<compile_context>
chip_gen: v6e
topology: v6e:2x2x1
jax: 0.10.0
libtpu: 0.0.40
codegen_flags: <defaults>
</compile_context>

<pallas_src>
import functools
import math

import jax
import jax.numpy as jnp
from jax.experimental import pallas as pl
from jax.experimental.pallas import tpu as pltpu

EPS = 1e-8
_TILE_BUDGET = 12 * 1024 * 1024        # per-step block budget (double-buffering headroom)


# ---------------------------------------------------------------------------
# helpers
# ---------------------------------------------------------------------------
def _round_up(x, m):
    return (x + m - 1) // m * m


@functools.lru_cache(maxsize=None)
def _vmem_limit_bytes():
    # Stay well below physical VMEM (64 MiB/TC on v7x, 128 MiB on v5e/v6e) so Mosaic keeps
    # headroom for internal scratch / spill.
    try:
        cap = int(getattr(pltpu.get_tpu_info(), "vmem_capacity_bytes", 128 * 1024 * 1024))
    except Exception:
        cap = 64 * 1024 * 1024
    return int(min(cap * 3 // 4, 96 * 1024 * 1024))


def _compiler_params():
    return pltpu.CompilerParams(
        dimension_semantics=("parallel",),
        vmem_limit_bytes=_vmem_limit_bytes())


def _pick_row_tile(n, row_bytes, max_tile=512, budget=_TILE_BUDGET, min_steps=8):
    """Largest row tile (multiple of 8) that fits the VMEM budget while keeping at least
    `min_steps` grid steps (pipeline overlap + work for both v7x TensorCores)."""
    t = max(8, min(max_tile, budget // max(row_bytes, 1)))
    per_step = _round_up(max(1, -(-n // min_steps)), 8)   # ceil(n / min_steps), 8-aligned
    t = min(t, per_step)
    t = max(8, (t // 8) * 8)
    t = min(t, _round_up(n, 8))
    return t


def _pad_rows(x, n_pad):
    pad = n_pad - x.shape[0]
    if pad == 0:
        return x
    return jnp.pad(x, ((0, pad), (0, 0)))


def _quat_rotate(px, py, pz, qw, qx, qy, qz):
    """Rotate points (px,py,pz) by unit quaternion (qw,qx,qy,qz): p' = p + 2*qv x (qv x p + w*p)."""
    cx = qy * pz - qz * py + qw * px
    cy = qz * px - qx * pz + qw * py
    cz = qx * py - qy * px + qw * pz
    rx = px + 2.0 * (qy * cz - qz * cy)
    ry = py + 2.0 * (qz * cx - qx * cz)
    rz = pz + 2.0 * (qx * cy - qy * cx)
    return rx, ry, rz


def _head_segment_matrix(nh, d):
    """[nh*d, nh] 0/1 matrix: column layout is head-major, so x @ M = per-head sum."""
    col = jnp.arange(nh * d) // d
    return (col[:, None] == jnp.arange(nh)[None, :]).astype(jnp.float32)


# ---------------------------------------------------------------------------
# Kernel A: fused node projections + one wide rotation/translation, slice stores
# ---------------------------------------------------------------------------
def _node_proj_kernel(s_ref, qt_ref, w_ref, main_ref, qk_ref, *, hs, hq, hv):
    f32 = jnp.float32
    h = jnp.dot(s_ref[...], w_ref[...], preferred_element_type=f32)
    qt = qt_ref[...]
    qw, qx, qy, qz = qt[:, 0:1], qt[:, 1:2], qt[:, 2:3], qt[:, 3:4]
    tx, ty, tz = qt[:, 4:5], qt[:, 5:6], qt[:, 6:7]

    # scalar q/k/v slabs pass straight through (one wide, lane-dense slice store).
    main_ref[:, 0:3 * hs] = h[:, 0:3 * hs].astype(main_ref.dtype)

    # one wide quaternion rotation over the [q_vec | k_vec | v_vec] point slabs.
    wp = 2 * hq + hv
    off = 3 * hs
    px = h[:, off:off + wp]
    py = h[:, off + wp:off + 2 * wp]
    pz = h[:, off + 2 * wp:off + 3 * wp]
    rx, ry, rz = _quat_rotate(px, py, pz, qw, qx, qy, qz)
    rx = rx + tx
    ry = ry + ty
    rz = rz + tz

    # q_vec / k_vec stay f32: they feed the point-attention squared-distance term
    # where bf16 would cancel badly against large translations.
    qk_ref[:, 0 * hq:1 * hq] = rx[:, 0:hq]
    qk_ref[:, 1 * hq:2 * hq] = ry[:, 0:hq]
    qk_ref[:, 2 * hq:3 * hq] = rz[:, 0:hq]
    qk_ref[:, 3 * hq:4 * hq] = rx[:, hq:2 * hq]
    qk_ref[:, 4 * hq:5 * hq] = ry[:, hq:2 * hq]
    qk_ref[:, 5 * hq:6 * hq] = rz[:, hq:2 * hq]

    # v_vec only feeds the f32 segment-sum aggregation -> store in the compute dtype.
    main_ref[:, 3 * hs + 0 * hv:3 * hs + 1 * hv] = rx[:, 2 * hq:wp].astype(main_ref.dtype)
    main_ref[:, 3 * hs + 1 * hv:3 * hs + 2 * hv] = ry[:, 2 * hq:wp].astype(main_ref.dtype)
    main_ref[:, 3 * hs + 2 * hv:3 * hs + 3 * hv] = rz[:, 2 * hq:wp].astype(main_ref.dtype)


def _node_proj(s, qt, w_perm, *, hs, hq, hv, compute_dtype):
    n, s_dim = s.shape
    d_total = w_perm.shape[1]
    d_main = 3 * hs + 3 * hv
    d_qk = 6 * hq
    itb = jnp.dtype(compute_dtype).itemsize
    row_bytes = s_dim * itb + 8 * 4 + d_main * itb + d_qk * 4
    tm = _pick_row_tile(n, row_bytes)
    n_pad = _round_up(n, tm)
    s_p = _pad_rows(s.astype(compute_dtype), n_pad)
    qt_p = _pad_rows(qt, n_pad)

    cost = pl.CostEstimate(
        flops=2 * n_pad * s_dim * d_total + 30 * n_pad * (2 * hq + hv),
        transcendentals=0,
        bytes_accessed=n_pad * row_bytes + s_dim * d_total * itb)

    main, qk = pl.pallas_call(
        functools.partial(_node_proj_kernel, hs=hs, hq=hq, hv=hv),
        out_shape=(jax.ShapeDtypeStruct((n_pad, d_main), compute_dtype),
                   jax.ShapeDtypeStruct((n_pad, d_qk), jnp.float32)),
        grid_spec=pltpu.PrefetchScalarGridSpec(
            num_scalar_prefetch=0,
            grid=(n_pad // tm,),
            in_specs=[pl.BlockSpec((tm, s_dim), lambda i: (i, 0)),
                      pl.BlockSpec((tm, 8), lambda i: (i, 0)),
                      pl.BlockSpec((s_dim, d_total), lambda i: (0, 0))],
            out_specs=[pl.BlockSpec((tm, d_main), lambda i: (i, 0)),
                       pl.BlockSpec((tm, d_qk), lambda i: (i, 0))]),
        compiler_params=_compiler_params(),
        cost_estimate=cost,
    )(s_p, qt_p, w_perm.astype(compute_dtype))
    return main[:n], qk[:n]


# ---------------------------------------------------------------------------
# Kernel B: per-edge attention logits + down-projected pair features
# (all scales folded into the weights; per-head reductions in f32)
# ---------------------------------------------------------------------------
def _edge_attn_kernel(z_ref, ks_ref, qs_ref, qv_ref, kv_ref,
                      wz_ref, segs_ref, segq_ref, bias_ref, o_ref, *, hq):
    f32 = jnp.float32
    # z -> [c_bias*linear_b | down_z]
    acc = jnp.dot(z_ref[...], wz_ref[...], preferred_element_type=f32)
    # scalar attention: per-head dot of k_scalar[i] * q_scalar[j] (ones-block matmul, f32).
    prod = ks_ref[...].astype(f32) * qs_ref[...].astype(f32)
    acc = acc + jnp.dot(prod, segs_ref[...], preferred_element_type=f32)
    # point attention: squared distance of f32 rotated+translated points (scale in segq).
    d = qv_ref[...] - kv_ref[...]
    dx, dy, dz = d[:, 0:hq], d[:, hq:2 * hq], d[:, 2 * hq:3 * hq]
    sq = dx * dx + dy * dy + dz * dz
    acc = acc + jnp.dot(sq, segq_ref[...], preferred_element_type=f32)
    acc = acc + bias_ref[...]
    o_ref[...] = acc.astype(o_ref.dtype)


def _edge_attn(z, ks_i, qs_j, qv_i, kv_j, wz, seg_s, seg_q, bias_row, *, nh, compute_dtype):
    e, z_dim = z.shape
    hs = ks_i.shape[1]
    hq = qv_i.shape[1] // 3
    d_out = wz.shape[1]
    itb = jnp.dtype(compute_dtype).itemsize
    row_bytes = (z_dim + 2 * hs) * itb + 6 * hq * 4 + d_out * 4
    te = _pick_row_tile(e, row_bytes, max_tile=2048)
    e_pad = _round_up(e, te)

    z_p = _pad_rows(z.astype(compute_dtype), e_pad)
    ks_p = _pad_rows(ks_i, e_pad)
    qs_p = _pad_rows(qs_j, e_pad)
    qv_p = _pad_rows(qv_i, e_pad)
    kv_p = _pad_rows(kv_j, e_pad)

    cost = pl.CostEstimate(
        flops=2 * e_pad * (z_dim + hs + hq) * d_out + 10 * e_pad * (hs + 3 * hq),
        transcendentals=0,
        bytes_accessed=e_pad * row_bytes + (z_dim + hs + hq + 1) * d_out * 4)

    out = pl.pallas_call(
        functools.partial(_edge_attn_kernel, hq=hq),
        out_shape=jax.ShapeDtypeStruct((e_pad, d_out), jnp.float32),
        grid_spec=pltpu.PrefetchScalarGridSpec(
            num_scalar_prefetch=0,
            grid=(e_pad // te,),
            in_specs=[pl.BlockSpec((te, z_dim), lambda i: (i, 0)),
                      pl.BlockSpec((te, hs), lambda i: (i, 0)),
                      pl.BlockSpec((te, hs), lambda i: (i, 0)),
                      pl.BlockSpec((te, 3 * hq), lambda i: (i, 0)),
                      pl.BlockSpec((te, 3 * hq), lambda i: (i, 0)),
                      pl.BlockSpec((z_dim, d_out), lambda i: (0, 0)),
                      pl.BlockSpec((hs, d_out), lambda i: (0, 0)),
                      pl.BlockSpec((hq, d_out), lambda i: (0, 0)),
                      pl.BlockSpec((1, d_out), lambda i: (0, 0))],
            out_specs=pl.BlockSpec((te, d_out), lambda i: (i, 0))),
        compiler_params=_compiler_params(),
        cost_estimate=cost,
    )(z_p, ks_p, qs_p, qv_p, kv_p,
      wz.astype(compute_dtype), seg_s, seg_q, bias_row)
    return out[:e, :nh], out[:e, nh:]


# ---------------------------------------------------------------------------
# Kernel C: inverse rigid transform, point norms, per-slab matmuls against linear_out
# ---------------------------------------------------------------------------
def _node_out_kernel(os_ref, ov_ref, op_ref, qt_ref, w_ref, b_ref, o_ref, *, hs, hv):
    cdt = w_ref.dtype
    f32 = jnp.float32
    hp = op_ref.shape[1]
    qt = qt_ref[...]
    qw, qx, qy, qz = qt[:, 0:1], -qt[:, 1:2], -qt[:, 2:3], -qt[:, 3:4]   # conjugate quaternion
    tx, ty, tz = qt[:, 4:5], qt[:, 5:6], qt[:, 6:7]

    ov = ov_ref[...]
    px = ov[:, 0:hv] - tx
    py = ov[:, hv:2 * hv] - ty
    pz = ov[:, 2 * hv:3 * hv] - tz
    rx, ry, rz = _quat_rotate(px, py, pz, qw, qx, qy, qz)
    norms = jnp.sqrt(rx * rx + ry * ry + rz * rz + EPS)
    vec_feats = jnp.concatenate([rx, ry, rz, norms], axis=-1)            # [tm, 4*hv]

    # per-slab dots against row blocks of w_out instead of one wide concat + matmul.
    out = jnp.dot(os_ref[...], w_ref[0:hs, :], preferred_element_type=f32)
    out = out + jnp.dot(vec_feats.astype(cdt), w_ref[hs:hs + 4 * hv, :],
                        preferred_element_type=f32)
    out = out + jnp.dot(op_ref[...], w_ref[hs + 4 * hv:hs + 4 * hv + hp, :],
                        preferred_element_type=f32)
    out = out + b_ref[...]
    o_ref[...] = out.astype(o_ref.dtype)


def _node_out(out_scalar, out_vec, out_pair, qt, w_out, b_out, *, hs, hv, s_dim, compute_dtype):
    n = out_scalar.shape[0]
    hp = out_pair.shape[1]
    dcat = w_out.shape[0]
    itb = jnp.dtype(compute_dtype).itemsize
    row_bytes = (hs + hp) * itb + 3 * hv * 4 + 8 * 4 + s_dim * 4
    tm = _pick_row_tile(n, row_bytes)
    n_pad = _round_up(n, tm)

    cost = pl.CostEstimate(
        flops=2 * n_pad * dcat * s_dim + 40 * n_pad * hv,
        transcendentals=n_pad * hv,
        bytes_accessed=n_pad * row_bytes + dcat * s_dim * itb)

    out = pl.pallas_call(
        functools.partial(_node_out_kernel, hs=hs, hv=hv),
        out_shape=jax.ShapeDtypeStruct((n_pad, s_dim), jnp.float32),
        grid_spec=pltpu.PrefetchScalarGridSpec(
            num_scalar_prefetch=0,
            grid=(n_pad // tm,),
            in_specs=[pl.BlockSpec((tm, hs), lambda i: (i, 0)),
                      pl.BlockSpec((tm, 3 * hv), lambda i: (i, 0)),
                      pl.BlockSpec((tm, hp), lambda i: (i, 0)),
                      pl.BlockSpec((tm, 8), lambda i: (i, 0)),
                      pl.BlockSpec((dcat, s_dim), lambda i: (0, 0)),
                      pl.BlockSpec((1, s_dim), lambda i: (0, 0))],
            out_specs=pl.BlockSpec((tm, s_dim), lambda i: (i, 0))),
        compiler_params=_compiler_params(),
        cost_estimate=cost,
    )(_pad_rows(out_scalar.astype(compute_dtype), n_pad),
      _pad_rows(out_vec, n_pad),
      _pad_rows(out_pair.astype(compute_dtype), n_pad),
      _pad_rows(qt, n_pad),
      w_out.astype(compute_dtype), b_out.reshape(1, s_dim).astype(jnp.float32))
    return out[:n]


# ---------------------------------------------------------------------------
# Full forward
# ---------------------------------------------------------------------------
@functools.partial(jax.jit, static_argnames=("num_heads", "qk_dim", "v_dim", "compute_dtype"))
def invariant_point_attention(s, z, edge_index, quaternion, translation, params,
                              *, num_heads, qk_dim, v_dim, compute_dtype=jnp.bfloat16):
    """s:[N,s_dim], z:[E,z_dim], edge_index:[2,E], quaternion:[N,4] (unit), translation:[N,3]."""
    w_all, w_bz, b_bz, head_weights, w_out, b_out = params
    n, s_dim = s.shape
    e, z_dim = z.shape
    zq = z_dim // 4
    nh = num_heads
    hs, hq, hv = nh * s_dim, nh * qk_dim, nh * v_dim

    idx_i = edge_index[0]
    idx_j = edge_index[1]

    # packed per-node rigid transform: [w, x, y, z, tx, ty, tz, pad]
    qt = jnp.concatenate(
        [quaternion.astype(jnp.float32), translation.astype(jnp.float32),
         jnp.zeros((n, 1), jnp.float32)], axis=-1)

    # permute w_all's point columns so all x / y / z components (across q/k/v vectors) are
    # contiguous -> a single wide quaternion rotation per tile inside Kernel A.
    o = 3 * hs
    wq_v = w_all[:, o:o + 3 * hq]
    wk_v = w_all[:, o + 3 * hq:o + 6 * hq]
    wv_v = w_all[:, o + 6 * hq:o + 6 * hq + 3 * hv]

    def _xyz(w, width):
        return w[:, :width], w[:, width:2 * width], w[:, 2 * width:3 * width]

    qx_, qy_, qz_ = _xyz(wq_v, hq)
    kx_, ky_, kz_ = _xyz(wk_v, hq)
    vx_, vy_, vz_ = _xyz(wv_v, hv)
    w_perm = jnp.concatenate(
        [w_all[:, :3 * hs], qx_, kx_, vx_, qy_, ky_, vy_, qz_, kz_, vz_], axis=1)

    # ---- Kernel A: fused projections + rotation/translation of the point features.
    main, qkp = _node_proj(s, qt, w_perm, hs=hs, hq=hq, hv=hv, compute_dtype=compute_dtype)
    q_scalar = main[:, 0:hs]
    k_scalar = main[:, hs:2 * hs]
    v_scalar = main[:, 2 * hs:3 * hs]
    v_vec = main[:, 3 * hs:]          # [vv_x | vv_y | vv_z], compute dtype
    q_vec = qkp[:, :3 * hq]           # f32 [qx | qy | qz]
    k_vec = qkp[:, 3 * hq:]           # f32 [kx | ky | kz]

    # TODO(synk): edge gather stays in XLA; an in-kernel DMA gather (scalar-prefetched indices,
    # node tables in HBM via memory_space=pl.ANY) would remove the E-row intermediates.
    ks_i = k_scalar[idx_i]
    qs_j = q_scalar[idx_j]
    qv_i = q_vec[idx_i]
    kv_j = k_vec[idx_j]

    # fold every attention scale (and softplus(head_weights)) into the reduction weights once.
    c_scalar = math.sqrt(1.0 / 3 * qk_dim)   # verbatim module expression (== sqrt(qk_dim/3))
    c_bias = math.sqrt(1.0 / 3)
    c_point = math.sqrt(1.0 / (3 * (qk_dim * 9.0 / 2)))
    hw = jax.nn.softplus(head_weights.astype(jnp.float32))
    scale_cols = jnp.concatenate([jnp.full((nh,), c_bias, jnp.float32),
                                  jnp.ones((zq,), jnp.float32)])
    wz_comb = w_bz * scale_cols[None, :]
    bias_row = (b_bz * scale_cols).reshape(1, nh + zq).astype(jnp.float32)
    seg_s = jnp.concatenate(
        [c_scalar * _head_segment_matrix(nh, s_dim), jnp.zeros((hs, zq), jnp.float32)], axis=1)
    seg_q = jnp.concatenate(
        [_head_segment_matrix(nh, qk_dim) * ((-0.5 * c_point) * hw)[None, :],
         jnp.zeros((hq, zq), jnp.float32)], axis=1)

    # ---- Kernel B: attention logits + down-projected pair features.
    logits, pair = _edge_attn(z, ks_i, qs_j, qv_i, kv_j, wz_comb, seg_s, seg_q, bias_row,
                              nh=nh, compute_dtype=compute_dtype)

    # ---- scatter softmax over destination node (XLA segment ops).
    # TODO(synk): fuse scatter-softmax + weighted segment sums into one Pallas kernel once
    # edges are destination-sorted with CSR offsets (scalar prefetch).
    seg_max = jax.ops.segment_max(logits, idx_i, num_segments=n)
    seg_max = jnp.where(jnp.isfinite(seg_max), seg_max, 0.0)
    ex = jnp.exp(logits - seg_max[idx_i])
    denom = jax.ops.segment_sum(ex, idx_i, num_segments=n)
    attn = ex / (denom[idx_i] + 1e-16)

    # ---- weighted segment-sum aggregation, broadcast-reshape form (no repeat/concat copies).
    v_s_i = v_scalar[idx_i].astype(jnp.float32).reshape(e, nh, s_dim)
    out_scalar = jax.ops.segment_sum(attn[:, :, None] * v_s_i, idx_i,
                                     num_segments=n).reshape(n, hs)
    v_v_i = v_vec[idx_i].astype(jnp.float32).reshape(e, 3, nh, v_dim)
    out_vec = jax.ops.segment_sum(attn[:, None, :, None] * v_v_i, idx_i,
                                  num_segments=n).reshape(n, 3 * hv)
    out_pair = jax.ops.segment_sum(
        (attn[:, :, None] * pair[:, None, :]).reshape(e, nh * zq), idx_i, num_segments=n)

    # ---- Kernel C: inverse rigid transform, point norms, linear_out.
    return _node_out(out_scalar, out_vec, out_pair, qt, w_out, b_out,
                     hs=hs, hv=hv, s_dim=s_dim, compute_dtype=compute_dtype)


# ---------------------------------------------------------------------------
# synthetic params + pure-JAX reference
# ---------------------------------------------------------------------------
def init_params(key, *, s_dim, z_dim, qk_dim, v_dim, num_heads):
    nh = num_heads
    zq = z_dim // 4
    hs, hq, hv = nh * s_dim, nh * qk_dim, nh * v_dim
    dcat = hs + 4 * hv + nh * zq
    k = jax.random.split(key, 10)

    def w(kk, fan_in, fan_out, scale):
        return jax.random.normal(kk, (fan_in, fan_out), jnp.float32) * scale

    sq = 1.0 / s_dim                      # keep demo logits well-conditioned
    sv = 1.0 / math.sqrt(s_dim)
    # [Wq_s | Wk_s | Wv_s | Wq_v | Wk_v | Wv_v], stored [c_in, c_out]
    w_all = jnp.concatenate([
        w(k[0], s_dim, hs, sq), w(k[1], s_dim, hs, sq), w(k[2], s_dim, hs, sv),
        w(k[3], s_dim, 3 * hq, sq), w(k[4], s_dim, 3 * hq, sq), w(k[5], s_dim, 3 * hv, sv)],
        axis=1)
    w_bz = w(k[6], z_dim, nh + zq, 1.0 / math.sqrt(z_dim))       # [linear_b | down_z]
    b_bz = jax.random.normal(k[7], (nh + zq,), jnp.float32) * 0.1
    head_weights = jnp.full((nh,), math.log(math.e - 1.0), jnp.float32)  # softplus -> 1.0
    # NOTE: the module uses init='final' (zeros) for linear_out; random here so the
    # correctness check exercises the whole pipeline.
    w_out = w(k[8], dcat, s_dim, 1.0 / math.sqrt(dcat))
    b_out = jax.random.normal(k[9], (s_dim,), jnp.float32) * 0.1
    return (w_all, w_bz, b_bz, head_weights, w_out, b_out)


def _reference(s, z, edge_index, quaternion, translation, params, *, num_heads, qk_dim, v_dim):
    w_all, w_bz, b_bz, head_weights, w_out, b_out = params
    n, s_dim = s.shape
    e, z_dim = z.shape
    zq = z_dim // 4
    nh = num_heads
    hs, hq, hv = nh * s_dim, nh * qk_dim, nh * v_dim
    idx_i, idx_j = edge_index[0], edge_index[1]

    proj = s @ w_all
    q_s = proj[:, :hs].reshape(n, nh, s_dim)
    k_s = proj[:, hs:2 * hs].reshape(n, nh, s_dim)
    v_s = proj[:, 2 * hs:3 * hs].reshape(n, nh, s_dim)

    qw, qx, qy, qz = (quaternion[:, i:i + 1] for i in range(4))
    tx, ty, tz = (translation[:, i:i + 1] for i in range(3))

    def rot_fwd(raw, width):
        px, py, pz = raw[:, :width], raw[:, width:2 * width], raw[:, 2 * width:]
        rx, ry, rz = _quat_rotate(px, py, pz, qw, qx, qy, qz)
        return rx + tx, ry + ty, rz + tz

    o = 3 * hs
    qvx, qvy, qvz = rot_fwd(proj[:, o:o + 3 * hq], hq)
    kvx, kvy, kvz = rot_fwd(proj[:, o + 3 * hq:o + 6 * hq], hq)
    vvx, vvy, vvz = rot_fwd(proj[:, o + 6 * hq:o + 6 * hq + 3 * hv], hv)

    zproj = z @ w_bz + b_bz
    b = zproj[:, :nh]
    pair_z = zproj[:, nh:]

    attn = (k_s[idx_i] * q_s[idx_j]).sum(-1) * math.sqrt(1.0 / 3 * qk_dim)
    attn = attn + math.sqrt(1.0 / 3) * b

    dx = qvx[idx_i] - kvx[idx_j]
    dy = qvy[idx_i] - kvy[idx_j]
    dz = qvz[idx_i] - kvz[idx_j]
    sq = (dx * dx + dy * dy + dz * dz).reshape(e, nh, qk_dim)
    hw = jax.nn.softplus(head_weights)
    pt = sq.sum(-1) * hw[None, :] * math.sqrt(1.0 / (3 * (qk_dim * 9.0 / 2)))
    attn = attn + (-0.5) * pt

    seg_max = jax.ops.segment_max(attn, idx_i, num_segments=n)
    seg_max = jnp.where(jnp.isfinite(seg_max), seg_max, 0.0)
    ex = jnp.exp(attn - seg_max[idx_i])
    den = jax.ops.segment_sum(ex, idx_i, num_segments=n)
    attn = ex / (den[idx_i] + 1e-16)

    out_scalar = jax.ops.segment_sum(
        attn[:, :, None] * v_s[idx_i], idx_i, num_segments=n).reshape(n, hs)

    attn_v = jnp.repeat(attn, v_dim, axis=1)
    ovx = jax.ops.segment_sum(attn_v * vvx[idx_i], idx_i, num_segments=n) - tx
    ovy = jax.ops.segment_sum(attn_v * vvy[idx_i], idx_i, num_segments=n) - ty
    ovz = jax.ops.segment_sum(attn_v * vvz[idx_i], idx_i, num_segments=n) - tz
    rx, ry, rz = _quat_rotate(ovx, ovy, ovz, qw, -qx, -qy, -qz)
    norms = jnp.sqrt(rx * rx + ry * ry + rz * rz + EPS)

    out_pair = jax.ops.segment_sum(
        (attn[:, :, None] * pair_z[:, None, :]).reshape(e, nh * zq), idx_i, num_segments=n)

    cat = jnp.concatenate([out_scalar, rx, ry, rz, norms, out_pair], axis=-1)
    return cat @ w_out + b_out


# ---------------------------------------------------------------------------
if __name__ == "__main__":
    key = jax.random.PRNGKey(0)
    k_s, k_z, k_e1, k_e2, k_q, k_t, k_p = jax.random.split(key, 7)

    # small, module-consistent shapes (feature dims small, enough rows for multi-step grids)
    N, E = 1024, 4096
    s_dim, z_dim, qk_dim, v_dim, num_heads = 32, 16, 8, 8, 4

    s = jax.random.normal(k_s, (N, s_dim), jnp.float32)
    z = jax.random.normal(k_z, (E, z_dim), jnp.float32)
    idx_i = jax.random.randint(k_e1, (E,), 0, N, dtype=jnp.int32)
    idx_j = jax.random.randint(k_e2, (E,), 0, N, dtype=jnp.int32)
    edge_index = jnp.stack([idx_i, idx_j], axis=0)
    quaternion = jax.random.normal(k_q, (N, 4), jnp.float32)
    quaternion = quaternion / jnp.linalg.norm(quaternion, axis=-1, keepdims=True)
    translation = jax.random.normal(k_t, (N, 3), jnp.float32)
    params = init_params(k_p, s_dim=s_dim, z_dim=z_dim, qk_dim=qk_dim,
                         v_dim=v_dim, num_heads=num_heads)

    ref = jax.block_until_ready(
        _reference(s, z, edge_index, quaternion, translation, params,
                   num_heads=num_heads, qk_dim=qk_dim, v_dim=v_dim))
    ref_scale = float(jnp.max(jnp.abs(ref))) + 1e-6

    # default performance path: bf16 MXU operands / storage, f32 for the point-geometry math
    out_bf16 = jax.block_until_ready(
        invariant_point_attention(s, z, edge_index, quaternion, translation, params,
                                  num_heads=num_heads, qk_dim=qk_dim, v_dim=v_dim,
                                  compute_dtype=jnp.bfloat16))
    assert out_bf16.shape == (N, s_dim)
    assert bool(jnp.all(jnp.isfinite(out_bf16)))
    assert float(jnp.max(jnp.abs(out_bf16 - ref))) < 0.05 * ref_scale + 1e-2, \
        "bf16 path deviates too far from reference"

    # f32 path for a tight numerical check of the kernel logic
    out_f32 = jax.block_until_ready(
        invariant_point_attention(s, z, edge_index, quaternion, translation, params,
                                  num_heads=num_heads, qk_dim=qk_dim, v_dim=v_dim,
                                  compute_dtype=jnp.float32))
    assert float(jnp.max(jnp.abs(out_f32 - ref))) < 1e-2 * ref_scale + 1e-3, \
        "f32 path mismatch vs reference"

    print("KERNEL_OK")
</pallas_src>

<mosaic_0001>
module attributes {stable_mosaic.version = 11 : i64} {
  func.func @_node_proj_kernel(%arg0: i32, %arg1: memref<128x32xbf16, #tpu.memory_space<vmem>>, %arg2: memref<128x8xf32, #tpu.memory_space<vmem>>, %arg3: memref<32x672xbf16, #tpu.memory_space<vmem>>, %arg4: memref<128x480xbf16, #tpu.memory_space<vmem>>, %arg5: memref<128x192xf32, #tpu.memory_space<vmem>>) attributes {dimension_semantics = [#tpu.dimension_semantics<parallel>], iteration_bounds = array<i64: 8>, scalar_prefetch = 0 : i64, scratch_operands = 0 : i64, tpu.core_type = #tpu.core_type<tc>, window_params = [{transform_indices = @transform_0, window_bounds = array<i64: 128, 32>}, {transform_indices = @transform_1, window_bounds = array<i64: 128, 8>}, {pipeline_mode = #tpu.pipeline_mode<synchronous>, transform_indices = @transform_2, window_bounds = array<i64: 32, 672>}, {transform_indices = @transform_3, window_bounds = array<i64: 128, 480>}, {transform_indices = @transform_4, window_bounds = array<i64: 128, 192>}]} {
    %c0 = arith.constant 0 : index
    %c0_0 = arith.constant 0 : index
    %0 = vector.load %arg1[%c0, %c0_0] : memref<128x32xbf16, #tpu.memory_space<vmem>>, vector<128x32xbf16>
    %c0_1 = arith.constant 0 : index
    %c0_2 = arith.constant 0 : index
    %1 = vector.load %arg3[%c0_1, %c0_2] : memref<32x672xbf16, #tpu.memory_space<vmem>>, vector<32x672xbf16>
    %cst = arith.constant dense<0.000000e+00> : vector<128x672xf32>
    %2 = tpu.matmul %0, %1, %cst {dimension_numbers = #tpu.dot_dimension_numbers<[1], [0], [0], [1], [0, 0, 1, 1], [], []>} : vector<128x32xbf16>, vector<32x672xbf16>, vector<128x672xf32> -> vector<128x672xf32>
    %c0_3 = arith.constant 0 : index
    %c0_4 = arith.constant 0 : index
    %3 = vector.load %arg2[%c0_3, %c0_4] : memref<128x8xf32, #tpu.memory_space<vmem>>, vector<128x8xf32>
    %4 = vector.extract_strided_slice %3 {offsets = [0, 0], sizes = [128, 1], strides = [1, 1]} : vector<128x8xf32> to vector<128x1xf32>
    %5 = vector.extract_strided_slice %3 {offsets = [0, 1], sizes = [128, 1], strides = [1, 1]} : vector<128x8xf32> to vector<128x1xf32>
    %6 = vector.extract_strided_slice %3 {offsets = [0, 2], sizes = [128, 1], strides = [1, 1]} : vector<128x8xf32> to vector<128x1xf32>
    %7 = vector.extract_strided_slice %3 {offsets = [0, 3], sizes = [128, 1], strides = [1, 1]} : vector<128x8xf32> to vector<128x1xf32>
    %8 = vector.extract_strided_slice %3 {offsets = [0, 4], sizes = [128, 1], strides = [1, 1]} : vector<128x8xf32> to vector<128x1xf32>
    %9 = vector.extract_strided_slice %3 {offsets = [0, 5], sizes = [128, 1], strides = [1, 1]} : vector<128x8xf32> to vector<128x1xf32>
    %10 = vector.extract_strided_slice %3 {offsets = [0, 6], sizes = [128, 1], strides = [1, 1]} : vector<128x8xf32> to vector<128x1xf32>
    %11 = vector.extract_strided_slice %2 {offsets = [0, 0], sizes = [128, 384], strides = [1, 1]} : vector<128x672xf32> to vector<128x384xf32>
    %12 = arith.truncf %11 : vector<128x384xf32> to vector<128x384xbf16>
    %c0_5 = arith.constant 0 : index
    %c0_6 = arith.constant 0 : index
    %13 = vector.load %arg4[%c0_5, %c0_6] : memref<128x480xbf16, #tpu.memory_space<vmem>>, vector<128x384xbf16>
    tpu.vector_store %arg4[%c0_5, %c0_6], %12 {strides = array<i32>} : memref<128x480xbf16, #tpu.memory_space<vmem>>, vector<128x384xbf16>,
    %14 = vector.extract_strided_slice %2 {offsets = [0, 384], sizes = [128, 96], strides = [1, 1]} : vector<128x672xf32> to vector<128x96xf32>
    %15 = vector.extract_strided_slice %2 {offsets = [0, 480], sizes = [128, 96], strides = [1, 1]} : vector<128x672xf32> to vector<128x96xf32>
    %16 = vector.extract_strided_slice %2 {offsets = [0, 576], sizes = [128, 96], strides = [1, 1]} : vector<128x672xf32> to vector<128x96xf32>
    %17 = vector.broadcast %6 : vector<128x1xf32> to vector<128x96xf32>
    %18 = arith.mulf %17, %16 : vector<128x96xf32>
    %19 = vector.broadcast %7 : vector<128x1xf32> to vector<128x96xf32>
    %20 = arith.mulf %19, %15 : vector<128x96xf32>
    %21 = arith.subf %18, %20 : vector<128x96xf32>
    %22 = vector.broadcast %4 : vector<128x1xf32> to vector<128x96xf32>
    %23 = arith.mulf %22, %14 : vector<128x96xf32>
    %24 = arith.addf %21, %23 : vector<128x96xf32>
    %25 = vector.broadcast %7 : vector<128x1xf32> to vector<128x96xf32>
    %26 = arith.mulf %25, %14 : vector<128x96xf32>
    %27 = vector.broadcast %5 : vector<128x1xf32> to vector<128x96xf32>
    %28 = arith.mulf %27, %16 : vector<128x96xf32>
    %29 = arith.subf %26, %28 : vector<128x96xf32>
    %30 = vector.broadcast %4 : vector<128x1xf32> to vector<128x96xf32>
    %31 = arith.mulf %30, %15 : vector<128x96xf32>
    %32 = arith.addf %29, %31 : vector<128x96xf32>
    %33 = vector.broadcast %5 : vector<128x1xf32> to vector<128x96xf32>
    %34 = arith.mulf %33, %15 : vector<128x96xf32>
    %35 = vector.broadcast %6 : vector<128x1xf32> to vector<128x96xf32>
    %36 = arith.mulf %35, %14 : vector<128x96xf32>
    %37 = arith.subf %34, %36 : vector<128x96xf32>
    %38 = vector.broadcast %4 : vector<128x1xf32> to vector<128x96xf32>
    %39 = arith.mulf %38, %16 : vector<128x96xf32>
    %40 = arith.addf %37, %39 : vector<128x96xf32>
    %41 = vector.broadcast %6 : vector<128x1xf32> to vector<128x96xf32>
    %42 = arith.mulf %41, %40 : vector<128x96xf32>
    %43 = vector.broadcast %7 : vector<128x1xf32> to vector<128x96xf32>
    %44 = arith.mulf %43, %32 : vector<128x96xf32>
    %45 = arith.subf %42, %44 : vector<128x96xf32>
    %cst_7 = arith.constant 2.000000e+00 : f32
    %46 = vector.broadcast %cst_7 : f32 to vector<128x96xf32>
    %47 = arith.mulf %46, %45 : vector<128x96xf32>
    %48 = arith.addf %14, %47 : vector<128x96xf32>
    %49 = vector.broadcast %7 : vector<128x1xf32> to vector<128x96xf32>
    %50 = arith.mulf %49, %24 : vector<128x96xf32>
    %51 = vector.broadcast %5 : vector<128x1xf32> to vector<128x96xf32>
    %52 = arith.mulf %51, %40 : vector<128x96xf32>
    %53 = arith.subf %50, %52 : vector<128x96xf32>
    %cst_8 = arith.constant 2.000000e+00 : f32
    %54 = vector.broadcast %cst_8 : f32 to vector<128x96xf32>
    %55 = arith.mulf %54, %53 : vector<128x96xf32>
    %56 = arith.addf %15, %55 : vector<128x96xf32>
    %57 = vector.broadcast %5 : vector<128x1xf32> to vector<128x96xf32>
    %58 = arith.mulf %57, %32 : vector<128x96xf32>
    %59 = vector.broadcast %6 : vector<128x1xf32> to vector<128x96xf32>
    %60 = arith.mulf %59, %24 : vector<128x96xf32>
    %61 = arith.subf %58, %60 : vector<128x96xf32>
    %cst_9 = arith.constant 2.000000e+00 : f32
    %62 = vector.broadcast %cst_9 : f32 to vector<128x96xf32>
    %63 = arith.mulf %62, %61 : vector<128x96xf32>
    %64 = arith.addf %16, %63 : vector<128x96xf32>
    %65 = vector.broadcast %8 : vector<128x1xf32> to vector<128x96xf32>
    %66 = arith.addf %48, %65 : vector<128x96xf32>
    %67 = vector.broadcast %9 : vector<128x1xf32> to vector<128x96xf32>
    %68 = arith.addf %56, %67 : vector<128x96xf32>
    %69 = vector.broadcast %10 : vector<128x1xf32> to vector<128x96xf32>
    %70 = arith.addf %64, %69 : vector<128x96xf32>
    %71 = vector.extract_strided_slice %66 {offsets = [0, 0], sizes = [128, 32], strides = [1, 1]} : vector<128x96xf32> to vector<128x32xf32>
    %c0_10 = arith.constant 0 : index
    %c0_11 = arith.constant 0 : index
    %72 = vector.load %arg5[%c0_10, %c0_11] : memref<128x192xf32, #tpu.memory_space<vmem>>, vector<128x32xf32>
    tpu.vector_store %arg5[%c0_10, %c0_11], %71 {strides = array<i32>} : memref<128x192xf32, #tpu.memory_space<vmem>>, vector<128x32xf32>,
    %73 = vector.extract_strided_slice %68 {offsets = [0, 0], sizes = [128, 32], strides = [1, 1]} : vector<128x96xf32> to vector<128x32xf32>
    %c0_12 = arith.constant 0 : index
    %c32 = arith.constant 32 : index
    %74 = vector.load %arg5[%c0_12, %c32] : memref<128x192xf32, #tpu.memory_space<vmem>>, vector<128x32xf32>
    tpu.vector_store %arg5[%c0_12, %c32], %73 {strides = array<i32>} : memref<128x192xf32, #tpu.memory_space<vmem>>, vector<128x32xf32>,
    %75 = vector.extract_strided_slice %70 {offsets = [0, 0], sizes = [128, 32], strides = [1, 1]} : vector<128x96xf32> to vector<128x32xf32>
    %c0_13 = arith.constant 0 : index
    %c64 = arith.constant 64 : index
    %76 = vector.load %arg5[%c0_13, %c64] : memref<128x192xf32, #tpu.memory_space<vmem>>, vector<128x32xf32>
    tpu.vector_store %arg5[%c0_13, %c64], %75 {strides = array<i32>} : memref<128x192xf32, #tpu.memory_space<vmem>>, vector<128x32xf32>,
    %77 = vector.extract_strided_slice %66 {offsets = [0, 32], sizes = [128, 32], strides = [1, 1]} : vector<128x96xf32> to vector<128x32xf32>
    %c0_14 = arith.constant 0 : index
    %c96 = arith.constant 96 : index
    %78 = vector.load %arg5[%c0_14, %c96] : memref<128x192xf32, #tpu.memory_space<vmem>>, vector<128x32xf32>
    tpu.vector_store %arg5[%c0_14, %c96], %77 {strides = array<i32>} : memref<128x192xf32, #tpu.memory_space<vmem>>, vector<128x32xf32>,
    %79 = vector.extract_strided_slice %68 {offsets = [0, 32], sizes = [128, 32], strides = [1, 1]} : vector<128x96xf32> to vector<128x32xf32>
    %c0_15 = arith.constant 0 : index
    %c128 = arith.constant 128 : index
    %80 = vector.load %arg5[%c0_15, %c128] : memref<128x192xf32, #tpu.memory_space<vmem>>, vector<128x32xf32>
    tpu.vector_store %arg5[%c0_15, %c128], %79 {strides = array<i32>} : memref<128x192xf32, #tpu.memory_space<vmem>>, vector<128x32xf32>,
    %81 = vector.extract_strided_slice %70 {offsets = [0, 32], sizes = [128, 32], strides = [1, 1]} : vector<128x96xf32> to vector<128x32xf32>
    %c0_16 = arith.constant 0 : index
    %c160 = arith.constant 160 : index
    %82 = vector.load %arg5[%c0_16, %c160] : memref<128x192xf32, #tpu.memory_space<vmem>>, vector<128x32xf32>
    tpu.vector_store %arg5[%c0_16, %c160], %81 {strides = array<i32>} : memref<128x192xf32, #tpu.memory_space<vmem>>, vector<128x32xf32>,
    %83 = vector.extract_strided_slice %66 {offsets = [0, 64], sizes = [128, 32], strides = [1, 1]} : vector<128x96xf32> to vector<128x32xf32>
    %84 = arith.truncf %83 : vector<128x32xf32> to vector<128x32xbf16>
    %c0_17 = arith.constant 0 : index
    %c384 = arith.constant 384 : index
    %85 = vector.load %arg4[%c0_17, %c384] : memref<128x480xbf16, #tpu.memory_space<vmem>>, vector<128x32xbf16>
    tpu.vector_store %arg4[%c0_17, %c384], %84 {strides = array<i32>} : memref<128x480xbf16, #tpu.memory_space<vmem>>, vector<128x32xbf16>,
    %86 = vector.extract_strided_slice %68 {offsets = [0, 64], sizes = [128, 32], strides = [1, 1]} : vector<128x96xf32> to vector<128x32xf32>
    %87 = arith.truncf %86 : vector<128x32xf32> to vector<128x32xbf16>
    %c0_18 = arith.constant 0 : index
    %c416 = arith.constant 416 : index
    %88 = vector.load %arg4[%c0_18, %c416] : memref<128x480xbf16, #tpu.memory_space<vmem>>, vector<128x32xbf16>
    tpu.vector_store %arg4[%c0_18, %c416], %87 {strides = array<i32>} : memref<128x480xbf16, #tpu.memory_space<vmem>>, vector<128x32xbf16>,
    %89 = vector.extract_strided_slice %70 {offsets = [0, 64], sizes = [128, 32], strides = [1, 1]} : vector<128x96xf32> to vector<128x32xf32>
    %90 = arith.truncf %89 : vector<128x32xf32> to vector<128x32xbf16>
    %c0_19 = arith.constant 0 : index
    %c448 = arith.constant 448 : index
    %91 = vector.load %arg4[%c0_19, %c448] : memref<128x480xbf16, #tpu.memory_space<vmem>>, vector<128x32xbf16>
    tpu.vector_store %arg4[%c0_19, %c448], %90 {strides = array<i32>} : memref<128x480xbf16, #tpu.memory_space<vmem>>, vector<128x32xbf16>,
    return
  }
  func.func @transform_0(%arg0: i32) -> (i32, i32) {
    %c0_i32 = arith.constant 0 : i32
    %c0_i32_0 = arith.constant 0 : i32
    return %arg0, %c0_i32 : i32, i32
  }
  func.func @transform_1(%arg0: i32) -> (i32, i32) {
    %c0_i32 = arith.constant 0 : i32
    %c0_i32_0 = arith.constant 0 : i32
    return %arg0, %c0_i32 : i32, i32
  }
  func.func @transform_2(%arg0: i32) -> (i32, i32) {
    %c0_i32 = arith.constant 0 : i32
    %c0_i32_0 = arith.constant 0 : i32
    %c0_i32_1 = arith.constant 0 : i32
    return %c0_i32, %c0_i32_0 : i32, i32
  }
  func.func @transform_3(%arg0: i32) -> (i32, i32) {
    %c0_i32 = arith.constant 0 : i32
    %c0_i32_0 = arith.constant 0 : i32
    return %arg0, %c0_i32 : i32, i32
  }
  func.func @transform_4(%arg0: i32) -> (i32, i32) {
    %c0_i32 = arith.constant 0 : i32
    %c0_i32_0 = arith.constant 0 : i32
    return %arg0, %c0_i32 : i32, i32
  }
}

module attributes {stable_mosaic.version = 11 : i64} {
  func.func @_edge_attn_kernel(%arg0: i32, %arg1: memref<512x16xbf16, #tpu.memory_space<vmem>>, %arg2: memref<512x128xbf16, #tpu.memory_space<vmem>>, %arg3: memref<512x128xbf16, #tpu.memory_space<vmem>>, %arg4: memref<512x96xf32, #tpu.memory_space<vmem>>, %arg5: memref<512x96xf32, #tpu.memory_space<vmem>>, %arg6: memref<16x8xbf16, #tpu.memory_space<vmem>>, %arg7: memref<128x8xf32, #tpu.memory_space<vmem>>, %arg8: memref<32x8xf32, #tpu.memory_space<vmem>>, %arg9: memref<1x8xf32, #tpu.memory_space<vmem>>, %arg10: memref<512x8xf32, #tpu.memory_space<vmem>>) attributes {dimension_semantics = [#tpu.dimension_semantics<parallel>], iteration_bounds = array<i64: 8>, scalar_prefetch = 0 : i64, scratch_operands = 0 : i64, tpu.core_type = #tpu.core_type<tc>, window_params = [{transform_indices = @transform_0, window_bounds = array<i64: 512, 16>}, {transform_indices = @transform_1, window_bounds = array<i64: 512, 128>}, {transform_indices = @transform_2, window_bounds = array<i64: 512, 128>}, {transform_indices = @transform_3, window_bounds = array<i64: 512, 96>}, {transform_indices = @transform_4, window_bounds = array<i64: 512, 96>}, {pipeline_mode = #tpu.pipeline_mode<synchronous>, transform_indices = @transform_5, window_bounds = array<i64: 16, 8>}, {pipeline_mode = #tpu.pipeline_mode<synchronous>, transform_indices = @transform_6, window_bounds = array<i64: 128, 8>}, {pipeline_mode = #tpu.pipeline_mode<synchronous>, transform_indices = @transform_7, window_bounds = array<i64: 32, 8>}, {pipeline_mode = #tpu.pipeline_mode<synchronous>, transform_indices = @transform_8, window_bounds = array<i64: 1, 8>}, {transform_indices = @transform_9, window_bounds = array<i64: 512, 8>}]} {
    %c0 = arith.constant 0 : index
    %c0_0 = arith.constant 0 : index
    %0 = vector.load %arg1[%c0, %c0_0] : memref<512x16xbf16, #tpu.memory_space<vmem>>, vector<512x16xbf16>
    %c0_1 = arith.constant 0 : index
    %c0_2 = arith.constant 0 : index
    %1 = vector.load %arg6[%c0_1, %c0_2] : memref<16x8xbf16, #tpu.memory_space<vmem>>, vector<16x8xbf16>
    %cst = arith.constant dense<0.000000e+00> : vector<512x8xf32>
    %2 = tpu.matmul %0, %1, %cst {dimension_numbers = #tpu.dot_dimension_numbers<[1], [0], [0], [1], [0, 0, 1, 1], [], []>} : vector<512x16xbf16>, vector<16x8xbf16>, vector<512x8xf32> -> vector<512x8xf32>
    %c0_3 = arith.constant 0 : index
    %c0_4 = arith.constant 0 : index
    %3 = vector.load %arg2[%c0_3, %c0_4] : memref<512x128xbf16, #tpu.memory_space<vmem>>, vector<512x128xbf16>
    %4 = arith.extf %3 : vector<512x128xbf16> to vector<512x128xf32>
    %c0_5 = arith.constant 0 : index
    %c0_6 = arith.constant 0 : index
    %5 = vector.load %arg3[%c0_5, %c0_6] : memref<512x128xbf16, #tpu.memory_space<vmem>>, vector<512x128xbf16>
    %6 = arith.extf %5 : vector<512x128xbf16> to vector<512x128xf32>
    %7 = arith.mulf %4, %6 : vector<512x128xf32>
    %c0_7 = arith.constant 0 : index
    %c0_8 = arith.constant 0 : index
    %8 = vector.load %arg7[%c0_7, %c0_8] : memref<128x8xf32, #tpu.memory_space<vmem>>, vector<128x8xf32>
    %cst_9 = arith.constant dense<0.000000e+00> : vector<512x8xf32>
    %9 = tpu.matmul %7, %8, %cst_9 {dimension_numbers = #tpu.dot_dimension_numbers<[1], [0], [0], [1], [0, 0, 1, 1], [], []>} : vector<512x128xf32>, vector<128x8xf32>, vector<512x8xf32> -> vector<512x8xf32>
    %10 = arith.addf %2, %9 : vector<512x8xf32>
    %c0_10 = arith.constant 0 : index
    %c0_11 = arith.constant 0 : index
    %11 = vector.load %arg4[%c0_10, %c0_11] : memref<512x96xf32, #tpu.memory_space<vmem>>, vector<512x96xf32>
    %c0_12 = arith.constant 0 : index
    %c0_13 = arith.constant 0 : index
    %12 = vector.load %arg5[%c0_12, %c0_13] : memref<512x96xf32, #tpu.memory_space<vmem>>, vector<512x96xf32>
    %13 = arith.subf %11, %12 : vector<512x96xf32>
    %14 = vector.extract_strided_slice %13 {offsets = [0, 0], sizes = [512, 32], strides = [1, 1]} : vector<512x96xf32> to vector<512x32xf32>
    %15 = vector.extract_strided_slice %13 {offsets = [0, 32], sizes = [512, 32], strides = [1, 1]} : vector<512x96xf32> to vector<512x32xf32>
    %16 = vector.extract_strided_slice %13 {offsets = [0, 64], sizes = [512, 32], strides = [1, 1]} : vector<512x96xf32> to vector<512x32xf32>
    %17 = arith.mulf %14, %14 : vector<512x32xf32>
    %18 = arith.mulf %15, %15 : vector<512x32xf32>
    %19 = arith.addf %17, %18 : vector<512x32xf32>
    %20 = arith.mulf %16, %16 : vector<512x32xf32>
    %21 = arith.addf %19, %20 : vector<512x32xf32>
    %c0_14 = arith.constant 0 : index
    %c0_15 = arith.constant 0 : index
    %22 = vector.load %arg8[%c0_14, %c0_15] : memref<32x8xf32, #tpu.memory_space<vmem>>, vector<32x8xf32>
    %cst_16 = arith.constant dense<0.000000e+00> : vector<512x8xf32>
    %23 = tpu.matmul %21, %22, %cst_16 {dimension_numbers = #tpu.dot_dimension_numbers<[1], [0], [0], [1], [0, 0, 1, 1], [], []>} : vector<512x32xf32>, vector<32x8xf32>, vector<512x8xf32> -> vector<512x8xf32>
    %24 = arith.addf %10, %23 : vector<512x8xf32>
    %c0_17 = arith.constant 0 : index
    %c0_18 = arith.constant 0 : index
    %25 = vector.load %arg9[%c0_17, %c0_18] : memref<1x8xf32, #tpu.memory_space<vmem>>, vector<1x8xf32>
    %26 = vector.broadcast %25 : vector<1x8xf32> to vector<512x8xf32>
    %27 = arith.addf %24, %26 : vector<512x8xf32>
    %c0_19 = arith.constant 0 : index
    %c0_20 = arith.constant 0 : index
    %28 = vector.load %arg10[%c0_19, %c0_20] : memref<512x8xf32, #tpu.memory_space<vmem>>, vector<512x8xf32>
    tpu.vector_store %arg10[%c0_19, %c0_20], %27 {strides = array<i32>} : memref<512x8xf32, #tpu.memory_space<vmem>>, vector<512x8xf32>,
    return
  }
  func.func @transform_0(%arg0: i32) -> (i32, i32) {
    %c0_i32 = arith.constant 0 : i32
    %c0_i32_0 = arith.constant 0 : i32
    return %arg0, %c0_i32 : i32, i32
  }
  func.func @transform_1(%arg0: i32) -> (i32, i32) {
    %c0_i32 = arith.constant 0 : i32
    %c0_i32_0 = arith.constant 0 : i32
    return %arg0, %c0_i32 : i32, i32
  }
  func.func @transform_2(%arg0: i32) -> (i32, i32) {
    %c0_i32 = arith.constant 0 : i32
    %c0_i32_0 = arith.constant 0 : i32
    return %arg0, %c0_i32 : i32, i32
  }
  func.func @transform_3(%arg0: i32) -> (i32, i32) {
    %c0_i32 = arith.constant 0 : i32
    %c0_i32_0 = arith.constant 0 : i32
    return %arg0, %c0_i32 : i32, i32
  }
  func.func @transform_4(%arg0: i32) -> (i32, i32) {
    %c0_i32 = arith.constant 0 : i32
    %c0_i32_0 = arith.constant 0 : i32
    return %arg0, %c0_i32 : i32, i32
  }
  func.func @transform_5(%arg0: i32) -> (i32, i32) {
    %c0_i32 = arith.constant 0 : i32
    %c0_i32_0 = arith.constant 0 : i32
    %c0_i32_1 = arith.constant 0 : i32
    return %c0_i32, %c0_i32_0 : i32, i32
  }
  func.func @transform_6(%arg0: i32) -> (i32, i32) {
    %c0_i32 = arith.constant 0 : i32
    %c0_i32_0 = arith.constant 0 : i32
    %c0_i32_1 = arith.constant 0 : i32
    return %c0_i32, %c0_i32_0 : i32, i32
  }
  func.func @transform_7(%arg0: i32) -> (i32, i32) {
    %c0_i32 = arith.constant 0 : i32
    %c0_i32_0 = arith.constant 0 : i32
    %c0_i32_1 = arith.constant 0 : i32
    return %c0_i32, %c0_i32_0 : i32, i32
  }
  func.func @transform_8(%arg0: i32) -> (i32, i32) {
    %c0_i32 = arith.constant 0 : i32
    %c0_i32_0 = arith.constant 0 : i32
    %c0_i32_1 = arith.constant 0 : i32
    return %c0_i32, %c0_i32_0 : i32, i32
  }
  func.func @transform_9(%arg0: i32) -> (i32, i32) {
    %c0_i32 = arith.constant 0 : i32
    %c0_i32_0 = arith.constant 0 : i32
    return %arg0, %c0_i32 : i32, i32
  }
}

module attributes {stable_mosaic.version = 11 : i64} {
  func.func @_node_out_kernel(%arg0: i32, %arg1: memref<128x128xbf16, #tpu.memory_space<vmem>>, %arg2: memref<128x96xf32, #tpu.memory_space<vmem>>, %arg3: memref<128x16xbf16, #tpu.memory_space<vmem>>, %arg4: memref<128x8xf32, #tpu.memory_space<vmem>>, %arg5: memref<272x32xbf16, #tpu.memory_space<vmem>>, %arg6: memref<1x32xf32, #tpu.memory_space<vmem>>, %arg7: memref<128x32xf32, #tpu.memory_space<vmem>>) attributes {dimension_semantics = [#tpu.dimension_semantics<parallel>], iteration_bounds = array<i64: 8>, scalar_prefetch = 0 : i64, scratch_operands = 0 : i64, tpu.core_type = #tpu.core_type<tc>, window_params = [{transform_indices = @transform_0, window_bounds = array<i64: 128, 128>}, {transform_indices = @transform_1, window_bounds = array<i64: 128, 96>}, {transform_indices = @transform_2, window_bounds = array<i64: 128, 16>}, {transform_indices = @transform_3, window_bounds = array<i64: 128, 8>}, {pipeline_mode = #tpu.pipeline_mode<synchronous>, transform_indices = @transform_4, window_bounds = array<i64: 272, 32>}, {pipeline_mode = #tpu.pipeline_mode<synchronous>, transform_indices = @transform_5, window_bounds = array<i64: 1, 32>}, {transform_indices = @transform_6, window_bounds = array<i64: 128, 32>}]} {
    %c0 = arith.constant 0 : index
    %c0_0 = arith.constant 0 : index
    %0 = vector.load %arg4[%c0, %c0_0] : memref<128x8xf32, #tpu.memory_space<vmem>>, vector<128x8xf32>
    %1 = vector.extract_strided_slice %0 {offsets = [0, 0], sizes = [128, 1], strides = [1, 1]} : vector<128x8xf32> to vector<128x1xf32>
    %2 = vector.extract_strided_slice %0 {offsets = [0, 1], sizes = [128, 1], strides = [1, 1]} : vector<128x8xf32> to vector<128x1xf32>
    %cst = arith.constant 0.000000e+00 : f32
    %3 = vector.broadcast %cst : f32 to vector<128x1xf32>
    %4 = arith.subf %3, %2 : vector<128x1xf32>
    %5 = vector.extract_strided_slice %0 {offsets = [0, 2], sizes = [128, 1], strides = [1, 1]} : vector<128x8xf32> to vector<128x1xf32>
    %cst_1 = arith.constant 0.000000e+00 : f32
    %6 = vector.broadcast %cst_1 : f32 to vector<128x1xf32>
    %7 = arith.subf %6, %5 : vector<128x1xf32>
    %8 = vector.extract_strided_slice %0 {offsets = [0, 3], sizes = [128, 1], strides = [1, 1]} : vector<128x8xf32> to vector<128x1xf32>
    %cst_2 = arith.constant 0.000000e+00 : f32
    %9 = vector.broadcast %cst_2 : f32 to vector<128x1xf32>
    %10 = arith.subf %9, %8 : vector<128x1xf32>
    %11 = vector.extract_strided_slice %0 {offsets = [0, 4], sizes = [128, 1], strides = [1, 1]} : vector<128x8xf32> to vector<128x1xf32>
    %12 = vector.extract_strided_slice %0 {offsets = [0, 5], sizes = [128, 1], strides = [1, 1]} : vector<128x8xf32> to vector<128x1xf32>
    %13 = vector.extract_strided_slice %0 {offsets = [0, 6], sizes = [128, 1], strides = [1, 1]} : vector<128x8xf32> to vector<128x1xf32>
    %c0_3 = arith.constant 0 : index
    %c0_4 = arith.constant 0 : index
    %14 = vector.load %arg2[%c0_3, %c0_4] : memref<128x96xf32, #tpu.memory_space<vmem>>, vector<128x96xf32>
    %15 = vector.extract_strided_slice %14 {offsets = [0, 0], sizes = [128, 32], strides = [1, 1]} : vector<128x96xf32> to vector<128x32xf32>
    %16 = vector.broadcast %11 : vector<128x1xf32> to vector<128x32xf32>
    %17 = arith.subf %15, %16 : vector<128x32xf32>
    %18 = vector.extract_strided_slice %14 {offsets = [0, 32], sizes = [128, 32], strides = [1, 1]} : vector<128x96xf32> to vector<128x32xf32>
    %19 = vector.broadcast %12 : vector<128x1xf32> to vector<128x32xf32>
    %20 = arith.subf %18, %19 : vector<128x32xf32>
    %21 = vector.extract_strided_slice %14 {offsets = [0, 64], sizes = [128, 32], strides = [1, 1]} : vector<128x96xf32> to vector<128x32xf32>
    %22 = vector.broadcast %13 : vector<128x1xf32> to vector<128x32xf32>
    %23 = arith.subf %21, %22 : vector<128x32xf32>
    %24 = vector.broadcast %7 : vector<128x1xf32> to vector<128x32xf32>
    %25 = arith.mulf %24, %23 : vector<128x32xf32>
    %26 = vector.broadcast %10 : vector<128x1xf32> to vector<128x32xf32>
    %27 = arith.mulf %26, %20 : vector<128x32xf32>
    %28 = arith.subf %25, %27 : vector<128x32xf32>
    %29 = vector.broadcast %1 : vector<128x1xf32> to vector<128x32xf32>
    %30 = arith.mulf %29, %17 : vector<128x32xf32>
    %31 = arith.addf %28, %30 : vector<128x32xf32>
    %32 = vector.broadcast %10 : vector<128x1xf32> to vector<128x32xf32>
    %33 = arith.mulf %32, %17 : vector<128x32xf32>
    %34 = vector.broadcast %4 : vector<128x1xf32> to vector<128x32xf32>
    %35 = arith.mulf %34, %23 : vector<128x32xf32>
    %36 = arith.subf %33, %35 : vector<128x32xf32>
    %37 = vector.broadcast %1 : vector<128x1xf32> to vector<128x32xf32>
    %38 = arith.mulf %37, %20 : vector<128x32xf32>
    %39 = arith.addf %36, %38 : vector<128x32xf32>
    %40 = vector.broadcast %4 : vector<128x1xf32> to vector<128x32xf32>
    %41 = arith.mulf %40, %20 : vector<128x32xf32>
    %42 = vector.broadcast %7 : vector<128x1xf32> to vector<128x32xf32>
    %43 = arith.mulf %42, %17 : vector<128x32xf32>
    %44 = arith.subf %41, %43 : vector<128x32xf32>
    %45 = vector.broadcast %1 : vector<128x1xf32> to vector<128x32xf32>
    %46 = arith.mulf %45, %23 : vector<128x32xf32>
    %47 = arith.addf %44, %46 : vector<128x32xf32>
    %48 = vector.broadcast %7 : vector<128x1xf32> to vector<128x32xf32>
    %49 = arith.mulf %48, %47 : vector<128x32xf32>
    %50 = vector.broadcast %10 : vector<128x1xf32> to vector<128x32xf32>
    %51 = arith.mulf %50, %39 : vector<128x32xf32>
    %52 = arith.subf %49, %51 : vector<128x32xf32>
    %cst_5 = arith.constant 2.000000e+00 : f32
    %53 = vector.broadcast %cst_5 : f32 to vector<128x32xf32>
    %54 = arith.mulf %53, %52 : vector<128x32xf32>
    %55 = arith.addf %17, %54 : vector<128x32xf32>
    %56 = vector.broadcast %10 : vector<128x1xf32> to vector<128x32xf32>
    %57 = arith.mulf %56, %31 : vector<128x32xf32>
    %58 = vector.broadcast %4 : vector<128x1xf32> to vector<128x32xf32>
    %59 = arith.mulf %58, %47 : vector<128x32xf32>
    %60 = arith.subf %57, %59 : vector<128x32xf32>
    %cst_6 = arith.constant 2.000000e+00 : f32
    %61 = vector.broadcast %cst_6 : f32 to vector<128x32xf32>
    %62 = arith.mulf %61, %60 : vector<128x32xf32>
    %63 = arith.addf %20, %62 : vector<128x32xf32>
    %64 = vector.broadcast %4 : vector<128x1xf32> to vector<128x32xf32>
    %65 = arith.mulf %64, %39 : vector<128x32xf32>
    %66 = vector.broadcast %7 : vector<128x1xf32> to vector<128x32xf32>
    %67 = arith.mulf %66, %31 : vector<128x32xf32>
    %68 = arith.subf %65, %67 : vector<128x32xf32>
    %cst_7 = arith.constant 2.000000e+00 : f32
    %69 = vector.broadcast %cst_7 : f32 to vector<128x32xf32>
    %70 = arith.mulf %69, %68 : vector<128x32xf32>
    %71 = arith.addf %23, %70 : vector<128x32xf32>
    %72 = arith.mulf %55, %55 : vector<128x32xf32>
    %73 = arith.mulf %63, %63 : vector<128x32xf32>
    %74 = arith.addf %72, %73 : vector<128x32xf32>
    %75 = arith.mulf %71, %71 : vector<128x32xf32>
    %76 = arith.addf %74, %75 : vector<128x32xf32>
    %cst_8 = arith.constant 9.99999993E-9 : f32
    %77 = vector.broadcast %cst_8 : f32 to vector<128x32xf32>
    %78 = arith.addf %76, %77 : vector<128x32xf32>
    %79 = math.sqrt %78 : vector<128x32xf32>
    %80 = tpu.concatenate %55, %63, %71, %79 in 1 : vector<128x32xf32>, vector<128x32xf32>, vector<128x32xf32>, vector<128x32xf32> -> vector<128x128xf32>
    %c0_9 = arith.constant 0 : index
    %c0_10 = arith.constant 0 : index
    %81 = vector.load %arg1[%c0_9, %c0_10] : memref<128x128xbf16, #tpu.memory_space<vmem>>, vector<128x128xbf16>
    %c0_11 = arith.constant 0 : index
    %c0_12 = arith.constant 0 : index
    %82 = vector.load %arg5[%c0_11, %c0_12] : memref<272x32xbf16, #tpu.memory_space<vmem>>, vector<128x32xbf16>
    %cst_13 = arith.constant dense<0.000000e+00> : vector<128x32xf32>
    %83 = tpu.matmul %81, %82, %cst_13 {dimension_numbers = #tpu.dot_dimension_numbers<[1], [0], [0], [1], [0, 0, 1, 1], [], []>} : vector<128x128xbf16>, vector<128x32xbf16>, vector<128x32xf32> -> vector<128x32xf32>
    %84 = arith.truncf %80 : vector<128x128xf32> to vector<128x128xbf16>
    %c128 = arith.constant 128 : index
    %c0_14 = arith.constant 0 : index
    %85 = vector.load %arg5[%c128, %c0_14] : memref<272x32xbf16, #tpu.memory_space<vmem>>, vector<128x32xbf16>
    %cst_15 = arith.constant dense<0.000000e+00> : vector<128x32xf32>
    %86 = tpu.matmul %84, %85, %cst_15 {dimension_numbers = #tpu.dot_dimension_numbers<[1], [0], [0], [1], [0, 0, 1, 1], [], []>} : vector<128x128xbf16>, vector<128x32xbf16>, vector<128x32xf32> -> vector<128x32xf32>
    %87 = arith.addf %83, %86 : vector<128x32xf32>
    %c0_16 = arith.constant 0 : index
    %c0_17 = arith.constant 0 : index
    %88 = vector.load %arg3[%c0_16, %c0_17] : memref<128x16xbf16, #tpu.memory_space<vmem>>, vector<128x16xbf16>
    %c256 = arith.constant 256 : index
    %c0_18 = arith.constant 0 : index
    %89 = vector.load %arg5[%c256, %c0_18] : memref<272x32xbf16, #tpu.memory_space<vmem>>, vector<16x32xbf16>
    %cst_19 = arith.constant dense<0.000000e+00> : vector<128x32xf32>
    %90 = tpu.matmul %88, %89, %cst_19 {dimension_numbers = #tpu.dot_dimension_numbers<[1], [0], [0], [1], [0, 0, 1, 1], [], []>} : vector<128x16xbf16>, vector<16x32xbf16>, vector<128x32xf32> -> vector<128x32xf32>
    %91 = arith.addf %87, %90 : vector<128x32xf32>
    %c0_20 = arith.constant 0 : index
    %c0_21 = arith.constant 0 : index
    %92 = vector.load %arg6[%c0_20, %c0_21] : memref<1x32xf32, #tpu.memory_space<vmem>>, vector<1x32xf32>
    %93 = vector.broadcast %92 : vector<1x32xf32> to vector<128x32xf32>
    %94 = arith.addf %91, %93 : vector<128x32xf32>
    %c0_22 = arith.constant 0 : index
    %c0_23 = arith.constant 0 : index
    %95 = vector.load %arg7[%c0_22, %c0_23] : memref<128x32xf32, #tpu.memory_space<vmem>>, vector<128x32xf32>
    tpu.vector_store %arg7[%c0_22, %c0_23], %94 {strides = array<i32>} : memref<128x32xf32, #tpu.memory_space<vmem>>, vector<128x32xf32>,
    return
  }
  func.func @transform_0(%arg0: i32) -> (i32, i32) {
    %c0_i32 = arith.constant 0 : i32
    %c0_i32_0 = arith.constant 0 : i32
    return %arg0, %c0_i32 : i32, i32
  }
  func.func @transform_1(%arg0: i32) -> (i32, i32) {
    %c0_i32 = arith.constant 0 : i32
    %c0_i32_0 = arith.constant 0 : i32
    return %arg0, %c0_i32 : i32, i32
  }
  func.func @transform_2(%arg0: i32) -> (i32, i32) {
    %c0_i32 = arith.constant 0 : i32
    %c0_i32_0 = arith.constant 0 : i32
    return %arg0, %c0_i32 : i32, i32
  }
  func.func @transform_3(%arg0: i32) -> (i32, i32) {
    %c0_i32 = arith.constant 0 : i32
    %c0_i32_0 = arith.constant 0 : i32
    return %arg0, %c0_i32 : i32, i32
  }
  func.func @transform_4(%arg0: i32) -> (i32, i32) {
    %c0_i32 = arith.constant 0 : i32
    %c0_i32_0 = arith.constant 0 : i32
    %c0_i32_1 = arith.constant 0 : i32
    return %c0_i32, %c0_i32_0 : i32, i32
  }
  func.func @transform_5(%arg0: i32) -> (i32, i32) {
    %c0_i32 = arith.constant 0 : i32
    %c0_i32_0 = arith.constant 0 : i32
    %c0_i32_1 = arith.constant 0 : i32
    return %c0_i32, %c0_i32_0 : i32, i32
  }
  func.func @transform_6(%arg0: i32) -> (i32, i32) {
    %c0_i32 = arith.constant 0 : i32
    %c0_i32_0 = arith.constant 0 : i32
    return %arg0, %c0_i32 : i32, i32
  }
}

</mosaic_0001>

<llo_original>
// kernel: invariant_point_attention.3
$region0: #{invariant_point_attention.3}
  #allocation0 [shape = 'u32[]', space=smem, size = 0x4, offset = 0x4, fixed_abs, tag = 'smem constant byte address 0x4 - core index']
  #allocation1 [shape = 'u32[144,128]{1,0:T(1,128)}', space=vmem, size = 0x12000, scoped, tag = 'internal scratch']
  %s0 = inlined_call_operand.vmem [shape: bf16[1024,32], index: 0, kind: input, shape index: {}]
  %s1 = inlined_call_operand.vmem [shape: f32[1024,8], index: 1, kind: input, shape index: {}]
  %s2 = inlined_call_operand.vmem [shape: bf16[32,672], index: 2, kind: input, shape index: {}]
  %s3 = inlined_call_operand.vmem [shape: bf16[1024,480], index: 3, kind: output, shape index: {0}]
  %s4 = inlined_call_operand.vmem [shape: f32[1024,192], index: 4, kind: output, shape index: {1}]
  %5 = xla_tuple %s3, %s4
  %s6 = sld [smem:[#allocation0]]
  $region53: #{invariant_point_attention.3} parent=0
    _
  %s8 = ssub.s32 1, %s6
  %s9 = scalar_select 0, %s8, %s6
  loop: start=0, step=1, limit=10
  $region2: #{invariant_point_attention.3} parent=0 // loop_pre_header
    _
  $region3: #{invariant_point_attention.3} parent=0 // loop_header
    %s11 = sphi 0, %s15
    %p12 = scmp.ge.s32.totalorder %s11, 10
    %s21 = sphi 0, %s23
    %s24 = sphi 0, %s21
    %s25 = sphi 0, %s24
    %s41 = sphi 0, %s25
    %s47 = sphi 0, %s49
    %s50 = sphi 0, %s47
    %s51 = sphi 0, %s50
    %s67 = sphi 0, %s51
    %s71 = sphi 0, %s71
    %s73 = sphi 0, %s71
    %s74 = sphi 0, %s73
    %s88 = sphi 0, %s74
    %s94 = sphi 0, %s96
    %s97 = sphi 0, %s94
    %s98 = sphi 0, %s97
    %s114 = sphi 0, %s98
    %s120 = sphi 0, %s122
    %s123 = sphi 0, %s120
    %s124 = sphi 0, %s123
    %s140 = sphi 0, %s124
  $region4: #{invariant_point_attention.3} parent=0 // loop_header_branch
    %14 = sbr.rel (%p12) target = $region8
  $region5: #{invariant_point_attention.3} parent=0 // loop_body
    %s16 = ssub.s32 %s11, 1
    %s17 = ssub.s32 %s11, 2
    %s18 = sadd.s32 %s11, 1
    %s19 = ssub.s32 %s11, %s18
    %p20 = scmp.eq.s32.totalorder %s19, 0
    %s22 = sadd.s32 %s21, 1
    %s23 = scalar_select %p20, %s21, %s22
    %p26 = pneg %p20
    %p27 = scmp.eq.s32.totalorder %s11, 7
    %p28 = por %p26, %p27
    %p29 = scmp.ne.s32.totalorder %s21, %s24
    %p30 = scmp.eq.s32.totalorder %s11, 0
    %p31 = por %p29, %p30
    %p32 = scmp.ne.s32.totalorder %s21, %s24
    %p33 = scmp.eq.s32.totalorder %s16, 7
    %p34 = por %p32, %p33
    %p35 = scmp.ne.s32.totalorder %s24, %s25
    %p36 = scmp.eq.s32.totalorder %s16, 0
    %p37 = por %p35, %p36
    %p38 = scmp.ne.s32.totalorder %s24, %s25
    %p39 = scmp.eq.s32.totalorder %s17, 7
    %p40 = por %p38, %p39
    %p42 = scmp.ne.s32.totalorder %s25, %s41
    %p43 = scmp.eq.s32.totalorder %s17, 0
    %p44 = por %p42, %p43
    %s45 = ssub.s32 %s11, %s18
    %p46 = scmp.eq.s32.totalorder %s45, 0
    %s48 = sadd.s32 %s47, 1
    %s49 = scalar_select %p46, %s47, %s48
    %p52 = pneg %p46
    %p53 = scmp.eq.s32.totalorder %s11, 7
    %p54 = por %p52, %p53
    %p55 = scmp.ne.s32.totalorder %s47, %s50
    %p56 = scmp.eq.s32.totalorder %s11, 0
    %p57 = por %p55, %p56
    %p58 = scmp.ne.s32.totalorder %s47, %s50
    %p59 = scmp.eq.s32.totalorder %s16, 7
    %p60 = por %p58, %p59
    %p61 = scmp.ne.s32.totalorder %s50, %s51
    %p62 = scmp.eq.s32.totalorder %s16, 0
    %p63 = por %p61, %p62
    %p64 = scmp.ne.s32.totalorder %s50, %s51
    %p65 = scmp.eq.s32.totalorder %s17, 7
    %p66 = por %p64, %p65
    %p68 = scmp.ne.s32.totalorder %s51, %s67
    %p69 = scmp.eq.s32.totalorder %s17, 0
    %p70 = por %p68, %p69
    %s72 = sadd.s32 %s71, 1
    %p75 = scmp.eq.s32.totalorder %s11, 7
    %p76 = scmp.ne.s32.totalorder %s71, %s73
    %p77 = scmp.eq.s32.totalorder %s11, 0
    %p78 = por %p76, %p77
    %p79 = scmp.ne.s32.totalorder %s71, %s73
    %p80 = scmp.eq.s32.totalorder %s16, 7
    %p81 = por %p79, %p80
    %p82 = scmp.ne.s32.totalorder %s73, %s74
    %p83 = scmp.eq.s32.totalorder %s16, 0
    %p84 = por %p82, %p83
    %p85 = scmp.ne.s32.totalorder %s73, %s74
    %p86 = scmp.eq.s32.totalorder %s17, 7
    %p87 = por %p85, %p86
    %p89 = scmp.ne.s32.totalorder %s74, %s88
    %p90 = scmp.eq.s32.totalorder %s17, 0
    %p91 = por %p89, %p90
    %s92 = ssub.s32 %s11, %s18
    %p93 = scmp.eq.s32.totalorder %s92, 0
    %s95 = sadd.s32 %s94, 1
    %s96 = scalar_select %p93, %s94, %s95
    %p99 = pneg %p93
    %p100 = scmp.eq.s32.totalorder %s11, 7
    %p101 = por %p99, %p100
    %p102 = scmp.ne.s32.totalorder %s94, %s97
    %p103 = scmp.eq.s32.totalorder %s11, 0
    %p104 = por %p102, %p103
    %p105 = scmp.ne.s32.totalorder %s94, %s97
    %p106 = scmp.eq.s32.totalorder %s16, 7
    %p107 = por %p105, %p106
    %p108 = scmp.ne.s32.totalorder %s97, %s98
    %p109 = scmp.eq.s32.totalorder %s16, 0
    %p110 = por %p108, %p109
    %p111 = scmp.ne.s32.totalorder %s97, %s98
    %p112 = scmp.eq.s32.totalorder %s17, 7
    %p113 = por %p111, %p112
    %p115 = scmp.ne.s32.totalorder %s98, %s114
    %p116 = scmp.eq.s32.totalorder %s17, 0
    %p117 = por %p115, %p116
    %s118 = ssub.s32 %s11, %s18
    %p119 = scmp.eq.s32.totalorder %s118, 0
    %s121 = sadd.s32 %s120, 1
    %s122 = scalar_select %p119, %s120, %s121
    %p125 = pneg %p119
    %p126 = scmp.eq.s32.totalorder %s11, 7
    %p127 = por %p125, %p126
    %p128 = scmp.ne.s32.totalorder %s120, %s123
    %p129 = scmp.eq.s32.totalorder %s11, 0
    %p130 = por %p128, %p129
    %p131 = scmp.ne.s32.totalorder %s120, %s123
    %p132 = scmp.eq.s32.totalorder %s16, 7
    %p133 = por %p131, %p132
    %p134 = scmp.ne.s32.totalorder %s123, %s124
    %p135 = scmp.eq.s32.totalorder %s16, 0
    %p136 = por %p134, %p135
    %p137 = scmp.ne.s32.totalorder %s123, %s124
    %p138 = scmp.eq.s32.totalorder %s17, 7
    %p139 = por %p137, %p138
    %p141 = scmp.ne.s32.totalorder %s124, %s140
    %p142 = scmp.eq.s32.totalorder %s17, 0
    %p143 = por %p141, %p142
    %p144 = scmp.le.s32.totalorder 1, %s11
    %p145 = scmp.lt.s32.totalorder %s11, 9
    %p146 = pnand %p144, %p145
    %p147 = pneg %p146
    // Predicated region
    $region9: #{invariant_point_attention.3} parent=5 // pred_check
      _
    $region10: #{invariant_point_attention.3} parent=5 // pred_check_branch
      %149 = sbr.rel (%p146) target = $region12
    $region11: #{invariant_point_attention.3} parent=5 // pred_region
      %s150 = ssub.s32 %s11, 1
      // Predicated region
      $region13: #{invariant_point_attention.3} parent=11 // pred_check
        %p151 = pneg %p84
      $region14: #{invariant_point_attention.3} parent=11 // pred_check_branch
        %153 = sbr.rel (%p151) target = $region16
      $region15: #{invariant_point_attention.3} parent=11 // pred_region
        _
      $region16: #{invariant_point_attention.3} parent=11 // pred_fallthru
        _
    $region12: #{invariant_point_attention.3} parent=5 // pred_fallthru
      _
    %p154 = scmp.lt.s32.totalorder %s11, 8
    // Predicated region
    $region17: #{invariant_point_attention.3} parent=5 // pred_check
      %p155 = pneg %p154
    $region18: #{invariant_point_attention.3} parent=5 // pred_check_branch
      %157 = sbr.rel (%p155) target = $region20
    $region19: #{invariant_point_attention.3} parent=5 // pred_region
      // Predicated region
      $region21: #{invariant_point_attention.3} parent=19 // pred_check
        %p158 = pneg %p31
      $region22: #{invariant_point_attention.3} parent=19 // pred_check_branch
        %160 = sbr.rel (%p158) target = $region24
      $region23: #{invariant_point_attention.3} parent=19 // pred_region
        %s161 = smul.u32 16, %s11
        %p162 = scmp.lt.s32.totalorder %s161, 127
        %s163 = scalar_select %p162, %s161, 127
        %s164 = smul.addr %s163, 4
        %s165 = scalar_lea.vmem %s0, %s164
        %s166 = smul.u32 16, %s11
      $region24: #{invariant_point_attention.3} parent=19 // pred_fallthru
        _
      // Predicated region
      $region25: #{invariant_point_attention.3} parent=19 // pred_check
        %p167 = pneg %p57
      $region26: #{invariant_point_attention.3} parent=19 // pred_check_branch
        %169 = sbr.rel (%p167) target = $region28
      $region27: #{invariant_point_attention.3} parent=19 // pred_region
        %s170 = smul.u32 16, %s11
        %p171 = scmp.lt.s32.totalorder %s170, 127
        %s172 = scalar_select %p171, %s170, 127
        %s173 = smul.addr %s172, 8
        %s174 = scalar_lea.vmem %s1, %s173
        %s175 = smul.u32 16, %s11
      $region28: #{invariant_point_attention.3} parent=19 // pred_fallthru
        _
    $region20: #{invariant_point_attention.3} parent=5 // pred_fallthru
      _
    %p176 = scmp.le.s32.totalorder 1, %s11
    %p177 = scmp.lt.s32.totalorder %s11, 9
    %p178 = pnand %p176, %p177
    %p179 = pneg %p178
    // Predicated region
    $region29: #{invariant_point_attention.3} parent=5 // pred_check
      _
    $region30: #{invariant_point_attention.3} parent=5 // pred_check_branch
      %181 = sbr.rel (%p178) target = $region32
    $region31: #{invariant_point_attention.3} parent=5 // pred_region
      %s182 = ssub.s32 %s11, 1
      %s183 = smul.u32 16, %s16
      %p184 = scmp.lt.s32.totalorder %s183, 127
      %s185 = scalar_select %p184, %s183, 127
      %s186 = smul.addr %s185, 4
      %s187 = scalar_lea.vmem %s0, %s186
      %p188 = pneg %p37
      %p189 = pneg %p34
      %s190 = smul.u32 16, %s16
      %p191 = scmp.lt.s32.totalorder %s190, 127
      %s192 = scalar_select %p191, %s190, 127
      %s193 = smul.addr %s192, 8
      %s194 = scalar_lea.vmem %s1, %s193
      %p195 = pneg %p63
      %p196 = pneg %p60
      %p197 = pneg %p84
      %p198 = pneg %p81
      %p199 = pneg %p110
      %p200 = pneg %p107
      %s201 = smul.u32 16, %s16
      %p202 = scmp.lt.s32.totalorder %s201, 127
      %s203 = scalar_select %p202, %s201, 127
      %s204 = smul.addr %s203, 4
      %s205 = smul.addr %s204, 4
      %s206 = scalar_lea.vmem %s3, %s205
      %p207 = pneg %p136
      %p208 = pneg %p133
      %s209 = smul.u32 16, %s16
      %p210 = scmp.lt.s32.totalorder %s209, 127
      %s211 = scalar_select %p210, %s209, 127
      %s212 = smul.addr %s211, 2
      %s213 = smul.addr %s212, 8
      %s214 = scalar_lea.vmem %s4, %s213
      %s215 = smul.u32 16, %s16
      %p216 = scmp.lt.s32.totalorder %s215, 127
      %s217 = scalar_select %p216, %s215, 127
      %s218 = smul.addr %s217, 4
      %s219 = scalar_lea.vmem %s0, %s218
      %s220 = smul.u32 16, %s16
      %s221 = smul.u32 16, %s16
      %p222 = scmp.lt.s32.totalorder %s221, 127
      %s223 = scalar_select %p222, %s221, 127
      %s224 = smul.addr %s223, 8
      %s225 = scalar_lea.vmem %s1, %s224
      %s226 = smul.u32 16, %s16
      %s227 = smul.u32 16, %s16
      %p228 = scmp.lt.s32.totalorder %s227, 127
      %s229 = scalar_select %p228, %s227, 127
      %s230 = smul.addr %s229, 4
      %s231 = smul.addr %s230, 4
      %s232 = scalar_lea.vmem %s3, %s231
      %s233 = smul.u32 16, %s16
      %s234 = smul.u32 16, %s16
      %p235 = scmp.lt.s32.totalorder %s234, 127
      %s236 = scalar_select %p235, %s234, 127
      %s237 = smul.addr %s236, 2
      %s238 = smul.addr %s237, 8
      %s239 = scalar_lea.vmem %s4, %s238
      %s240 = smul.u32 16, %s16
      %v242 = vld [vmem:[%s219] sm:$0xf]
      %v243 = vld [vmem:[%s219 + $0x4] sm:$0xf]
      %v244 = vld [vmem:[%s219 + $0x8] sm:$0xf]
      %v245 = vld [vmem:[%s219 + $0xc] sm:$0xf]
      %v246 = vld [vmem:[%s219 + $0x10] sm:$0xf]
      %v247 = vld [vmem:[%s219 + $0x14] sm:$0xf]
      %v248 = vld [vmem:[%s219 + $0x18] sm:$0xf]
      %v249 = vld [vmem:[%s219 + $0x1c] sm:$0xf]
      %v250 = vld [vmem:[%s219 + $0x20] sm:$0xf]
      %v251 = vld [vmem:[%s219 + $0x24] sm:$0xf]
      %v252 = vld [vmem:[%s219 + $0x28] sm:$0xf]
      %v253 = vld [vmem:[%s219 + $0x2c] sm:$0xf]
      %v254 = vld [vmem:[%s219 + $0x30] sm:$0xf]
      %v255 = vld [vmem:[%s219 + $0x34] sm:$0xf]
      %v256 = vld [vmem:[%s219 + $0x38] sm:$0xf]
      %v257 = vld [vmem:[%s219 + $0x3c] sm:$0xf]
      %v258 = vld [vmem:[%s2] sm:$0xff]
      %v259 = vld [vmem:[%s2 + $0x8] sm:$0xff]
      %v260 = vld [vmem:[%s2 + $0x10] sm:$0xff]
      %v261 = vld [vmem:[%s2 + $0x18] sm:$0xff]
      %v262 = vld [vmem:[%s2 + $0x20] sm:$0xff]
      %v263 = vld [vmem:[%s2 + $0x28] sm:$0xff]
      %v264 = vld [vmem:[%s2 + $0x30] sm:$0xff]
      %v265 = vld [vmem:[%s2 + $0x38] sm:$0xff]
      %v266 = vld [vmem:[%s2 + $0x40] sm:$0xff]
      %v267 = vld [vmem:[%s2 + $0x48] sm:$0xff]
      %v268 = vld [vmem:[%s2 + $0x50] sm:$0xff]
      %v269 = vld [vmem:[%s2 + $0x58] sm:$0xff]
      %v286 = vunpack.c.l.b16 %v242
      %v287 = vunpack.c.l.b16 %v243
      %v288 = vunpack.c.l.b16 %v244
      %v289 = vunpack.c.l.b16 %v245
      %v290 = vunpack.c.l.b16 %v246
      %v291 = vunpack.c.l.b16 %v247
      %v292 = vunpack.c.l.b16 %v248
      %v293 = vunpack.c.l.b16 %v249
      %v294 = vunpack.c.l.b16 %v250
      %v295 = vunpack.c.l.b16 %v251
      %v296 = vunpack.c.l.b16 %v252
      %v297 = vunpack.c.l.b16 %v253
      %v298 = vunpack.c.l.b16 %v254
      %v299 = vunpack.c.l.b16 %v255
      %v300 = vunpack.c.l.b16 %v256
      %v301 = vunpack.c.l.b16 %v257
      %v302 = vpack.c.b16 %v287, %v286
      %v303 = vpack.c.b16 %v289, %v288
      %v304 = vpack.c.b16 %v291, %v290
      %v305 = vpack.c.b16 %v293, %v292
      %v306 = vpack.c.b16 %v295, %v294
      %v307 = vpack.c.b16 %v297, %v296
      %v308 = vpack.c.b16 %v299, %v298
      %v309 = vpack.c.b16 %v301, %v300
      %v322 = vunpack.c.l.b16 %v258
      %v323 = vunpack.c.h.b16 %v258
      %v324 = vunpack.c.l.b16 %v259
      %v325 = vunpack.c.h.b16 %v259
      %v326 = vunpack.c.l.b16 %v260
      %v327 = vunpack.c.h.b16 %v260
      %v328 = vunpack.c.l.b16 %v261
      %v329 = vunpack.c.h.b16 %v261
      %v330 = vunpack.c.l.b16 %v262
      %v331 = vunpack.c.h.b16 %v262
      %v332 = vunpack.c.l.b16 %v263
      %v333 = vunpack.c.h.b16 %v263
      %v334 = vunpack.c.l.b16 %v264
      %v335 = vunpack.c.h.b16 %v264
      %v336 = vunpack.c.l.b16 %v265
      %v337 = vunpack.c.h.b16 %v265
      %v338 = vunpack.c.l.b16 %v266
      %v339 = vunpack.c.h.b16 %v266
      %v340 = vunpack.c.l.b16 %v267
      %v341 = vunpack.c.h.b16 %v267
      %v342 = vunpack.c.l.b16 %v268
      %v343 = vunpack.c.h.b16 %v268
      %v344 = vunpack.c.l.b16 %v269
      %v345 = vunpack.c.h.b16 %v269
      %v346 = vpack.c.b16 %v328, %v322
      %v347 = vpack.c.b16 %v329, %v323
      %v348 = vpack.c.b16 %v330, %v324
      %v349 = vpack.c.b16 %v331, %v325
      %v350 = vpack.c.b16 %v332, %v326
      %v351 = vpack.c.b16 %v333, %v327
      %v352 = vpack.c.b16 %v340, %v334
      %v353 = vpack.c.b16 %v341, %v335
      %v354 = vpack.c.b16 %v342, %v336
      %v355 = vpack.c.b16 %v343, %v337
      %v356 = vpack.c.b16 %v344, %v338
      %v357 = vpack.c.b16 %v345, %v339
      %vm370 = vcmask 261120
      %v372 = vsel %vm370, %v302, 0
      %v375 = vsel %vm370, %v303, 0
      %v378 = vsel %vm370, %v304, 0
      %v381 = vsel %vm370, %v305, 0
      %v384 = vsel %vm370, %v306, 0
      %v387 = vsel %vm370, %v307, 0
      %v390 = vsel %vm370, %v308, 0
      %v393 = vsel %vm370, %v309, 0
      %395 = vmatprep.subr.bf16.mxu0 0
      %396 = vmatpush1.bf16.msra.mxu0 0
      %397 = vmatprep.subr.bf16.mxu0 0
      %398 = vmatpush1.bf16.msra.mxu0 0
      %399 = vmatprep.subr.bf16.mxu0 0
      %400 = vmatpush1.bf16.msra.mxu0 0
      %401 = vmatprep.subr.bf16.mxu0 0
      %402 = vmatpush1.bf16.msra.mxu0 0
      %403 = vmatprep.subr.bf16.mxu0 0
      %404 = vmatpush1.bf16.msra.mxu0 0
      %405 = vmatprep.subr.bf16.mxu0 0
      %406 = vmatpush1.bf16.msra.mxu0 0
      %407 = vmatprep.subr.bf16.mxu0 %v353
      %408 = vmatpush1.bf16.msra.mxu0 %v352
      %409 = vmatprep.subr.bf16.mxu0 %v347
      %410 = vmatpush1.bf16.msra.mxu0 %v346
      %411 = vmatprep.subr.bf16.mxu0 0
      %412 = vmatpush2.bf16.msra.mxu0 0
      %413 = vmatprep.subr.bf16.mxu0 0
      %414 = vmatpush2.bf16.msra.mxu0 0
      %415 = vmatprep.subr.bf16.mxu0 0
      %416 = vmatpush2.bf16.msra.mxu0 0
      %417 = vmatprep.subr.bf16.mxu0 0
      %418 = vmatpush2.bf16.msra.mxu0 0
      %419 = vmatprep.subr.bf16.mxu0 0
      %420 = vmatpush2.bf16.msra.mxu0 0
      %421 = vmatprep.subr.bf16.mxu0 0
      %422 = vmatpush2.bf16.msra.mxu0 0
      %423 = vmatprep.subr.bf16.mxu0 0
      %424 = vmatpush2.bf16.msra.mxu0 0
      %425 = vmatprep.subr.bf16.mxu0 0
      %426 = vmatpush2.bf16.msra.mxu0 0
      %427 = vmatprep.mubr.bf16.mxu0 0
      %428 = vmatmul.mubr.bf16.gmra.mxu0 %v372
      %v429 = vpop.f32.mrf.mxu0
      %v430 = vadd.f32 0.0, %v429
      %v431 = vpop.f32.mrf.mxu0
      %v432 = vadd.f32 0.0, %v431
      %v433 = vpop.f32.mrf.mxu0
      %v434 = vadd.f32 0.0, %v433
      %v435 = vpop.f32.mrf.mxu0
      %v436 = vadd.f32 0.0, %v435
      %437 = vmatprep.mubr.bf16.mxu0 0
      %438 = vmatmul.mubr.bf16.gmra.mxu0 %v375
      %v439 = vpop.f32.mrf.mxu0
      %v440 = vadd.f32 0.0, %v439
      %v441 = vpop.f32.mrf.mxu0
      %v442 = vadd.f32 0.0, %v441
      %v443 = vpop.f32.mrf.mxu0
      %v444 = vadd.f32 0.0, %v443
      %v445 = vpop.f32.mrf.mxu0
      %v446 = vadd.f32 0.0, %v445
      %447 = vmatprep.mubr.bf16.mxu0 0
      %448 = vmatmul.mubr.bf16.gmra.mxu0 %v378
      %v449 = vpop.f32.mrf.mxu0
      %v450 = vadd.f32 0.0, %v449
      %v451 = vpop.f32.mrf.mxu0
      %v452 = vadd.f32 0.0, %v451
      %v453 = vpop.f32.mrf.mxu0
      %v454 = vadd.f32 0.0, %v453
      %v455 = vpop.f32.mrf.mxu0
      %v456 = vadd.f32 0.0, %v455
      %457 = vmatprep.mubr.bf16.mxu0 0
      %458 = vmatmul.mubr.bf16.gmra.mxu0 %v381
      %v459 = vpop.f32.mrf.mxu0
      %v460 = vadd.f32 0.0, %v459
      %v461 = vpop.f32.mrf.mxu0
      %v462 = vadd.f32 0.0, %v461
      %v463 = vpop.f32.mrf.mxu0
      %v464 = vadd.f32 0.0, %v463
      %v465 = vpop.f32.mrf.mxu0
      %v466 = vadd.f32 0.0, %v465
      %467 = vmatprep.mubr.bf16.mxu0 0
      %468 = vmatmul.mubr.bf16.gmra.mxu0 %v384
      %v469 = vpop.f32.mrf.mxu0
      %v470 = vadd.f32 0.0, %v469
      %v471 = vpop.f32.mrf.mxu0
      %v472 = vadd.f32 0.0, %v471
      %v473 = vpop.f32.mrf.mxu0
      %v474 = vadd.f32 0.0, %v473
      %v475 = vpop.f32.mrf.mxu0
      %v476 = vadd.f32 0.0, %v475
      %477 = vmatprep.mubr.bf16.mxu0 0
      %478 = vmatmul.mubr.bf16.gmra.mxu0 %v387
      %v479 = vpop.f32.mrf.mxu0
      %v480 = vadd.f32 0.0, %v479
      %v481 = vpop.f32.mrf.mxu0
      %v482 = vadd.f32 0.0, %v481
      %v483 = vpop.f32.mrf.mxu0
      %v484 = vadd.f32 0.0, %v483
      %v485 = vpop.f32.mrf.mxu0
      %v486 = vadd.f32 0.0, %v485
      %487 = vmatprep.mubr.bf16.mxu0 0
      %488 = vmatmul.mubr.bf16.gmra.mxu0 %v390
      %v489 = vpop.f32.mrf.mxu0
      %v490 = vadd.f32 0.0, %v489
      %v491 = vpop.f32.mrf.mxu0
      %v492 = vadd.f32 0.0, %v491
      %v493 = vpop.f32.mrf.mxu0
      %v494 = vadd.f32 0.0, %v493
      %v495 = vpop.f32.mrf.mxu0
      %v496 = vadd.f32 0.0, %v495
      %497 = vmatprep.mubr.bf16.mxu0 0
      %498 = vmatmul.mubr.bf16.gmra.mxu0 %v393
      %v499 = vpop.f32.mrf.mxu0
      %v500 = vadd.f32 0.0, %v499
      %v501 = vpop.f32.mrf.mxu0
      %v502 = vadd.f32 0.0, %v501
      %v503 = vpop.f32.mrf.mxu0
      %v504 = vadd.f32 0.0, %v503
      %v505 = vpop.f32.mrf.mxu0
      %v506 = vadd.f32 0.0, %v505
      %507 = vdwg.mxu0
      %508 = vmatprep.subr.bf16.mxu0 0
      %509 = vmatpush1.bf16.msra.mxu0 0
      %510 = vmatprep.subr.bf16.mxu0 0
      %511 = vmatpush1.bf16.msra.mxu0 0
      %512 = vmatprep.subr.bf16.mxu0 0
      %513 = vmatpush1.bf16.msra.mxu0 0
      %514 = vmatprep.subr.bf16.mxu0 0
      %515 = vmatpush1.bf16.msra.mxu0 0
      %516 = vmatprep.subr.bf16.mxu0 0
      %517 = vmatpush1.bf16.msra.mxu0 0
      %518 = vmatprep.subr.bf16.mxu0 0
      %519 = vmatpush1.bf16.msra.mxu0 0
      %520 = vmatprep.subr.bf16.mxu0 %v355
      %521 = vmatpush1.bf16.msra.mxu0 %v354
      %522 = vmatprep.subr.bf16.mxu0 %v349
      %523 = vmatpush1.bf16.msra.mxu0 %v348
      %524 = vmatprep.subr.bf16.mxu0 0
      %525 = vmatpush2.bf16.msra.mxu0 0
      %526 = vmatprep.subr.bf16.mxu0 0
      %527 = vmatpush2.bf16.msra.mxu0 0
      %528 = vmatprep.subr.bf16.mxu0 0
      %529 = vmatpush2.bf16.msra.mxu0 0
      %530 = vmatprep.subr.bf16.mxu0 0
      %531 = vmatpush2.bf16.msra.mxu0 0
      %532 = vmatprep.subr.bf16.mxu0 0
      %533 = vmatpush2.bf16.msra.mxu0 0
      %534 = vmatprep.subr.bf16.mxu0 0
      %535 = vmatpush2.bf16.msra.mxu0 0
      %536 = vmatprep.subr.bf16.mxu0 0
      %537 = vmatpush2.bf16.msra.mxu0 0
      %538 = vmatprep.subr.bf16.mxu0 0
      %539 = vmatpush2.bf16.msra.mxu0 0
      %540 = vmatprep.mubr.bf16.mxu0 0
      %541 = vmatmul.mubr.bf16.gmra.mxu0 %v372
      %v542 = vpop.f32.mrf.mxu0
      %v543 = vadd.f32 0.0, %v542
      %v544 = vpop.f32.mrf.mxu0
      %v545 = vadd.f32 0.0, %v544
      %v546 = vpop.f32.mrf.mxu0
      %v547 = vadd.f32 0.0, %v546
      %v548 = vpop.f32.mrf.mxu0
      %v549 = vadd.f32 0.0, %v548
      %550 = vmatprep.mubr.bf16.mxu0 0
      %551 = vmatmul.mubr.bf16.gmra.mxu0 %v375
      %v552 = vpop.f32.mrf.mxu0
      %v553 = vadd.f32 0.0, %v552
      %v554 = vpop.f32.mrf.mxu0
      %v555 = vadd.f32 0.0, %v554
      %v556 = vpop.f32.mrf.mxu0
      %v557 = vadd.f32 0.0, %v556
      %v558 = vpop.f32.mrf.mxu0
      %v559 = vadd.f32 0.0, %v558
      %560 = vmatprep.mubr.bf16.mxu0 0
      %561 = vmatmul.mubr.bf16.gmra.mxu0 %v378
      %v562 = vpop.f32.mrf.mxu0
      %v563 = vadd.f32 0.0, %v562
      %v564 = vpop.f32.mrf.mxu0
      %v565 = vadd.f32 0.0, %v564
      %v566 = vpop.f32.mrf.mxu0
      %v567 = vadd.f32 0.0, %v566
      %v568 = vpop.f32.mrf.mxu0
      %v569 = vadd.f32 0.0, %v568
      %570 = vmatprep.mubr.bf16.mxu0 0
      %571 = vmatmul.mubr.bf16.gmra.mxu0 %v381
      %v572 = vpop.f32.mrf.mxu0
      %v573 = vadd.f32 0.0, %v572
      %v574 = vpop.f32.mrf.mxu0
      %v575 = vadd.f32 0.0, %v574
      %v576 = vpop.f32.mrf.mxu0
      %v577 = vadd.f32 0.0, %v576
      %v578 = vpop.f32.mrf.mxu0
      %v579 = vadd.f32 0.0, %v578
      %580 = vmatprep.mubr.bf16.mxu0 0
      %581 = vmatmul.mubr.bf16.gmra.mxu0 %v384
      %v582 = vpop.f32.mrf.mxu0
      %v583 = vadd.f32 0.0, %v582
      %v584 = vpop.f32.mrf.mxu0
      %v585 = vadd.f32 0.0, %v584
      %v586 = vpop.f32.mrf.mxu0
      %v587 = vadd.f32 0.0, %v586
      %v588 = vpop.f32.mrf.mxu0
      %v589 = vadd.f32 0.0, %v588
      %590 = vmatprep.mubr.bf16.mxu0 0
      %591 = vmatmul.mubr.bf16.gmra.mxu0 %v387
      %v592 = vpop.f32.mrf.mxu0
      %v593 = vadd.f32 0.0, %v592
      %v594 = vpop.f32.mrf.mxu0
      %v595 = vadd.f32 0.0, %v594
      %v596 = vpop.f32.mrf.mxu0
      %v597 = vadd.f32 0.0, %v596
      %v598 = vpop.f32.mrf.mxu0
      %v599 = vadd.f32 0.0, %v598
      %600 = vmatprep.mubr.bf16.mxu0 0
      %601 = vmatmul.mubr.bf16.gmra.mxu0 %v390
      %v602 = vpop.f32.mrf.mxu0
      %v603 = vadd.f32 0.0, %v602
      %v604 = vpop.f32.mrf.mxu0
      %v605 = vadd.f32 0.0, %v604
      %v606 = vpop.f32.mrf.mxu0
      %v607 = vadd.f32 0.0, %v606
      %v608 = vpop.f32.mrf.mxu0
      %v609 = vadd.f32 0.0, %v608
      %610 = vmatprep.mubr.bf16.mxu0 0
      %611 = vmatmul.mubr.bf16.gmra.mxu0 %v393
      %v612 = vpop.f32.mrf.mxu0
      %v613 = vadd.f32 0.0, %v612
      %v614 = vpop.f32.mrf.mxu0
      %v615 = vadd.f32 0.0, %v614
      %v616 = vpop.f32.mrf.mxu0
      %v617 = vadd.f32 0.0, %v616
      %v618 = vpop.f32.mrf.mxu0
      %v619 = vadd.f32 0.0, %v618
      %620 = vdwg.mxu0
      %621 = vmatprep.subr.bf16.mxu0 0
      %622 = vmatpush1.bf16.msra.mxu0 0
      %623 = vmatprep.subr.bf16.mxu0 0
      %624 = vmatpush1.bf16.msra.mxu0 0
      %625 = vmatprep.subr.bf16.mxu0 0
      %626 = vmatpush1.bf16.msra.mxu0 0
      %627 = vmatprep.subr.bf16.mxu0 0
      %628 = vmatpush1.bf16.msra.mxu0 0
      %629 = vmatprep.subr.bf16.mxu0 0
      %630 = vmatpush1.bf16.msra.mxu0 0
      %631 = vmatprep.subr.bf16.mxu0 0
      %632 = vmatpush1.bf16.msra.mxu0 0
      %633 = vmatprep.subr.bf16.mxu0 %v357
      %634 = vmatpush1.bf16.msra.mxu0 %v356
      %635 = vmatprep.subr.bf16.mxu0 %v351
      %636 = vmatpush1.bf16.msra.mxu0 %v350
      %637 = vmatprep.subr.bf16.mxu0 0
      %638 = vmatpush2.bf16.msra.mxu0 0
      %639 = vmatprep.subr.bf16.mxu0 0
      %640 = vmatpush2.bf16.msra.mxu0 0
      %641 = vmatprep.subr.bf16.mxu0 0
      %642 = vmatpush2.bf16.msra.mxu0 0
      %643 = vmatprep.subr.bf16.mxu0 0
      %644 = vmatpush2.bf16.msra.mxu0 0
      %645 = vmatprep.subr.bf16.mxu0 0
      %646 = vmatpush2.bf16.msra.mxu0 0
      %647 = vmatprep.subr.bf16.mxu0 0
      %648 = vmatpush2.bf16.msra.mxu0 0
      %649 = vmatprep.subr.bf16.mxu0 0
      %650 = vmatpush2.bf16.msra.mxu0 0
      %651 = vmatprep.subr.bf16.mxu0 0
      %652 = vmatpush2.bf16.msra.mxu0 0
      %653 = vmatprep.mubr.bf16.mxu0 0
      %654 = vmatmul.mubr.bf16.gmra.mxu0 %v372
      %v655 = vpop.f32.mrf.mxu0
      %v656 = vadd.f32 0.0, %v655
      %v657 = vpop.f32.mrf.mxu0
      %v658 = vadd.f32 0.0, %v657
      %v659 = vpop.f32.mrf.mxu0
      %v660 = vadd.f32 0.0, %v659
      %v661 = vpop.f32.mrf.mxu0
      %v662 = vadd.f32 0.0, %v661
      %663 = vmatprep.mubr.bf16.mxu0 0
      %664 = vmatmul.mubr.bf16.gmra.mxu0 %v375
      %v665 = vpop.f32.mrf.mxu0
      %v666 = vadd.f32 0.0, %v665
      %v667 = vpop.f32.mrf.mxu0
      %v668 = vadd.f32 0.0, %v667
      %v669 = vpop.f32.mrf.mxu0
      %v670 = vadd.f32 0.0, %v669
      %v671 = vpop.f32.mrf.mxu0
      %v672 = vadd.f32 0.0, %v671
      %673 = vmatprep.mubr.bf16.mxu0 0
      %674 = vmatmul.mubr.bf16.gmra.mxu0 %v378
      %v675 = vpop.f32.mrf.mxu0
      %v676 = vadd.f32 0.0, %v675
      %v677 = vpop.f32.mrf.mxu0
      %v678 = vadd.f32 0.0, %v677
      %v679 = vpop.f32.mrf.mxu0
      %v680 = vadd.f32 0.0, %v679
      %v681 = vpop.f32.mrf.mxu0
      %v682 = vadd.f32 0.0, %v681
      %683 = vmatprep.mubr.bf16.mxu0 0
      %684 = vmatmul.mubr.bf16.gmra.mxu0 %v381
      %v685 = vpop.f32.mrf.mxu0
      %v686 = vadd.f32 0.0, %v685
      %v687 = vpop.f32.mrf.mxu0
      %v688 = vadd.f32 0.0, %v687
      %v689 = vpop.f32.mrf.mxu0
      %v690 = vadd.f32 0.0, %v689
      %v691 = vpop.f32.mrf.mxu0
      %v692 = vadd.f32 0.0, %v691
      %693 = vmatprep.mubr.bf16.mxu0 0
      %694 = vmatmul.mubr.bf16.gmra.mxu0 %v384
      %v695 = vpop.f32.mrf.mxu0
      %v696 = vadd.f32 0.0, %v695
      %v697 = vpop.f32.mrf.mxu0
      %v698 = vadd.f32 0.0, %v697
      %v699 = vpop.f32.mrf.mxu0
      %v700 = vadd.f32 0.0, %v699
      %v701 = vpop.f32.mrf.mxu0
      %v702 = vadd.f32 0.0, %v701
      %703 = vmatprep.mubr.bf16.mxu0 0
      %704 = vmatmul.mubr.bf16.gmra.mxu0 %v387
      %v705 = vpop.f32.mrf.mxu0
      %v706 = vadd.f32 0.0, %v705
      %v707 = vpop.f32.mrf.mxu0
      %v708 = vadd.f32 0.0, %v707
      %v709 = vpop.f32.mrf.mxu0
      %v710 = vadd.f32 0.0, %v709
      %v711 = vpop.f32.mrf.mxu0
      %v712 = vadd.f32 0.0, %v711
      %713 = vmatprep.mubr.bf16.mxu0 0
      %714 = vmatmul.mubr.bf16.gmra.mxu0 %v390
      %v715 = vpop.f32.mrf.mxu0
      %v716 = vadd.f32 0.0, %v715
      %v717 = vpop.f32.mrf.mxu0
      %v718 = vadd.f32 0.0, %v717
      %v719 = vpop.f32.mrf.mxu0
      %v720 = vadd.f32 0.0, %v719
      %v721 = vpop.f32.mrf.mxu0
      %v722 = vadd.f32 0.0, %v721
      %723 = vmatprep.mubr.bf16.mxu0 0
      %724 = vmatmul.mubr.bf16.gmra.mxu0 %v393
      %v725 = vpop.f32.mrf.mxu0
      %v726 = vadd.f32 0.0, %v725
      %v727 = vpop.f32.mrf.mxu0
      %v728 = vadd.f32 0.0, %v727
      %v729 = vpop.f32.mrf.mxu0
      %v730 = vadd.f32 0.0, %v729
      %v731 = vpop.f32.mrf.mxu0
      %v732 = vadd.f32 0.0, %v731
      %733 = vdwg.mxu0
      %v734 = vld [vmem:[%s225] sm:$0xff]
      %v735 = vld [vmem:[%s225 + $0x8] sm:$0xff]
      %v736 = vld [vmem:[%s225 + $0x10] sm:$0xff]
      %v737 = vld [vmem:[%s225 + $0x18] sm:$0xff]
      %v738 = vld [vmem:[%s225 + $0x20] sm:$0xff]
      %v739 = vld [vmem:[%s225 + $0x28] sm:$0xff]
      %v740 = vld [vmem:[%s225 + $0x30] sm:$0xff]
      %v741 = vld [vmem:[%s225 + $0x38] sm:$0xff]
      %v742 = vld [vmem:[%s225 + $0x40] sm:$0xff]
      %v743 = vld [vmem:[%s225 + $0x48] sm:$0xff]
      %v744 = vld [vmem:[%s225 + $0x50] sm:$0xff]
      %v745 = vld [vmem:[%s225 + $0x58] sm:$0xff]
      %v746 = vld [vmem:[%s225 + $0x60] sm:$0xff]
      %v747 = vld [vmem:[%s225 + $0x68] sm:$0xff]
      %v748 = vld [vmem:[%s225 + $0x70] sm:$0xff]
      %v749 = vld [vmem:[%s225 + $0x78] sm:$0xff]
      %v750 = vpack.c.bf16 %v434, %v430
      %v751 = vpack.c.bf16 %v436, %v432
      %v752 = vpack.c.bf16 %v547, %v543
      %v753 = vpack.c.bf16 %v444, %v440
      %v754 = vpack.c.bf16 %v446, %v442
      %v755 = vpack.c.bf16 %v557, %v553
      %v756 = vpack.c.bf16 %v454, %v450
      %v757 = vpack.c.bf16 %v456, %v452
      %v758 = vpack.c.bf16 %v567, %v563
      %v759 = vpack.c.bf16 %v464, %v460
      %v760 = vpack.c.bf16 %v466, %v462
      %v761 = vpack.c.bf16 %v577, %v573
      %v762 = vpack.c.bf16 %v474, %v470
      %v763 = vpack.c.bf16 %v476, %v472
      %v764 = vpack.c.bf16 %v587, %v583
      %v765 = vpack.c.bf16 %v484, %v480
      %v766 = vpack.c.bf16 %v486, %v482
      %v767 = vpack.c.bf16 %v597, %v593
      %v768 = vpack.c.bf16 %v494, %v490
      %v769 = vpack.c.bf16 %v496, %v492
      %v770 = vpack.c.bf16 %v607, %v603
      %v771 = vpack.c.bf16 %v504, %v500
      %v772 = vpack.c.bf16 %v506, %v502
      %v773 = vpack.c.bf16 %v617, %v613
      %v798 = vunpack.c.l.b16 %v750
      %v799 = vunpack.c.l.b16 %v751
      %v800 = vunpack.c.l.b16 %v752
      %v801 = vunpack.c.h.b16 %v750
      %v802 = vunpack.c.h.b16 %v751
      %v803 = vunpack.c.h.b16 %v752
      %v804 = vunpack.c.l.b16 %v753
      %v805 = vunpack.c.l.b16 %v754
      %v806 = vunpack.c.l.b16 %v755
      %v807 = vunpack.c.h.b16 %v753
      %v808 = vunpack.c.h.b16 %v754
      %v809 = vunpack.c.h.b16 %v755
      %v810 = vunpack.c.l.b16 %v756
      %v811 = vunpack.c.l.b16 %v757
      %v812 = vunpack.c.l.b16 %v758
      %v813 = vunpack.c.h.b16 %v756
      %v814 = vunpack.c.h.b16 %v757
      %v815 = vunpack.c.h.b16 %v758
      %v816 = vunpack.c.l.b16 %v759
      %v817 = vunpack.c.l.b16 %v760
      %v818 = vunpack.c.l.b16 %v761
      %v819 = vunpack.c.h.b16 %v759
      %v820 = vunpack.c.h.b16 %v760
      %v821 = vunpack.c.h.b16 %v761
      %v822 = vunpack.c.l.b16 %v762
      %v823 = vunpack.c.l.b16 %v763
      %v824 = vunpack.c.l.b16 %v764
      %v825 = vunpack.c.h.b16 %v762
      %v826 = vunpack.c.h.b16 %v763
      %v827 = vunpack.c.h.b16 %v764
      %v828 = vunpack.c.l.b16 %v765
      %v829 = vunpack.c.l.b16 %v766
      %v830 = vunpack.c.l.b16 %v767
      %v831 = vunpack.c.h.b16 %v765
      %v832 = vunpack.c.h.b16 %v766
      %v833 = vunpack.c.h.b16 %v767
      %v834 = vunpack.c.l.b16 %v768
      %v835 = vunpack.c.l.b16 %v769
      %v836 = vunpack.c.l.b16 %v770
      %v837 = vunpack.c.h.b16 %v768
      %v838 = vunpack.c.h.b16 %v769
      %v839 = vunpack.c.h.b16 %v770
      %v840 = vunpack.c.l.b16 %v771
      %v841 = vunpack.c.l.b16 %v772
      %v842 = vunpack.c.l.b16 %v773
      %v843 = vunpack.c.h.b16 %v771
      %v844 = vunpack.c.h.b16 %v772
      %v845 = vunpack.c.h.b16 %v773
      %v846 = vpack.c.b16 %v799, %v798
      %v847 = vpack.c.b16 %v800, %v800
      %v848 = vpack.c.b16 %v802, %v801
      %v849 = vpack.c.b16 %v803, %v803
      %v850 = vpack.c.b16 %v805, %v804
      %v851 = vpack.c.b16 %v806, %v806
      %v852 = vpack.c.b16 %v808, %v807
      %v853 = vpack.c.b16 %v809, %v809
      %v854 = vpack.c.b16 %v811, %v810
      %v855 = vpack.c.b16 %v812, %v812
      %v856 = vpack.c.b16 %v814, %v813
      %v857 = vpack.c.b16 %v815, %v815
      %v858 = vpack.c.b16 %v817, %v816
      %v859 = vpack.c.b16 %v818, %v818
      %v860 = vpack.c.b16 %v820, %v819
      %v861 = vpack.c.b16 %v821, %v821
      %v862 = vpack.c.b16 %v823, %v822
      %v863 = vpack.c.b16 %v824, %v824
      %v864 = vpack.c.b16 %v826, %v825
      %v865 = vpack.c.b16 %v827, %v827
      %v866 = vpack.c.b16 %v829, %v828
      %v867 = vpack.c.b16 %v830, %v830
      %v868 = vpack.c.b16 %v832, %v831
      %v869 = vpack.c.b16 %v833, %v833
      %v870 = vpack.c.b16 %v835, %v834
      %v871 = vpack.c.b16 %v836, %v836
      %v872 = vpack.c.b16 %v838, %v837
      %v873 = vpack.c.b16 %v839, %v839
      %v874 = vpack.c.b16 %v841, %v840
      %v875 = vpack.c.b16 %v842, %v842
      %v876 = vpack.c.b16 %v844, %v843
      %v877 = vpack.c.b16 %v845, %v845
      %910 = vst [vmem:[%s232] sm:$0xff] %v846
      %911 = vst [vmem:[%s232 + $0x8] sm:$0xf] %v847
      %912 = vst [vmem:[%s232 + $0x10] sm:$0xff] %v848
      %913 = vst [vmem:[%s232 + $0x18] sm:$0xf] %v849
      %914 = vst [vmem:[%s232 + $0x20] sm:$0xff] %v850
      %915 = vst [vmem:[%s232 + $0x28] sm:$0xf] %v851
      %916 = vst [vmem:[%s232 + $0x30] sm:$0xff] %v852
      %917 = vst [vmem:[%s232 + $0x38] sm:$0xf] %v853
      %918 = vst [vmem:[%s232 + $0x40] sm:$0xff] %v854
      %919 = vst [vmem:[%s232 + $0x48] sm:$0xf] %v855
      %920 = vst [vmem:[%s232 + $0x50] sm:$0xff] %v856
      %921 = vst [vmem:[%s232 + $0x58] sm:$0xf] %v857
      %922 = vst [vmem:[%s232 + $0x60] sm:$0xff] %v858
      %923 = vst [vmem:[%s232 + $0x68] sm:$0xf] %v859
      %924 = vst [vmem:[%s232 + $0x70] sm:$0xff] %v860
      %925 = vst [vmem:[%s232 + $0x78] sm:$0xf] %v861
      %926 = vst [vmem:[%s232 + $0x80] sm:$0xff] %v862
      %927 = vst [vmem:[%s232 + $0x88] sm:$0xf] %v863
      %928 = vst [vmem:[%s232 + $0x90] sm:$0xff] %v864
      %929 = vst [vmem:[%s232 + $0x98] sm:$0xf] %v865
      %930 = vst [vmem:[%s232 + $0xa0] sm:$0xff] %v866
      %931 = vst [vmem:[%s232 + $0xa8] sm:$0xf] %v867
      %932 = vst [vmem:[%s232 + $0xb0] sm:$0xff] %v868
      %933 = vst [vmem:[%s232 + $0xb8] sm:$0xf] %v869
      %934 = vst [vmem:[%s232 + $0xc0] sm:$0xff] %v870
      %935 = vst [vmem:[%s232 + $0xc8] sm:$0xf] %v871
      %936 = vst [vmem:[%s232 + $0xd0] sm:$0xff] %v872
      %937 = vst [vmem:[%s232 + $0xd8] sm:$0xf] %v873
      %938 = vst [vmem:[%s232 + $0xe0] sm:$0xff] %v874
      %939 = vst [vmem:[%s232 + $0xe8] sm:$0xf] %v875
      %940 = vst [vmem:[%s232 + $0xf0] sm:$0xff] %v876
      %941 = vst [vmem:[%s232 + $0xf8] sm:$0xf] %v877
      %943 = vset.pattern.permute.xlu0 2
      %944 = vperm.xlu0 %943, %v734
      %v945 = vpop.permute.xlu0 %944
      %948 = vset.pattern.permute.xlu0 2
      %949 = vperm.xlu0 %948, %v735
      %v950 = vpop.permute.xlu0 %949
      %953 = vset.pattern.permute.xlu0 2
      %954 = vperm.xlu0 %953, %v736
      %v955 = vpop.permute.xlu0 %954
      %958 = vset.pattern.permute.xlu0 2
      %959 = vperm.xlu0 %958, %v737
      %v960 = vpop.permute.xlu0 %959
      %963 = vset.pattern.permute.xlu0 2
      %964 = vperm.xlu0 %963, %v738
      %v965 = vpop.permute.xlu0 %964
      %968 = vset.pattern.permute.xlu0 2
      %969 = vperm.xlu0 %968, %v739
      %v970 = vpop.permute.xlu0 %969
      %973 = vset.pattern.permute.xlu0 2
      %974 = vperm.xlu0 %973, %v740
      %v975 = vpop.permute.xlu0 %974
      %978 = vset.pattern.permute.xlu0 2
      %979 = vperm.xlu0 %978, %v741
      %v980 = vpop.permute.xlu0 %979
      %983 = vset.pattern.permute.xlu0 2
      %984 = vperm.xlu0 %983, %v742
      %v985 = vpop.permute.xlu0 %984
      %988 = vset.pattern.permute.xlu0 2
      %989 = vperm.xlu0 %988, %v743
      %v990 = vpop.permute.xlu0 %989
      %993 = vset.pattern.permute.xlu0 2
      %994 = vperm.xlu0 %993, %v744
      %v995 = vpop.permute.xlu0 %994
      %998 = vset.pattern.permute.xlu0 2
      %999 = vperm.xlu0 %998, %v745
      %v1000 = vpop.permute.xlu0 %999
      %1003 = vset.pattern.permute.xlu0 2
      %1004 = vperm.xlu0 %1003, %v746
      %v1005 = vpop.permute.xlu0 %1004
      %1008 = vset.pattern.permute.xlu0 2
      %1009 = vperm.xlu0 %1008, %v747
      %v1010 = vpop.permute.xlu0 %1009
      %1013 = vset.pattern.permute.xlu0 2
      %1014 = vperm.xlu0 %1013, %v748
      %v1015 = vpop.permute.xlu0 %1014
      %1018 = vset.pattern.permute.xlu0 2
      %1019 = vperm.xlu0 %1018, %v749
      %v1020 = vpop.permute.xlu0 %1019
      %v1022 = vmul.f32 %v945, %v656
      %v1023 = vmul.f32 %v945, %v658
      %v1024 = vmul.f32 %v950, %v660
      %v1025 = vmul.f32 %v950, %v662
      %v1026 = vmul.f32 %v955, %v666
      %v1027 = vmul.f32 %v955, %v668
      %v1028 = vmul.f32 %v960, %v670
      %v1029 = vmul.f32 %v960, %v672
      %v1030 = vmul.f32 %v965, %v676
      %v1031 = vmul.f32 %v965, %v678
      %v1032 = vmul.f32 %v970, %v680
      %v1033 = vmul.f32 %v970, %v682
      %v1034 = vmul.f32 %v975, %v686
      %v1035 = vmul.f32 %v975, %v688
      %v1036 = vmul.f32 %v980, %v690
      %v1037 = vmul.f32 %v980, %v692
      %v1038 = vmul.f32 %v985, %v696
      %v1039 = vmul.f32 %v985, %v698
      %v1040 = vmul.f32 %v990, %v700
      %v1041 = vmul.f32 %v990, %v702
      %v1042 = vmul.f32 %v995, %v706
      %v1043 = vmul.f32 %v995, %v708
      %v1044 = vmul.f32 %v1000, %v710
      %v1045 = vmul.f32 %v1000, %v712
      %v1046 = vmul.f32 %v1005, %v716
      %v1047 = vmul.f32 %v1005, %v718
      %v1048 = vmul.f32 %v1010, %v720
      %v1049 = vmul.f32 %v1010, %v722
      %v1050 = vmul.f32 %v1015, %v726
      %v1051 = vmul.f32 %v1015, %v728
      %v1052 = vmul.f32 %v1020, %v730
      %v1053 = vmul.f32 %v1020, %v732
      %1054 = vset.pattern.permute.xlu0 3
      %1055 = vperm.xlu0 %1054, %v734
      %v1056 = vpop.permute.xlu0 %1055
      %1058 = vset.pattern.permute.xlu0 3
      %1059 = vperm.xlu0 %1058, %v735
      %v1060 = vpop.permute.xlu0 %1059
      %1062 = vset.pattern.permute.xlu0 3
      %1063 = vperm.xlu0 %1062, %v736
      %v1064 = vpop.permute.xlu0 %1063
      %1066 = vset.pattern.permute.xlu0 3
      %1067 = vperm.xlu0 %1066, %v737
      %v1068 = vpop.permute.xlu0 %1067
      %1070 = vset.pattern.permute.xlu0 3
      %1071 = vperm.xlu0 %1070, %v738
      %v1072 = vpop.permute.xlu0 %1071
      %1074 = vset.pattern.permute.xlu0 3
      %1075 = vperm.xlu0 %1074, %v739
      %v1076 = vpop.permute.xlu0 %1075
      %1078 = vset.pattern.permute.xlu0 3
      %1079 = vperm.xlu0 %1078, %v740
      %v1080 = vpop.permute.xlu0 %1079
      %1082 = vset.pattern.permute.xlu0 3
      %1083 = vperm.xlu0 %1082, %v741
      %v1084 = vpop.permute.xlu0 %1083
      %1086 = vset.pattern.permute.xlu0 3
      %1087 = vperm.xlu0 %1086, %v742
      %v1088 = vpop.permute.xlu0 %1087
      %1090 = vset.pattern.permute.xlu0 3
      %1091 = vperm.xlu0 %1090, %v743
      %v1092 = vpop.permute.xlu0 %1091
      %1094 = vset.pattern.permute.xlu0 3
      %1095 = vperm.xlu0 %1094, %v744
      %v1096 = vpop.permute.xlu0 %1095
      %1098 = vset.pattern.permute.xlu0 3
      %1099 = vperm.xlu0 %1098, %v745
      %v1100 = vpop.permute.xlu0 %1099
      %1102 = vset.pattern.permute.xlu0 3
      %1103 = vperm.xlu0 %1102, %v746
      %v1104 = vpop.permute.xlu0 %1103
      %1106 = vset.pattern.permute.xlu0 3
      %1107 = vperm.xlu0 %1106, %v747
      %v1108 = vpop.permute.xlu0 %1107
      %1110 = vset.pattern.permute.xlu0 3
      %1111 = vperm.xlu0 %1110, %v748
      %v1112 = vpop.permute.xlu0 %1111
      %1114 = vset.pattern.permute.xlu0 3
      %1115 = vperm.xlu0 %1114, %v749
      %v1116 = vpop.permute.xlu0 %1115
      %v1118 = vmul.f32 %v1056, %v545
      %v1119 = vmul.f32 %v1056, %v656
      %v1120 = vmul.f32 %v1060, %v549
      %v1121 = vmul.f32 %v1060, %v660
      %v1122 = vmul.f32 %v1064, %v555
      %v1123 = vmul.f32 %v1064, %v666
      %v1124 = vmul.f32 %v1068, %v559
      %v1125 = vmul.f32 %v1068, %v670
      %v1126 = vmul.f32 %v1072, %v565
      %v1127 = vmul.f32 %v1072, %v676
      %v1128 = vmul.f32 %v1076, %v569
      %v1129 = vmul.f32 %v1076, %v680
      %v1130 = vmul.f32 %v1080, %v575
      %v1131 = vmul.f32 %v1080, %v686
      %v1132 = vmul.f32 %v1084, %v579
      %v1133 = vmul.f32 %v1084, %v690
      %v1134 = vmul.f32 %v1088, %v585
      %v1135 = vmul.f32 %v1088, %v696
      %v1136 = vmul.f32 %v1092, %v589
      %v1137 = vmul.f32 %v1092, %v700
      %v1138 = vmul.f32 %v1096, %v595
      %v1139 = vmul.f32 %v1096, %v706
      %v1140 = vmul.f32 %v1100, %v599
      %v1141 = vmul.f32 %v1100, %v710
      %v1142 = vmul.f32 %v1104, %v605
      %v1143 = vmul.f32 %v1104, %v716
      %v1144 = vmul.f32 %v1108, %v609
      %v1145 = vmul.f32 %v1108, %v720
      %v1146 = vmul.f32 %v1112, %v615
      %v1147 = vmul.f32 %v1112, %v726
      %v1148 = vmul.f32 %v1116, %v619
      %v1149 = vmul.f32 %v1116, %v730
      %1182 = vrot.lane.b32.xlu0 %v1118, 96
      %v1183 = vpop.permute.xlu0 %1182
      %1184 = vrot.lane.b32.xlu0 %v1119, 96
      %v1185 = vpop.permute.xlu0 %1184
      %1186 = vrot.lane.b32.xlu0 %v1120, 96
      %v1187 = vpop.permute.xlu0 %1186
      %1188 = vrot.lane.b32.xlu0 %v1121, 96
      %v1189 = vpop.permute.xlu0 %1188
      %1190 = vrot.lane.b32.xlu0 %v1122, 96
      %v1191 = vpop.permute.xlu0 %1190
      %1192 = vrot.lane.b32.xlu0 %v1123, 96
      %v1193 = vpop.permute.xlu0 %1192
      %1194 = vrot.lane.b32.xlu0 %v1124, 96
      %v1195 = vpop.permute.xlu0 %1194
      %1196 = vrot.lane.b32.xlu0 %v1125, 96
      %v1197 = vpop.permute.xlu0 %1196
      %1198 = vrot.lane.b32.xlu0 %v1126, 96
      %v1199 = vpop.permute.xlu0 %1198
      %1200 = vrot.lane.b32.xlu0 %v1127, 96
      %v1201 = vpop.permute.xlu0 %1200
      %1202 = vrot.lane.b32.xlu0 %v1128, 96
      %v1203 = vpop.permute.xlu0 %1202
      %1204 = vrot.lane.b32.xlu0 %v1129, 96
      %v1205 = vpop.permute.xlu0 %1204
      %1206 = vrot.lane.b32.xlu0 %v1130, 96
      %v1207 = vpop.permute.xlu0 %1206
      %1208 = vrot.lane.b32.xlu0 %v1131, 96
      %v1209 = vpop.permute.xlu0 %1208
      %1210 = vrot.lane.b32.xlu0 %v1132, 96
      %v1211 = vpop.permute.xlu0 %1210
      %1212 = vrot.lane.b32.xlu0 %v1133, 96
      %v1213 = vpop.permute.xlu0 %1212
      %1214 = vrot.lane.b32.xlu0 %v1134, 96
      %v1215 = vpop.permute.xlu0 %1214
      %1216 = vrot.lane.b32.xlu0 %v1135, 96
      %v1217 = vpop.permute.xlu0 %1216
      %1218 = vrot.lane.b32.xlu0 %v1136, 96
      %v1219 = vpop.permute.xlu0 %1218
      %1220 = vrot.lane.b32.xlu0 %v1137, 96
      %v1221 = vpop.permute.xlu0 %1220
      %1222 = vrot.lane.b32.xlu0 %v1138, 96
      %v1223 = vpop.permute.xlu0 %1222
      %1224 = vrot.lane.b32.xlu0 %v1139, 96
      %v1225 = vpop.permute.xlu0 %1224
      %1226 = vrot.lane.b32.xlu0 %v1140, 96
      %v1227 = vpop.permute.xlu0 %1226
      %1228 = vrot.lane.b32.xlu0 %v1141, 96
      %v1229 = vpop.permute.xlu0 %1228
      %1230 = vrot.lane.b32.xlu0 %v1142, 96
      %v1231 = vpop.permute.xlu0 %1230
      %1232 = vrot.lane.b32.xlu0 %v1143, 96
      %v1233 = vpop.permute.xlu0 %1232
      %1234 = vrot.lane.b32.xlu0 %v1144, 96
      %v1235 = vpop.permute.xlu0 %1234
      %1236 = vrot.lane.b32.xlu0 %v1145, 96
      %v1237 = vpop.permute.xlu0 %1236
      %1238 = vrot.lane.b32.xlu0 %v1146, 96
      %v1239 = vpop.permute.xlu0 %1238
      %1240 = vrot.lane.b32.xlu0 %v1147, 96
      %v1241 = vpop.permute.xlu0 %1240
      %1242 = vrot.lane.b32.xlu0 %v1148, 96
      %v1243 = vpop.permute.xlu0 %1242
      %1244 = vrot.lane.b32.xlu0 %v1149, 96
      %v1245 = vpop.permute.xlu0 %1244
      %vm1246 = vcmask 785408
      %v1247 = vsel %vm1246, %v1183, %v1185
      %v1248 = vsel %vm1246, %v1187, %v1189
      %v1249 = vsel %vm1246, %v1191, %v1193
      %v1250 = vsel %vm1246, %v1195, %v1197
      %v1251 = vsel %vm1246, %v1199, %v1201
      %v1252 = vsel %vm1246, %v1203, %v1205
      %v1253 = vsel %vm1246, %v1207, %v1209
      %v1254 = vsel %vm1246, %v1211, %v1213
      %v1255 = vsel %vm1246, %v1215, %v1217
      %v1256 = vsel %vm1246, %v1219, %v1221
      %v1257 = vsel %vm1246, %v1223, %v1225
      %v1258 = vsel %vm1246, %v1227, %v1229
      %v1259 = vsel %vm1246, %v1231, %v1233
      %v1260 = vsel %vm1246, %v1235, %v1237
      %v1261 = vsel %vm1246, %v1239, %v1241
      %v1262 = vsel %vm1246, %v1243, %v1245
      %v1295 = vsub.f32 %v1022, %v1247
      %v1296 = vsub.f32 %v1023, %v1185
      %v1297 = vsub.f32 %v1024, %v1248
      %v1298 = vsub.f32 %v1025, %v1189
      %v1299 = vsub.f32 %v1026, %v1249
      %v1300 = vsub.f32 %v1027, %v1193
      %v1301 = vsub.f32 %v1028, %v1250
      %v1302 = vsub.f32 %v1029, %v1197
      %v1303 = vsub.f32 %v1030, %v1251
      %v1304 = vsub.f32 %v1031, %v1201
      %v1305 = vsub.f32 %v1032, %v1252
      %v1306 = vsub.f32 %v1033, %v1205
      %v1307 = vsub.f32 %v1034, %v1253
      %v1308 = vsub.f32 %v1035, %v1209
      %v1309 = vsub.f32 %v1036, %v1254
      %v1310 = vsub.f32 %v1037, %v1213
      %v1311 = vsub.f32 %v1038, %v1255
      %v1312 = vsub.f32 %v1039, %v1217
      %v1313 = vsub.f32 %v1040, %v1256
      %v1314 = vsub.f32 %v1041, %v1221
      %v1315 = vsub.f32 %v1042, %v1257
      %v1316 = vsub.f32 %v1043, %v1225
      %v1317 = vsub.f32 %v1044, %v1258
      %v1318 = vsub.f32 %v1045, %v1229
      %v1319 = vsub.f32 %v1046, %v1259
      %v1320 = vsub.f32 %v1047, %v1233
      %v1321 = vsub.f32 %v1048, %v1260
      %v1322 = vsub.f32 %v1049, %v1237
      %v1323 = vsub.f32 %v1050, %v1261
      %v1324 = vsub.f32 %v1051, %v1241
      %v1325 = vsub.f32 %v1052, %v1262
      %v1326 = vsub.f32 %v1053, %v1245
      %1327 = vset.pattern.permute.xlu0 0
      %1328 = vperm.xlu0 %1327, %v734
      %v1329 = vpop.permute.xlu0 %1328
      %1331 = vset.pattern.permute.xlu0 0
      %1332 = vperm.xlu0 %1331, %v735
      %v1333 = vpop.permute.xlu0 %1332
      %1335 = vset.pattern.permute.xlu0 0
      %1336 = vperm.xlu0 %1335, %v736
      %v1337 = vpop.permute.xlu0 %1336
      %1339 = vset.pattern.permute.xlu0 0
      %1340 = vperm.xlu0 %1339, %v737
      %v1341 = vpop.permute.xlu0 %1340
      %1343 = vset.pattern.permute.xlu0 0
      %1344 = vperm.xlu0 %1343, %v738
      %v1345 = vpop.permute.xlu0 %1344
      %1347 = vset.pattern.permute.xlu0 0
      %1348 = vperm.xlu0 %1347, %v739
      %v1349 = vpop.permute.xlu0 %1348
      %1351 = vset.pattern.permute.xlu0 0
      %1352 = vperm.xlu0 %1351, %v740
      %v1353 = vpop.permute.xlu0 %1352
      %1355 = vset.pattern.permute.xlu0 0
      %1356 = vperm.xlu0 %1355, %v741
      %v1357 = vpop.permute.xlu0 %1356
      %1359 = vset.pattern.permute.xlu0 0
      %1360 = vperm.xlu0 %1359, %v742
      %v1361 = vpop.permute.xlu0 %1360
      %1363 = vset.pattern.permute.xlu0 0
      %1364 = vperm.xlu0 %1363, %v743
      %v1365 = vpop.permute.xlu0 %1364
      %1367 = vset.pattern.permute.xlu0 0
      %1368 = vperm.xlu0 %1367, %v744
      %v1369 = vpop.permute.xlu0 %1368
      %1371 = vset.pattern.permute.xlu0 0
      %1372 = vperm.xlu0 %1371, %v745
      %v1373 = vpop.permute.xlu0 %1372
      %1375 = vset.pattern.permute.xlu0 0
      %1376 = vperm.xlu0 %1375, %v746
      %v1377 = vpop.permute.xlu0 %1376
      %1379 = vset.pattern.permute.xlu0 0
      %1380 = vperm.xlu0 %1379, %v747
      %v1381 = vpop.permute.xlu0 %1380
      %1383 = vset.pattern.permute.xlu0 0
      %1384 = vperm.xlu0 %1383, %v748
      %v1385 = vpop.permute.xlu0 %1384
      %1387 = vset.pattern.permute.xlu0 0
      %1388 = vperm.xlu0 %1387, %v749
      %v1389 = vpop.permute.xlu0 %1388
      %v1391 = vmul.f32 %v1329, %v545
      %v1392 = vmul.f32 %v1333, %v549
      %v1393 = vmul.f32 %v1337, %v555
      %v1394 = vmul.f32 %v1341, %v559
      %v1395 = vmul.f32 %v1345, %v565
      %v1396 = vmul.f32 %v1349, %v569
      %v1397 = vmul.f32 %v1353, %v575
      %v1398 = vmul.f32 %v1357, %v579
      %v1399 = vmul.f32 %v1361, %v585
      %v1400 = vmul.f32 %v1365, %v589
      %v1401 = vmul.f32 %v1369, %v595
      %v1402 = vmul.f32 %v1373, %v599
      %v1403 = vmul.f32 %v1377, %v605
      %v1404 = vmul.f32 %v1381, %v609
      %v1405 = vmul.f32 %v1385, %v615
      %v1406 = vmul.f32 %v1389, %v619
      %1423 = vrot.lane.b32.xlu0 %v1391, 64
      %v1424 = vpop.permute.xlu0 %1423
      %1425 = vrot.lane.b32.xlu0 %v1392, 64
      %v1426 = vpop.permute.xlu0 %1425
      %1427 = vrot.lane.b32.xlu0 %v1393, 64
      %v1428 = vpop.permute.xlu0 %1427
      %1429 = vrot.lane.b32.xlu0 %v1394, 64
      %v1430 = vpop.permute.xlu0 %1429
      %1431 = vrot.lane.b32.xlu0 %v1395, 64
      %v1432 = vpop.permute.xlu0 %1431
      %1433 = vrot.lane.b32.xlu0 %v1396, 64
      %v1434 = vpop.permute.xlu0 %1433
      %1435 = vrot.lane.b32.xlu0 %v1397, 64
      %v1436 = vpop.permute.xlu0 %1435
      %1437 = vrot.lane.b32.xlu0 %v1398, 64
      %v1438 = vpop.permute.xlu0 %1437
      %1439 = vrot.lane.b32.xlu0 %v1399, 64
      %v1440 = vpop.permute.xlu0 %1439
      %1441 = vrot.lane.b32.xlu0 %v1400, 64
      %v1442 = vpop.permute.xlu0 %1441
      %1443 = vrot.lane.b32.xlu0 %v1401, 64
      %v1444 = vpop.permute.xlu0 %1443
      %1445 = vrot.lane.b32.xlu0 %v1402, 64
      %v1446 = vpop.permute.xlu0 %1445
      %1447 = vrot.lane.b32.xlu0 %v1403, 64
      %v1448 = vpop.permute.xlu0 %1447
      %1449 = vrot.lane.b32.xlu0 %v1404, 64
      %v1450 = vpop.permute.xlu0 %1449
      %1451 = vrot.lane.b32.xlu0 %v1405, 64
      %v1452 = vpop.permute.xlu0 %1451
      %1453 = vrot.lane.b32.xlu0 %v1406, 64
      %v1454 = vpop.permute.xlu0 %1453
      %v1471 = vadd.f32 %v1295, %v1424
      %v1472 = vadd.f32 %v1296, %v1424
      %v1473 = vadd.f32 %v1297, %v1426
      %v1474 = vadd.f32 %v1298, %v1426
      %v1475 = vadd.f32 %v1299, %v1428
      %v1476 = vadd.f32 %v1300, %v1428
      %v1477 = vadd.f32 %v1301, %v1430
      %v1478 = vadd.f32 %v1302, %v1430
      %v1479 = vadd.f32 %v1303, %v1432
      %v1480 = vadd.f32 %v1304, %v1432
      %v1481 = vadd.f32 %v1305, %v1434
      %v1482 = vadd.f32 %v1306, %v1434
      %v1483 = vadd.f32 %v1307, %v1436
      %v1484 = vadd.f32 %v1308, %v1436
      %v1485 = vadd.f32 %v1309, %v1438
      %v1486 = vadd.f32 %v1310, %v1438
      %v1487 = vadd.f32 %v1311, %v1440
      %v1488 = vadd.f32 %v1312, %v1440
      %v1489 = vadd.f32 %v1313, %v1442
      %v1490 = vadd.f32 %v1314, %v1442
      %v1491 = vadd.f32 %v1315, %v1444
      %v1492 = vadd.f32 %v1316, %v1444
      %v1493 = vadd.f32 %v1317, %v1446
      %v1494 = vadd.f32 %v1318, %v1446
      %v1495 = vadd.f32 %v1319, %v1448
      %v1496 = vadd.f32 %v1320, %v1448
      %v1497 = vadd.f32 %v1321, %v1450
      %v1498 = vadd.f32 %v1322, %v1450
      %v1499 = vadd.f32 %v1323, %v1452
      %v1500 = vadd.f32 %v1324, %v1452
      %v1501 = vadd.f32 %v1325, %v1454
      %v1502 = vadd.f32 %v1326, %v1454
      %1503 = vset.pattern.permute.xlu0 1
      %1504 = vperm.xlu0 %1503, %v734
      %v1505 = vpop.permute.xlu0 %1504
      %1507 = vset.pattern.permute.xlu0 1
      %1508 = vperm.xlu0 %1507, %v735
      %v1509 = vpop.permute.xlu0 %1508
      %1511 = vset.pattern.permute.xlu0 1
      %1512 = vperm.xlu0 %1511, %v736
      %v1513 = vpop.permute.xlu0 %1512
      %1515 = vset.pattern.permute.xlu0 1
      %1516 = vperm.xlu0 %1515, %v737
      %v1517 = vpop.permute.xlu0 %1516
      %1519 = vset.pattern.permute.xlu0 1
      %1520 = vperm.xlu0 %1519, %v738
      %v1521 = vpop.permute.xlu0 %1520
      %1523 = vset.pattern.permute.xlu0 1
      %1524 = vperm.xlu0 %1523, %v739
      %v1525 = vpop.permute.xlu0 %1524
      %1527 = vset.pattern.permute.xlu0 1
      %1528 = vperm.xlu0 %1527, %v740
      %v1529 = vpop.permute.xlu0 %1528
      %1531 = vset.pattern.permute.xlu0 1
      %1532 = vperm.xlu0 %1531, %v741
      %v1533 = vpop.permute.xlu0 %1532
      %1535 = vset.pattern.permute.xlu0 1
      %1536 = vperm.xlu0 %1535, %v742
      %v1537 = vpop.permute.xlu0 %1536
      %1539 = vset.pattern.permute.xlu0 1
      %1540 = vperm.xlu0 %1539, %v743
      %v1541 = vpop.permute.xlu0 %1540
      %1543 = vset.pattern.permute.xlu0 1
      %1544 = vperm.xlu0 %1543, %v744
      %v1545 = vpop.permute.xlu0 %1544
      %1547 = vset.pattern.permute.xlu0 1
      %1548 = vperm.xlu0 %1547, %v745
      %v1549 = vpop.permute.xlu0 %1548
      %1551 = vset.pattern.permute.xlu0 1
      %1552 = vperm.xlu0 %1551, %v746
      %v1553 = vpop.permute.xlu0 %1552
      %1555 = vset.pattern.permute.xlu0 1
      %1556 = vperm.xlu0 %1555, %v747
      %v1557 = vpop.permute.xlu0 %1556
      %1559 = vset.pattern.permute.xlu0 1
      %1560 = vperm.xlu0 %1559, %v748
      %v1561 = vpop.permute.xlu0 %1560
      %1563 = vset.pattern.permute.xlu0 1
      %1564 = vperm.xlu0 %1563, %v749
      %v1565 = vpop.permute.xlu0 %1564
      %v1567 = vmul.f32 %v1505, %v656
      %v1568 = vmul.f32 %v1505, %v658
      %v1569 = vmul.f32 %v1509, %v660
      %v1570 = vmul.f32 %v1509, %v662
      %v1571 = vmul.f32 %v1513, %v666
      %v1572 = vmul.f32 %v1513, %v668
      %v1573 = vmul.f32 %v1517, %v670
      %v1574 = vmul.f32 %v1517, %v672
      %v1575 = vmul.f32 %v1521, %v676
      %v1576 = vmul.f32 %v1521, %v678
      %v1577 = vmul.f32 %v1525, %v680
      %v1578 = vmul.f32 %v1525, %v682
      %v1579 = vmul.f32 %v1529, %v686
      %v1580 = vmul.f32 %v1529, %v688
      %v1581 = vmul.f32 %v1533, %v690
      %v1582 = vmul.f32 %v1533, %v692
      %v1583 = vmul.f32 %v1537, %v696
      %v1584 = vmul.f32 %v1537, %v698
      %v1585 = vmul.f32 %v1541, %v700
      %v1586 = vmul.f32 %v1541, %v702
      %v1587 = vmul.f32 %v1545, %v706
      %v1588 = vmul.f32 %v1545, %v708
      %v1589 = vmul.f32 %v1549, %v710
      %v1590 = vmul.f32 %v1549, %v712
      %v1591 = vmul.f32 %v1553, %v716
      %v1592 = vmul.f32 %v1553, %v718
      %v1593 = vmul.f32 %v1557, %v720
      %v1594 = vmul.f32 %v1557, %v722
      %v1595 = vmul.f32 %v1561, %v726
      %v1596 = vmul.f32 %v1561, %v728
      %v1597 = vmul.f32 %v1565, %v730
      %v1598 = vmul.f32 %v1565, %v732
      %1631 = vrot.lane.b32.xlu0 %v1567, 64
      %v1632 = vpop.permute.xlu0 %1631
      %1633 = vrot.lane.b32.xlu0 %v1568, 64
      %v1634 = vpop.permute.xlu0 %1633
      %1635 = vrot.lane.b32.xlu0 %v1569, 64
      %v1636 = vpop.permute.xlu0 %1635
      %1637 = vrot.lane.b32.xlu0 %v1570, 64
      %v1638 = vpop.permute.xlu0 %1637
      %1639 = vrot.lane.b32.xlu0 %v1571, 64
      %v1640 = vpop.permute.xlu0 %1639
      %1641 = vrot.lane.b32.xlu0 %v1572, 64
      %v1642 = vpop.permute.xlu0 %1641
      %1643 = vrot.lane.b32.xlu0 %v1573, 64
      %v1644 = vpop.permute.xlu0 %1643
      %1645 = vrot.lane.b32.xlu0 %v1574, 64
      %v1646 = vpop.permute.xlu0 %1645
      %1647 = vrot.lane.b32.xlu0 %v1575, 64
      %v1648 = vpop.permute.xlu0 %1647
      %1649 = vrot.lane.b32.xlu0 %v1576, 64
      %v1650 = vpop.permute.xlu0 %1649
      %1651 = vrot.lane.b32.xlu0 %v1577, 64
      %v1652 = vpop.permute.xlu0 %1651
      %1653 = vrot.lane.b32.xlu0 %v1578, 64
      %v1654 = vpop.permute.xlu0 %1653
      %1655 = vrot.lane.b32.xlu0 %v1579, 64
      %v1656 = vpop.permute.xlu0 %1655
      %1657 = vrot.lane.b32.xlu0 %v1580, 64
      %v1658 = vpop.permute.xlu0 %1657
      %1659 = vrot.lane.b32.xlu0 %v1581, 64
      %v1660 = vpop.permute.xlu0 %1659
      %1661 = vrot.lane.b32.xlu0 %v1582, 64
      %v1662 = vpop.permute.xlu0 %1661
      %1663 = vrot.lane.b32.xlu0 %v1583, 64
      %v1664 = vpop.permute.xlu0 %1663
      %1665 = vrot.lane.b32.xlu0 %v1584, 64
      %v1666 = vpop.permute.xlu0 %1665
      %1667 = vrot.lane.b32.xlu0 %v1585, 64
      %v1668 = vpop.permute.xlu0 %1667
      %1669 = vrot.lane.b32.xlu0 %v1586, 64
      %v1670 = vpop.permute.xlu0 %1669
      %1671 = vrot.lane.b32.xlu0 %v1587, 64
      %v1672 = vpop.permute.xlu0 %1671
      %1673 = vrot.lane.b32.xlu0 %v1588, 64
      %v1674 = vpop.permute.xlu0 %1673
      %1675 = vrot.lane.b32.xlu0 %v1589, 64
      %v1676 = vpop.permute.xlu0 %1675
      %1677 = vrot.lane.b32.xlu0 %v1590, 64
      %v1678 = vpop.permute.xlu0 %1677
      %1679 = vrot.lane.b32.xlu0 %v1591, 64
      %v1680 = vpop.permute.xlu0 %1679
      %1681 = vrot.lane.b32.xlu0 %v1592, 64
      %v1682 = vpop.permute.xlu0 %1681
      %1683 = vrot.lane.b32.xlu0 %v1593, 64
      %v1684 = vpop.permute.xlu0 %1683
      %1685 = vrot.lane.b32.xlu0 %v1594, 64
      %v1686 = vpop.permute.xlu0 %1685
      %1687 = vrot.lane.b32.xlu0 %v1595, 64
      %v1688 = vpop.permute.xlu0 %1687
      %1689 = vrot.lane.b32.xlu0 %v1596, 64
      %v1690 = vpop.permute.xlu0 %1689
      %1691 = vrot.lane.b32.xlu0 %v1597, 64
      %v1692 = vpop.permute.xlu0 %1691
      %1693 = vrot.lane.b32.xlu0 %v1598, 64
      %v1694 = vpop.permute.xlu0 %1693
      %vm1695 = vcmask 523264
      %v1696 = vsel %vm1695, %v1632, %v1634
      %v1697 = vsel %vm1695, %v1636, %v1638
      %v1698 = vsel %vm1695, %v1640, %v1642
      %v1699 = vsel %vm1695, %v1644, %v1646
      %v1700 = vsel %vm1695, %v1648, %v1650
      %v1701 = vsel %vm1695, %v1652, %v1654
      %v1702 = vsel %vm1695, %v1656, %v1658
      %v1703 = vsel %vm1695, %v1660, %v1662
      %v1704 = vsel %vm1695, %v1664, %v1666
      %v1705 = vsel %vm1695, %v1668, %v1670
      %v1706 = vsel %vm1695, %v1672, %v1674
      %v1707 = vsel %vm1695, %v1676, %v1678
      %v1708 = vsel %vm1695, %v1680, %v1682
      %v1709 = vsel %vm1695, %v1684, %v1686
      %v1710 = vsel %vm1695, %v1688, %v1690
      %v1711 = vsel %vm1695, %v1692, %v1694
      %v1728 = vsub.f32 %v1118, %v1696
      %v1729 = vsub.f32 %v1120, %v1697
      %v1730 = vsub.f32 %v1122, %v1698
      %v1731 = vsub.f32 %v1124, %v1699
      %v1732 = vsub.f32 %v1126, %v1700
      %v1733 = vsub.f32 %v1128, %v1701
      %v1734 = vsub.f32 %v1130, %v1702
      %v1735 = vsub.f32 %v1132, %v1703
      %v1736 = vsub.f32 %v1134, %v1704
      %v1737 = vsub.f32 %v1136, %v1705
      %v1738 = vsub.f32 %v1138, %v1706
      %v1739 = vsub.f32 %v1140, %v1707
      %v1740 = vsub.f32 %v1142, %v1708
      %v1741 = vsub.f32 %v1144, %v1709
      %v1742 = vsub.f32 %v1146, %v1710
      %v1743 = vsub.f32 %v1148, %v1711
      %v1744 = vmul.f32 %v1329, %v656
      %v1745 = vmul.f32 %v1333, %v660
      %v1746 = vmul.f32 %v1337, %v666
      %v1747 = vmul.f32 %v1341, %v670
      %v1748 = vmul.f32 %v1345, %v676
      %v1749 = vmul.f32 %v1349, %v680
      %v1750 = vmul.f32 %v1353, %v686
      %v1751 = vmul.f32 %v1357, %v690
      %v1752 = vmul.f32 %v1361, %v696
      %v1753 = vmul.f32 %v1365, %v700
      %v1754 = vmul.f32 %v1369, %v706
      %v1755 = vmul.f32 %v1373, %v710
      %v1756 = vmul.f32 %v1377, %v716
      %v1757 = vmul.f32 %v1381, %v720
      %v1758 = vmul.f32 %v1385, %v726
      %v1759 = vmul.f32 %v1389, %v730
      %1776 = vrot.lane.b32.xlu0 %v1391, 32
      %v1777 = vpop.permute.xlu0 %1776
      %1778 = vrot.lane.b32.xlu0 %v1744, 32
      %v1779 = vpop.permute.xlu0 %1778
      %1780 = vrot.lane.b32.xlu0 %v1392, 32
      %v1781 = vpop.permute.xlu0 %1780
      %1782 = vrot.lane.b32.xlu0 %v1745, 32
      %v1783 = vpop.permute.xlu0 %1782
      %1784 = vrot.lane.b32.xlu0 %v1393, 32
      %v1785 = vpop.permute.xlu0 %1784
      %1786 = vrot.lane.b32.xlu0 %v1746, 32
      %v1787 = vpop.permute.xlu0 %1786
      %1788 = vrot.lane.b32.xlu0 %v1394, 32
      %v1789 = vpop.permute.xlu0 %1788
      %1790 = vrot.lane.b32.xlu0 %v1747, 32
      %v1791 = vpop.permute.xlu0 %1790
      %1792 = vrot.lane.b32.xlu0 %v1395, 32
      %v1793 = vpop.permute.xlu0 %1792
      %1794 = vrot.lane.b32.xlu0 %v1748, 32
      %v1795 = vpop.permute.xlu0 %1794
      %1796 = vrot.lane.b32.xlu0 %v1396, 32
      %v1797 = vpop.permute.xlu0 %1796
      %1798 = vrot.lane.b32.xlu0 %v1749, 32
      %v1799 = vpop.permute.xlu0 %1798
      %1800 = vrot.lane.b32.xlu0 %v1397, 32
      %v1801 = vpop.permute.xlu0 %1800
      %1802 = vrot.lane.b32.xlu0 %v1750, 32
      %v1803 = vpop.permute.xlu0 %1802
      %1804 = vrot.lane.b32.xlu0 %v1398, 32
      %v1805 = vpop.permute.xlu0 %1804
      %1806 = vrot.lane.b32.xlu0 %v1751, 32
      %v1807 = vpop.permute.xlu0 %1806
      %1808 = vrot.lane.b32.xlu0 %v1399, 32
      %v1809 = vpop.permute.xlu0 %1808
      %1810 = vrot.lane.b32.xlu0 %v1752, 32
      %v1811 = vpop.permute.xlu0 %1810
      %1812 = vrot.lane.b32.xlu0 %v1400, 32
      %v1813 = vpop.permute.xlu0 %1812
      %1814 = vrot.lane.b32.xlu0 %v1753, 32
      %v1815 = vpop.permute.xlu0 %1814
      %1816 = vrot.lane.b32.xlu0 %v1401, 32
      %v1817 = vpop.permute.xlu0 %1816
      %1818 = vrot.lane.b32.xlu0 %v1754, 32
      %v1819 = vpop.permute.xlu0 %1818
      %1820 = vrot.lane.b32.xlu0 %v1402, 32
      %v1821 = vpop.permute.xlu0 %1820
      %1822 = vrot.lane.b32.xlu0 %v1755, 32
      %v1823 = vpop.permute.xlu0 %1822
      %1824 = vrot.lane.b32.xlu0 %v1403, 32
      %v1825 = vpop.permute.xlu0 %1824
      %1826 = vrot.lane.b32.xlu0 %v1756, 32
      %v1827 = vpop.permute.xlu0 %1826
      %1828 = vrot.lane.b32.xlu0 %v1404, 32
      %v1829 = vpop.permute.xlu0 %1828
      %1830 = vrot.lane.b32.xlu0 %v1757, 32
      %v1831 = vpop.permute.xlu0 %1830
      %1832 = vrot.lane.b32.xlu0 %v1405, 32
      %v1833 = vpop.permute.xlu0 %1832
      %1834 = vrot.lane.b32.xlu0 %v1758, 32
      %v1835 = vpop.permute.xlu0 %1834
      %1836 = vrot.lane.b32.xlu0 %v1406, 32
      %v1837 = vpop.permute.xlu0 %1836
      %1838 = vrot.lane.b32.xlu0 %v1759, 32
      %v1839 = vpop.permute.xlu0 %1838
      %v1840 = vsel %vm370, %v1777, %v1779
      %v1841 = vsel %vm370, %v1781, %v1783
      %v1842 = vsel %vm370, %v1785, %v1787
      %v1843 = vsel %vm370, %v1789, %v1791
      %v1844 = vsel %vm370, %v1793, %v1795
      %v1845 = vsel %vm370, %v1797, %v1799
      %v1846 = vsel %vm370, %v1801, %v1803
      %v1847 = vsel %vm370, %v1805, %v1807
      %v1848 = vsel %vm370, %v1809, %v1811
      %v1849 = vsel %vm370, %v1813, %v1815
      %v1850 = vsel %vm370, %v1817, %v1819
      %v1851 = vsel %vm370, %v1821, %v1823
      %v1852 = vsel %vm370, %v1825, %v1827
      %v1853 = vsel %vm370, %v1829, %v1831
      %v1854 = vsel %vm370, %v1833, %v1835
      %v1855 = vsel %vm370, %v1837, %v1839
      %v1872 = vadd.f32 %v1728, %v1840
      %v1873 = vadd.f32 %v1729, %v1841
      %v1874 = vadd.f32 %v1730, %v1842
      %v1875 = vadd.f32 %v1731, %v1843
      %v1876 = vadd.f32 %v1732, %v1844
      %v1877 = vadd.f32 %v1733, %v1845
      %v1878 = vadd.f32 %v1734, %v1846
      %v1879 = vadd.f32 %v1735, %v1847
      %v1880 = vadd.f32 %v1736, %v1848
      %v1881 = vadd.f32 %v1737, %v1849
      %v1882 = vadd.f32 %v1738, %v1850
      %v1883 = vadd.f32 %v1739, %v1851
      %v1884 = vadd.f32 %v1740, %v1852
      %v1885 = vadd.f32 %v1741, %v1853
      %v1886 = vadd.f32 %v1742, %v1854
      %v1887 = vadd.f32 %v1743, %v1855
      %v1888 = vmul.f32 %v1505, %v545
      %v1889 = vmul.f32 %v1509, %v549
      %v1890 = vmul.f32 %v1513, %v555
      %v1891 = vmul.f32 %v1517, %v559
      %v1892 = vmul.f32 %v1521, %v565
      %v1893 = vmul.f32 %v1525, %v569
      %v1894 = vmul.f32 %v1529, %v575
      %v1895 = vmul.f32 %v1533, %v579
      %v1896 = vmul.f32 %v1537, %v585
      %v1897 = vmul.f32 %v1541, %v589
      %v1898 = vmul.f32 %v1545, %v595
      %v1899 = vmul.f32 %v1549, %v599
      %v1900 = vmul.f32 %v1553, %v605
      %v1901 = vmul.f32 %v1557, %v609
      %v1902 = vmul.f32 %v1561, %v615
      %v1903 = vmul.f32 %v1565, %v619
      %v1904 = vmul.f32 %v945, %v545
      %v1905 = vmul.f32 %v950, %v549
      %v1906 = vmul.f32 %v955, %v555
      %v1907 = vmul.f32 %v960, %v559
      %v1908 = vmul.f32 %v965, %v565
      %v1909 = vmul.f32 %v970, %v569
      %v1910 = vmul.f32 %v975, %v575
      %v1911 = vmul.f32 %v980, %v579
      %v1912 = vmul.f32 %v985, %v585
      %v1913 = vmul.f32 %v990, %v589
      %v1914 = vmul.f32 %v995, %v595
      %v1915 = vmul.f32 %v1000, %v599
      %v1916 = vmul.f32 %v1005, %v605
      %v1917 = vmul.f32 %v1010, %v609
      %v1918 = vmul.f32 %v1015, %v615
      %v1919 = vmul.f32 %v1020, %v619
      %1936 = vrot.lane.b32.xlu0 %v1904, 96
      %v1937 = vpop.permute.xlu0 %1936
      %1938 = vrot.lane.b32.xlu0 %v1905, 96
      %v1939 = vpop.permute.xlu0 %1938
      %1940 = vrot.lane.b32.xlu0 %v1906, 96
      %v1941 = vpop.permute.xlu0 %1940
      %1942 = vrot.lane.b32.xlu0 %v1907, 96
      %v1943 = vpop.permute.xlu0 %1942
      %1944 = vrot.lane.b32.xlu0 %v1908, 96
      %v1945 = vpop.permute.xlu0 %1944
      %1946 = vrot.lane.b32.xlu0 %v1909, 96
      %v1947 = vpop.permute.xlu0 %1946
      %1948 = vrot.lane.b32.xlu0 %v1910, 96
      %v1949 = vpop.permute.xlu0 %1948
      %1950 = vrot.lane.b32.xlu0 %v1911, 96
      %v1951 = vpop.permute.xlu0 %1950
      %1952 = vrot.lane.b32.xlu0 %v1912, 96
      %v1953 = vpop.permute.xlu0 %1952
      %1954 = vrot.lane.b32.xlu0 %v1913, 96
      %v1955 = vpop.permute.xlu0 %1954
      %1956 = vrot.lane.b32.xlu0 %v1914, 96
      %v1957 = vpop.permute.xlu0 %1956
      %1958 = vrot.lane.b32.xlu0 %v1915, 96
      %v1959 = vpop.permute.xlu0 %1958
      %1960 = vrot.lane.b32.xlu0 %v1916, 96
      %v1961 = vpop.permute.xlu0 %1960
      %1962 = vrot.lane.b32.xlu0 %v1917, 96
      %v1963 = vpop.permute.xlu0 %1962
      %1964 = vrot.lane.b32.xlu0 %v1918, 96
      %v1965 = vpop.permute.xlu0 %1964
      %1966 = vrot.lane.b32.xlu0 %v1919, 96
      %v1967 = vpop.permute.xlu0 %1966
      %v1984 = vsub.f32 %v1888, %v1937
      %v1985 = vsub.f32 %v1567, %v1937
      %v1986 = vsub.f32 %v1889, %v1939
      %v1987 = vsub.f32 %v1569, %v1939
      %v1988 = vsub.f32 %v1890, %v1941
      %v1989 = vsub.f32 %v1571, %v1941
      %v1990 = vsub.f32 %v1891, %v1943
      %v1991 = vsub.f32 %v1573, %v1943
      %v1992 = vsub.f32 %v1892, %v1945
      %v1993 = vsub.f32 %v1575, %v1945
      %v1994 = vsub.f32 %v1893, %v1947
      %v1995 = vsub.f32 %v1577, %v1947
      %v1996 = vsub.f32 %v1894, %v1949
      %v1997 = vsub.f32 %v1579, %v1949
      %v1998 = vsub.f32 %v1895, %v1951
      %v1999 = vsub.f32 %v1581, %v1951
      %v2000 = vsub.f32 %v1896, %v1953
      %v2001 = vsub.f32 %v1583, %v1953
      %v2002 = vsub.f32 %v1897, %v1955
      %v2003 = vsub.f32 %v1585, %v1955
      %v2004 = vsub.f32 %v1898, %v1957
      %v2005 = vsub.f32 %v1587, %v1957
      %v2006 = vsub.f32 %v1899, %v1959
      %v2007 = vsub.f32 %v1589, %v1959
      %v2008 = vsub.f32 %v1900, %v1961
      %v2009 = vsub.f32 %v1591, %v1961
      %v2010 = vsub.f32 %v1901, %v1963
      %v2011 = vsub.f32 %v1593, %v1963
      %v2012 = vsub.f32 %v1902, %v1965
      %v2013 = vsub.f32 %v1595, %v1965
      %v2014 = vsub.f32 %v1903, %v1967
      %v2015 = vsub.f32 %v1597, %v1967
      %v2016 = vmul.f32 %v1329, %v658
      %v2017 = vmul.f32 %v1333, %v662
      %v2018 = vmul.f32 %v1337, %v668
      %v2019 = vmul.f32 %v1341, %v672
      %v2020 = vmul.f32 %v1345, %v678
      %v2021 = vmul.f32 %v1349, %v682
      %v2022 = vmul.f32 %v1353, %v688
      %v2023 = vmul.f32 %v1357, %v692
      %v2024 = vmul.f32 %v1361, %v698
      %v2025 = vmul.f32 %v1365, %v702
      %v2026 = vmul.f32 %v1369, %v708
      %v2027 = vmul.f32 %v1373, %v712
      %v2028 = vmul.f32 %v1377, %v718
      %v2029 = vmul.f32 %v1381, %v722
      %v2030 = vmul.f32 %v1385, %v728
      %v2031 = vmul.f32 %v1389, %v732
      %2048 = vrot.lane.b32.xlu0 %v2016, 32
      %v2049 = vpop.permute.xlu0 %2048
      %2050 = vrot.lane.b32.xlu0 %v2017, 32
      %v2051 = vpop.permute.xlu0 %2050
      %2052 = vrot.lane.b32.xlu0 %v2018, 32
      %v2053 = vpop.permute.xlu0 %2052
      %2054 = vrot.lane.b32.xlu0 %v2019, 32
      %v2055 = vpop.permute.xlu0 %2054
      %2056 = vrot.lane.b32.xlu0 %v2020, 32
      %v2057 = vpop.permute.xlu0 %2056
      %2058 = vrot.lane.b32.xlu0 %v2021, 32
      %v2059 = vpop.permute.xlu0 %2058
      %2060 = vrot.lane.b32.xlu0 %v2022, 32
      %v2061 = vpop.permute.xlu0 %2060
      %2062 = vrot.lane.b32.xlu0 %v2023, 32
      %v2063 = vpop.permute.xlu0 %2062
      %2064 = vrot.lane.b32.xlu0 %v2024, 32
      %v2065 = vpop.permute.xlu0 %2064
      %2066 = vrot.lane.b32.xlu0 %v2025, 32
      %v2067 = vpop.permute.xlu0 %2066
      %2068 = vrot.lane.b32.xlu0 %v2026, 32
      %v2069 = vpop.permute.xlu0 %2068
      %2070 = vrot.lane.b32.xlu0 %v2027, 32
      %v2071 = vpop.permute.xlu0 %2070
      %2072 = vrot.lane.b32.xlu0 %v2028, 32
      %v2073 = vpop.permute.xlu0 %2072
      %2074 = vrot.lane.b32.xlu0 %v2029, 32
      %v2075 = vpop.permute.xlu0 %2074
      %2076 = vrot.lane.b32.xlu0 %v2030, 32
      %v2077 = vpop.permute.xlu0 %2076
      %2078 = vrot.lane.b32.xlu0 %v2031, 32
      %v2079 = vpop.permute.xlu0 %2078
      %v2080 = vsel %vm370, %v1779, %v2049
      %v2081 = vsel %vm370, %v1783, %v2051
      %v2082 = vsel %vm370, %v1787, %v2053
      %v2083 = vsel %vm370, %v1791, %v2055
      %v2084 = vsel %vm370, %v1795, %v2057
      %v2085 = vsel %vm370, %v1799, %v2059
      %v2086 = vsel %vm370, %v1803, %v2061
      %v2087 = vsel %vm370, %v1807, %v2063
      %v2088 = vsel %vm370, %v1811, %v2065
      %v2089 = vsel %vm370, %v1815, %v2067
      %v2090 = vsel %vm370, %v1819, %v2069
      %v2091 = vsel %vm370, %v1823, %v2071
      %v2092 = vsel %vm370, %v1827, %v2073
      %v2093 = vsel %vm370, %v1831, %v2075
      %v2094 = vsel %vm370, %v1835, %v2077
      %v2095 = vsel %vm370, %v1839, %v2079
      %v2128 = vadd.f32 %v1984, %v1779
      %v2129 = vadd.f32 %v1985, %v2080
      %v2130 = vadd.f32 %v1986, %v1783
      %v2131 = vadd.f32 %v1987, %v2081
      %v2132 = vadd.f32 %v1988, %v1787
      %v2133 = vadd.f32 %v1989, %v2082
      %v2134 = vadd.f32 %v1990, %v1791
      %v2135 = vadd.f32 %v1991, %v2083
      %v2136 = vadd.f32 %v1992, %v1795
      %v2137 = vadd.f32 %v1993, %v2084
      %v2138 = vadd.f32 %v1994, %v1799
      %v2139 = vadd.f32 %v1995, %v2085
      %v2140 = vadd.f32 %v1996, %v1803
      %v2141 = vadd.f32 %v1997, %v2086
      %v2142 = vadd.f32 %v1998, %v1807
      %v2143 = vadd.f32 %v1999, %v2087
      %v2144 = vadd.f32 %v2000, %v1811
      %v2145 = vadd.f32 %v2001, %v2088
      %v2146 = vadd.f32 %v2002, %v1815
      %v2147 = vadd.f32 %v2003, %v2089
      %v2148 = vadd.f32 %v2004, %v1819
      %v2149 = vadd.f32 %v2005, %v2090
      %v2150 = vadd.f32 %v2006, %v1823
      %v2151 = vadd.f32 %v2007, %v2091
      %v2152 = vadd.f32 %v2008, %v1827
      %v2153 = vadd.f32 %v2009, %v2092
      %v2154 = vadd.f32 %v2010, %v1831
      %v2155 = vadd.f32 %v2011, %v2093
      %v2156 = vadd.f32 %v2012, %v1835
      %v2157 = vadd.f32 %v2013, %v2094
      %v2158 = vadd.f32 %v2014, %v1839
      %v2159 = vadd.f32 %v2015, %v2095
      %v2160 = vmul.f32 %v945, %v2128
      %v2161 = vmul.f32 %v945, %v2129
      %v2162 = vmul.f32 %v950, %v2130
      %v2163 = vmul.f32 %v950, %v2131
      %v2164 = vmul.f32 %v955, %v2132
      %v2165 = vmul.f32 %v955, %v2133
      %v2166 = vmul.f32 %v960, %v2134
      %v2167 = vmul.f32 %v960, %v2135
      %v2168 = vmul.f32 %v965, %v2136
      %v2169 = vmul.f32 %v965, %v2137
      %v2170 = vmul.f32 %v970, %v2138
      %v2171 = vmul.f32 %v970, %v2139
      %v2172 = vmul.f32 %v975, %v2140
      %v2173 = vmul.f32 %v975, %v2141
      %v2174 = vmul.f32 %v980, %v2142
      %v2175 = vmul.f32 %v980, %v2143
      %v2176 = vmul.f32 %v985, %v2144
      %v2177 = vmul.f32 %v985, %v2145
      %v2178 = vmul.f32 %v990, %v2146
      %v2179 = vmul.f32 %v990, %v2147
      %v2180 = vmul.f32 %v995, %v2148
      %v2181 = vmul.f32 %v995, %v2149
      %v2182 = vmul.f32 %v1000, %v2150
      %v2183 = vmul.f32 %v1000, %v2151
      %v2184 = vmul.f32 %v1005, %v2152
      %v2185 = vmul.f32 %v1005, %v2153
      %v2186 = vmul.f32 %v1010, %v2154
      %v2187 = vmul.f32 %v1010, %v2155
      %v2188 = vmul.f32 %v1015, %v2156
      %v2189 = vmul.f32 %v1015, %v2157
      %v2190 = vmul.f32 %v1020, %v2158
      %v2191 = vmul.f32 %v1020, %v2159
      %v2192 = vmul.f32 %v1056, %v1872
      %v2193 = vmul.f32 %v1060, %v1873
      %v2194 = vmul.f32 %v1064, %v1874
      %v2195 = vmul.f32 %v1068, %v1875
      %v2196 = vmul.f32 %v1072, %v1876
      %v2197 = vmul.f32 %v1076, %v1877
      %v2198 = vmul.f32 %v1080, %v1878
      %v2199 = vmul.f32 %v1084, %v1879
      %v2200 = vmul.f32 %v1088, %v1880
      %v2201 = vmul.f32 %v1092, %v1881
      %v2202 = vmul.f32 %v1096, %v1882
      %v2203 = vmul.f32 %v1100, %v1883
      %v2204 = vmul.f32 %v1104, %v1884
      %v2205 = vmul.f32 %v1108, %v1885
      %v2206 = vmul.f32 %v1112, %v1886
      %v2207 = vmul.f32 %v1116, %v1887
      %2224 = vrot.lane.b32.xlu0 %v2192, 96
      %v2225 = vpop.permute.xlu0 %2224
      %2226 = vrot.lane.b32.xlu0 %v2193, 96
      %v2227 = vpop.permute.xlu0 %2226
      %2228 = vrot.lane.b32.xlu0 %v2194, 96
      %v2229 = vpop.permute.xlu0 %2228
      %2230 = vrot.lane.b32.xlu0 %v2195, 96
      %v2231 = vpop.permute.xlu0 %2230
      %2232 = vrot.lane.b32.xlu0 %v2196, 96
      %v2233 = vpop.permute.xlu0 %2232
      %2234 = vrot.lane.b32.xlu0 %v2197, 96
      %v2235 = vpop.permute.xlu0 %2234
      %2236 = vrot.lane.b32.xlu0 %v2198, 96
      %v2237 = vpop.permute.xlu0 %2236
      %2238 = vrot.lane.b32.xlu0 %v2199, 96
      %v2239 = vpop.permute.xlu0 %2238
      %2240 = vrot.lane.b32.xlu0 %v2200, 96
      %v2241 = vpop.permute.xlu0 %2240
      %2242 = vrot.lane.b32.xlu0 %v2201, 96
      %v2243 = vpop.permute.xlu0 %2242
      %2244 = vrot.lane.b32.xlu0 %v2202, 96
      %v2245 = vpop.permute.xlu0 %2244
      %2246 = vrot.lane.b32.xlu0 %v2203, 96
      %v2247 = vpop.permute.xlu0 %2246
      %2248 = vrot.lane.b32.xlu0 %v2204, 96
      %v2249 = vpop.permute.xlu0 %2248
      %2250 = vrot.lane.b32.xlu0 %v2205, 96
      %v2251 = vpop.permute.xlu0 %2250
      %2252 = vrot.lane.b32.xlu0 %v2206, 96
      %v2253 = vpop.permute.xlu0 %2252
      %2254 = vrot.lane.b32.xlu0 %v2207, 96
      %v2255 = vpop.permute.xlu0 %2254
      %v2272 = vsub.f32 %v2160, %v2225
      %v2273 = vsub.f32 %v2161, %v2225
      %v2274 = vsub.f32 %v2162, %v2227
      %v2275 = vsub.f32 %v2163, %v2227
      %v2276 = vsub.f32 %v2164, %v2229
      %v2277 = vsub.f32 %v2165, %v2229
      %v2278 = vsub.f32 %v2166, %v2231
      %v2279 = vsub.f32 %v2167, %v2231
      %v2280 = vsub.f32 %v2168, %v2233
      %v2281 = vsub.f32 %v2169, %v2233
      %v2282 = vsub.f32 %v2170, %v2235
      %v2283 = vsub.f32 %v2171, %v2235
      %v2284 = vsub.f32 %v2172, %v2237
      %v2285 = vsub.f32 %v2173, %v2237
      %v2286 = vsub.f32 %v2174, %v2239
      %v2287 = vsub.f32 %v2175, %v2239
      %v2288 = vsub.f32 %v2176, %v2241
      %v2289 = vsub.f32 %v2177, %v2241
      %v2290 = vsub.f32 %v2178, %v2243
      %v2291 = vsub.f32 %v2179, %v2243
      %v2292 = vsub.f32 %v2180, %v2245
      %v2293 = vsub.f32 %v2181, %v2245
      %v2294 = vsub.f32 %v2182, %v2247
      %v2295 = vsub.f32 %v2183, %v2247
      %v2296 = vsub.f32 %v2184, %v2249
      %v2297 = vsub.f32 %v2185, %v2249
      %v2298 = vsub.f32 %v2186, %v2251
      %v2299 = vsub.f32 %v2187, %v2251
      %v2300 = vsub.f32 %v2188, %v2253
      %v2301 = vsub.f32 %v2189, %v2253
      %v2302 = vsub.f32 %v2190, %v2255
      %v2303 = vsub.f32 %v2191, %v2255
      %v2304 = vmul.f32 %v2272, 2.0
      %v2305 = vmul.f32 %v2273, 2.0
      %v2306 = vmul.f32 %v2274, 2.0
      %v2307 = vmul.f32 %v2275, 2.0
      %v2308 = vmul.f32 %v2276, 2.0
      %v2309 = vmul.f32 %v2277, 2.0
      %v2310 = vmul.f32 %v2278, 2.0
      %v2311 = vmul.f32 %v2279, 2.0
      %v2312 = vmul.f32 %v2280, 2.0
      %v2313 = vmul.f32 %v2281, 2.0
      %v2314 = vmul.f32 %v2282, 2.0
      %v2315 = vmul.f32 %v2283, 2.0
      %v2316 = vmul.f32 %v2284, 2.0
      %v2317 = vmul.f32 %v2285, 2.0
      %v2318 = vmul.f32 %v2286, 2.0
      %v2319 = vmul.f32 %v2287, 2.0
      %v2320 = vmul.f32 %v2288, 2.0
      %v2321 = vmul.f32 %v2289, 2.0
      %v2322 = vmul.f32 %v2290, 2.0
      %v2323 = vmul.f32 %v2291, 2.0
      %v2324 = vmul.f32 %v2292, 2.0
      %v2325 = vmul.f32 %v2293, 2.0
      %v2326 = vmul.f32 %v2294, 2.0
      %v2327 = vmul.f32 %v2295, 2.0
      %v2328 = vmul.f32 %v2296, 2.0
      %v2329 = vmul.f32 %v2297, 2.0
      %v2330 = vmul.f32 %v2298, 2.0
      %v2331 = vmul.f32 %v2299, 2.0
      %v2332 = vmul.f32 %v2300, 2.0
      %v2333 = vmul.f32 %v2301, 2.0
      %v2334 = vmul.f32 %v2302, 2.0
      %v2335 = vmul.f32 %v2303, 2.0
      %2368 = vrot.lane.b32.xlu0 %v2304, 32
      %v2369 = vpop.permute.xlu0 %2368
      %2370 = vrot.lane.b32.xlu0 %v2305, 32
      %v2371 = vpop.permute.xlu0 %2370
      %2372 = vrot.lane.b32.xlu0 %v2306, 32
      %v2373 = vpop.permute.xlu0 %2372
      %2374 = vrot.lane.b32.xlu0 %v2307, 32
      %v2375 = vpop.permute.xlu0 %2374
      %2376 = vrot.lane.b32.xlu0 %v2308, 32
      %v2377 = vpop.permute.xlu0 %2376
      %2378 = vrot.lane.b32.xlu0 %v2309, 32
      %v2379 = vpop.permute.xlu0 %2378
      %2380 = vrot.lane.b32.xlu0 %v2310, 32
      %v2381 = vpop.permute.xlu0 %2380
      %2382 = vrot.lane.b32.xlu0 %v2311, 32
      %v2383 = vpop.permute.xlu0 %2382
      %2384 = vrot.lane.b32.xlu0 %v2312, 32
      %v2385 = vpop.permute.xlu0 %2384
      %2386 = vrot.lane.b32.xlu0 %v2313, 32
      %v2387 = vpop.permute.xlu0 %2386
      %2388 = vrot.lane.b32.xlu0 %v2314, 32
      %v2389 = vpop.permute.xlu0 %2388
      %2390 = vrot.lane.b32.xlu0 %v2315, 32
      %v2391 = vpop.permute.xlu0 %2390
      %2392 = vrot.lane.b32.xlu0 %v2316, 32
      %v2393 = vpop.permute.xlu0 %2392
      %2394 = vrot.lane.b32.xlu0 %v2317, 32
      %v2395 = vpop.permute.xlu0 %2394
      %2396 = vrot.lane.b32.xlu0 %v2318, 32
      %v2397 = vpop.permute.xlu0 %2396
      %2398 = vrot.lane.b32.xlu0 %v2319, 32
      %v2399 = vpop.permute.xlu0 %2398
      %2400 = vrot.lane.b32.xlu0 %v2320, 32
      %v2401 = vpop.permute.xlu0 %2400
      %2402 = vrot.lane.b32.xlu0 %v2321, 32
      %v2403 = vpop.permute.xlu0 %2402
      %2404 = vrot.lane.b32.xlu0 %v2322, 32
      %v2405 = vpop.permute.xlu0 %2404
      %2406 = vrot.lane.b32.xlu0 %v2323, 32
      %v2407 = vpop.permute.xlu0 %2406
      %2408 = vrot.lane.b32.xlu0 %v2324, 32
      %v2409 = vpop.permute.xlu0 %2408
      %2410 = vrot.lane.b32.xlu0 %v2325, 32
      %v2411 = vpop.permute.xlu0 %2410
      %2412 = vrot.lane.b32.xlu0 %v2326, 32
      %v2413 = vpop.permute.xlu0 %2412
      %2414 = vrot.lane.b32.xlu0 %v2327, 32
      %v2415 = vpop.permute.xlu0 %2414
      %2416 = vrot.lane.b32.xlu0 %v2328, 32
      %v2417 = vpop.permute.xlu0 %2416
      %2418 = vrot.lane.b32.xlu0 %v2329, 32
      %v2419 = vpop.permute.xlu0 %2418
      %2420 = vrot.lane.b32.xlu0 %v2330, 32
      %v2421 = vpop.permute.xlu0 %2420
      %2422 = vrot.lane.b32.xlu0 %v2331, 32
      %v2423 = vpop.permute.xlu0 %2422
      %2424 = vrot.lane.b32.xlu0 %v2332, 32
      %v2425 = vpop.permute.xlu0 %2424
      %2426 = vrot.lane.b32.xlu0 %v2333, 32
      %v2427 = vpop.permute.xlu0 %2426
      %2428 = vrot.lane.b32.xlu0 %v2334, 32
      %v2429 = vpop.permute.xlu0 %2428
      %2430 = vrot.lane.b32.xlu0 %v2335, 32
      %v2431 = vpop.permute.xlu0 %2430
      %v2432 = vsel %vm370, %v2369, %v2371
      %v2433 = vsel %vm370, %v2373, %v2375
      %v2434 = vsel %vm370, %v2377, %v2379
      %v2435 = vsel %vm370, %v2381, %v2383
      %v2436 = vsel %vm370, %v2385, %v2387
      %v2437 = vsel %vm370, %v2389, %v2391
      %v2438 = vsel %vm370, %v2393, %v2395
      %v2439 = vsel %vm370, %v2397, %v2399
      %v2440 = vsel %vm370, %v2401, %v2403
      %v2441 = vsel %vm370, %v2405, %v2407
      %v2442 = vsel %vm370, %v2409, %v2411
      %v2443 = vsel %vm370, %v2413, %v2415
      %v2444 = vsel %vm370, %v2417, %v2419
      %v2445 = vsel %vm370, %v2421, %v2423
      %v2446 = vsel %vm370, %v2425, %v2427
      %v2447 = vsel %vm370, %v2429, %v2431
      %v2464 = vadd.f32 %v545, %v2432
      %v2465 = vadd.f32 %v549, %v2433
      %v2466 = vadd.f32 %v555, %v2434
      %v2467 = vadd.f32 %v559, %v2435
      %v2468 = vadd.f32 %v565, %v2436
      %v2469 = vadd.f32 %v569, %v2437
      %v2470 = vadd.f32 %v575, %v2438
      %v2471 = vadd.f32 %v579, %v2439
      %v2472 = vadd.f32 %v585, %v2440
      %v2473 = vadd.f32 %v589, %v2441
      %v2474 = vadd.f32 %v595, %v2442
      %v2475 = vadd.f32 %v599, %v2443
      %v2476 = vadd.f32 %v605, %v2444
      %v2477 = vadd.f32 %v609, %v2445
      %v2478 = vadd.f32 %v615, %v2446
      %v2479 = vadd.f32 %v619, %v2447
      %v2480 = vmul.f32 %v1056, %v1471
      %v2481 = vmul.f32 %v1056, %v1472
      %v2482 = vmul.f32 %v1060, %v1473
      %v2483 = vmul.f32 %v1060, %v1474
      %v2484 = vmul.f32 %v1064, %v1475
      %v2485 = vmul.f32 %v1064, %v1476
      %v2486 = vmul.f32 %v1068, %v1477
      %v2487 = vmul.f32 %v1068, %v1478
      %v2488 = vmul.f32 %v1072, %v1479
      %v2489 = vmul.f32 %v1072, %v1480
      %v2490 = vmul.f32 %v1076, %v1481
      %v2491 = vmul.f32 %v1076, %v1482
      %v2492 = vmul.f32 %v1080, %v1483
      %v2493 = vmul.f32 %v1080, %v1484
      %v2494 = vmul.f32 %v1084, %v1485
      %v2495 = vmul.f32 %v1084, %v1486
      %v2496 = vmul.f32 %v1088, %v1487
      %v2497 = vmul.f32 %v1088, %v1488
      %v2498 = vmul.f32 %v1092, %v1489
      %v2499 = vmul.f32 %v1092, %v1490
      %v2500 = vmul.f32 %v1096, %v1491
      %v2501 = vmul.f32 %v1096, %v1492
      %v2502 = vmul.f32 %v1100, %v1493
      %v2503 = vmul.f32 %v1100, %v1494
      %v2504 = vmul.f32 %v1104, %v1495
      %v2505 = vmul.f32 %v1104, %v1496
      %v2506 = vmul.f32 %v1108, %v1497
      %v2507 = vmul.f32 %v1108, %v1498
      %v2508 = vmul.f32 %v1112, %v1499
      %v2509 = vmul.f32 %v1112, %v1500
      %v2510 = vmul.f32 %v1116, %v1501
      %v2511 = vmul.f32 %v1116, %v1502
      %v2512 = vmul.f32 %v1505, %v2128
      %v2513 = vmul.f32 %v1505, %v2129
      %v2514 = vmul.f32 %v1509, %v2130
      %v2515 = vmul.f32 %v1509, %v2131
      %v2516 = vmul.f32 %v1513, %v2132
      %v2517 = vmul.f32 %v1513, %v2133
      %v2518 = vmul.f32 %v1517, %v2134
      %v2519 = vmul.f32 %v1517, %v2135
      %v2520 = vmul.f32 %v1521, %v2136
      %v2521 = vmul.f32 %v1521, %v2137
      %v2522 = vmul.f32 %v1525, %v2138
      %v2523 = vmul.f32 %v1525, %v2139
      %v2524 = vmul.f32 %v1529, %v2140
      %v2525 = vmul.f32 %v1529, %v2141
      %v2526 = vmul.f32 %v1533, %v2142
      %v2527 = vmul.f32 %v1533, %v2143
      %v2528 = vmul.f32 %v1537, %v2144
      %v2529 = vmul.f32 %v1537, %v2145
      %v2530 = vmul.f32 %v1541, %v2146
      %v2531 = vmul.f32 %v1541, %v2147
      %v2532 = vmul.f32 %v1545, %v2148
      %v2533 = vmul.f32 %v1545, %v2149
      %v2534 = vmul.f32 %v1549, %v2150
      %v2535 = vmul.f32 %v1549, %v2151
      %v2536 = vmul.f32 %v1553, %v2152
      %v2537 = vmul.f32 %v1553, %v2153
      %v2538 = vmul.f32 %v1557, %v2154
      %v2539 = vmul.f32 %v1557, %v2155
      %v2540 = vmul.f32 %v1561, %v2156
      %v2541 = vmul.f32 %v1561, %v2157
      %v2542 = vmul.f32 %v1565, %v2158
      %v2543 = vmul.f32 %v1565, %v2159
      %2576 = vrot.lane.b32.xlu0 %v2512, 96
      %v2577 = vpop.permute.xlu0 %2576
      %2578 = vrot.lane.b32.xlu0 %v2513, 96
      %v2579 = vpop.permute.xlu0 %2578
      %2580 = vrot.lane.b32.xlu0 %v2514, 96
      %v2581 = vpop.permute.xlu0 %2580
      %2582 = vrot.lane.b32.xlu0 %v2515, 96
      %v2583 = vpop.permute.xlu0 %2582
      %2584 = vrot.lane.b32.xlu0 %v2516, 96
      %v2585 = vpop.permute.xlu0 %2584
      %2586 = vrot.lane.b32.xlu0 %v2517, 96
      %v2587 = vpop.permute.xlu0 %2586
      %2588 = vrot.lane.b32.xlu0 %v2518, 96
      %v2589 = vpop.permute.xlu0 %2588
      %2590 = vrot.lane.b32.xlu0 %v2519, 96
      %v2591 = vpop.permute.xlu0 %2590
      %2592 = vrot.lane.b32.xlu0 %v2520, 96
      %v2593 = vpop.permute.xlu0 %2592
      %2594 = vrot.lane.b32.xlu0 %v2521, 96
      %v2595 = vpop.permute.xlu0 %2594
      %2596 = vrot.lane.b32.xlu0 %v2522, 96
      %v2597 = vpop.permute.xlu0 %2596
      %2598 = vrot.lane.b32.xlu0 %v2523, 96
      %v2599 = vpop.permute.xlu0 %2598
      %2600 = vrot.lane.b32.xlu0 %v2524, 96
      %v2601 = vpop.permute.xlu0 %2600
      %2602 = vrot.lane.b32.xlu0 %v2525, 96
      %v2603 = vpop.permute.xlu0 %2602
      %2604 = vrot.lane.b32.xlu0 %v2526, 96
      %v2605 = vpop.permute.xlu0 %2604
      %2606 = vrot.lane.b32.xlu0 %v2527, 96
      %v2607 = vpop.permute.xlu0 %2606
      %2608 = vrot.lane.b32.xlu0 %v2528, 96
      %v2609 = vpop.permute.xlu0 %2608
      %2610 = vrot.lane.b32.xlu0 %v2529, 96
      %v2611 = vpop.permute.xlu0 %2610
      %2612 = vrot.lane.b32.xlu0 %v2530, 96
      %v2613 = vpop.permute.xlu0 %2612
      %2614 = vrot.lane.b32.xlu0 %v2531, 96
      %v2615 = vpop.permute.xlu0 %2614
      %2616 = vrot.lane.b32.xlu0 %v2532, 96
      %v2617 = vpop.permute.xlu0 %2616
      %2618 = vrot.lane.b32.xlu0 %v2533, 96
      %v2619 = vpop.permute.xlu0 %2618
      %2620 = vrot.lane.b32.xlu0 %v2534, 96
      %v2621 = vpop.permute.xlu0 %2620
      %2622 = vrot.lane.b32.xlu0 %v2535, 96
      %v2623 = vpop.permute.xlu0 %2622
      %2624 = vrot.lane.b32.xlu0 %v2536, 96
      %v2625 = vpop.permute.xlu0 %2624
      %2626 = vrot.lane.b32.xlu0 %v2537, 96
      %v2627 = vpop.permute.xlu0 %2626
      %2628 = vrot.lane.b32.xlu0 %v2538, 96
      %v2629 = vpop.permute.xlu0 %2628
      %2630 = vrot.lane.b32.xlu0 %v2539, 96
      %v2631 = vpop.permute.xlu0 %2630
      %2632 = vrot.lane.b32.xlu0 %v2540, 96
      %v2633 = vpop.permute.xlu0 %2632
      %2634 = vrot.lane.b32.xlu0 %v2541, 96
      %v2635 = vpop.permute.xlu0 %2634
      %2636 = vrot.lane.b32.xlu0 %v2542, 96
      %v2637 = vpop.permute.xlu0 %2636
      %2638 = vrot.lane.b32.xlu0 %v2543, 96
      %v2639 = vpop.permute.xlu0 %2638
      %v2640 = vsel %vm1246, %v2577, %v2579
      %v2641 = vsel %vm1246, %v2581, %v2583
      %v2642 = vsel %vm1246, %v2585, %v2587
      %v2643 = vsel %vm1246, %v2589, %v2591
      %v2644 = vsel %vm1246, %v2593, %v2595
      %v2645 = vsel %vm1246, %v2597, %v2599
      %v2646 = vsel %vm1246, %v2601, %v2603
      %v2647 = vsel %vm1246, %v2605, %v2607
      %v2648 = vsel %vm1246, %v2609, %v2611
      %v2649 = vsel %vm1246, %v2613, %v2615
      %v2650 = vsel %vm1246, %v2617, %v2619
      %v2651 = vsel %vm1246, %v2621, %v2623
      %v2652 = vsel %vm1246, %v2625, %v2627
      %v2653 = vsel %vm1246, %v2629, %v2631
      %v2654 = vsel %vm1246, %v2633, %v2635
      %v2655 = vsel %vm1246, %v2637, %v2639
      %v2688 = vsub.f32 %v2480, %v2640
      %v2689 = vsub.f32 %v2481, %v2579
      %v2690 = vsub.f32 %v2482, %v2641
      %v2691 = vsub.f32 %v2483, %v2583
      %v2692 = vsub.f32 %v2484, %v2642
      %v2693 = vsub.f32 %v2485, %v2587
      %v2694 = vsub.f32 %v2486, %v2643
      %v2695 = vsub.f32 %v2487, %v2591
      %v2696 = vsub.f32 %v2488, %v2644
      %v2697 = vsub.f32 %v2489, %v2595
      %v2698 = vsub.f32 %v2490, %v2645
      %v2699 = vsub.f32 %v2491, %v2599
      %v2700 = vsub.f32 %v2492, %v2646
      %v2701 = vsub.f32 %v2493, %v2603
      %v2702 = vsub.f32 %v2494, %v2647
      %v2703 = vsub.f32 %v2495, %v2607
      %v2704 = vsub.f32 %v2496, %v2648
      %v2705 = vsub.f32 %v2497, %v2611
      %v2706 = vsub.f32 %v2498, %v2649
      %v2707 = vsub.f32 %v2499, %v2615
      %v2708 = vsub.f32 %v2500, %v2650
      %v2709 = vsub.f32 %v2501, %v2619
      %v2710 = vsub.f32 %v2502, %v2651
      %v2711 = vsub.f32 %v2503, %v2623
      %v2712 = vsub.f32 %v2504, %v2652
      %v2713 = vsub.f32 %v2505, %v2627
      %v2714 = vsub.f32 %v2506, %v2653
      %v2715 = vsub.f32 %v2507, %v2631
      %v2716 = vsub.f32 %v2508, %v2654
      %v2717 = vsub.f32 %v2509, %v2635
      %v2718 = vsub.f32 %v2510, %v2655
      %v2719 = vsub.f32 %v2511, %v2639
      %v2720 = vmul.f32 %v2688, 2.0
      %v2721 = vmul.f32 %v2689, 2.0
      %v2722 = vmul.f32 %v2690, 2.0
      %v2723 = vmul.f32 %v2691, 2.0
      %v2724 = vmul.f32 %v2692, 2.0
      %v2725 = vmul.f32 %v2693, 2.0
      %v2726 = vmul.f32 %v2694, 2.0
      %v2727 = vmul.f32 %v2695, 2.0
      %v2728 = vmul.f32 %v2696, 2.0
      %v2729 = vmul.f32 %v2697, 2.0
      %v2730 = vmul.f32 %v2698, 2.0
      %v2731 = vmul.f32 %v2699, 2.0
      %v2732 = vmul.f32 %v2700, 2.0
      %v2733 = vmul.f32 %v2701, 2.0
      %v2734 = vmul.f32 %v2702, 2.0
      %v2735 = vmul.f32 %v2703, 2.0
      %v2736 = vmul.f32 %v2704, 2.0
      %v2737 = vmul.f32 %v2705, 2.0
      %v2738 = vmul.f32 %v2706, 2.0
      %v2739 = vmul.f32 %v2707, 2.0
      %v2740 = vmul.f32 %v2708, 2.0
      %v2741 = vmul.f32 %v2709, 2.0
      %v2742 = vmul.f32 %v2710, 2.0
      %v2743 = vmul.f32 %v2711, 2.0
      %v2744 = vmul.f32 %v2712, 2.0
      %v2745 = vmul.f32 %v2713, 2.0
      %v2746 = vmul.f32 %v2714, 2.0
      %v2747 = vmul.f32 %v2715, 2.0
      %v2748 = vmul.f32 %v2716, 2.0
      %v2749 = vmul.f32 %v2717, 2.0
      %v2750 = vmul.f32 %v2718, 2.0
      %v2751 = vmul.f32 %v2719, 2.0
      %2784 = vrot.lane.b32.xlu0 %v2720, 32
      %v2785 = vpop.permute.xlu0 %2784
      %2786 = vrot.lane.b32.xlu0 %v2721, 32
      %v2787 = vpop.permute.xlu0 %2786
      %2788 = vrot.lane.b32.xlu0 %v2722, 32
      %v2789 = vpop.permute.xlu0 %2788
      %2790 = vrot.lane.b32.xlu0 %v2723, 32
      %v2791 = vpop.permute.xlu0 %2790
      %2792 = vrot.lane.b32.xlu0 %v2724, 32
      %v2793 = vpop.permute.xlu0 %2792
      %2794 = vrot.lane.b32.xlu0 %v2725, 32
      %v2795 = vpop.permute.xlu0 %2794
      %2796 = vrot.lane.b32.xlu0 %v2726, 32
      %v2797 = vpop.permute.xlu0 %2796
      %2798 = vrot.lane.b32.xlu0 %v2727, 32
      %v2799 = vpop.permute.xlu0 %2798
      %2800 = vrot.lane.b32.xlu0 %v2728, 32
      %v2801 = vpop.permute.xlu0 %2800
      %2802 = vrot.lane.b32.xlu0 %v2729, 32
      %v2803 = vpop.permute.xlu0 %2802
      %2804 = vrot.lane.b32.xlu0 %v2730, 32
      %v2805 = vpop.permute.xlu0 %2804
      %2806 = vrot.lane.b32.xlu0 %v2731, 32
      %v2807 = vpop.permute.xlu0 %2806
      %2808 = vrot.lane.b32.xlu0 %v2732, 32
      %v2809 = vpop.permute.xlu0 %2808
      %2810 = vrot.lane.b32.xlu0 %v2733, 32
      %v2811 = vpop.permute.xlu0 %2810
      %2812 = vrot.lane.b32.xlu0 %v2734, 32
      %v2813 = vpop.permute.xlu0 %2812
      %2814 = vrot.lane.b32.xlu0 %v2735, 32
      %v2815 = vpop.permute.xlu0 %2814
      %2816 = vrot.lane.b32.xlu0 %v2736, 32
      %v2817 = vpop.permute.xlu0 %2816
      %2818 = vrot.lane.b32.xlu0 %v2737, 32
      %v2819 = vpop.permute.xlu0 %2818
      %2820 = vrot.lane.b32.xlu0 %v2738, 32
      %v2821 = vpop.permute.xlu0 %2820
      %2822 = vrot.lane.b32.xlu0 %v2739, 32
      %v2823 = vpop.permute.xlu0 %2822
      %2824 = vrot.lane.b32.xlu0 %v2740, 32
      %v2825 = vpop.permute.xlu0 %2824
      %2826 = vrot.lane.b32.xlu0 %v2741, 32
      %v2827 = vpop.permute.xlu0 %2826
      %2828 = vrot.lane.b32.xlu0 %v2742, 32
      %v2829 = vpop.permute.xlu0 %2828
      %2830 = vrot.lane.b32.xlu0 %v2743, 32
      %v2831 = vpop.permute.xlu0 %2830
      %2832 = vrot.lane.b32.xlu0 %v2744, 32
      %v2833 = vpop.permute.xlu0 %2832
      %2834 = vrot.lane.b32.xlu0 %v2745, 32
      %v2835 = vpop.permute.xlu0 %2834
      %2836 = vrot.lane.b32.xlu0 %v2746, 32
      %v2837 = vpop.permute.xlu0 %2836
      %2838 = vrot.lane.b32.xlu0 %v2747, 32
      %v2839 = vpop.permute.xlu0 %2838
      %2840 = vrot.lane.b32.xlu0 %v2748, 32
      %v2841 = vpop.permute.xlu0 %2840
      %2842 = vrot.lane.b32.xlu0 %v2749, 32
      %v2843 = vpop.permute.xlu0 %2842
      %2844 = vrot.lane.b32.xlu0 %v2750, 32
      %v2845 = vpop.permute.xlu0 %2844
      %2846 = vrot.lane.b32.xlu0 %v2751, 32
      %v2847 = vpop.permute.xlu0 %2846
      %v2848 = vsel %vm370, %v2785, %v2787
      %v2849 = vsel %vm370, %v2789, %v2791
      %v2850 = vsel %vm370, %v2793, %v2795
      %v2851 = vsel %vm370, %v2797, %v2799
      %v2852 = vsel %vm370, %v2801, %v2803
      %v2853 = vsel %vm370, %v2805, %v2807
      %v2854 = vsel %vm370, %v2809, %v2811
      %v2855 = vsel %vm370, %v2813, %v2815
      %v2856 = vsel %vm370, %v2817, %v2819
      %v2857 = vsel %vm370, %v2821, %v2823
      %v2858 = vsel %vm370, %v2825, %v2827
      %v2859 = vsel %vm370, %v2829, %v2831
      %v2860 = vsel %vm370, %v2833, %v2835
      %v2861 = vsel %vm370, %v2837, %v2839
      %v2862 = vsel %vm370, %v2841, %v2843
      %v2863 = vsel %vm370, %v2845, %v2847
      %v2896 = vadd.f32 %v545, %v2785
      %v2897 = vadd.f32 %v656, %v2848
      %v2898 = vadd.f32 %v549, %v2789
      %v2899 = vadd.f32 %v660, %v2849
      %v2900 = vadd.f32 %v555, %v2793
      %v2901 = vadd.f32 %v666, %v2850
      %v2902 = vadd.f32 %v559, %v2797
      %v2903 = vadd.f32 %v670, %v2851
      %v2904 = vadd.f32 %v565, %v2801
      %v2905 = vadd.f32 %v676, %v2852
      %v2906 = vadd.f32 %v569, %v2805
      %v2907 = vadd.f32 %v680, %v2853
      %v2908 = vadd.f32 %v575, %v2809
      %v2909 = vadd.f32 %v686, %v2854
      %v2910 = vadd.f32 %v579, %v2813
      %v2911 = vadd.f32 %v690, %v2855
      %v2912 = vadd.f32 %v585, %v2817
      %v2913 = vadd.f32 %v696, %v2856
      %v2914 = vadd.f32 %v589, %v2821
      %v2915 = vadd.f32 %v700, %v2857
      %v2916 = vadd.f32 %v595, %v2825
      %v2917 = vadd.f32 %v706, %v2858
      %v2918 = vadd.f32 %v599, %v2829
      %v2919 = vadd.f32 %v710, %v2859
      %v2920 = vadd.f32 %v605, %v2833
      %v2921 = vadd.f32 %v716, %v2860
      %v2922 = vadd.f32 %v609, %v2837
      %v2923 = vadd.f32 %v720, %v2861
      %v2924 = vadd.f32 %v615, %v2841
      %v2925 = vadd.f32 %v726, %v2862
      %v2926 = vadd.f32 %v619, %v2845
      %v2927 = vadd.f32 %v730, %v2863
      %v2928 = vmul.f32 %v1505, %v1872
      %v2929 = vmul.f32 %v1509, %v1873
      %v2930 = vmul.f32 %v1513, %v1874
      %v2931 = vmul.f32 %v1517, %v1875
      %v2932 = vmul.f32 %v1521, %v1876
      %v2933 = vmul.f32 %v1525, %v1877
      %v2934 = vmul.f32 %v1529, %v1878
      %v2935 = vmul.f32 %v1533, %v1879
      %v2936 = vmul.f32 %v1537, %v1880
      %v2937 = vmul.f32 %v1541, %v1881
      %v2938 = vmul.f32 %v1545, %v1882
      %v2939 = vmul.f32 %v1549, %v1883
      %v2940 = vmul.f32 %v1553, %v1884
      %v2941 = vmul.f32 %v1557, %v1885
      %v2942 = vmul.f32 %v1561, %v1886
      %v2943 = vmul.f32 %v1565, %v1887
      %v2944 = vmul.f32 %v945, %v1471
      %v2945 = vmul.f32 %v945, %v1472
      %v2946 = vmul.f32 %v950, %v1473
      %v2947 = vmul.f32 %v950, %v1474
      %v2948 = vmul.f32 %v955, %v1475
      %v2949 = vmul.f32 %v955, %v1476
      %v2950 = vmul.f32 %v960, %v1477
      %v2951 = vmul.f32 %v960, %v1478
      %v2952 = vmul.f32 %v965, %v1479
      %v2953 = vmul.f32 %v965, %v1480
      %v2954 = vmul.f32 %v970, %v1481
      %v2955 = vmul.f32 %v970, %v1482
      %v2956 = vmul.f32 %v975, %v1483
      %v2957 = vmul.f32 %v975, %v1484
      %v2958 = vmul.f32 %v980, %v1485
      %v2959 = vmul.f32 %v980, %v1486
      %v2960 = vmul.f32 %v985, %v1487
      %v2961 = vmul.f32 %v985, %v1488
      %v2962 = vmul.f32 %v990, %v1489
      %v2963 = vmul.f32 %v990, %v1490
      %v2964 = vmul.f32 %v995, %v1491
      %v2965 = vmul.f32 %v995, %v1492
      %v2966 = vmul.f32 %v1000, %v1493
      %v2967 = vmul.f32 %v1000, %v1494
      %v2968 = vmul.f32 %v1005, %v1495
      %v2969 = vmul.f32 %v1005, %v1496
      %v2970 = vmul.f32 %v1010, %v1497
      %v2971 = vmul.f32 %v1010, %v1498
      %v2972 = vmul.f32 %v1015, %v1499
      %v2973 = vmul.f32 %v1015, %v1500
      %v2974 = vmul.f32 %v1020, %v1501
      %v2975 = vmul.f32 %v1020, %v1502
      %3008 = vrot.lane.b32.xlu0 %v2944, 64
      %v3009 = vpop.permute.xlu0 %3008
      %3010 = vrot.lane.b32.xlu0 %v2945, 64
      %v3011 = vpop.permute.xlu0 %3010
      %3012 = vrot.lane.b32.xlu0 %v2946, 64
      %v3013 = vpop.permute.xlu0 %3012
      %3014 = vrot.lane.b32.xlu0 %v2947, 64
      %v3015 = vpop.permute.xlu0 %3014
      %3016 = vrot.lane.b32.xlu0 %v2948, 64
      %v3017 = vpop.permute.xlu0 %3016
      %3018 = vrot.lane.b32.xlu0 %v2949, 64
      %v3019 = vpop.permute.xlu0 %3018
      %3020 = vrot.lane.b32.xlu0 %v2950, 64
      %v3021 = vpop.permute.xlu0 %3020
      %3022 = vrot.lane.b32.xlu0 %v2951, 64
      %v3023 = vpop.permute.xlu0 %3022
      %3024 = vrot.lane.b32.xlu0 %v2952, 64
      %v3025 = vpop.permute.xlu0 %3024
      %3026 = vrot.lane.b32.xlu0 %v2953, 64
      %v3027 = vpop.permute.xlu0 %3026
      %3028 = vrot.lane.b32.xlu0 %v2954, 64
      %v3029 = vpop.permute.xlu0 %3028
      %3030 = vrot.lane.b32.xlu0 %v2955, 64
      %v3031 = vpop.permute.xlu0 %3030
      %3032 = vrot.lane.b32.xlu0 %v2956, 64
      %v3033 = vpop.permute.xlu0 %3032
      %3034 = vrot.lane.b32.xlu0 %v2957, 64
      %v3035 = vpop.permute.xlu0 %3034
      %3036 = vrot.lane.b32.xlu0 %v2958, 64
      %v3037 = vpop.permute.xlu0 %3036
      %3038 = vrot.lane.b32.xlu0 %v2959, 64
      %v3039 = vpop.permute.xlu0 %3038
      %3040 = vrot.lane.b32.xlu0 %v2960, 64
      %v3041 = vpop.permute.xlu0 %3040
      %3042 = vrot.lane.b32.xlu0 %v2961, 64
      %v3043 = vpop.permute.xlu0 %3042
      %3044 = vrot.lane.b32.xlu0 %v2962, 64
      %v3045 = vpop.permute.xlu0 %3044
      %3046 = vrot.lane.b32.xlu0 %v2963, 64
      %v3047 = vpop.permute.xlu0 %3046
      %3048 = vrot.lane.b32.xlu0 %v2964, 64
      %v3049 = vpop.permute.xlu0 %3048
      %3050 = vrot.lane.b32.xlu0 %v2965, 64
      %v3051 = vpop.permute.xlu0 %3050
      %3052 = vrot.lane.b32.xlu0 %v2966, 64
      %v3053 = vpop.permute.xlu0 %3052
      %3054 = vrot.lane.b32.xlu0 %v2967, 64
      %v3055 = vpop.permute.xlu0 %3054
      %3056 = vrot.lane.b32.xlu0 %v2968, 64
      %v3057 = vpop.permute.xlu0 %3056
      %3058 = vrot.lane.b32.xlu0 %v2969, 64
      %v3059 = vpop.permute.xlu0 %3058
      %3060 = vrot.lane.b32.xlu0 %v2970, 64
      %v3061 = vpop.permute.xlu0 %3060
      %3062 = vrot.lane.b32.xlu0 %v2971, 64
      %v3063 = vpop.permute.xlu0 %3062
      %3064 = vrot.lane.b32.xlu0 %v2972, 64
      %v3065 = vpop.permute.xlu0 %3064
      %3066 = vrot.lane.b32.xlu0 %v2973, 64
      %v3067 = vpop.permute.xlu0 %3066
      %3068 = vrot.lane.b32.xlu0 %v2974, 64
      %v3069 = vpop.permute.xlu0 %3068
      %3070 = vrot.lane.b32.xlu0 %v2975, 64
      %v3071 = vpop.permute.xlu0 %3070
      %v3072 = vsel %vm1695, %v3009, %v3011
      %v3073 = vsel %vm1695, %v3013, %v3015
      %v3074 = vsel %vm1695, %v3017, %v3019
      %v3075 = vsel %vm1695, %v3021, %v3023
      %v3076 = vsel %vm1695, %v3025, %v3027
      %v3077 = vsel %vm1695, %v3029, %v3031
      %v3078 = vsel %vm1695, %v3033, %v3035
      %v3079 = vsel %vm1695, %v3037, %v3039
      %v3080 = vsel %vm1695, %v3041, %v3043
      %v3081 = vsel %vm1695, %v3045, %v3047
      %v3082 = vsel %vm1695, %v3049, %v3051
      %v3083 = vsel %vm1695, %v3053, %v3055
      %v3084 = vsel %vm1695, %v3057, %v3059
      %v3085 = vsel %vm1695, %v3061, %v3063
      %v3086 = vsel %vm1695, %v3065, %v3067
      %v3087 = vsel %vm1695, %v3069, %v3071
      %v3104 = vsub.f32 %v2928, %v3072
      %v3105 = vsub.f32 %v2929, %v3073
      %v3106 = vsub.f32 %v2930, %v3074
      %v3107 = vsub.f32 %v2931, %v3075
      %v3108 = vsub.f32 %v2932, %v3076
      %v3109 = vsub.f32 %v2933, %v3077
      %v3110 = vsub.f32 %v2934, %v3078
      %v3111 = vsub.f32 %v2935, %v3079
      %v3112 = vsub.f32 %v2936, %v3080
      %v3113 = vsub.f32 %v2937, %v3081
      %v3114 = vsub.f32 %v2938, %v3082
      %v3115 = vsub.f32 %v2939, %v3083
      %v3116 = vsub.f32 %v2940, %v3084
      %v3117 = vsub.f32 %v2941, %v3085
      %v3118 = vsub.f32 %v2942, %v3086
      %v3119 = vsub.f32 %v2943, %v3087
      %v3120 = vmul.f32 %v3104, 2.0
      %v3121 = vmul.f32 %v3105, 2.0
      %v3122 = vmul.f32 %v3106, 2.0
      %v3123 = vmul.f32 %v3107, 2.0
      %v3124 = vmul.f32 %v3108, 2.0
      %v3125 = vmul.f32 %v3109, 2.0
      %v3126 = vmul.f32 %v3110, 2.0
      %v3127 = vmul.f32 %v3111, 2.0
      %v3128 = vmul.f32 %v3112, 2.0
      %v3129 = vmul.f32 %v3113, 2.0
      %v3130 = vmul.f32 %v3114, 2.0
      %v3131 = vmul.f32 %v3115, 2.0
      %v3132 = vmul.f32 %v3116, 2.0
      %v3133 = vmul.f32 %v3117, 2.0
      %v3134 = vmul.f32 %v3118, 2.0
      %v3135 = vmul.f32 %v3119, 2.0
      %3152 = vrot.lane.b32.xlu0 %v3120, 64
      %v3153 = vpop.permute.xlu0 %3152
      %3154 = vrot.lane.b32.xlu0 %v3121, 64
      %v3155 = vpop.permute.xlu0 %3154
      %3156 = vrot.lane.b32.xlu0 %v3122, 64
      %v3157 = vpop.permute.xlu0 %3156
      %3158 = vrot.lane.b32.xlu0 %v3123, 64
      %v3159 = vpop.permute.xlu0 %3158
      %3160 = vrot.lane.b32.xlu0 %v3124, 64
      %v3161 = vpop.permute.xlu0 %3160
      %3162 = vrot.lane.b32.xlu0 %v3125, 64
      %v3163 = vpop.permute.xlu0 %3162
      %3164 = vrot.lane.b32.xlu0 %v3126, 64
      %v3165 = vpop.permute.xlu0 %3164
      %3166 = vrot.lane.b32.xlu0 %v3127, 64
      %v3167 = vpop.permute.xlu0 %3166
      %3168 = vrot.lane.b32.xlu0 %v3128, 64
      %v3169 = vpop.permute.xlu0 %3168
      %3170 = vrot.lane.b32.xlu0 %v3129, 64
      %v3171 = vpop.permute.xlu0 %3170
      %3172 = vrot.lane.b32.xlu0 %v3130, 64
      %v3173 = vpop.permute.xlu0 %3172
      %3174 = vrot.lane.b32.xlu0 %v3131, 64
      %v3175 = vpop.permute.xlu0 %3174
      %3176 = vrot.lane.b32.xlu0 %v3132, 64
      %v3177 = vpop.permute.xlu0 %3176
      %3178 = vrot.lane.b32.xlu0 %v3133, 64
      %v3179 = vpop.permute.xlu0 %3178
      %3180 = vrot.lane.b32.xlu0 %v3134, 64
      %v3181 = vpop.permute.xlu0 %3180
      %3182 = vrot.lane.b32.xlu0 %v3135, 64
      %v3183 = vpop.permute.xlu0 %3182
      %v3200 = vadd.f32 %v656, %v3153
      %v3201 = vadd.f32 %v658, %v3153
      %v3202 = vadd.f32 %v660, %v3155
      %v3203 = vadd.f32 %v662, %v3155
      %v3204 = vadd.f32 %v666, %v3157
      %v3205 = vadd.f32 %v668, %v3157
      %v3206 = vadd.f32 %v670, %v3159
      %v3207 = vadd.f32 %v672, %v3159
      %v3208 = vadd.f32 %v676, %v3161
      %v3209 = vadd.f32 %v678, %v3161
      %v3210 = vadd.f32 %v680, %v3163
      %v3211 = vadd.f32 %v682, %v3163
      %v3212 = vadd.f32 %v686, %v3165
      %v3213 = vadd.f32 %v688, %v3165
      %v3214 = vadd.f32 %v690, %v3167
      %v3215 = vadd.f32 %v692, %v3167
      %v3216 = vadd.f32 %v696, %v3169
      %v3217 = vadd.f32 %v698, %v3169
      %v3218 = vadd.f32 %v700, %v3171
      %v3219 = vadd.f32 %v702, %v3171
      %v3220 = vadd.f32 %v706, %v3173
      %v3221 = vadd.f32 %v708, %v3173
      %v3222 = vadd.f32 %v710, %v3175
      %v3223 = vadd.f32 %v712, %v3175
      %v3224 = vadd.f32 %v716, %v3177
      %v3225 = vadd.f32 %v718, %v3177
      %v3226 = vadd.f32 %v720, %v3179
      %v3227 = vadd.f32 %v722, %v3179
      %v3228 = vadd.f32 %v726, %v3181
      %v3229 = vadd.f32 %v728, %v3181
      %v3230 = vadd.f32 %v730, %v3183
      %v3231 = vadd.f32 %v732, %v3183
      %3232 = vset.pattern.permute.xlu0 4
      %3233 = vperm.xlu0 %3232, %v734
      %v3234 = vpop.permute.xlu0 %3233
      %3236 = vset.pattern.permute.xlu0 4
      %3237 = vperm.xlu0 %3236, %v735
      %v3238 = vpop.permute.xlu0 %3237
      %3240 = vset.pattern.permute.xlu0 4
      %3241 = vperm.xlu0 %3240, %v736
      %v3242 = vpop.permute.xlu0 %3241
      %3244 = vset.pattern.permute.xlu0 4
      %3245 = vperm.xlu0 %3244, %v737
      %v3246 = vpop.permute.xlu0 %3245
      %3248 = vset.pattern.permute.xlu0 4
      %3249 = vperm.xlu0 %3248, %v738
      %v3250 = vpop.permute.xlu0 %3249
      %3252 = vset.pattern.permute.xlu0 4
      %3253 = vperm.xlu0 %3252, %v739
      %v3254 = vpop.permute.xlu0 %3253
      %3256 = vset.pattern.permute.xlu0 4
      %3257 = vperm.xlu0 %3256, %v740
      %v3258 = vpop.permute.xlu0 %3257
      %3260 = vset.pattern.permute.xlu0 4
      %3261 = vperm.xlu0 %3260, %v741
      %v3262 = vpop.permute.xlu0 %3261
      %3264 = vset.pattern.permute.xlu0 4
      %3265 = vperm.xlu0 %3264, %v742
      %v3266 = vpop.permute.xlu0 %3265
      %3268 = vset.pattern.permute.xlu0 4
      %3269 = vperm.xlu0 %3268, %v743
      %v3270 = vpop.permute.xlu0 %3269
      %3272 = vset.pattern.permute.xlu0 4
      %3273 = vperm.xlu0 %3272, %v744
      %v3274 = vpop.permute.xlu0 %3273
      %3276 = vset.pattern.permute.xlu0 4
      %3277 = vperm.xlu0 %3276, %v745
      %v3278 = vpop.permute.xlu0 %3277
      %3280 = vset.pattern.permute.xlu0 4
      %3281 = vperm.xlu0 %3280, %v746
      %v3282 = vpop.permute.xlu0 %3281
      %3284 = vset.pattern.permute.xlu0 4
      %3285 = vperm.xlu0 %3284, %v747
      %v3286 = vpop.permute.xlu0 %3285
      %3288 = vset.pattern.permute.xlu0 4
      %3289 = vperm.xlu0 %3288, %v748
      %v3290 = vpop.permute.xlu0 %3289
      %3292 = vset.pattern.permute.xlu0 4
      %3293 = vperm.xlu0 %3292, %v749
      %v3294 = vpop.permute.xlu0 %3293
      %v3296 = vadd.f32 %v2464, %v3234
      %v3297 = vadd.f32 %v2465, %v3238
      %v3298 = vadd.f32 %v2466, %v3242
      %v3299 = vadd.f32 %v2467, %v3246
      %v3300 = vadd.f32 %v2468, %v3250
      %v3301 = vadd.f32 %v2469, %v3254
      %v3302 = vadd.f32 %v2470, %v3258
      %v3303 = vadd.f32 %v2471, %v3262
      %v3304 = vadd.f32 %v2472, %v3266
      %v3305 = vadd.f32 %v2473, %v3270
      %v3306 = vadd.f32 %v2474, %v3274
      %v3307 = vadd.f32 %v2475, %v3278
      %v3308 = vadd.f32 %v2476, %v3282
      %v3309 = vadd.f32 %v2477, %v3286
      %v3310 = vadd.f32 %v2478, %v3290
      %v3311 = vadd.f32 %v2479, %v3294
      %3312 = vset.pattern.permute.xlu0 5
      %3313 = vperm.xlu0 %3312, %v734
      %v3314 = vpop.permute.xlu0 %3313
      %3316 = vset.pattern.permute.xlu0 5
      %3317 = vperm.xlu0 %3316, %v735
      %v3318 = vpop.permute.xlu0 %3317
      %3320 = vset.pattern.permute.xlu0 5
      %3321 = vperm.xlu0 %3320, %v736
      %v3322 = vpop.permute.xlu0 %3321
      %3324 = vset.pattern.permute.xlu0 5
      %3325 = vperm.xlu0 %3324, %v737
      %v3326 = vpop.permute.xlu0 %3325
      %3328 = vset.pattern.permute.xlu0 5
      %3329 = vperm.xlu0 %3328, %v738
      %v3330 = vpop.permute.xlu0 %3329
      %3332 = vset.pattern.permute.xlu0 5
      %3333 = vperm.xlu0 %3332, %v739
      %v3334 = vpop.permute.xlu0 %3333
      %3336 = vset.pattern.permute.xlu0 5
      %3337 = vperm.xlu0 %3336, %v740
      %v3338 = vpop.permute.xlu0 %3337
      %3340 = vset.pattern.permute.xlu0 5
      %3341 = vperm.xlu0 %3340, %v741
      %v3342 = vpop.permute.xlu0 %3341
      %3344 = vset.pattern.permute.xlu0 5
      %3345 = vperm.xlu0 %3344, %v742
      %v3346 = vpop.permute.xlu0 %3345
      %3348 = vset.pattern.permute.xlu0 5
      %3349 = vperm.xlu0 %3348, %v743
      %v3350 = vpop.permute.xlu0 %3349
      %3352 = vset.pattern.permute.xlu0 5
      %3353 = vperm.xlu0 %3352, %v744
      %v3354 = vpop.permute.xlu0 %3353
      %3356 = vset.pattern.permute.xlu0 5
      %3357 = vperm.xlu0 %3356, %v745
      %v3358 = vpop.permute.xlu0 %3357
      %3360 = vset.pattern.permute.xlu0 5
      %3361 = vperm.xlu0 %3360, %v746
      %v3362 = vpop.permute.xlu0 %3361
      %3364 = vset.pattern.permute.xlu0 5
      %3365 = vperm.xlu0 %3364, %v747
      %v3366 = vpop.permute.xlu0 %3365
      %3368 = vset.pattern.permute.xlu0 5
      %3369 = vperm.xlu0 %3368, %v748
      %v3370 = vpop.permute.xlu0 %3369
      %3372 = vset.pattern.permute.xlu0 5
      %3373 = vperm.xlu0 %3372, %v749
      %v3374 = vpop.permute.xlu0 %3373
      %v3376 = vadd.f32 %v2896, %v3314
      %v3377 = vadd.f32 %v2897, %v3314
      %v3378 = vadd.f32 %v2898, %v3318
      %v3379 = vadd.f32 %v2899, %v3318
      %v3380 = vadd.f32 %v2900, %v3322
      %v3381 = vadd.f32 %v2901, %v3322
      %v3382 = vadd.f32 %v2902, %v3326
      %v3383 = vadd.f32 %v2903, %v3326
      %v3384 = vadd.f32 %v2904, %v3330
      %v3385 = vadd.f32 %v2905, %v3330
      %v3386 = vadd.f32 %v2906, %v3334
      %v3387 = vadd.f32 %v2907, %v3334
      %v3388 = vadd.f32 %v2908, %v3338
      %v3389 = vadd.f32 %v2909, %v3338
      %v3390 = vadd.f32 %v2910, %v3342
      %v3391 = vadd.f32 %v2911, %v3342
      %v3392 = vadd.f32 %v2912, %v3346
      %v3393 = vadd.f32 %v2913, %v3346
      %v3394 = vadd.f32 %v2914, %v3350
      %v3395 = vadd.f32 %v2915, %v3350
      %v3396 = vadd.f32 %v2916, %v3354
      %v3397 = vadd.f32 %v2917, %v3354
      %v3398 = vadd.f32 %v2918, %v3358
      %v3399 = vadd.f32 %v2919, %v3358
      %v3400 = vadd.f32 %v2920, %v3362
      %v3401 = vadd.f32 %v2921, %v3362
      %v3402 = vadd.f32 %v2922, %v3366
      %v3403 = vadd.f32 %v2923, %v3366
      %v3404 = vadd.f32 %v2924, %v3370
      %v3405 = vadd.f32 %v2925, %v3370
      %v3406 = vadd.f32 %v2926, %v3374
      %v3407 = vadd.f32 %v2927, %v3374
      %3408 = vset.pattern.permute.xlu0 6
      %3409 = vperm.xlu0 %3408, %v734
      %v3410 = vpop.permute.xlu0 %3409
      %3412 = vset.pattern.permute.xlu0 6
      %3413 = vperm.xlu0 %3412, %v735
      %v3414 = vpop.permute.xlu0 %3413
      %3416 = vset.pattern.permute.xlu0 6
      %3417 = vperm.xlu0 %3416, %v736
      %v3418 = vpop.permute.xlu0 %3417
      %3420 = vset.pattern.permute.xlu0 6
      %3421 = vperm.xlu0 %3420, %v737
      %v3422 = vpop.permute.xlu0 %3421
      %3424 = vset.pattern.permute.xlu0 6
      %3425 = vperm.xlu0 %3424, %v738
      %v3426 = vpop.permute.xlu0 %3425
      %3428 = vset.pattern.permute.xlu0 6
      %3429 = vperm.xlu0 %3428, %v739
      %v3430 = vpop.permute.xlu0 %3429
      %3432 = vset.pattern.permute.xlu0 6
      %3433 = vperm.xlu0 %3432, %v740
      %v3434 = vpop.permute.xlu0 %3433
      %3436 = vset.pattern.permute.xlu0 6
      %3437 = vperm.xlu0 %3436, %v741
      %v3438 = vpop.permute.xlu0 %3437
      %3440 = vset.pattern.permute.xlu0 6
      %3441 = vperm.xlu0 %3440, %v742
      %v3442 = vpop.permute.xlu0 %3441
      %3444 = vset.pattern.permute.xlu0 6
      %3445 = vperm.xlu0 %3444, %v743
      %v3446 = vpop.permute.xlu0 %3445
      %3448 = vset.pattern.permute.xlu0 6
      %3449 = vperm.xlu0 %3448, %v744
      %v3450 = vpop.permute.xlu0 %3449
      %3452 = vset.pattern.permute.xlu0 6
      %3453 = vperm.xlu0 %3452, %v745
      %v3454 = vpop.permute.xlu0 %3453
      %3456 = vset.pattern.permute.xlu0 6
      %3457 = vperm.xlu0 %3456, %v746
      %v3458 = vpop.permute.xlu0 %3457
      %3460 = vset.pattern.permute.xlu0 6
      %3461 = vperm.xlu0 %3460, %v747
      %v3462 = vpop.permute.xlu0 %3461
      %3464 = vset.pattern.permute.xlu0 6
      %3465 = vperm.xlu0 %3464, %v748
      %v3466 = vpop.permute.xlu0 %3465
      %3468 = vset.pattern.permute.xlu0 6
      %3469 = vperm.xlu0 %3468, %v749
      %v3470 = vpop.permute.xlu0 %3469
      %v3472 = vadd.f32 %v3200, %v3410
      %v3473 = vadd.f32 %v3201, %v3410
      %v3474 = vadd.f32 %v3202, %v3414
      %v3475 = vadd.f32 %v3203, %v3414
      %v3476 = vadd.f32 %v3204, %v3418
      %v3477 = vadd.f32 %v3205, %v3418
      %v3478 = vadd.f32 %v3206, %v3422
      %v3479 = vadd.f32 %v3207, %v3422
      %v3480 = vadd.f32 %v3208, %v3426
      %v3481 = vadd.f32 %v3209, %v3426
      %v3482 = vadd.f32 %v3210, %v3430
      %v3483 = vadd.f32 %v3211, %v3430
      %v3484 = vadd.f32 %v3212, %v3434
      %v3485 = vadd.f32 %v3213, %v3434
      %v3486 = vadd.f32 %v3214, %v3438
      %v3487 = vadd.f32 %v3215, %v3438
      %v3488 = vadd.f32 %v3216, %v3442
      %v3489 = vadd.f32 %v3217, %v3442
      %v3490 = vadd.f32 %v3218, %v3446
      %v3491 = vadd.f32 %v3219, %v3446
      %v3492 = vadd.f32 %v3220, %v3450
      %v3493 = vadd.f32 %v3221, %v3450
      %v3494 = vadd.f32 %v3222, %v3454
      %v3495 = vadd.f32 %v3223, %v3454
      %v3496 = vadd.f32 %v3224, %v3458
      %v3497 = vadd.f32 %v3225, %v3458
      %v3498 = vadd.f32 %v3226, %v3462
      %v3499 = vadd.f32 %v3227, %v3462
      %v3500 = vadd.f32 %v3228, %v3466
      %v3501 = vadd.f32 %v3229, %v3466
      %v3502 = vadd.f32 %v3230, %v3470
      %v3503 = vadd.f32 %v3231, %v3470
      %3504 = vst.msk [vmem:[%s239] sm:$0xff] %vm370, %v3296
      %3505 = vst.msk [vmem:[%s239 + $0x10] sm:$0xff] %vm370, %v3297
      %3506 = vst.msk [vmem:[%s239 + $0x20] sm:$0xff] %vm370, %v3298
      %3507 = vst.msk [vmem:[%s239 + $0x30] sm:$0xff] %vm370, %v3299
      %3508 = vst.msk [vmem:[%s239 + $0x40] sm:$0xff] %vm370, %v3300
      %3509 = vst.msk [vmem:[%s239 + $0x50] sm:$0xff] %vm370, %v3301
      %3510 = vst.msk [vmem:[%s239 + $0x60] sm:$0xff] %vm370, %v3302
      %3511 = vst.msk [vmem:[%s239 + $0x70] sm:$0xff] %vm370, %v3303
      %3512 = vst.msk [vmem:[%s239 + $0x80] sm:$0xff] %vm370, %v3304
      %3513 = vst.msk [vmem:[%s239 + $0x90] sm:$0xff] %vm370, %v3305
      %3514 = vst.msk [vmem:[%s239 + $0xa0] sm:$0xff] %vm370, %v3306
      %3515 = vst.msk [vmem:[%s239 + $0xb0] sm:$0xff] %vm370, %v3307
      %3516 = vst.msk [vmem:[%s239 + $0xc0] sm:$0xff] %vm370, %v3308
      %3517 = vst.msk [vmem:[%s239 + $0xd0] sm:$0xff] %vm370, %v3309
      %3518 = vst.msk [vmem:[%s239 + $0xe0] sm:$0xff] %vm370, %v3310
      %3519 = vst.msk [vmem:[%s239 + $0xf0] sm:$0xff] %vm370, %v3311
      %3536 = vrot.lane.b32.xlu0 %v3376, 64
      %v3537 = vpop.permute.xlu0 %3536
      %3538 = vrot.lane.b32.xlu0 %v3378, 64
      %v3539 = vpop.permute.xlu0 %3538
      %3540 = vrot.lane.b32.xlu0 %v3380, 64
      %v3541 = vpop.permute.xlu0 %3540
      %3542 = vrot.lane.b32.xlu0 %v3382, 64
      %v3543 = vpop.permute.xlu0 %3542
      %3544 = vrot.lane.b32.xlu0 %v3384, 64
      %v3545 = vpop.permute.xlu0 %3544
      %3546 = vrot.lane.b32.xlu0 %v3386, 64
      %v3547 = vpop.permute.xlu0 %3546
      %3548 = vrot.lane.b32.xlu0 %v3388, 64
      %v3549 = vpop.permute.xlu0 %3548
      %3550 = vrot.lane.b32.xlu0 %v3390, 64
      %v3551 = vpop.permute.xlu0 %3550
      %3552 = vrot.lane.b32.xlu0 %v3392, 64
      %v3553 = vpop.permute.xlu0 %3552
      %3554 = vrot.lane.b32.xlu0 %v3394, 64
      %v3555 = vpop.permute.xlu0 %3554
      %3556 = vrot.lane.b32.xlu0 %v3396, 64
      %v3557 = vpop.permute.xlu0 %3556
      %3558 = vrot.lane.b32.xlu0 %v3398, 64
      %v3559 = vpop.permute.xlu0 %3558
      %3560 = vrot.lane.b32.xlu0 %v3400, 64
      %v3561 = vpop.permute.xlu0 %3560
      %3562 = vrot.lane.b32.xlu0 %v3402, 64
      %v3563 = vpop.permute.xlu0 %3562
      %3564 = vrot.lane.b32.xlu0 %v3404, 64
      %v3565 = vpop.permute.xlu0 %3564
      %3566 = vrot.lane.b32.xlu0 %v3406, 64
      %v3567 = vpop.permute.xlu0 %3566
      %vm3584 = vcmask 523520
      %3585 = vst.msk [vmem:[%s239] sm:$0xff] %vm3584, %v3537
      %3586 = vst.msk [vmem:[%s239 + $0x10] sm:$0xff] %vm3584, %v3539
      %3587 = vst.msk [vmem:[%s239 + $0x20] sm:$0xff] %vm3584, %v3541
      %3588 = vst.msk [vmem:[%s239 + $0x30] sm:$0xff] %vm3584, %v3543
      %3589 = vst.msk [vmem:[%s239 + $0x40] sm:$0xff] %vm3584, %v3545
      %3590 = vst.msk [vmem:[%s239 + $0x50] sm:$0xff] %vm3584, %v3547
      %3591 = vst.msk [vmem:[%s239 + $0x60] sm:$0xff] %vm3584, %v3549
      %3592 = vst.msk [vmem:[%s239 + $0x70] sm:$0xff] %vm3584, %v3551
      %3593 = vst.msk [vmem:[%s239 + $0x80] sm:$0xff] %vm3584, %v3553
      %3594 = vst.msk [vmem:[%s239 + $0x90] sm:$0xff] %vm3584, %v3555
      %3595 = vst.msk [vmem:[%s239 + $0xa0] sm:$0xff] %vm3584, %v3557
      %3596 = vst.msk [vmem:[%s239 + $0xb0] sm:$0xff] %vm3584, %v3559
      %3597 = vst.msk [vmem:[%s239 + $0xc0] sm:$0xff] %vm3584, %v3561
      %3598 = vst.msk [vmem:[%s239 + $0xd0] sm:$0xff] %vm3584, %v3563
      %3599 = vst.msk [vmem:[%s239 + $0xe0] sm:$0xff] %vm3584, %v3565
      %3600 = vst.msk [vmem:[%s239 + $0xf0] sm:$0xff] %vm3584, %v3567
      %vm3601 = vcmask 785920
      %3602 = vst.msk [vmem:[%s239] sm:$0xff] %vm3601, %v3472
      %3603 = vst.msk [vmem:[%s239 + $0x10] sm:$0xff] %vm3601, %v3474
      %3604 = vst.msk [vmem:[%s239 + $0x20] sm:$0xff] %vm3601, %v3476
      %3605 = vst.msk [vmem:[%s239 + $0x30] sm:$0xff] %vm3601, %v3478
      %3606 = vst.msk [vmem:[%s239 + $0x40] sm:$0xff] %vm3601, %v3480
      %3607 = vst.msk [vmem:[%s239 + $0x50] sm:$0xff] %vm3601, %v3482
      %3608 = vst.msk [vmem:[%s239 + $0x60] sm:$0xff] %vm3601, %v3484
      %3609 = vst.msk [vmem:[%s239 + $0x70] sm:$0xff] %vm3601, %v3486
      %3610 = vst.msk [vmem:[%s239 + $0x80] sm:$0xff] %vm3601, %v3488
      %3611 = vst.msk [vmem:[%s239 + $0x90] sm:$0xff] %vm3601, %v3490
      %3612 = vst.msk [vmem:[%s239 + $0xa0] sm:$0xff] %vm3601, %v3492
      %3613 = vst.msk [vmem:[%s239 + $0xb0] sm:$0xff] %vm3601, %v3494
      %3614 = vst.msk [vmem:[%s239 + $0xc0] sm:$0xff] %vm3601, %v3496
      %3615 = vst.msk [vmem:[%s239 + $0xd0] sm:$0xff] %vm3601, %v3498
      %3616 = vst.msk [vmem:[%s239 + $0xe0] sm:$0xff] %vm3601, %v3500
      %3617 = vst.msk [vmem:[%s239 + $0xf0] sm:$0xff] %vm3601, %v3502
      %3634 = vrot.lane.b32.xlu0 %v3296, 64
      %v3635 = vpop.permute.xlu0 %3634
      %3636 = vrot.lane.b32.xlu0 %v3297, 64
      %v3637 = vpop.permute.xlu0 %3636
      %3638 = vrot.lane.b32.xlu0 %v3298, 64
      %v3639 = vpop.permute.xlu0 %3638
      %3640 = vrot.lane.b32.xlu0 %v3299, 64
      %v3641 = vpop.permute.xlu0 %3640
      %3642 = vrot.lane.b32.xlu0 %v3300, 64
      %v3643 = vpop.permute.xlu0 %3642
      %3644 = vrot.lane.b32.xlu0 %v3301, 64
      %v3645 = vpop.permute.xlu0 %3644
      %3646 = vrot.lane.b32.xlu0 %v3302, 64
      %v3647 = vpop.permute.xlu0 %3646
      %3648 = vrot.lane.b32.xlu0 %v3303, 64
      %v3649 = vpop.permute.xlu0 %3648
      %3650 = vrot.lane.b32.xlu0 %v3304, 64
      %v3651 = vpop.permute.xlu0 %3650
      %3652 = vrot.lane.b32.xlu0 %v3305, 64
      %v3653 = vpop.permute.xlu0 %3652
      %3654 = vrot.lane.b32.xlu0 %v3306, 64
      %v3655 = vpop.permute.xlu0 %3654
      %3656 = vrot.lane.b32.xlu0 %v3307, 64
      %v3657 = vpop.permute.xlu0 %3656
      %3658 = vrot.lane.b32.xlu0 %v3308, 64
      %v3659 = vpop.permute.xlu0 %3658
      %3660 = vrot.lane.b32.xlu0 %v3309, 64
      %v3661 = vpop.permute.xlu0 %3660
      %3662 = vrot.lane.b32.xlu0 %v3310, 64
      %v3663 = vpop.permute.xlu0 %3662
      %3664 = vrot.lane.b32.xlu0 %v3311, 64
      %v3665 = vpop.permute.xlu0 %3664
      %vm3682 = vcmask 1048320
      %3683 = vst.msk [vmem:[%s239] sm:$0xff] %vm3682, %v3635
      %3684 = vst.msk [vmem:[%s239 + $0x10] sm:$0xff] %vm3682, %v3637
      %3685 = vst.msk [vmem:[%s239 + $0x20] sm:$0xff] %vm3682, %v3639
      %3686 = vst.msk [vmem:[%s239 + $0x30] sm:$0xff] %vm3682, %v3641
      %3687 = vst.msk [vmem:[%s239 + $0x40] sm:$0xff] %vm3682, %v3643
      %3688 = vst.msk [vmem:[%s239 + $0x50] sm:$0xff] %vm3682, %v3645
      %3689 = vst.msk [vmem:[%s239 + $0x60] sm:$0xff] %vm3682, %v3647
      %3690 = vst.msk [vmem:[%s239 + $0x70] sm:$0xff] %vm3682, %v3649
      %3691 = vst.msk [vmem:[%s239 + $0x80] sm:$0xff] %vm3682, %v3651
      %3692 = vst.msk [vmem:[%s239 + $0x90] sm:$0xff] %vm3682, %v3653
      %3693 = vst.msk [vmem:[%s239 + $0xa0] sm:$0xff] %vm3682, %v3655
      %3694 = vst.msk [vmem:[%s239 + $0xb0] sm:$0xff] %vm3682, %v3657
      %3695 = vst.msk [vmem:[%s239 + $0xc0] sm:$0xff] %vm3682, %v3659
      %3696 = vst.msk [vmem:[%s239 + $0xd0] sm:$0xff] %vm3682, %v3661
      %3697 = vst.msk [vmem:[%s239 + $0xe0] sm:$0xff] %vm3682, %v3663
      %3698 = vst.msk [vmem:[%s239 + $0xf0] sm:$0xff] %vm3682, %v3665
      %3699 = vst.msk [vmem:[%s239 + $0x8] sm:$0xff] %vm370, %v3377
      %3700 = vst.msk [vmem:[%s239 + $0x18] sm:$0xff] %vm370, %v3379
      %3701 = vst.msk [vmem:[%s239 + $0x28] sm:$0xff] %vm370, %v3381
      %3702 = vst.msk [vmem:[%s239 + $0x38] sm:$0xff] %vm370, %v3383
      %3703 = vst.msk [vmem:[%s239 + $0x48] sm:$0xff] %vm370, %v3385
      %3704 = vst.msk [vmem:[%s239 + $0x58] sm:$0xff] %vm370, %v3387
      %3705 = vst.msk [vmem:[%s239 + $0x68] sm:$0xff] %vm370, %v3389
      %3706 = vst.msk [vmem:[%s239 + $0x78] sm:$0xff] %vm370, %v3391
      %3707 = vst.msk [vmem:[%s239 + $0x88] sm:$0xff] %vm370, %v3393
      %3708 = vst.msk [vmem:[%s239 + $0x98] sm:$0xff] %vm370, %v3395
      %3709 = vst.msk [vmem:[%s239 + $0xa8] sm:$0xff] %vm370, %v3397
      %3710 = vst.msk [vmem:[%s239 + $0xb8] sm:$0xff] %vm370, %v3399
      %3711 = vst.msk [vmem:[%s239 + $0xc8] sm:$0xff] %vm370, %v3401
      %3712 = vst.msk [vmem:[%s239 + $0xd8] sm:$0xff] %vm370, %v3403
      %3713 = vst.msk [vmem:[%s239 + $0xe8] sm:$0xff] %vm370, %v3405
      %3714 = vst.msk [vmem:[%s239 + $0xf8] sm:$0xff] %vm370, %v3407
      %3731 = vrot.lane.b32.xlu0 %v3472, 64
      %v3732 = vpop.permute.xlu0 %3731
      %3733 = vrot.lane.b32.xlu0 %v3474, 64
      %v3734 = vpop.permute.xlu0 %3733
      %3735 = vrot.lane.b32.xlu0 %v3476, 64
      %v3736 = vpop.permute.xlu0 %3735
      %3737 = vrot.lane.b32.xlu0 %v3478, 64
      %v3738 = vpop.permute.xlu0 %3737
      %3739 = vrot.lane.b32.xlu0 %v3480, 64
      %v3740 = vpop.permute.xlu0 %3739
      %3741 = vrot.lane.b32.xlu0 %v3482, 64
      %v3742 = vpop.permute.xlu0 %3741
      %3743 = vrot.lane.b32.xlu0 %v3484, 64
      %v3744 = vpop.permute.xlu0 %3743
      %3745 = vrot.lane.b32.xlu0 %v3486, 64
      %v3746 = vpop.permute.xlu0 %3745
      %3747 = vrot.lane.b32.xlu0 %v3488, 64
      %v3748 = vpop.permute.xlu0 %3747
      %3749 = vrot.lane.b32.xlu0 %v3490, 64
      %v3750 = vpop.permute.xlu0 %3749
      %3751 = vrot.lane.b32.xlu0 %v3492, 64
      %v3752 = vpop.permute.xlu0 %3751
      %3753 = vrot.lane.b32.xlu0 %v3494, 64
      %v3754 = vpop.permute.xlu0 %3753
      %3755 = vrot.lane.b32.xlu0 %v3496, 64
      %v3756 = vpop.permute.xlu0 %3755
      %3757 = vrot.lane.b32.xlu0 %v3498, 64
      %v3758 = vpop.permute.xlu0 %3757
      %3759 = vrot.lane.b32.xlu0 %v3500, 64
      %v3760 = vpop.permute.xlu0 %3759
      %3761 = vrot.lane.b32.xlu0 %v3502, 64
      %v3762 = vpop.permute.xlu0 %3761
      %3779 = vst.msk [vmem:[%s239 + $0x8] sm:$0xff] %vm3584, %v3732
      %3780 = vst.msk [vmem:[%s239 + $0x18] sm:$0xff] %vm3584, %v3734
      %3781 = vst.msk [vmem:[%s239 + $0x28] sm:$0xff] %vm3584, %v3736
      %3782 = vst.msk [vmem:[%s239 + $0x38] sm:$0xff] %vm3584, %v3738
      %3783 = vst.msk [vmem:[%s239 + $0x48] sm:$0xff] %vm3584, %v3740
      %3784 = vst.msk [vmem:[%s239 + $0x58] sm:$0xff] %vm3584, %v3742
      %3785 = vst.msk [vmem:[%s239 + $0x68] sm:$0xff] %vm3584, %v3744
      %3786 = vst.msk [vmem:[%s239 + $0x78] sm:$0xff] %vm3584, %v3746
      %3787 = vst.msk [vmem:[%s239 + $0x88] sm:$0xff] %vm3584, %v3748
      %3788 = vst.msk [vmem:[%s239 + $0x98] sm:$0xff] %vm3584, %v3750
      %3789 = vst.msk [vmem:[%s239 + $0xa8] sm:$0xff] %vm3584, %v3752
      %3790 = vst.msk [vmem:[%s239 + $0xb8] sm:$0xff] %vm3584, %v3754
      %3791 = vst.msk [vmem:[%s239 + $0xc8] sm:$0xff] %vm3584, %v3756
      %3792 = vst.msk [vmem:[%s239 + $0xd8] sm:$0xff] %vm3584, %v3758
      %3793 = vst.msk [vmem:[%s239 + $0xe8] sm:$0xff] %vm3584, %v3760
      %3794 = vst.msk [vmem:[%s239 + $0xf8] sm:$0xff] %vm3584, %v3762
      %v3795 = vpack.c.bf16 %v3297, %v3296
      %v3796 = vpack.c.bf16 %v3299, %v3298
      %v3797 = vpack.c.bf16 %v3301, %v3300
      %v3798 = vpack.c.bf16 %v3303, %v3302
      %v3799 = vpack.c.bf16 %v3305, %v3304
      %v3800 = vpack.c.bf16 %v3307, %v3306
      %v3801 = vpack.c.bf16 %v3309, %v3308
      %v3802 = vpack.c.bf16 %v3311, %v3310
      %v3811 = vunpack.c.l.b16 %v3795
      %v3812 = vunpack.c.h.b16 %v3795
      %v3813 = vunpack.c.l.b16 %v3796
      %v3814 = vunpack.c.h.b16 %v3796
      %v3815 = vunpack.c.l.b16 %v3797
      %v3816 = vunpack.c.h.b16 %v3797
      %v3817 = vunpack.c.l.b16 %v3798
      %v3818 = vunpack.c.h.b16 %v3798
      %v3819 = vunpack.c.l.b16 %v3799
      %v3820 = vunpack.c.h.b16 %v3799
      %v3821 = vunpack.c.l.b16 %v3800
      %v3822 = vunpack.c.h.b16 %v3800
      %v3823 = vunpack.c.l.b16 %v3801
      %v3824 = vunpack.c.h.b16 %v3801
      %v3825 = vunpack.c.l.b16 %v3802
      %v3826 = vunpack.c.h.b16 %v3802
      %v3827 = vpack.c.b16 %v3811, %v3811
      %v3828 = vpack.c.b16 %v3812, %v3812
      %v3829 = vpack.c.b16 %v3813, %v3813
      %v3830 = vpack.c.b16 %v3814, %v3814
      %v3831 = vpack.c.b16 %v3815, %v3815
      %v3832 = vpack.c.b16 %v3816, %v3816
      %v3833 = vpack.c.b16 %v3817, %v3817
      %v3834 = vpack.c.b16 %v3818, %v3818
      %v3835 = vpack.c.b16 %v3819, %v3819
      %v3836 = vpack.c.b16 %v3820, %v3820
      %v3837 = vpack.c.b16 %v3821, %v3821
      %v3838 = vpack.c.b16 %v3822, %v3822
      %v3839 = vpack.c.b16 %v3823, %v3823
      %v3840 = vpack.c.b16 %v3824, %v3824
      %v3841 = vpack.c.b16 %v3825, %v3825
      %v3842 = vpack.c.b16 %v3826, %v3826
      %3843 = vrot.lane.b32.xlu0 %v3827, 64
      %v3844 = vpop.permute.xlu0 %3843
      %3845 = vrot.lane.b32.xlu0 %v3828, 64
      %v3846 = vpop.permute.xlu0 %3845
      %3847 = vrot.lane.b32.xlu0 %v3829, 64
      %v3848 = vpop.permute.xlu0 %3847
      %3849 = vrot.lane.b32.xlu0 %v3830, 64
      %v3850 = vpop.permute.xlu0 %3849
      %3851 = vrot.lane.b32.xlu0 %v3831, 64
      %v3852 = vpop.permute.xlu0 %3851
      %3853 = vrot.lane.b32.xlu0 %v3832, 64
      %v3854 = vpop.permute.xlu0 %3853
      %3855 = vrot.lane.b32.xlu0 %v3833, 64
      %v3856 = vpop.permute.xlu0 %3855
      %3857 = vrot.lane.b32.xlu0 %v3834, 64
      %v3858 = vpop.permute.xlu0 %3857
      %3859 = vrot.lane.b32.xlu0 %v3835, 64
      %v3860 = vpop.permute.xlu0 %3859
      %3861 = vrot.lane.b32.xlu0 %v3836, 64
      %v3862 = vpop.permute.xlu0 %3861
      %3863 = vrot.lane.b32.xlu0 %v3837, 64
      %v3864 = vpop.permute.xlu0 %3863
      %3865 = vrot.lane.b32.xlu0 %v3838, 64
      %v3866 = vpop.permute.xlu0 %3865
      %3867 = vrot.lane.b32.xlu0 %v3839, 64
      %v3868 = vpop.permute.xlu0 %3867
      %3869 = vrot.lane.b32.xlu0 %v3840, 64
      %v3870 = vpop.permute.xlu0 %3869
      %3871 = vrot.lane.b32.xlu0 %v3841, 64
      %v3872 = vpop.permute.xlu0 %3871
      %3873 = vrot.lane.b32.xlu0 %v3842, 64
      %v3874 = vpop.permute.xlu0 %3873
      %vm3891 = vcmask 257024
      %3892 = vst.msk [vmem:[%s232 + $0xc] sm:$0xf] %vm3891, %v3844
      %3893 = vst.msk [vmem:[%s232 + $0x1c] sm:$0xf] %vm3891, %v3846
      %3894 = vst.msk [vmem:[%s232 + $0x2c] sm:$0xf] %vm3891, %v3848
      %3895 = vst.msk [vmem:[%s232 + $0x3c] sm:$0xf] %vm3891, %v3850
      %3896 = vst.msk [vmem:[%s232 + $0x4c] sm:$0xf] %vm3891, %v3852
      %3897 = vst.msk [vmem:[%s232 + $0x5c] sm:$0xf] %vm3891, %v3854
      %3898 = vst.msk [vmem:[%s232 + $0x6c] sm:$0xf] %vm3891, %v3856
      %3899 = vst.msk [vmem:[%s232 + $0x7c] sm:$0xf] %vm3891, %v3858
      %3900 = vst.msk [vmem:[%s232 + $0x8c] sm:$0xf] %vm3891, %v3860
      %3901 = vst.msk [vmem:[%s232 + $0x9c] sm:$0xf] %vm3891, %v3862
      %3902 = vst.msk [vmem:[%s232 + $0xac] sm:$0xf] %vm3891, %v3864
      %3903 = vst.msk [vmem:[%s232 + $0xbc] sm:$0xf] %vm3891, %v3866
      %3904 = vst.msk [vmem:[%s232 + $0xcc] sm:$0xf] %vm3891, %v3868
      %3905 = vst.msk [vmem:[%s232 + $0xdc] sm:$0xf] %vm3891, %v3870
      %3906 = vst.msk [vmem:[%s232 + $0xec] sm:$0xf] %vm3891, %v3872
      %3907 = vst.msk [vmem:[%s232 + $0xfc] sm:$0xf] %vm3891, %v3874
      %v3908 = vpack.c.bf16 %v3379, %v3377
      %v3909 = vpack.c.bf16 %v3383, %v3381
      %v3910 = vpack.c.bf16 %v3387, %v3385
      %v3911 = vpack.c.bf16 %v3391, %v3389
      %v3912 = vpack.c.bf16 %v3395, %v3393
      %v3913 = vpack.c.bf16 %v3399, %v3397
      %v3914 = vpack.c.bf16 %v3403, %v3401
      %v3915 = vpack.c.bf16 %v3407, %v3405
      %v3924 = vunpack.c.l.b16 %v3908
      %v3925 = vunpack.c.h.b16 %v3908
      %v3926 = vunpack.c.l.b16 %v3909
      %v3927 = vunpack.c.h.b16 %v3909
      %v3928 = vunpack.c.l.b16 %v3910
      %v3929 = vunpack.c.h.b16 %v3910
      %v3930 = vunpack.c.l.b16 %v3911
      %v3931 = vunpack.c.h.b16 %v3911
      %v3932 = vunpack.c.l.b16 %v3912
      %v3933 = vunpack.c.h.b16 %v3912
      %v3934 = vunpack.c.l.b16 %v3913
      %v3935 = vunpack.c.h.b16 %v3913
      %v3936 = vunpack.c.l.b16 %v3914
      %v3937 = vunpack.c.h.b16 %v3914
      %v3938 = vunpack.c.l.b16 %v3915
      %v3939 = vunpack.c.h.b16 %v3915
      %v3940 = vpack.c.b16 %v3924, %v3924
      %v3941 = vpack.c.b16 %v3925, %v3925
      %v3942 = vpack.c.b16 %v3926, %v3926
      %v3943 = vpack.c.b16 %v3927, %v3927
      %v3944 = vpack.c.b16 %v3928, %v3928
      %v3945 = vpack.c.b16 %v3929, %v3929
      %v3946 = vpack.c.b16 %v3930, %v3930
      %v3947 = vpack.c.b16 %v3931, %v3931
      %v3948 = vpack.c.b16 %v3932, %v3932
      %v3949 = vpack.c.b16 %v3933, %v3933
      %v3950 = vpack.c.b16 %v3934, %v3934
      %v3951 = vpack.c.b16 %v3935, %v3935
      %v3952 = vpack.c.b16 %v3936, %v3936
      %v3953 = vpack.c.b16 %v3937, %v3937
      %v3954 = vpack.c.b16 %v3938, %v3938
      %v3955 = vpack.c.b16 %v3939, %v3939
      %vm3972 = vcmask 519424
      %3973 = vst.msk [vmem:[%s232 + $0xc] sm:$0xf] %vm3972, %v3940
      %3974 = vst.msk [vmem:[%s232 + $0x1c] sm:$0xf] %vm3972, %v3941
      %3975 = vst.msk [vmem:[%s232 + $0x2c] sm:$0xf] %vm3972, %v3942
      %3976 = vst.msk [vmem:[%s232 + $0x3c] sm:$0xf] %vm3972, %v3943
      %3977 = vst.msk [vmem:[%s232 + $0x4c] sm:$0xf] %vm3972, %v3944
      %3978 = vst.msk [vmem:[%s232 + $0x5c] sm:$0xf] %vm3972, %v3945
      %3979 = vst.msk [vmem:[%s232 + $0x6c] sm:$0xf] %vm3972, %v3946
      %3980 = vst.msk [vmem:[%s232 + $0x7c] sm:$0xf] %vm3972, %v3947
      %3981 = vst.msk [vmem:[%s232 + $0x8c] sm:$0xf] %vm3972, %v3948
      %3982 = vst.msk [vmem:[%s232 + $0x9c] sm:$0xf] %vm3972, %v3949
      %3983 = vst.msk [vmem:[%s232 + $0xac] sm:$0xf] %vm3972, %v3950
      %3984 = vst.msk [vmem:[%s232 + $0xbc] sm:$0xf] %vm3972, %v3951
      %3985 = vst.msk [vmem:[%s232 + $0xcc] sm:$0xf] %vm3972, %v3952
      %3986 = vst.msk [vmem:[%s232 + $0xdc] sm:$0xf] %vm3972, %v3953
      %3987 = vst.msk [vmem:[%s232 + $0xec] sm:$0xf] %vm3972, %v3954
      %3988 = vst.msk [vmem:[%s232 + $0xfc] sm:$0xf] %vm3972, %v3955
      %v3989 = vpack.c.bf16 %v3475, %v3473
      %v3990 = vpack.c.bf16 %v3479, %v3477
      %v3991 = vpack.c.bf16 %v3483, %v3481
      %v3992 = vpack.c.bf16 %v3487, %v3485
      %v3993 = vpack.c.bf16 %v3491, %v3489
      %v3994 = vpack.c.bf16 %v3495, %v3493
      %v3995 = vpack.c.bf16 %v3499, %v3497
      %v3996 = vpack.c.bf16 %v3503, %v3501
      %v4005 = vunpack.c.l.b16 %v3989
      %v4006 = vunpack.c.h.b16 %v3989
      %v4007 = vunpack.c.l.b16 %v3990
      %v4008 = vunpack.c.h.b16 %v3990
      %v4009 = vunpack.c.l.b16 %v3991
      %v4010 = vunpack.c.h.b16 %v3991
      %v4011 = vunpack.c.l.b16 %v3992
      %v4012 = vunpack.c.h.b16 %v3992
      %v4013 = vunpack.c.l.b16 %v3993
      %v4014 = vunpack.c.h.b16 %v3993
      %v4015 = vunpack.c.l.b16 %v3994
      %v4016 = vunpack.c.h.b16 %v3994
      %v4017 = vunpack.c.l.b16 %v3995
      %v4018 = vunpack.c.h.b16 %v3995
      %v4019 = vunpack.c.l.b16 %v3996
      %v4020 = vunpack.c.h.b16 %v3996
      %v4021 = vpack.c.b16 %v4005, %v4005
      %v4022 = vpack.c.b16 %v4006, %v4006
      %v4023 = vpack.c.b16 %v4007, %v4007
      %v4024 = vpack.c.b16 %v4008, %v4008
      %v4025 = vpack.c.b16 %v4009, %v4009
      %v4026 = vpack.c.b16 %v4010, %v4010
      %v4027 = vpack.c.b16 %v4011, %v4011
      %v4028 = vpack.c.b16 %v4012, %v4012
      %v4029 = vpack.c.b16 %v4013, %v4013
      %v4030 = vpack.c.b16 %v4014, %v4014
      %v4031 = vpack.c.b16 %v4015, %v4015
      %v4032 = vpack.c.b16 %v4016, %v4016
      %v4033 = vpack.c.b16 %v4017, %v4017
      %v4034 = vpack.c.b16 %v4018, %v4018
      %v4035 = vpack.c.b16 %v4019, %v4019
      %v4036 = vpack.c.b16 %v4020, %v4020
      %4037 = vrot.lane.b32.xlu0 %v4021, 64
      %v4038 = vpop.permute.xlu0 %4037
      %4039 = vrot.lane.b32.xlu0 %v4022, 64
      %v4040 = vpop.permute.xlu0 %4039
      %4041 = vrot.lane.b32.xlu0 %v4023, 64
      %v4042 = vpop.permute.xlu0 %4041
      %4043 = vrot.lane.b32.xlu0 %v4024, 64
      %v4044 = vpop.permute.xlu0 %4043
      %4045 = vrot.lane.b32.xlu0 %v4025, 64
      %v4046 = vpop.permute.xlu0 %4045
      %4047 = vrot.lane.b32.xlu0 %v4026, 64
      %v4048 = vpop.permute.xlu0 %4047
      %4049 = vrot.lane.b32.xlu0 %v4027, 64
      %v4050 = vpop.permute.xlu0 %4049
      %4051 = vrot.lane.b32.xlu0 %v4028, 64
      %v4052 = vpop.permute.xlu0 %4051
      %4053 = vrot.lane.b32.xlu0 %v4029, 64
      %v4054 = vpop.permute.xlu0 %4053
      %4055 = vrot.lane.b32.xlu0 %v4030, 64
      %v4056 = vpop.permute.xlu0 %4055
      %4057 = vrot.lane.b32.xlu0 %v4031, 64
      %v4058 = vpop.permute.xlu0 %4057
      %4059 = vrot.lane.b32.xlu0 %v4032, 64
      %v4060 = vpop.permute.xlu0 %4059
      %4061 = vrot.lane.b32.xlu0 %v4033, 64
      %v4062 = vpop.permute.xlu0 %4061
      %4063 = vrot.lane.b32.xlu0 %v4034, 64
      %v4064 = vpop.permute.xlu0 %4063
      %4065 = vrot.lane.b32.xlu0 %v4035, 64
      %v4066 = vpop.permute.xlu0 %4065
      %4067 = vrot.lane.b32.xlu0 %v4036, 64
      %v4068 = vpop.permute.xlu0 %4067
      %vm4085 = vcmask 781824
      %4086 = vst.msk [vmem:[%s232 + $0xc] sm:$0xf] %vm4085, %v4038
      %4087 = vst.msk [vmem:[%s232 + $0x1c] sm:$0xf] %vm4085, %v4040
      %4088 = vst.msk [vmem:[%s232 + $0x2c] sm:$0xf] %vm4085, %v4042
      %4089 = vst.msk [vmem:[%s232 + $0x3c] sm:$0xf] %vm4085, %v4044
      %4090 = vst.msk [vmem:[%s232 + $0x4c] sm:$0xf] %vm4085, %v4046
      %4091 = vst.msk [vmem:[%s232 + $0x5c] sm:$0xf] %vm4085, %v4048
      %4092 = vst.msk [vmem:[%s232 + $0x6c] sm:$0xf] %vm4085, %v4050
      %4093 = vst.msk [vmem:[%s232 + $0x7c] sm:$0xf] %vm4085, %v4052
      %4094 = vst.msk [vmem:[%s232 + $0x8c] sm:$0xf] %vm4085, %v4054
      %4095 = vst.msk [vmem:[%s232 + $0x9c] sm:$0xf] %vm4085, %v4056
      %4096 = vst.msk [vmem:[%s232 + $0xac] sm:$0xf] %vm4085, %v4058
      %4097 = vst.msk [vmem:[%s232 + $0xbc] sm:$0xf] %vm4085, %v4060
      %4098 = vst.msk [vmem:[%s232 + $0xcc] sm:$0xf] %vm4085, %v4062
      %4099 = vst.msk [vmem:[%s232 + $0xdc] sm:$0xf] %vm4085, %v4064
      %4100 = vst.msk [vmem:[%s232 + $0xec] sm:$0xf] %vm4085, %v4066
      %4101 = vst.msk [vmem:[%s232 + $0xfc] sm:$0xf] %vm4085, %v4068
      %s4102 = smul.u32 16, %s16
      %p4103 = scmp.lt.s32.totalorder %s4102, 127
      %s4104 = scalar_select %p4103, %s4102, 127
      %s4105 = smul.addr %s4104, 4
      %s4106 = smul.addr %s4105, 4
      %s4107 = scalar_lea.vmem %s3, %s4106
      %s4108 = smul.u32 16, %s16
      %p4109 = scmp.lt.s32.totalorder %s4108, 127
      %s4110 = scalar_select %p4109, %s4108, 127
      %s4111 = smul.addr %s4110, 2
      %s4112 = smul.addr %s4111, 8
      %s4113 = scalar_lea.vmem %s4, %s4112
      // Predicated region
      $region33: #{invariant_point_attention.3} parent=31 // pred_check
        %p4114 = pneg %p107
      $region34: #{invariant_point_attention.3} parent=31 // pred_check_branch
        %4116 = sbr.rel (%p4114) target = $region36
      $region35: #{invariant_point_attention.3} parent=31 // pred_region
        %s4117 = smul.u32 16, %s16
      $region36: #{invariant_point_attention.3} parent=31 // pred_fallthru
        _
      // Predicated region
      $region37: #{invariant_point_attention.3} parent=31 // pred_check
        %p4118 = pneg %p133
      $region38: #{invariant_point_attention.3} parent=31 // pred_check_branch
        %4120 = sbr.rel (%p4118) target = $region40
      $region39: #{invariant_point_attention.3} parent=31 // pred_region
        %s4121 = smul.u32 16, %s16
      $region40: #{invariant_point_attention.3} parent=31 // pred_fallthru
        _
    $region32: #{invariant_point_attention.3} parent=5 // pred_fallthru
      _
    %p4122 = scmp.le.s32.totalorder 2, %s11
    // Predicated region
    $region41: #{invariant_point_attention.3} parent=5 // pred_check
      %p4123 = pneg %p4122
    $region42: #{invariant_point_attention.3} parent=5 // pred_check_branch
      %4125 = sbr.rel (%p4123) target = $region44
    $region43: #{invariant_point_attention.3} parent=5 // pred_region
      %s4126 = ssub.s32 %s11, 2
      // Predicated region
      $region45: #{invariant_point_attention.3} parent=43 // pred_check
        %p4127 = pneg %p113
      $region46: #{invariant_point_attention.3} parent=43 // pred_check_branch
        %4129 = sbr.rel (%p4127) target = $region48
      $region47: #{invariant_point_attention.3} parent=43 // pred_region
        %s4130 = smul.u32 16, %s17
        %p4131 = scmp.lt.s32.totalorder %s4130, 127
        %s4132 = scalar_select %p4131, %s4130, 127
        %s4133 = smul.addr %s4132, 4
        %s4134 = smul.addr %s4133, 4
        %s4135 = scalar_lea.vmem %s3, %s4134
      $region48: #{invariant_point_attention.3} parent=43 // pred_fallthru
        _
      // Predicated region
      $region49: #{invariant_point_attention.3} parent=43 // pred_check
        %p4136 = pneg %p139
      $region50: #{invariant_point_attention.3} parent=43 // pred_check_branch
        %4138 = sbr.rel (%p4136) target = $region52
      $region51: #{invariant_point_attention.3} parent=43 // pred_region
        %s4139 = smul.u32 16, %s17
        %p4140 = scmp.lt.s32.totalorder %s4139, 127
        %s4141 = scalar_select %p4140, %s4139, 127
        %s4142 = smul.addr %s4141, 2
        %s4143 = smul.addr %s4142, 8
        %s4144 = scalar_lea.vmem %s4, %s4143
      $region52: #{invariant_point_attention.3} parent=43 // pred_fallthru
        _
    $region44: #{invariant_point_attention.3} parent=5 // pred_fallthru
      _
  $region6: #{invariant_point_attention.3} parent=0 // loop_footer
    %s15 = sadd.s32 1, %s11
  $region7: #{invariant_point_attention.3} parent=0 // loop_footer_branch
    %10 = sbr.rel target = $region3
  $region8: #{invariant_point_attention.3} parent=0 // loop_exit
    _

// kernel: invariant_point_attention.4
$region0: #{invariant_point_attention.4}
  #allocation0 [shape = 'u32[]', space=smem, size = 0x4, offset = 0x4, fixed_abs, tag = 'smem constant byte address 0x4 - core index']
  #allocation1 [shape = 'u32[144,128]{1,0:T(1,128)}', space=vmem, size = 0x12000, scoped, tag = 'internal scratch']
  %s0 = inlined_call_operand.vmem [shape: bf16[4096,16], index: 0, kind: input, shape index: {}]
  %s1 = inlined_call_operand.vmem [shape: bf16[4096,128], index: 1, kind: input, shape index: {}]
  %s2 = inlined_call_operand.vmem [shape: bf16[4096,128], index: 2, kind: input, shape index: {}]
  %s3 = inlined_call_operand.vmem [shape: f32[4096,96], index: 3, kind: input, shape index: {}]
  %s4 = inlined_call_operand.vmem [shape: f32[4096,96], index: 4, kind: input, shape index: {}]
  %s5 = inlined_call_operand.vmem [shape: bf16[16,8], index: 5, kind: input, shape index: {}]
  %s6 = inlined_call_operand.vmem [shape: f32[128,8], index: 6, kind: input, shape index: {}]
  %s7 = inlined_call_operand.vmem [shape: f32[32,8], index: 7, kind: input, shape index: {}]
  %s8 = inlined_call_operand.vmem [shape: f32[1,8], index: 8, kind: input, shape index: {}]
  %s9 = inlined_call_operand.vmem [shape: f32[4096,8], index: 9, kind: output, shape index: {}]
  %s10 = sld [smem:[#allocation0]]
  $region69: #{invariant_point_attention.4} parent=0
    _
  %s12 = ssub.s32 1, %s10
  %s13 = scalar_select 0, %s12, %s10
  loop: start=0, step=1, limit=10
  $region2: #{invariant_point_attention.4} parent=0 // loop_pre_header
    _
  $region3: #{invariant_point_attention.4} parent=0 // loop_header
    %s15 = sphi 0, %s19
    %p16 = scmp.ge.s32.totalorder %s15, 10
    %s25 = sphi 0, %s27
    %s28 = sphi 0, %s25
    %s29 = sphi 0, %s28
    %s45 = sphi 0, %s29
    %s51 = sphi 0, %s53
    %s54 = sphi 0, %s51
    %s55 = sphi 0, %s54
    %s71 = sphi 0, %s55
    %s77 = sphi 0, %s79
    %s80 = sphi 0, %s77
    %s81 = sphi 0, %s80
    %s97 = sphi 0, %s81
    %s103 = sphi 0, %s105
    %s106 = sphi 0, %s103
    %s107 = sphi 0, %s106
    %s123 = sphi 0, %s107
    %s129 = sphi 0, %s131
    %s132 = sphi 0, %s129
    %s133 = sphi 0, %s132
    %s149 = sphi 0, %s133
    %s153 = sphi 0, %s153
    %s155 = sphi 0, %s153
    %s156 = sphi 0, %s155
    %s170 = sphi 0, %s156
    %s174 = sphi 0, %s174
    %s176 = sphi 0, %s174
    %s177 = sphi 0, %s176
    %s191 = sphi 0, %s177
    %s195 = sphi 0, %s195
    %s197 = sphi 0, %s195
    %s198 = sphi 0, %s197
    %s212 = sphi 0, %s198
    %s216 = sphi 0, %s216
    %s218 = sphi 0, %s216
    %s219 = sphi 0, %s218
    %s233 = sphi 0, %s219
    %s239 = sphi 0, %s241
    %s242 = sphi 0, %s239
    %s243 = sphi 0, %s242
    %s259 = sphi 0, %s243
  $region4: #{invariant_point_attention.4} parent=0 // loop_header_branch
    %18 = sbr.rel (%p16) target = $region8
  $region5: #{invariant_point_attention.4} parent=0 // loop_body
    %s20 = ssub.s32 %s15, 1
    %s21 = ssub.s32 %s15, 2
    %s22 = sadd.s32 %s15, 1
    %s23 = ssub.s32 %s15, %s22
    %p24 = scmp.eq.s32.totalorder %s23, 0
    %s26 = sadd.s32 %s25, 1
    %s27 = scalar_select %p24, %s25, %s26
    %p30 = pneg %p24
    %p31 = scmp.eq.s32.totalorder %s15, 7
    %p32 = por %p30, %p31
    %p33 = scmp.ne.s32.totalorder %s25, %s28
    %p34 = scmp.eq.s32.totalorder %s15, 0
    %p35 = por %p33, %p34
    %p36 = scmp.ne.s32.totalorder %s25, %s28
    %p37 = scmp.eq.s32.totalorder %s20, 7
    %p38 = por %p36, %p37
    %p39 = scmp.ne.s32.totalorder %s28, %s29
    %p40 = scmp.eq.s32.totalorder %s20, 0
    %p41 = por %p39, %p40
    %p42 = scmp.ne.s32.totalorder %s28, %s29
    %p43 = scmp.eq.s32.totalorder %s21, 7
    %p44 = por %p42, %p43
    %p46 = scmp.ne.s32.totalorder %s29, %s45
    %p47 = scmp.eq.s32.totalorder %s21, 0
    %p48 = por %p46, %p47
    %s49 = ssub.s32 %s15, %s22
    %p50 = scmp.eq.s32.totalorder %s49, 0
    %s52 = sadd.s32 %s51, 1
    %s53 = scalar_select %p50, %s51, %s52
    %p56 = pneg %p50
    %p57 = scmp.eq.s32.totalorder %s15, 7
    %p58 = por %p56, %p57
    %p59 = scmp.ne.s32.totalorder %s51, %s54
    %p60 = scmp.eq.s32.totalorder %s15, 0
    %p61 = por %p59, %p60
    %p62 = scmp.ne.s32.totalorder %s51, %s54
    %p63 = scmp.eq.s32.totalorder %s20, 7
    %p64 = por %p62, %p63
    %p65 = scmp.ne.s32.totalorder %s54, %s55
    %p66 = scmp.eq.s32.totalorder %s20, 0
    %p67 = por %p65, %p66
    %p68 = scmp.ne.s32.totalorder %s54, %s55
    %p69 = scmp.eq.s32.totalorder %s21, 7
    %p70 = por %p68, %p69
    %p72 = scmp.ne.s32.totalorder %s55, %s71
    %p73 = scmp.eq.s32.totalorder %s21, 0
    %p74 = por %p72, %p73
    %s75 = ssub.s32 %s15, %s22
    %p76 = scmp.eq.s32.totalorder %s75, 0
    %s78 = sadd.s32 %s77, 1
    %s79 = scalar_select %p76, %s77, %s78
    %p82 = pneg %p76
    %p83 = scmp.eq.s32.totalorder %s15, 7
    %p84 = por %p82, %p83
    %p85 = scmp.ne.s32.totalorder %s77, %s80
    %p86 = scmp.eq.s32.totalorder %s15, 0
    %p87 = por %p85, %p86
    %p88 = scmp.ne.s32.totalorder %s77, %s80
    %p89 = scmp.eq.s32.totalorder %s20, 7
    %p90 = por %p88, %p89
    %p91 = scmp.ne.s32.totalorder %s80, %s81
    %p92 = scmp.eq.s32.totalorder %s20, 0
    %p93 = por %p91, %p92
    %p94 = scmp.ne.s32.totalorder %s80, %s81
    %p95 = scmp.eq.s32.totalorder %s21, 7
    %p96 = por %p94, %p95
    %p98 = scmp.ne.s32.totalorder %s81, %s97
    %p99 = scmp.eq.s32.totalorder %s21, 0
    %p100 = por %p98, %p99
    %s101 = ssub.s32 %s15, %s22
    %p102 = scmp.eq.s32.totalorder %s101, 0
    %s104 = sadd.s32 %s103, 1
    %s105 = scalar_select %p102, %s103, %s104
    %p108 = pneg %p102
    %p109 = scmp.eq.s32.totalorder %s15, 7
    %p110 = por %p108, %p109
    %p111 = scmp.ne.s32.totalorder %s103, %s106
    %p112 = scmp.eq.s32.totalorder %s15, 0
    %p113 = por %p111, %p112
    %p114 = scmp.ne.s32.totalorder %s103, %s106
    %p115 = scmp.eq.s32.totalorder %s20, 7
    %p116 = por %p114, %p115
    %p117 = scmp.ne.s32.totalorder %s106, %s107
    %p118 = scmp.eq.s32.totalorder %s20, 0
    %p119 = por %p117, %p118
    %p120 = scmp.ne.s32.totalorder %s106, %s107
    %p121 = scmp.eq.s32.totalorder %s21, 7
    %p122 = por %p120, %p121
    %p124 = scmp.ne.s32.totalorder %s107, %s123
    %p125 = scmp.eq.s32.totalorder %s21, 0
    %p126 = por %p124, %p125
    %s127 = ssub.s32 %s15, %s22
    %p128 = scmp.eq.s32.totalorder %s127, 0
    %s130 = sadd.s32 %s129, 1
    %s131 = scalar_select %p128, %s129, %s130
    %p134 = pneg %p128
    %p135 = scmp.eq.s32.totalorder %s15, 7
    %p136 = por %p134, %p135
    %p137 = scmp.ne.s32.totalorder %s129, %s132
    %p138 = scmp.eq.s32.totalorder %s15, 0
    %p139 = por %p137, %p138
    %p140 = scmp.ne.s32.totalorder %s129, %s132
    %p141 = scmp.eq.s32.totalorder %s20, 7
    %p142 = por %p140, %p141
    %p143 = scmp.ne.s32.totalorder %s132, %s133
    %p144 = scmp.eq.s32.totalorder %s20, 0
    %p145 = por %p143, %p144
    %p146 = scmp.ne.s32.totalorder %s132, %s133
    %p147 = scmp.eq.s32.totalorder %s21, 7
    %p148 = por %p146, %p147
    %p150 = scmp.ne.s32.totalorder %s133, %s149
    %p151 = scmp.eq.s32.totalorder %s21, 0
    %p152 = por %p150, %p151
    %s154 = sadd.s32 %s153, 1
    %p157 = scmp.eq.s32.totalorder %s15, 7
    %p158 = scmp.ne.s32.totalorder %s153, %s155
    %p159 = scmp.eq.s32.totalorder %s15, 0
    %p160 = por %p158, %p159
    %p161 = scmp.ne.s32.totalorder %s153, %s155
    %p162 = scmp.eq.s32.totalorder %s20, 7
    %p163 = por %p161, %p162
    %p164 = scmp.ne.s32.totalorder %s155, %s156
    %p165 = scmp.eq.s32.totalorder %s20, 0
    %p166 = por %p164, %p165
    %p167 = scmp.ne.s32.totalorder %s155, %s156
    %p168 = scmp.eq.s32.totalorder %s21, 7
    %p169 = por %p167, %p168
    %p171 = scmp.ne.s32.totalorder %s156, %s170
    %p172 = scmp.eq.s32.totalorder %s21, 0
    %p173 = por %p171, %p172
    %s175 = sadd.s32 %s174, 1
    %p178 = scmp.eq.s32.totalorder %s15, 7
    %p179 = scmp.ne.s32.totalorder %s174, %s176
    %p180 = scmp.eq.s32.totalorder %s15, 0
    %p181 = por %p179, %p180
    %p182 = scmp.ne.s32.totalorder %s174, %s176
    %p183 = scmp.eq.s32.totalorder %s20, 7
    %p184 = por %p182, %p183
    %p185 = scmp.ne.s32.totalorder %s176, %s177
    %p186 = scmp.eq.s32.totalorder %s20, 0
    %p187 = por %p185, %p186
    %p188 = scmp.ne.s32.totalorder %s176, %s177
    %p189 = scmp.eq.s32.totalorder %s21, 7
    %p190 = por %p188, %p189
    %p192 = scmp.ne.s32.totalorder %s177, %s191
    %p193 = scmp.eq.s32.totalorder %s21, 0
    %p194 = por %p192, %p193
    %s196 = sadd.s32 %s195, 1
    %p199 = scmp.eq.s32.totalorder %s15, 7
    %p200 = scmp.ne.s32.totalorder %s195, %s197
    %p201 = scmp.eq.s32.totalorder %s15, 0
    %p202 = por %p200, %p201
    %p203 = scmp.ne.s32.totalorder %s195, %s197
    %p204 = scmp.eq.s32.totalorder %s20, 7
    %p205 = por %p203, %p204
    %p206 = scmp.ne.s32.totalorder %s197, %s198
    %p207 = scmp.eq.s32.totalorder %s20, 0
    %p208 = por %p206, %p207
    %p209 = scmp.ne.s32.totalorder %s197, %s198
    %p210 = scmp.eq.s32.totalorder %s21, 7
    %p211 = por %p209, %p210
    %p213 = scmp.ne.s32.totalorder %s198, %s212
    %p214 = scmp.eq.s32.totalorder %s21, 0
    %p215 = por %p213, %p214
    %s217 = sadd.s32 %s216, 1
    %p220 = scmp.eq.s32.totalorder %s15, 7
    %p221 = scmp.ne.s32.totalorder %s216, %s218
    %p222 = scmp.eq.s32.totalorder %s15, 0
    %p223 = por %p221, %p222
    %p224 = scmp.ne.s32.totalorder %s216, %s218
    %p225 = scmp.eq.s32.totalorder %s20, 7
    %p226 = por %p224, %p225
    %p227 = scmp.ne.s32.totalorder %s218, %s219
    %p228 = scmp.eq.s32.totalorder %s20, 0
    %p229 = por %p227, %p228
    %p230 = scmp.ne.s32.totalorder %s218, %s219
    %p231 = scmp.eq.s32.totalorder %s21, 7
    %p232 = por %p230, %p231
    %p234 = scmp.ne.s32.totalorder %s219, %s233
    %p235 = scmp.eq.s32.totalorder %s21, 0
    %p236 = por %p234, %p235
    %s237 = ssub.s32 %s15, %s22
    %p238 = scmp.eq.s32.totalorder %s237, 0
    %s240 = sadd.s32 %s239, 1
    %s241 = scalar_select %p238, %s239, %s240
    %p244 = pneg %p238
    %p245 = scmp.eq.s32.totalorder %s15, 7
    %p246 = por %p244, %p245
    %p247 = scmp.ne.s32.totalorder %s239, %s242
    %p248 = scmp.eq.s32.totalorder %s15, 0
    %p249 = por %p247, %p248
    %p250 = scmp.ne.s32.totalorder %s239, %s242
    %p251 = scmp.eq.s32.totalorder %s20, 7
    %p252 = por %p250, %p251
    %p253 = scmp.ne.s32.totalorder %s242, %s243
    %p254 = scmp.eq.s32.totalorder %s20, 0
    %p255 = por %p253, %p254
    %p256 = scmp.ne.s32.totalorder %s242, %s243
    %p257 = scmp.eq.s32.totalorder %s21, 7
    %p258 = por %p256, %p257
    %p260 = scmp.ne.s32.totalorder %s243, %s259
    %p261 = scmp.eq.s32.totalorder %s21, 0
    %p262 = por %p260, %p261
    %p263 = scmp.le.s32.totalorder 1, %s15
    %p264 = scmp.lt.s32.totalorder %s15, 9
    %p265 = pnand %p263, %p264
    %p266 = pneg %p265
    // Predicated region
    $region9: #{invariant_point_attention.4} parent=5 // pred_check
      _
    $region10: #{invariant_point_attention.4} parent=5 // pred_check_branch
      %268 = sbr.rel (%p265) target = $region12
    $region11: #{invariant_point_attention.4} parent=5 // pred_region
      %s269 = ssub.s32 %s15, 1
      // Predicated region
      $region13: #{invariant_point_attention.4} parent=11 // pred_check
        %p270 = pneg %p166
      $region14: #{invariant_point_attention.4} parent=11 // pred_check_branch
        %272 = sbr.rel (%p270) target = $region16
      $region15: #{invariant_point_attention.4} parent=11 // pred_region
        _
      $region16: #{invariant_point_attention.4} parent=11 // pred_fallthru
        _
      // Predicated region
      $region17: #{invariant_point_attention.4} parent=11 // pred_check
        %p273 = pneg %p187
      $region18: #{invariant_point_attention.4} parent=11 // pred_check_branch
        %275 = sbr.rel (%p273) target = $region20
      $region19: #{invariant_point_attention.4} parent=11 // pred_region
        _
      $region20: #{invariant_point_attention.4} parent=11 // pred_fallthru
        _
      // Predicated region
      $region21: #{invariant_point_attention.4} parent=11 // pred_check
        %p276 = pneg %p208
      $region22: #{invariant_point_attention.4} parent=11 // pred_check_branch
        %278 = sbr.rel (%p276) target = $region24
      $region23: #{invariant_point_attention.4} parent=11 // pred_region
        _
      $region24: #{invariant_point_attention.4} parent=11 // pred_fallthru
        _
      // Predicated region
      $region25: #{invariant_point_attention.4} parent=11 // pred_check
        %p279 = pneg %p229
      $region26: #{invariant_point_attention.4} parent=11 // pred_check_branch
        %281 = sbr.rel (%p279) target = $region28
      $region27: #{invariant_point_attention.4} parent=11 // pred_region
        _
      $region28: #{invariant_point_attention.4} parent=11 // pred_fallthru
        _
    $region12: #{invariant_point_attention.4} parent=5 // pred_fallthru
      _
    %p282 = scmp.lt.s32.totalorder %s15, 8
    // Predicated region
    $region29: #{invariant_point_attention.4} parent=5 // pred_check
      %p283 = pneg %p282
    $region30: #{invariant_point_attention.4} parent=5 // pred_check_branch
      %285 = sbr.rel (%p283) target = $region32
    $region31: #{invariant_point_attention.4} parent=5 // pred_region
      // Predicated region
      $region33: #{invariant_point_attention.4} parent=31 // pred_check
        %p286 = pneg %p35
      $region34: #{invariant_point_attention.4} parent=31 // pred_check_branch
        %288 = sbr.rel (%p286) target = $region36
      $region35: #{invariant_point_attention.4} parent=31 // pred_region
        %s289 = smul.u32 64, %s15
        %p290 = scmp.lt.s32.totalorder %s289, 511
        %s291 = scalar_select %p290, %s289, 511
        %s292 = smul.addr %s291, 4
        %s293 = scalar_lea.vmem %s0, %s292
        %s294 = smul.u32 64, %s15
      $region36: #{invariant_point_attention.4} parent=31 // pred_fallthru
        _
      // Predicated region
      $region37: #{invariant_point_attention.4} parent=31 // pred_check
        %p295 = pneg %p61
      $region38: #{invariant_point_attention.4} parent=31 // pred_check_branch
        %297 = sbr.rel (%p295) target = $region40
      $region39: #{invariant_point_attention.4} parent=31 // pred_region
        %s298 = smul.u32 64, %s15
        %p299 = scmp.lt.s32.totalorder %s298, 511
        %s300 = scalar_select %p299, %s298, 511
        %s301 = smul.addr %s300, 4
        %s302 = scalar_lea.vmem %s1, %s301
        %s303 = smul.u32 64, %s15
      $region40: #{invariant_point_attention.4} parent=31 // pred_fallthru
        _
      // Predicated region
      $region41: #{invariant_point_attention.4} parent=31 // pred_check
        %p304 = pneg %p87
      $region42: #{invariant_point_attention.4} parent=31 // pred_check_branch
        %306 = sbr.rel (%p304) target = $region44
      $region43: #{invariant_point_attention.4} parent=31 // pred_region
        %s307 = smul.u32 64, %s15
        %p308 = scmp.lt.s32.totalorder %s307, 511
        %s309 = scalar_select %p308, %s307, 511
        %s310 = smul.addr %s309, 4
        %s311 = scalar_lea.vmem %s2, %s310
        %s312 = smul.u32 64, %s15
      $region44: #{invariant_point_attention.4} parent=31 // pred_fallthru
        _
      // Predicated region
      $region45: #{invariant_point_attention.4} parent=31 // pred_check
        %p313 = pneg %p113
      $region46: #{invariant_point_attention.4} parent=31 // pred_check_branch
        %315 = sbr.rel (%p313) target = $region48
      $region47: #{invariant_point_attention.4} parent=31 // pred_region
        %s316 = smul.u32 64, %s15
        %p317 = scmp.lt.s32.totalorder %s316, 511
        %s318 = scalar_select %p317, %s316, 511
        %s319 = smul.addr %s318, 8
        %s320 = scalar_lea.vmem %s3, %s319
        %s321 = smul.u32 64, %s15
      $region48: #{invariant_point_attention.4} parent=31 // pred_fallthru
        _
      // Predicated region
      $region49: #{invariant_point_attention.4} parent=31 // pred_check
        %p322 = pneg %p139
      $region50: #{invariant_point_attention.4} parent=31 // pred_check_branch
        %324 = sbr.rel (%p322) target = $region52
      $region51: #{invariant_point_attention.4} parent=31 // pred_region
        %s325 = smul.u32 64, %s15
        %p326 = scmp.lt.s32.totalorder %s325, 511
        %s327 = scalar_select %p326, %s325, 511
        %s328 = smul.addr %s327, 8
        %s329 = scalar_lea.vmem %s4, %s328
        %s330 = smul.u32 64, %s15
      $region52: #{invariant_point_attention.4} parent=31 // pred_fallthru
        _
    $region32: #{invariant_point_attention.4} parent=5 // pred_fallthru
      _
    %p331 = scmp.le.s32.totalorder 1, %s15
    %p332 = scmp.lt.s32.totalorder %s15, 9
    %p333 = pnand %p331, %p332
    %p334 = pneg %p333
    // Predicated region
    $region53: #{invariant_point_attention.4} parent=5 // pred_check
      _
    $region54: #{invariant_point_attention.4} parent=5 // pred_check_branch
      %336 = sbr.rel (%p333) target = $region56
    $region55: #{invariant_point_attention.4} parent=5 // pred_region
      %s337 = ssub.s32 %s15, 1
      %s338 = smul.u32 64, %s20
      %p339 = scmp.lt.s32.totalorder %s338, 511
      %s340 = scalar_select %p339, %s338, 511
      %s341 = smul.addr %s340, 4
      %s342 = scalar_lea.vmem %s0, %s341
      %p343 = pneg %p41
      %p344 = pneg %p38
      %s345 = smul.u32 64, %s20
      %p346 = scmp.lt.s32.totalorder %s345, 511
      %s347 = scalar_select %p346, %s345, 511
      %s348 = smul.addr %s347, 4
      %s349 = scalar_lea.vmem %s1, %s348
      %p350 = pneg %p67
      %p351 = pneg %p64
      %s352 = smul.u32 64, %s20
      %p353 = scmp.lt.s32.totalorder %s352, 511
      %s354 = scalar_select %p353, %s352, 511
      %s355 = smul.addr %s354, 4
      %s356 = scalar_lea.vmem %s2, %s355
      %p357 = pneg %p93
      %p358 = pneg %p90
      %s359 = smul.u32 64, %s20
      %p360 = scmp.lt.s32.totalorder %s359, 511
      %s361 = scalar_select %p360, %s359, 511
      %s362 = smul.addr %s361, 8
      %s363 = scalar_lea.vmem %s3, %s362
      %p364 = pneg %p119
      %p365 = pneg %p116
      %s366 = smul.u32 64, %s20
      %p367 = scmp.lt.s32.totalorder %s366, 511
      %s368 = scalar_select %p367, %s366, 511
      %s369 = smul.addr %s368, 8
      %s370 = scalar_lea.vmem %s4, %s369
      %p371 = pneg %p145
      %p372 = pneg %p142
      %p373 = pneg %p166
      %p374 = pneg %p163
      %p375 = pneg %p187
      %p376 = pneg %p184
      %p377 = pneg %p208
      %p378 = pneg %p205
      %p379 = pneg %p229
      %p380 = pneg %p226
      %p381 = pneg %p255
      %p382 = pneg %p252
      %s383 = smul.u32 64, %s20
      %p384 = scmp.lt.s32.totalorder %s383, 511
      %s385 = scalar_select %p384, %s383, 511
      %s386 = smul.addr %s385, 8
      %s387 = scalar_lea.vmem %s9, %s386
      %s388 = smul.u32 64, %s20
      %p389 = scmp.lt.s32.totalorder %s388, 511
      %s390 = scalar_select %p389, %s388, 511
      %s391 = smul.addr %s390, 4
      %s392 = scalar_lea.vmem %s0, %s391
      %s393 = smul.u32 64, %s20
      %s394 = smul.u32 64, %s20
      %p395 = scmp.lt.s32.totalorder %s394, 511
      %s396 = scalar_select %p395, %s394, 511
      %s397 = smul.addr %s396, 4
      %s398 = scalar_lea.vmem %s1, %s397
      %s399 = smul.u32 64, %s20
      %s400 = smul.u32 64, %s20
      %p401 = scmp.lt.s32.totalorder %s400, 511
      %s402 = scalar_select %p401, %s400, 511
      %s403 = smul.addr %s402, 4
      %s404 = scalar_lea.vmem %s2, %s403
      %s405 = smul.u32 64, %s20
      %s406 = smul.u32 64, %s20
      %p407 = scmp.lt.s32.totalorder %s406, 511
      %s408 = scalar_select %p407, %s406, 511
      %s409 = smul.addr %s408, 8
      %s410 = scalar_lea.vmem %s3, %s409
      %s411 = smul.u32 64, %s20
      %s412 = smul.u32 64, %s20
      %p413 = scmp.lt.s32.totalorder %s412, 511
      %s414 = scalar_select %p413, %s412, 511
      %s415 = smul.addr %s414, 8
      %s416 = scalar_lea.vmem %s4, %s415
      %s417 = smul.u32 64, %s20
      %s418 = smul.u32 64, %s20
      %p419 = scmp.lt.s32.totalorder %s418, 511
      %s420 = scalar_select %p419, %s418, 511
      %s421 = smul.addr %s420, 8
      %s422 = scalar_lea.vmem %s9, %s421
      %s423 = smul.u32 64, %s20
      %v425 = vld [vmem:[%s392] sm:$0xf]
      %v426 = vld [vmem:[%s392 + $0x4] sm:$0xf]
      %v427 = vld [vmem:[%s392 + $0x8] sm:$0xf]
      %v428 = vld [vmem:[%s392 + $0xc] sm:$0xf]
      %v429 = vld [vmem:[%s392 + $0x10] sm:$0xf]
      %v430 = vld [vmem:[%s392 + $0x14] sm:$0xf]
      %v431 = vld [vmem:[%s392 + $0x18] sm:$0xf]
      %v432 = vld [vmem:[%s392 + $0x1c] sm:$0xf]
      %v433 = vld [vmem:[%s392 + $0x20] sm:$0xf]
      %v434 = vld [vmem:[%s392 + $0x24] sm:$0xf]
      %v435 = vld [vmem:[%s392 + $0x28] sm:$0xf]
      %v436 = vld [vmem:[%s392 + $0x2c] sm:$0xf]
      %v437 = vld [vmem:[%s392 + $0x30] sm:$0xf]
      %v438 = vld [vmem:[%s392 + $0x34] sm:$0xf]
      %v439 = vld [vmem:[%s392 + $0x38] sm:$0xf]
      %v440 = vld [vmem:[%s392 + $0x3c] sm:$0xf]
      %v441 = vld [vmem:[%s392 + $0x40] sm:$0xf]
      %v442 = vld [vmem:[%s392 + $0x44] sm:$0xf]
      %v443 = vld [vmem:[%s392 + $0x48] sm:$0xf]
      %v444 = vld [vmem:[%s392 + $0x4c] sm:$0xf]
      %v445 = vld [vmem:[%s392 + $0x50] sm:$0xf]
      %v446 = vld [vmem:[%s392 + $0x54] sm:$0xf]
      %v447 = vld [vmem:[%s392 + $0x58] sm:$0xf]
      %v448 = vld [vmem:[%s392 + $0x5c] sm:$0xf]
      %v449 = vld [vmem:[%s392 + $0x60] sm:$0xf]
      %v450 = vld [vmem:[%s392 + $0x64] sm:$0xf]
      %v451 = vld [vmem:[%s392 + $0x68] sm:$0xf]
      %v452 = vld [vmem:[%s392 + $0x6c] sm:$0xf]
      %v453 = vld [vmem:[%s392 + $0x70] sm:$0xf]
      %v454 = vld [vmem:[%s392 + $0x74] sm:$0xf]
      %v455 = vld [vmem:[%s392 + $0x78] sm:$0xf]
      %v456 = vld [vmem:[%s392 + $0x7c] sm:$0xf]
      %v457 = vld [vmem:[%s392 + $0x80] sm:$0xf]
      %v458 = vld [vmem:[%s392 + $0x84] sm:$0xf]
      %v459 = vld [vmem:[%s392 + $0x88] sm:$0xf]
      %v460 = vld [vmem:[%s392 + $0x8c] sm:$0xf]
      %v461 = vld [vmem:[%s392 + $0x90] sm:$0xf]
      %v462 = vld [vmem:[%s392 + $0x94] sm:$0xf]
      %v463 = vld [vmem:[%s392 + $0x98] sm:$0xf]
      %v464 = vld [vmem:[%s392 + $0x9c] sm:$0xf]
      %v465 = vld [vmem:[%s392 + $0xa0] sm:$0xf]
      %v466 = vld [vmem:[%s392 + $0xa4] sm:$0xf]
      %v467 = vld [vmem:[%s392 + $0xa8] sm:$0xf]
      %v468 = vld [vmem:[%s392 + $0xac] sm:$0xf]
      %v469 = vld [vmem:[%s392 + $0xb0] sm:$0xf]
      %v470 = vld [vmem:[%s392 + $0xb4] sm:$0xf]
      %v471 = vld [vmem:[%s392 + $0xb8] sm:$0xf]
      %v472 = vld [vmem:[%s392 + $0xbc] sm:$0xf]
      %v473 = vld [vmem:[%s392 + $0xc0] sm:$0xf]
      %v474 = vld [vmem:[%s392 + $0xc4] sm:$0xf]
      %v475 = vld [vmem:[%s392 + $0xc8] sm:$0xf]
      %v476 = vld [vmem:[%s392 + $0xcc] sm:$0xf]
      %v477 = vld [vmem:[%s392 + $0xd0] sm:$0xf]
      %v478 = vld [vmem:[%s392 + $0xd4] sm:$0xf]
      %v479 = vld [vmem:[%s392 + $0xd8] sm:$0xf]
      %v480 = vld [vmem:[%s392 + $0xdc] sm:$0xf]
      %v481 = vld [vmem:[%s392 + $0xe0] sm:$0xf]
      %v482 = vld [vmem:[%s392 + $0xe4] sm:$0xf]
      %v483 = vld [vmem:[%s392 + $0xe8] sm:$0xf]
      %v484 = vld [vmem:[%s392 + $0xec] sm:$0xf]
      %v485 = vld [vmem:[%s392 + $0xf0] sm:$0xf]
      %v486 = vld [vmem:[%s392 + $0xf4] sm:$0xf]
      %v487 = vld [vmem:[%s392 + $0xf8] sm:$0xf]
      %v488 = vld [vmem:[%s392 + $0xfc] sm:$0xf]
      %v489 = vld [vmem:[%s5] sm:$0xf]
      %v490 = vld [vmem:[%s5 + $0x4] sm:$0xf]
      %v491 = vld [vmem:[%s398] sm:$0xf]
      %v492 = vld [vmem:[%s398 + $0x4] sm:$0xf]
      %v493 = vld [vmem:[%s398 + $0x8] sm:$0xf]
      %v494 = vld [vmem:[%s398 + $0xc] sm:$0xf]
      %v495 = vld [vmem:[%s398 + $0x10] sm:$0xf]
      %v496 = vld [vmem:[%s398 + $0x14] sm:$0xf]
      %v497 = vld [vmem:[%s398 + $0x18] sm:$0xf]
      %v498 = vld [vmem:[%s398 + $0x1c] sm:$0xf]
      %v499 = vld [vmem:[%s398 + $0x20] sm:$0xf]
      %v500 = vld [vmem:[%s398 + $0x24] sm:$0xf]
      %v501 = vld [vmem:[%s398 + $0x28] sm:$0xf]
      %v502 = vld [vmem:[%s398 + $0x2c] sm:$0xf]
      %v503 = vld [vmem:[%s398 + $0x30] sm:$0xf]
      %v504 = vld [vmem:[%s398 + $0x34] sm:$0xf]
      %v505 = vld [vmem:[%s398 + $0x38] sm:$0xf]
      %v506 = vld [vmem:[%s398 + $0x3c] sm:$0xf]
      %v507 = vld [vmem:[%s398 + $0x40] sm:$0xf]
      %v508 = vld [vmem:[%s398 + $0x44] sm:$0xf]
      %v509 = vld [vmem:[%s398 + $0x48] sm:$0xf]
      %v510 = vld [vmem:[%s398 + $0x4c] sm:$0xf]
      %v511 = vld [vmem:[%s398 + $0x50] sm:$0xf]
      %v512 = vld [vmem:[%s398 + $0x54] sm:$0xf]
      %v513 = vld [vmem:[%s398 + $0x58] sm:$0xf]
      %v514 = vld [vmem:[%s398 + $0x5c] sm:$0xf]
      %v515 = vld [vmem:[%s398 + $0x60] sm:$0xf]
      %v516 = vld [vmem:[%s398 + $0x64] sm:$0xf]
      %v517 = vld [vmem:[%s398 + $0x68] sm:$0xf]
      %v518 = vld [vmem:[%s398 + $0x6c] sm:$0xf]
      %v519 = vld [vmem:[%s398 + $0x70] sm:$0xf]
      %v520 = vld [vmem:[%s398 + $0x74] sm:$0xf]
      %v521 = vld [vmem:[%s398 + $0x78] sm:$0xf]
      %v522 = vld [vmem:[%s398 + $0x7c] sm:$0xf]
      %v523 = vld [vmem:[%s398 + $0x80] sm:$0xf]
      %v524 = vld [vmem:[%s398 + $0x84] sm:$0xf]
      %v525 = vld [vmem:[%s398 + $0x88] sm:$0xf]
      %v526 = vld [vmem:[%s398 + $0x8c] sm:$0xf]
      %v527 = vld [vmem:[%s398 + $0x90] sm:$0xf]
      %v528 = vld [vmem:[%s398 + $0x94] sm:$0xf]
      %v529 = vld [vmem:[%s398 + $0x98] sm:$0xf]
      %v530 = vld [vmem:[%s398 + $0x9c] sm:$0xf]
      %v531 = vld [vmem:[%s398 + $0xa0] sm:$0xf]
      %v532 = vld [vmem:[%s398 + $0xa4] sm:$0xf]
      %v533 = vld [vmem:[%s398 + $0xa8] sm:$0xf]
      %v534 = vld [vmem:[%s398 + $0xac] sm:$0xf]
      %v535 = vld [vmem:[%s398 + $0xb0] sm:$0xf]
      %v536 = vld [vmem:[%s398 + $0xb4] sm:$0xf]
      %v537 = vld [vmem:[%s398 + $0xb8] sm:$0xf]
      %v538 = vld [vmem:[%s398 + $0xbc] sm:$0xf]
      %v539 = vld [vmem:[%s398 + $0xc0] sm:$0xf]
      %v540 = vld [vmem:[%s398 + $0xc4] sm:$0xf]
      %v541 = vld [vmem:[%s398 + $0xc8] sm:$0xf]
      %v542 = vld [vmem:[%s398 + $0xcc] sm:$0xf]
      %v543 = vld [vmem:[%s398 + $0xd0] sm:$0xf]
      %v544 = vld [vmem:[%s398 + $0xd4] sm:$0xf]
      %v545 = vld [vmem:[%s398 + $0xd8] sm:$0xf]
      %v546 = vld [vmem:[%s398 + $0xdc] sm:$0xf]
      %v547 = vld [vmem:[%s398 + $0xe0] sm:$0xf]
      %v548 = vld [vmem:[%s398 + $0xe4] sm:$0xf]
      %v549 = vld [vmem:[%s398 + $0xe8] sm:$0xf]
      %v550 = vld [vmem:[%s398 + $0xec] sm:$0xf]
      %v551 = vld [vmem:[%s398 + $0xf0] sm:$0xf]
      %v552 = vld [vmem:[%s398 + $0xf4] sm:$0xf]
      %v553 = vld [vmem:[%s398 + $0xf8] sm:$0xf]
      %v554 = vld [vmem:[%s398 + $0xfc] sm:$0xf]
      %v555 = vunpack.c.l.bf16 %v491
      %v556 = vunpack.c.l.bf16 %v492
      %v557 = vunpack.c.l.bf16 %v493
      %v558 = vunpack.c.l.bf16 %v494
      %v559 = vunpack.c.l.bf16 %v495
      %v560 = vunpack.c.l.bf16 %v496
      %v561 = vunpack.c.l.bf16 %v497
      %v562 = vunpack.c.l.bf16 %v498
      %v563 = vunpack.c.l.bf16 %v499
      %v564 = vunpack.c.l.bf16 %v500
      %v565 = vunpack.c.l.bf16 %v501
      %v566 = vunpack.c.l.bf16 %v502
      %v567 = vunpack.c.l.bf16 %v503
      %v568 = vunpack.c.l.bf16 %v504
      %v569 = vunpack.c.l.bf16 %v505
      %v570 = vunpack.c.l.bf16 %v506
      %v571 = vunpack.c.l.bf16 %v507
      %v572 = vunpack.c.l.bf16 %v508
      %v573 = vunpack.c.l.bf16 %v509
      %v574 = vunpack.c.l.bf16 %v510
      %v575 = vunpack.c.l.bf16 %v511
      %v576 = vunpack.c.l.bf16 %v512
      %v577 = vunpack.c.l.bf16 %v513
      %v578 = vunpack.c.l.bf16 %v514
      %v579 = vunpack.c.l.bf16 %v515
      %v580 = vunpack.c.l.bf16 %v516
      %v581 = vunpack.c.l.bf16 %v517
      %v582 = vunpack.c.l.bf16 %v518
      %v583 = vunpack.c.l.bf16 %v519
      %v584 = vunpack.c.l.bf16 %v520
      %v585 = vunpack.c.l.bf16 %v521
      %v586 = vunpack.c.l.bf16 %v522
      %v587 = vunpack.c.l.bf16 %v523
      %v588 = vunpack.c.l.bf16 %v524
      %v589 = vunpack.c.l.bf16 %v525
      %v590 = vunpack.c.l.bf16 %v526
      %v591 = vunpack.c.l.bf16 %v527
      %v592 = vunpack.c.l.bf16 %v528
      %v593 = vunpack.c.l.bf16 %v529
      %v594 = vunpack.c.l.bf16 %v530
      %v595 = vunpack.c.l.bf16 %v531
      %v596 = vunpack.c.l.bf16 %v532
      %v597 = vunpack.c.l.bf16 %v533
      %v598 = vunpack.c.l.bf16 %v534
      %v599 = vunpack.c.l.bf16 %v535
      %v600 = vunpack.c.l.bf16 %v536
      %v601 = vunpack.c.l.bf16 %v537
      %v602 = vunpack.c.l.bf16 %v538
      %v603 = vunpack.c.l.bf16 %v539
      %v604 = vunpack.c.l.bf16 %v540
      %v605 = vunpack.c.l.bf16 %v541
      %v606 = vunpack.c.l.bf16 %v542
      %v607 = vunpack.c.l.bf16 %v543
      %v608 = vunpack.c.l.bf16 %v544
      %v609 = vunpack.c.l.bf16 %v545
      %v610 = vunpack.c.l.bf16 %v546
      %v611 = vunpack.c.l.bf16 %v547
      %v612 = vunpack.c.l.bf16 %v548
      %v613 = vunpack.c.l.bf16 %v549
      %v614 = vunpack.c.l.bf16 %v550
      %v615 = vunpack.c.l.bf16 %v551
      %v616 = vunpack.c.l.bf16 %v552
      %v617 = vunpack.c.l.bf16 %v553
      %v618 = vunpack.c.l.bf16 %v554
      %v619 = vld [vmem:[%s404] sm:$0xf]
      %v620 = vld [vmem:[%s404 + $0x4] sm:$0xf]
      %v621 = vld [vmem:[%s404 + $0x8] sm:$0xf]
      %v622 = vld [vmem:[%s404 + $0xc] sm:$0xf]
      %v623 = vld [vmem:[%s404 + $0x10] sm:$0xf]
      %v624 = vld [vmem:[%s404 + $0x14] sm:$0xf]
      %v625 = vld [vmem:[%s404 + $0x18] sm:$0xf]
      %v626 = vld [vmem:[%s404 + $0x1c] sm:$0xf]
      %v627 = vld [vmem:[%s404 + $0x20] sm:$0xf]
      %v628 = vld [vmem:[%s404 + $0x24] sm:$0xf]
      %v629 = vld [vmem:[%s404 + $0x28] sm:$0xf]
      %v630 = vld [vmem:[%s404 + $0x2c] sm:$0xf]
      %v631 = vld [vmem:[%s404 + $0x30] sm:$0xf]
      %v632 = vld [vmem:[%s404 + $0x34] sm:$0xf]
      %v633 = vld [vmem:[%s404 + $0x38] sm:$0xf]
      %v634 = vld [vmem:[%s404 + $0x3c] sm:$0xf]
      %v635 = vld [vmem:[%s404 + $0x40] sm:$0xf]
      %v636 = vld [vmem:[%s404 + $0x44] sm:$0xf]
      %v637 = vld [vmem:[%s404 + $0x48] sm:$0xf]
      %v638 = vld [vmem:[%s404 + $0x4c] sm:$0xf]
      %v639 = vld [vmem:[%s404 + $0x50] sm:$0xf]
      %v640 = vld [vmem:[%s404 + $0x54] sm:$0xf]
      %v641 = vld [vmem:[%s404 + $0x58] sm:$0xf]
      %v642 = vld [vmem:[%s404 + $0x5c] sm:$0xf]
      %v643 = vld [vmem:[%s404 + $0x60] sm:$0xf]
      %v644 = vld [vmem:[%s404 + $0x64] sm:$0xf]
      %v645 = vld [vmem:[%s404 + $0x68] sm:$0xf]
      %v646 = vld [vmem:[%s404 + $0x6c] sm:$0xf]
      %v647 = vld [vmem:[%s404 + $0x70] sm:$0xf]
      %v648 = vld [vmem:[%s404 + $0x74] sm:$0xf]
      %v649 = vld [vmem:[%s404 + $0x78] sm:$0xf]
      %v650 = vld [vmem:[%s404 + $0x7c] sm:$0xf]
      %v651 = vld [vmem:[%s404 + $0x80] sm:$0xf]
      %v652 = vld [vmem:[%s404 + $0x84] sm:$0xf]
      %v653 = vld [vmem:[%s404 + $0x88] sm:$0xf]
      %v654 = vld [vmem:[%s404 + $0x8c] sm:$0xf]
      %v655 = vld [vmem:[%s404 + $0x90] sm:$0xf]
      %v656 = vld [vmem:[%s404 + $0x94] sm:$0xf]
      %v657 = vld [vmem:[%s404 + $0x98] sm:$0xf]
      %v658 = vld [vmem:[%s404 + $0x9c] sm:$0xf]
      %v659 = vld [vmem:[%s404 + $0xa0] sm:$0xf]
      %v660 = vld [vmem:[%s404 + $0xa4] sm:$0xf]
      %v661 = vld [vmem:[%s404 + $0xa8] sm:$0xf]
      %v662 = vld [vmem:[%s404 + $0xac] sm:$0xf]
      %v663 = vld [vmem:[%s404 + $0xb0] sm:$0xf]
      %v664 = vld [vmem:[%s404 + $0xb4] sm:$0xf]
      %v665 = vld [vmem:[%s404 + $0xb8] sm:$0xf]
      %v666 = vld [vmem:[%s404 + $0xbc] sm:$0xf]
      %v667 = vld [vmem:[%s404 + $0xc0] sm:$0xf]
      %v668 = vld [vmem:[%s404 + $0xc4] sm:$0xf]
      %v669 = vld [vmem:[%s404 + $0xc8] sm:$0xf]
      %v670 = vld [vmem:[%s404 + $0xcc] sm:$0xf]
      %v671 = vld [vmem:[%s404 + $0xd0] sm:$0xf]
      %v672 = vld [vmem:[%s404 + $0xd4] sm:$0xf]
      %v673 = vld [vmem:[%s404 + $0xd8] sm:$0xf]
      %v674 = vld [vmem:[%s404 + $0xdc] sm:$0xf]
      %v675 = vld [vmem:[%s404 + $0xe0] sm:$0xf]
      %v676 = vld [vmem:[%s404 + $0xe4] sm:$0xf]
      %v677 = vld [vmem:[%s404 + $0xe8] sm:$0xf]
      %v678 = vld [vmem:[%s404 + $0xec] sm:$0xf]
      %v679 = vld [vmem:[%s404 + $0xf0] sm:$0xf]
      %v680 = vld [vmem:[%s404 + $0xf4] sm:$0xf]
      %v681 = vld [vmem:[%s404 + $0xf8] sm:$0xf]
      %v682 = vld [vmem:[%s404 + $0xfc] sm:$0xf]
      %v683 = vunpack.c.l.bf16 %v619
      %v684 = vunpack.c.l.bf16 %v620
      %v685 = vunpack.c.l.bf16 %v621
      %v686 = vunpack.c.l.bf16 %v622
      %v687 = vunpack.c.l.bf16 %v623
      %v688 = vunpack.c.l.bf16 %v624
      %v689 = vunpack.c.l.bf16 %v625
      %v690 = vunpack.c.l.bf16 %v626
      %v691 = vunpack.c.l.bf16 %v627
      %v692 = vunpack.c.l.bf16 %v628
      %v693 = vunpack.c.l.bf16 %v629
      %v694 = vunpack.c.l.bf16 %v630
      %v695 = vunpack.c.l.bf16 %v631
      %v696 = vunpack.c.l.bf16 %v632
      %v697 = vunpack.c.l.bf16 %v633
      %v698 = vunpack.c.l.bf16 %v634
      %v699 = vunpack.c.l.bf16 %v635
      %v700 = vunpack.c.l.bf16 %v636
      %v701 = vunpack.c.l.bf16 %v637
      %v702 = vunpack.c.l.bf16 %v638
      %v703 = vunpack.c.l.bf16 %v639
      %v704 = vunpack.c.l.bf16 %v640
      %v705 = vunpack.c.l.bf16 %v641
      %v706 = vunpack.c.l.bf16 %v642
      %v707 = vunpack.c.l.bf16 %v643
      %v708 = vunpack.c.l.bf16 %v644
      %v709 = vunpack.c.l.bf16 %v645
      %v710 = vunpack.c.l.bf16 %v646
      %v711 = vunpack.c.l.bf16 %v647
      %v712 = vunpack.c.l.bf16 %v648
      %v713 = vunpack.c.l.bf16 %v649
      %v714 = vunpack.c.l.bf16 %v650
      %v715 = vunpack.c.l.bf16 %v651
      %v716 = vunpack.c.l.bf16 %v652
      %v717 = vunpack.c.l.bf16 %v653
      %v718 = vunpack.c.l.bf16 %v654
      %v719 = vunpack.c.l.bf16 %v655
      %v720 = vunpack.c.l.bf16 %v656
      %v721 = vunpack.c.l.bf16 %v657
      %v722 = vunpack.c.l.bf16 %v658
      %v723 = vunpack.c.l.bf16 %v659
      %v724 = vunpack.c.l.bf16 %v660
      %v725 = vunpack.c.l.bf16 %v661
      %v726 = vunpack.c.l.bf16 %v662
      %v727 = vunpack.c.l.bf16 %v663
      %v728 = vunpack.c.l.bf16 %v664
      %v729 = vunpack.c.l.bf16 %v665
      %v730 = vunpack.c.l.bf16 %v666
      %v731 = vunpack.c.l.bf16 %v667
      %v732 = vunpack.c.l.bf16 %v668
      %v733 = vunpack.c.l.bf16 %v669
      %v734 = vunpack.c.l.bf16 %v670
      %v735 = vunpack.c.l.bf16 %v671
      %v736 = vunpack.c.l.bf16 %v672
      %v737 = vunpack.c.l.bf16 %v673
      %v738 = vunpack.c.l.bf16 %v674
      %v739 = vunpack.c.l.bf16 %v675
      %v740 = vunpack.c.l.bf16 %v676
      %v741 = vunpack.c.l.bf16 %v677
      %v742 = vunpack.c.l.bf16 %v678
      %v743 = vunpack.c.l.bf16 %v679
      %v744 = vunpack.c.l.bf16 %v680
      %v745 = vunpack.c.l.bf16 %v681
      %v746 = vunpack.c.l.bf16 %v682
      %v747 = vmul.f32 %v555, %v683
      %v748 = vmul.f32 %v556, %v684
      %v749 = vmul.f32 %v557, %v685
      %v750 = vmul.f32 %v558, %v686
      %v751 = vmul.f32 %v559, %v687
      %v752 = vmul.f32 %v560, %v688
      %v753 = vmul.f32 %v561, %v689
      %v754 = vmul.f32 %v562, %v690
      %v755 = vmul.f32 %v563, %v691
      %v756 = vmul.f32 %v564, %v692
      %v757 = vmul.f32 %v565, %v693
      %v758 = vmul.f32 %v566, %v694
      %v759 = vmul.f32 %v567, %v695
      %v760 = vmul.f32 %v568, %v696
      %v761 = vmul.f32 %v569, %v697
      %v762 = vmul.f32 %v570, %v698
      %v763 = vmul.f32 %v571, %v699
      %v764 = vmul.f32 %v572, %v700
      %v765 = vmul.f32 %v573, %v701
      %v766 = vmul.f32 %v574, %v702
      %v767 = vmul.f32 %v575, %v703
      %v768 = vmul.f32 %v576, %v704
      %v769 = vmul.f32 %v577, %v705
      %v770 = vmul.f32 %v578, %v706
      %v771 = vmul.f32 %v579, %v707
      %v772 = vmul.f32 %v580, %v708
      %v773 = vmul.f32 %v581, %v709
      %v774 = vmul.f32 %v582, %v710
      %v775 = vmul.f32 %v583, %v711
      %v776 = vmul.f32 %v584, %v712
      %v777 = vmul.f32 %v585, %v713
      %v778 = vmul.f32 %v586, %v714
      %v779 = vmul.f32 %v587, %v715
      %v780 = vmul.f32 %v588, %v716
      %v781 = vmul.f32 %v589, %v717
      %v782 = vmul.f32 %v590, %v718
      %v783 = vmul.f32 %v591, %v719
      %v784 = vmul.f32 %v592, %v720
      %v785 = vmul.f32 %v593, %v721
      %v786 = vmul.f32 %v594, %v722
      %v787 = vmul.f32 %v595, %v723
      %v788 = vmul.f32 %v596, %v724
      %v789 = vmul.f32 %v597, %v725
      %v790 = vmul.f32 %v598, %v726
      %v791 = vmul.f32 %v599, %v727
      %v792 = vmul.f32 %v600, %v728
      %v793 = vmul.f32 %v601, %v729
      %v794 = vmul.f32 %v602, %v730
      %v795 = vmul.f32 %v603, %v731
      %v796 = vmul.f32 %v604, %v732
      %v797 = vmul.f32 %v605, %v733
      %v798 = vmul.f32 %v606, %v734
      %v799 = vmul.f32 %v607, %v735
      %v800 = vmul.f32 %v608, %v736
      %v801 = vmul.f32 %v609, %v737
      %v802 = vmul.f32 %v610, %v738
      %v803 = vmul.f32 %v611, %v739
      %v804 = vmul.f32 %v612, %v740
      %v805 = vmul.f32 %v613, %v741
      %v806 = vmul.f32 %v614, %v742
      %v807 = vmul.f32 %v615, %v743
      %v808 = vmul.f32 %v616, %v744
      %v809 = vmul.f32 %v617, %v745
      %v810 = vmul.f32 %v618, %v746
      %v811 = vld [vmem:[%s6] sm:$0xff]
      %v812 = vld [vmem:[%s6 + $0x8] sm:$0xff]
      %v813 = vld [vmem:[%s6 + $0x10] sm:$0xff]
      %v814 = vld [vmem:[%s6 + $0x18] sm:$0xff]
      %v815 = vld [vmem:[%s6 + $0x20] sm:$0xff]
      %v816 = vld [vmem:[%s6 + $0x28] sm:$0xff]
      %v817 = vld [vmem:[%s6 + $0x30] sm:$0xff]
      %v818 = vld [vmem:[%s6 + $0x38] sm:$0xff]
      %v819 = vld [vmem:[%s6 + $0x40] sm:$0xff]
      %v820 = vld [vmem:[%s6 + $0x48] sm:$0xff]
      %v821 = vld [vmem:[%s6 + $0x50] sm:$0xff]
      %v822 = vld [vmem:[%s6 + $0x58] sm:$0xff]
      %v823 = vld [vmem:[%s6 + $0x60] sm:$0xff]
      %v824 = vld [vmem:[%s6 + $0x68] sm:$0xff]
      %v825 = vld [vmem:[%s6 + $0x70] sm:$0xff]
      %v826 = vld [vmem:[%s6 + $0x78] sm:$0xff]
      %827 = vmatprep.subr.mxu0 0.0
      %828 = vmatpush1.msra.mxu0 %v826
      %829 = vmatprep.subr.mxu0 0.0
      %830 = vmatpush1.msra.mxu0 %v825
      %831 = vmatprep.subr.mxu0 0.0
      %832 = vmatpush1.msra.mxu0 %v824
      %833 = vmatprep.subr.mxu0 0.0
      %834 = vmatpush1.msra.mxu0 %v823
      %835 = vmatprep.subr.mxu0 0.0
      %836 = vmatpush1.msra.mxu0 %v822
      %837 = vmatprep.subr.mxu0 0.0
      %838 = vmatpush1.msra.mxu0 %v821
      %839 = vmatprep.subr.mxu0 0.0
      %840 = vmatpush1.msra.mxu0 %v820
      %841 = vmatprep.subr.mxu0 0.0
      %842 = vmatpush1.msra.mxu0 %v819
      %843 = vmatprep.subr.mxu0 0.0
      %844 = vmatpush1.msra.mxu0 %v818
      %845 = vmatprep.subr.mxu0 0.0
      %846 = vmatpush1.msra.mxu0 %v817
      %847 = vmatprep.subr.mxu0 0.0
      %848 = vmatpush1.msra.mxu0 %v816
      %849 = vmatprep.subr.mxu0 0.0
      %850 = vmatpush1.msra.mxu0 %v815
      %851 = vmatprep.subr.mxu0 0.0
      %852 = vmatpush1.msra.mxu0 %v814
      %853 = vmatprep.subr.mxu0 0.0
      %854 = vmatpush1.msra.mxu0 %v813
      %855 = vmatprep.subr.mxu0 0.0
      %856 = vmatpush1.msra.mxu0 %v812
      %857 = vmatprep.subr.mxu0 0.0
      %858 = vmatpush1.msra.mxu0 %v811
      %859 = vmatprep.subr.mxu0 0.0
      %860 = vmatpush2.msra.mxu0 0.0
      %861 = vmatprep.subr.mxu0 0.0
      %862 = vmatpush2.msra.mxu0 0.0
      %863 = vmatprep.subr.mxu0 0.0
      %864 = vmatpush2.msra.mxu0 0.0
      %865 = vmatprep.subr.mxu0 0.0
      %866 = vmatpush2.msra.mxu0 0.0
      %867 = vmatprep.subr.mxu0 0.0
      %868 = vmatpush2.msra.mxu0 0.0
      %869 = vmatprep.subr.mxu0 0.0
      %870 = vmatpush2.msra.mxu0 0.0
      %871 = vmatprep.subr.mxu0 0.0
      %872 = vmatpush2.msra.mxu0 0.0
      %873 = vmatprep.subr.mxu0 0.0
      %874 = vmatpush2.msra.mxu0 0.0
      %875 = vmatprep.subr.mxu0 0.0
      %876 = vmatpush2.msra.mxu0 0.0
      %877 = vmatprep.subr.mxu0 0.0
      %878 = vmatpush2.msra.mxu0 0.0
      %879 = vmatprep.subr.mxu0 0.0
      %880 = vmatpush2.msra.mxu0 0.0
      %881 = vmatprep.subr.mxu0 0.0
      %882 = vmatpush2.msra.mxu0 0.0
      %883 = vmatprep.subr.mxu0 0.0
      %884 = vmatpush2.msra.mxu0 0.0
      %885 = vmatprep.subr.mxu0 0.0
      %886 = vmatpush2.msra.mxu0 0.0
      %887 = vmatprep.subr.mxu0 0.0
      %888 = vmatpush2.msra.mxu0 0.0
      %889 = vmatprep.subr.mxu0 0.0
      %890 = vmatpush2.msra.mxu0 0.0
      %891 = vmatprep.mubr.f32.mxu0 0.0
      %892 = vmatmul.mubr.f32.gmra.mxu0 %v747
      %v893 = vpop.f32.mrf.mxu0
      %v894 = vadd.f32 0.0, %v893
      %v895 = vpop.f32.mrf.mxu0
      %896 = vmatprep.mubr.f32.mxu0 0.0
      %897 = vmatmul.mubr.f32.gmra.mxu0 %v748
      %v898 = vpop.f32.mrf.mxu0
      %v899 = vadd.f32 0.0, %v898
      %v900 = vpop.f32.mrf.mxu0
      %901 = vmatprep.mubr.f32.mxu0 0.0
      %902 = vmatmul.mubr.f32.gmra.mxu0 %v749
      %v903 = vpop.f32.mrf.mxu0
      %v904 = vadd.f32 0.0, %v903
      %v905 = vpop.f32.mrf.mxu0
      %906 = vmatprep.mubr.f32.mxu0 0.0
      %907 = vmatmul.mubr.f32.gmra.mxu0 %v750
      %v908 = vpop.f32.mrf.mxu0
      %v909 = vadd.f32 0.0, %v908
      %v910 = vpop.f32.mrf.mxu0
      %911 = vmatprep.mubr.f32.mxu0 0.0
      %912 = vmatmul.mubr.f32.gmra.mxu0 %v751
      %v913 = vpop.f32.mrf.mxu0
      %v914 = vadd.f32 0.0, %v913
      %v915 = vpop.f32.mrf.mxu0
      %916 = vmatprep.mubr.f32.mxu0 0.0
      %917 = vmatmul.mubr.f32.gmra.mxu0 %v752
      %v918 = vpop.f32.mrf.mxu0
      %v919 = vadd.f32 0.0, %v918
      %v920 = vpop.f32.mrf.mxu0
      %921 = vmatprep.mubr.f32.mxu0 0.0
      %922 = vmatmul.mubr.f32.gmra.mxu0 %v753
      %v923 = vpop.f32.mrf.mxu0
      %v924 = vadd.f32 0.0, %v923
      %v925 = vpop.f32.mrf.mxu0
      %926 = vmatprep.mubr.f32.mxu0 0.0
      %927 = vmatmul.mubr.f32.gmra.mxu0 %v754
      %v928 = vpop.f32.mrf.mxu0
      %v929 = vadd.f32 0.0, %v928
      %v930 = vpop.f32.mrf.mxu0
      %931 = vmatprep.mubr.f32.mxu0 0.0
      %932 = vmatmul.mubr.f32.gmra.mxu0 %v755
      %v933 = vpop.f32.mrf.mxu0
      %v934 = vadd.f32 0.0, %v933
      %v935 = vpop.f32.mrf.mxu0
      %936 = vmatprep.mubr.f32.mxu0 0.0
      %937 = vmatmul.mubr.f32.gmra.mxu0 %v756
      %v938 = vpop.f32.mrf.mxu0
      %v939 = vadd.f32 0.0, %v938
      %v940 = vpop.f32.mrf.mxu0
      %941 = vmatprep.mubr.f32.mxu0 0.0
      %942 = vmatmul.mubr.f32.gmra.mxu0 %v757
      %v943 = vpop.f32.mrf.mxu0
      %v944 = vadd.f32 0.0, %v943
      %v945 = vpop.f32.mrf.mxu0
      %946 = vmatprep.mubr.f32.mxu0 0.0
      %947 = vmatmul.mubr.f32.gmra.mxu0 %v758
      %v948 = vpop.f32.mrf.mxu0
      %v949 = vadd.f32 0.0, %v948
      %v950 = vpop.f32.mrf.mxu0
      %951 = vmatprep.mubr.f32.mxu0 0.0
      %952 = vmatmul.mubr.f32.gmra.mxu0 %v759
      %v953 = vpop.f32.mrf.mxu0
      %v954 = vadd.f32 0.0, %v953
      %v955 = vpop.f32.mrf.mxu0
      %956 = vmatprep.mubr.f32.mxu0 0.0
      %957 = vmatmul.mubr.f32.gmra.mxu0 %v760
      %v958 = vpop.f32.mrf.mxu0
      %v959 = vadd.f32 0.0, %v958
      %v960 = vpop.f32.mrf.mxu0
      %961 = vmatprep.mubr.f32.mxu0 0.0
      %962 = vmatmul.mubr.f32.gmra.mxu0 %v761
      %v963 = vpop.f32.mrf.mxu0
      %v964 = vadd.f32 0.0, %v963
      %v965 = vpop.f32.mrf.mxu0
      %966 = vmatprep.mubr.f32.mxu0 0.0
      %967 = vmatmul.mubr.f32.gmra.mxu0 %v762
      %v968 = vpop.f32.mrf.mxu0
      %v969 = vadd.f32 0.0, %v968
      %v970 = vpop.f32.mrf.mxu0
      %971 = vmatprep.mubr.f32.mxu0 0.0
      %972 = vmatmul.mubr.f32.gmra.mxu0 %v763
      %v973 = vpop.f32.mrf.mxu0
      %v974 = vadd.f32 0.0, %v973
      %v975 = vpop.f32.mrf.mxu0
      %976 = vmatprep.mubr.f32.mxu0 0.0
      %977 = vmatmul.mubr.f32.gmra.mxu0 %v764
      %v978 = vpop.f32.mrf.mxu0
      %v979 = vadd.f32 0.0, %v978
      %v980 = vpop.f32.mrf.mxu0
      %981 = vmatprep.mubr.f32.mxu0 0.0
      %982 = vmatmul.mubr.f32.gmra.mxu0 %v765
      %v983 = vpop.f32.mrf.mxu0
      %v984 = vadd.f32 0.0, %v983
      %v985 = vpop.f32.mrf.mxu0
      %986 = vmatprep.mubr.f32.mxu0 0.0
      %987 = vmatmul.mubr.f32.gmra.mxu0 %v766
      %v988 = vpop.f32.mrf.mxu0
      %v989 = vadd.f32 0.0, %v988
      %v990 = vpop.f32.mrf.mxu0
      %991 = vmatprep.mubr.f32.mxu0 0.0
      %992 = vmatmul.mubr.f32.gmra.mxu0 %v767
      %v993 = vpop.f32.mrf.mxu0
      %v994 = vadd.f32 0.0, %v993
      %v995 = vpop.f32.mrf.mxu0
      %996 = vmatprep.mubr.f32.mxu0 0.0
      %997 = vmatmul.mubr.f32.gmra.mxu0 %v768
      %v998 = vpop.f32.mrf.mxu0
      %v999 = vadd.f32 0.0, %v998
      %v1000 = vpop.f32.mrf.mxu0
      %1001 = vmatprep.mubr.f32.mxu0 0.0
      %1002 = vmatmul.mubr.f32.gmra.mxu0 %v769
      %v1003 = vpop.f32.mrf.mxu0
      %v1004 = vadd.f32 0.0, %v1003
      %v1005 = vpop.f32.mrf.mxu0
      %1006 = vmatprep.mubr.f32.mxu0 0.0
      %1007 = vmatmul.mubr.f32.gmra.mxu0 %v770
      %v1008 = vpop.f32.mrf.mxu0
      %v1009 = vadd.f32 0.0, %v1008
      %v1010 = vpop.f32.mrf.mxu0
      %1011 = vmatprep.mubr.f32.mxu0 0.0
      %1012 = vmatmul.mubr.f32.gmra.mxu0 %v771
      %v1013 = vpop.f32.mrf.mxu0
      %v1014 = vadd.f32 0.0, %v1013
      %v1015 = vpop.f32.mrf.mxu0
      %1016 = vmatprep.mubr.f32.mxu0 0.0
      %1017 = vmatmul.mubr.f32.gmra.mxu0 %v772
      %v1018 = vpop.f32.mrf.mxu0
      %v1019 = vadd.f32 0.0, %v1018
      %v1020 = vpop.f32.mrf.mxu0
      %1021 = vmatprep.mubr.f32.mxu0 0.0
      %1022 = vmatmul.mubr.f32.gmra.mxu0 %v773
      %v1023 = vpop.f32.mrf.mxu0
      %v1024 = vadd.f32 0.0, %v1023
      %v1025 = vpop.f32.mrf.mxu0
      %1026 = vmatprep.mubr.f32.mxu0 0.0
      %1027 = vmatmul.mubr.f32.gmra.mxu0 %v774
      %v1028 = vpop.f32.mrf.mxu0
      %v1029 = vadd.f32 0.0, %v1028
      %v1030 = vpop.f32.mrf.mxu0
      %1031 = vmatprep.mubr.f32.mxu0 0.0
      %1032 = vmatmul.mubr.f32.gmra.mxu0 %v775
      %v1033 = vpop.f32.mrf.mxu0
      %v1034 = vadd.f32 0.0, %v1033
      %v1035 = vpop.f32.mrf.mxu0
      %1036 = vmatprep.mubr.f32.mxu0 0.0
      %1037 = vmatmul.mubr.f32.gmra.mxu0 %v776
      %v1038 = vpop.f32.mrf.mxu0
      %v1039 = vadd.f32 0.0, %v1038
      %v1040 = vpop.f32.mrf.mxu0
      %1041 = vmatprep.mubr.f32.mxu0 0.0
      %1042 = vmatmul.mubr.f32.gmra.mxu0 %v777
      %v1043 = vpop.f32.mrf.mxu0
      %v1044 = vadd.f32 0.0, %v1043
      %v1045 = vpop.f32.mrf.mxu0
      %1046 = vmatprep.mubr.f32.mxu0 0.0
      %1047 = vmatmul.mubr.f32.gmra.mxu0 %v778
      %v1048 = vpop.f32.mrf.mxu0
      %v1049 = vadd.f32 0.0, %v1048
      %v1050 = vpop.f32.mrf.mxu0
      %1051 = vmatprep.mubr.f32.mxu0 0.0
      %1052 = vmatmul.mubr.f32.gmra.mxu0 %v779
      %v1053 = vpop.f32.mrf.mxu0
      %v1054 = vadd.f32 0.0, %v1053
      %v1055 = vpop.f32.mrf.mxu0
      %1056 = vmatprep.mubr.f32.mxu0 0.0
      %1057 = vmatmul.mubr.f32.gmra.mxu0 %v780
      %v1058 = vpop.f32.mrf.mxu0
      %v1059 = vadd.f32 0.0, %v1058
      %v1060 = vpop.f32.mrf.mxu0
      %1061 = vmatprep.mubr.f32.mxu0 0.0
      %1062 = vmatmul.mubr.f32.gmra.mxu0 %v781
      %v1063 = vpop.f32.mrf.mxu0
      %v1064 = vadd.f32 0.0, %v1063
      %v1065 = vpop.f32.mrf.mxu0
      %1066 = vmatprep.mubr.f32.mxu0 0.0
      %1067 = vmatmul.mubr.f32.gmra.mxu0 %v782
      %v1068 = vpop.f32.mrf.mxu0
      %v1069 = vadd.f32 0.0, %v1068
      %v1070 = vpop.f32.mrf.mxu0
      %1071 = vmatprep.mubr.f32.mxu0 0.0
      %1072 = vmatmul.mubr.f32.gmra.mxu0 %v783
      %v1073 = vpop.f32.mrf.mxu0
      %v1074 = vadd.f32 0.0, %v1073
      %v1075 = vpop.f32.mrf.mxu0
      %1076 = vmatprep.mubr.f32.mxu0 0.0
      %1077 = vmatmul.mubr.f32.gmra.mxu0 %v784
      %v1078 = vpop.f32.mrf.mxu0
      %v1079 = vadd.f32 0.0, %v1078
      %v1080 = vpop.f32.mrf.mxu0
      %1081 = vmatprep.mubr.f32.mxu0 0.0
      %1082 = vmatmul.mubr.f32.gmra.mxu0 %v785
      %v1083 = vpop.f32.mrf.mxu0
      %v1084 = vadd.f32 0.0, %v1083
      %v1085 = vpop.f32.mrf.mxu0
      %1086 = vmatprep.mubr.f32.mxu0 0.0
      %1087 = vmatmul.mubr.f32.gmra.mxu0 %v786
      %v1088 = vpop.f32.mrf.mxu0
      %v1089 = vadd.f32 0.0, %v1088
      %v1090 = vpop.f32.mrf.mxu0
      %1091 = vmatprep.mubr.f32.mxu0 0.0
      %1092 = vmatmul.mubr.f32.gmra.mxu0 %v787
      %v1093 = vpop.f32.mrf.mxu0
      %v1094 = vadd.f32 0.0, %v1093
      %v1095 = vpop.f32.mrf.mxu0
      %1096 = vmatprep.mubr.f32.mxu0 0.0
      %1097 = vmatmul.mubr.f32.gmra.mxu0 %v788
      %v1098 = vpop.f32.mrf.mxu0
      %v1099 = vadd.f32 0.0, %v1098
      %v1100 = vpop.f32.mrf.mxu0
      %1101 = vmatprep.mubr.f32.mxu0 0.0
      %1102 = vmatmul.mubr.f32.gmra.mxu0 %v789
      %v1103 = vpop.f32.mrf.mxu0
      %v1104 = vadd.f32 0.0, %v1103
      %v1105 = vpop.f32.mrf.mxu0
      %1106 = vmatprep.mubr.f32.mxu0 0.0
      %1107 = vmatmul.mubr.f32.gmra.mxu0 %v790
      %v1108 = vpop.f32.mrf.mxu0
      %v1109 = vadd.f32 0.0, %v1108
      %v1110 = vpop.f32.mrf.mxu0
      %1111 = vmatprep.mubr.f32.mxu0 0.0
      %1112 = vmatmul.mubr.f32.gmra.mxu0 %v791
      %v1113 = vpop.f32.mrf.mxu0
      %v1114 = vadd.f32 0.0, %v1113
      %v1115 = vpop.f32.mrf.mxu0
      %1116 = vmatprep.mubr.f32.mxu0 0.0
      %1117 = vmatmul.mubr.f32.gmra.mxu0 %v792
      %v1118 = vpop.f32.mrf.mxu0
      %v1119 = vadd.f32 0.0, %v1118
      %v1120 = vpop.f32.mrf.mxu0
      %1121 = vmatprep.mubr.f32.mxu0 0.0
      %1122 = vmatmul.mubr.f32.gmra.mxu0 %v793
      %v1123 = vpop.f32.mrf.mxu0
      %v1124 = vadd.f32 0.0, %v1123
      %v1125 = vpop.f32.mrf.mxu0
      %1126 = vmatprep.mubr.f32.mxu0 0.0
      %1127 = vmatmul.mubr.f32.gmra.mxu0 %v794
      %v1128 = vpop.f32.mrf.mxu0
      %v1129 = vadd.f32 0.0, %v1128
      %v1130 = vpop.f32.mrf.mxu0
      %1131 = vmatprep.mubr.f32.mxu0 0.0
      %1132 = vmatmul.mubr.f32.gmra.mxu0 %v795
      %v1133 = vpop.f32.mrf.mxu0
      %v1134 = vadd.f32 0.0, %v1133
      %v1135 = vpop.f32.mrf.mxu0
      %1136 = vmatprep.mubr.f32.mxu0 0.0
      %1137 = vmatmul.mubr.f32.gmra.mxu0 %v796
      %v1138 = vpop.f32.mrf.mxu0
      %v1139 = vadd.f32 0.0, %v1138
      %v1140 = vpop.f32.mrf.mxu0
      %1141 = vmatprep.mubr.f32.mxu0 0.0
      %1142 = vmatmul.mubr.f32.gmra.mxu0 %v797
      %v1143 = vpop.f32.mrf.mxu0
      %v1144 = vadd.f32 0.0, %v1143
      %v1145 = vpop.f32.mrf.mxu0
      %1146 = vmatprep.mubr.f32.mxu0 0.0
      %1147 = vmatmul.mubr.f32.gmra.mxu0 %v798
      %v1148 = vpop.f32.mrf.mxu0
      %v1149 = vadd.f32 0.0, %v1148
      %v1150 = vpop.f32.mrf.mxu0
      %1151 = vmatprep.mubr.f32.mxu0 0.0
      %1152 = vmatmul.mubr.f32.gmra.mxu0 %v799
      %v1153 = vpop.f32.mrf.mxu0
      %v1154 = vadd.f32 0.0, %v1153
      %v1155 = vpop.f32.mrf.mxu0
      %1156 = vmatprep.mubr.f32.mxu0 0.0
      %1157 = vmatmul.mubr.f32.gmra.mxu0 %v800
      %v1158 = vpop.f32.mrf.mxu0
      %v1159 = vadd.f32 0.0, %v1158
      %v1160 = vpop.f32.mrf.mxu0
      %1161 = vmatprep.mubr.f32.mxu0 0.0
      %1162 = vmatmul.mubr.f32.gmra.mxu0 %v801
      %v1163 = vpop.f32.mrf.mxu0
      %v1164 = vadd.f32 0.0, %v1163
      %v1165 = vpop.f32.mrf.mxu0
      %1166 = vmatprep.mubr.f32.mxu0 0.0
      %1167 = vmatmul.mubr.f32.gmra.mxu0 %v802
      %v1168 = vpop.f32.mrf.mxu0
      %v1169 = vadd.f32 0.0, %v1168
      %v1170 = vpop.f32.mrf.mxu0
      %1171 = vmatprep.mubr.f32.mxu0 0.0
      %1172 = vmatmul.mubr.f32.gmra.mxu0 %v803
      %v1173 = vpop.f32.mrf.mxu0
      %v1174 = vadd.f32 0.0, %v1173
      %v1175 = vpop.f32.mrf.mxu0
      %1176 = vmatprep.mubr.f32.mxu0 0.0
      %1177 = vmatmul.mubr.f32.gmra.mxu0 %v804
      %v1178 = vpop.f32.mrf.mxu0
      %v1179 = vadd.f32 0.0, %v1178
      %v1180 = vpop.f32.mrf.mxu0
      %1181 = vmatprep.mubr.f32.mxu0 0.0
      %1182 = vmatmul.mubr.f32.gmra.mxu0 %v805
      %v1183 = vpop.f32.mrf.mxu0
      %v1184 = vadd.f32 0.0, %v1183
      %v1185 = vpop.f32.mrf.mxu0
      %1186 = vmatprep.mubr.f32.mxu0 0.0
      %1187 = vmatmul.mubr.f32.gmra.mxu0 %v806
      %v1188 = vpop.f32.mrf.mxu0
      %v1189 = vadd.f32 0.0, %v1188
      %v1190 = vpop.f32.mrf.mxu0
      %1191 = vmatprep.mubr.f32.mxu0 0.0
      %1192 = vmatmul.mubr.f32.gmra.mxu0 %v807
      %v1193 = vpop.f32.mrf.mxu0
      %v1194 = vadd.f32 0.0, %v1193
      %v1195 = vpop.f32.mrf.mxu0
      %1196 = vmatprep.mubr.f32.mxu0 0.0
      %1197 = vmatmul.mubr.f32.gmra.mxu0 %v808
      %v1198 = vpop.f32.mrf.mxu0
      %v1199 = vadd.f32 0.0, %v1198
      %v1200 = vpop.f32.mrf.mxu0
      %1201 = vmatprep.mubr.f32.mxu0 0.0
      %1202 = vmatmul.mubr.f32.gmra.mxu0 %v809
      %v1203 = vpop.f32.mrf.mxu0
      %v1204 = vadd.f32 0.0, %v1203
      %v1205 = vpop.f32.mrf.mxu0
      %1206 = vmatprep.mubr.f32.mxu0 0.0
      %1207 = vmatmul.mubr.f32.gmra.mxu0 %v810
      %v1208 = vpop.f32.mrf.mxu0
      %v1209 = vadd.f32 0.0, %v1208
      %v1210 = vpop.f32.mrf.mxu0
      %1211 = vdwg.mxu0
      %v1276 = vunpack.c.l.b16 %v425
      %v1277 = vunpack.c.l.b16 %v426
      %v1278 = vunpack.c.l.b16 %v427
      %v1279 = vunpack.c.l.b16 %v428
      %v1280 = vunpack.c.l.b16 %v429
      %v1281 = vunpack.c.l.b16 %v430
      %v1282 = vunpack.c.l.b16 %v431
      %v1283 = vunpack.c.l.b16 %v432
      %v1284 = vunpack.c.l.b16 %v433
      %v1285 = vunpack.c.l.b16 %v434
      %v1286 = vunpack.c.l.b16 %v435
      %v1287 = vunpack.c.l.b16 %v436
      %v1288 = vunpack.c.l.b16 %v437
      %v1289 = vunpack.c.l.b16 %v438
      %v1290 = vunpack.c.l.b16 %v439
      %v1291 = vunpack.c.l.b16 %v440
      %v1292 = vunpack.c.l.b16 %v441
      %v1293 = vunpack.c.l.b16 %v442
      %v1294 = vunpack.c.l.b16 %v443
      %v1295 = vunpack.c.l.b16 %v444
      %v1296 = vunpack.c.l.b16 %v445
      %v1297 = vunpack.c.l.b16 %v446
      %v1298 = vunpack.c.l.b16 %v447
      %v1299 = vunpack.c.l.b16 %v448
      %v1300 = vunpack.c.l.b16 %v449
      %v1301 = vunpack.c.l.b16 %v450
      %v1302 = vunpack.c.l.b16 %v451
      %v1303 = vunpack.c.l.b16 %v452
      %v1304 = vunpack.c.l.b16 %v453
      %v1305 = vunpack.c.l.b16 %v454
      %v1306 = vunpack.c.l.b16 %v455
      %v1307 = vunpack.c.l.b16 %v456
      %v1308 = vunpack.c.l.b16 %v457
      %v1309 = vunpack.c.l.b16 %v458
      %v1310 = vunpack.c.l.b16 %v459
      %v1311 = vunpack.c.l.b16 %v460
      %v1312 = vunpack.c.l.b16 %v461
      %v1313 = vunpack.c.l.b16 %v462
      %v1314 = vunpack.c.l.b16 %v463
      %v1315 = vunpack.c.l.b16 %v464
      %v1316 = vunpack.c.l.b16 %v465
      %v1317 = vunpack.c.l.b16 %v466
      %v1318 = vunpack.c.l.b16 %v467
      %v1319 = vunpack.c.l.b16 %v468
      %v1320 = vunpack.c.l.b16 %v469
      %v1321 = vunpack.c.l.b16 %v470
      %v1322 = vunpack.c.l.b16 %v471
      %v1323 = vunpack.c.l.b16 %v472
      %v1324 = vunpack.c.l.b16 %v473
      %v1325 = vunpack.c.l.b16 %v474
      %v1326 = vunpack.c.l.b16 %v475
      %v1327 = vunpack.c.l.b16 %v476
      %v1328 = vunpack.c.l.b16 %v477
      %v1329 = vunpack.c.l.b16 %v478
      %v1330 = vunpack.c.l.b16 %v479
      %v1331 = vunpack.c.l.b16 %v480
      %v1332 = vunpack.c.l.b16 %v481
      %v1333 = vunpack.c.l.b16 %v482
      %v1334 = vunpack.c.l.b16 %v483
      %v1335 = vunpack.c.l.b16 %v484
      %v1336 = vunpack.c.l.b16 %v485
      %v1337 = vunpack.c.l.b16 %v486
      %v1338 = vunpack.c.l.b16 %v487
      %v1339 = vunpack.c.l.b16 %v488
      %v1340 = vpack.c.b16 %v1277, %v1276
      %v1341 = vpack.c.b16 %v1279, %v1278
      %v1342 = vpack.c.b16 %v1281, %v1280
      %v1343 = vpack.c.b16 %v1283, %v1282
      %v1344 = vpack.c.b16 %v1285, %v1284
      %v1345 = vpack.c.b16 %v1287, %v1286
      %v1346 = vpack.c.b16 %v1289, %v1288
      %v1347 = vpack.c.b16 %v1291, %v1290
      %v1348 = vpack.c.b16 %v1293, %v1292
      %v1349 = vpack.c.b16 %v1295, %v1294
      %v1350 = vpack.c.b16 %v1297, %v1296
      %v1351 = vpack.c.b16 %v1299, %v1298
      %v1352 = vpack.c.b16 %v1301, %v1300
      %v1353 = vpack.c.b16 %v1303, %v1302
      %v1354 = vpack.c.b16 %v1305, %v1304
      %v1355 = vpack.c.b16 %v1307, %v1306
      %v1356 = vpack.c.b16 %v1309, %v1308
      %v1357 = vpack.c.b16 %v1311, %v1310
      %v1358 = vpack.c.b16 %v1313, %v1312
      %v1359 = vpack.c.b16 %v1315, %v1314
      %v1360 = vpack.c.b16 %v1317, %v1316
      %v1361 = vpack.c.b16 %v1319, %v1318
      %v1362 = vpack.c.b16 %v1321, %v1320
      %v1363 = vpack.c.b16 %v1323, %v1322
      %v1364 = vpack.c.b16 %v1325, %v1324
      %v1365 = vpack.c.b16 %v1327, %v1326
      %v1366 = vpack.c.b16 %v1329, %v1328
      %v1367 = vpack.c.b16 %v1331, %v1330
      %v1368 = vpack.c.b16 %v1333, %v1332
      %v1369 = vpack.c.b16 %v1335, %v1334
      %v1370 = vpack.c.b16 %v1337, %v1336
      %v1371 = vpack.c.b16 %v1339, %v1338
      %v1374 = vunpack.c.l.b16 %v489
      %v1375 = vunpack.c.l.b16 %v490
      %v1376 = vpack.c.b16 %v1375, %v1374
      %vm1378 = vcmask 130048
      %v1380 = vsel %vm1378, %v1340, 0
      %v1383 = vsel %vm1378, %v1341, 0
      %v1386 = vsel %vm1378, %v1342, 0
      %v1389 = vsel %vm1378, %v1343, 0
      %v1392 = vsel %vm1378, %v1344, 0
      %v1395 = vsel %vm1378, %v1345, 0
      %v1398 = vsel %vm1378, %v1346, 0
      %v1401 = vsel %vm1378, %v1347, 0
      %v1404 = vsel %vm1378, %v1348, 0
      %v1407 = vsel %vm1378, %v1349, 0
      %v1410 = vsel %vm1378, %v1350, 0
      %v1413 = vsel %vm1378, %v1351, 0
      %v1416 = vsel %vm1378, %v1352, 0
      %v1419 = vsel %vm1378, %v1353, 0
      %v1422 = vsel %vm1378, %v1354, 0
      %v1425 = vsel %vm1378, %v1355, 0
      %v1428 = vsel %vm1378, %v1356, 0
      %v1431 = vsel %vm1378, %v1357, 0
      %v1434 = vsel %vm1378, %v1358, 0
      %v1437 = vsel %vm1378, %v1359, 0
      %v1440 = vsel %vm1378, %v1360, 0
      %v1443 = vsel %vm1378, %v1361, 0
      %v1446 = vsel %vm1378, %v1362, 0
      %v1449 = vsel %vm1378, %v1363, 0
      %v1452 = vsel %vm1378, %v1364, 0
      %v1455 = vsel %vm1378, %v1365, 0
      %v1458 = vsel %vm1378, %v1366, 0
      %v1461 = vsel %vm1378, %v1367, 0
      %v1464 = vsel %vm1378, %v1368, 0
      %v1467 = vsel %vm1378, %v1369, 0
      %v1470 = vsel %vm1378, %v1370, 0
      %v1473 = vsel %vm1378, %v1371, 0
      %1475 = vmatprep.subr.bf16.mxu0 0
      %1476 = vmatpush1.bf16.msra.mxu0 0
      %1477 = vmatprep.subr.bf16.mxu0 0
      %1478 = vmatpush1.bf16.msra.mxu0 0
      %1479 = vmatprep.subr.bf16.mxu0 0
      %1480 = vmatpush1.bf16.msra.mxu0 0
      %1481 = vmatprep.subr.bf16.mxu0 0
      %1482 = vmatpush1.bf16.msra.mxu0 0
      %1483 = vmatprep.subr.bf16.mxu0 0
      %1484 = vmatpush1.bf16.msra.mxu0 0
      %1485 = vmatprep.subr.bf16.mxu0 0
      %1486 = vmatpush1.bf16.msra.mxu0 0
      %1487 = vmatprep.subr.bf16.mxu0 0
      %1488 = vmatpush1.bf16.msra.mxu0 0
      %1489 = vmatprep.subr.bf16.mxu0 0
      %1490 = vmatpush1.bf16.msra.mxu0 %v1376
      %1491 = vmatprep.subr.bf16.mxu0 0
      %1492 = vmatpush2.bf16.msra.mxu0 0
      %1493 = vmatprep.subr.bf16.mxu0 0
      %1494 = vmatpush2.bf16.msra.mxu0 0
      %1495 = vmatprep.subr.bf16.mxu0 0
      %1496 = vmatpush2.bf16.msra.mxu0 0
      %1497 = vmatprep.subr.bf16.mxu0 0
      %1498 = vmatpush2.bf16.msra.mxu0 0
      %1499 = vmatprep.subr.bf16.mxu0 0
      %1500 = vmatpush2.bf16.msra.mxu0 0
      %1501 = vmatprep.subr.bf16.mxu0 0
      %1502 = vmatpush2.bf16.msra.mxu0 0
      %1503 = vmatprep.subr.bf16.mxu0 0
      %1504 = vmatpush2.bf16.msra.mxu0 0
      %1505 = vmatprep.subr.bf16.mxu0 0
      %1506 = vmatpush2.bf16.msra.mxu0 0
      %1507 = vmatprep.mubr.bf16.mxu0 0
      %1508 = vmatmul.mubr.bf16.gmra.mxu0 %v1380
      %v1509 = vpop.f32.mrf.mxu0
      %v1510 = vadd.f32 %v894, %v1509
      %v1511 = vpop.f32.mrf.mxu0
      %v1512 = vpop.f32.mrf.mxu0
      %v1513 = vadd.f32 %v899, %v1512
      %v1514 = vpop.f32.mrf.mxu0
      %1515 = vmatprep.mubr.bf16.mxu0 0
      %1516 = vmatmul.mubr.bf16.gmra.mxu0 %v1383
      %v1517 = vpop.f32.mrf.mxu0
      %v1518 = vadd.f32 %v904, %v1517
      %v1519 = vpop.f32.mrf.mxu0
      %v1520 = vpop.f32.mrf.mxu0
      %v1521 = vadd.f32 %v909, %v1520
      %v1522 = vpop.f32.mrf.mxu0
      %1523 = vmatprep.mubr.bf16.mxu0 0
      %1524 = vmatmul.mubr.bf16.gmra.mxu0 %v1386
      %v1525 = vpop.f32.mrf.mxu0
      %v1526 = vadd.f32 %v914, %v1525
      %v1527 = vpop.f32.mrf.mxu0
      %v1528 = vpop.f32.mrf.mxu0
      %v1529 = vadd.f32 %v919, %v1528
      %v1530 = vpop.f32.mrf.mxu0
      %1531 = vmatprep.mubr.bf16.mxu0 0
      %1532 = vmatmul.mubr.bf16.gmra.mxu0 %v1389
      %v1533 = vpop.f32.mrf.mxu0
      %v1534 = vadd.f32 %v924, %v1533
      %v1535 = vpop.f32.mrf.mxu0
      %v1536 = vpop.f32.mrf.mxu0
      %v1537 = vadd.f32 %v929, %v1536
      %v1538 = vpop.f32.mrf.mxu0
      %1539 = vmatprep.mubr.bf16.mxu0 0
      %1540 = vmatmul.mubr.bf16.gmra.mxu0 %v1392
      %v1541 = vpop.f32.mrf.mxu0
      %v1542 = vadd.f32 %v934, %v1541
      %v1543 = vpop.f32.mrf.mxu0
      %v1544 = vpop.f32.mrf.mxu0
      %v1545 = vadd.f32 %v939, %v1544
      %v1546 = vpop.f32.mrf.mxu0
      %1547 = vmatprep.mubr.bf16.mxu0 0
      %1548 = vmatmul.mubr.bf16.gmra.mxu0 %v1395
      %v1549 = vpop.f32.mrf.mxu0
      %v1550 = vadd.f32 %v944, %v1549
      %v1551 = vpop.f32.mrf.mxu0
      %v1552 = vpop.f32.mrf.mxu0
      %v1553 = vadd.f32 %v949, %v1552
      %v1554 = vpop.f32.mrf.mxu0
      %1555 = vmatprep.mubr.bf16.mxu0 0
      %1556 = vmatmul.mubr.bf16.gmra.mxu0 %v1398
      %v1557 = vpop.f32.mrf.mxu0
      %v1558 = vadd.f32 %v954, %v1557
      %v1559 = vpop.f32.mrf.mxu0
      %v1560 = vpop.f32.mrf.mxu0
      %v1561 = vadd.f32 %v959, %v1560
      %v1562 = vpop.f32.mrf.mxu0
      %1563 = vmatprep.mubr.bf16.mxu0 0
      %1564 = vmatmul.mubr.bf16.gmra.mxu0 %v1401
      %v1565 = vpop.f32.mrf.mxu0
      %v1566 = vadd.f32 %v964, %v1565
      %v1567 = vpop.f32.mrf.mxu0
      %v1568 = vpop.f32.mrf.mxu0
      %v1569 = vadd.f32 %v969, %v1568
      %v1570 = vpop.f32.mrf.mxu0
      %1571 = vmatprep.mubr.bf16.mxu0 0
      %1572 = vmatmul.mubr.bf16.gmra.mxu0 %v1404
      %v1573 = vpop.f32.mrf.mxu0
      %v1574 = vadd.f32 %v974, %v1573
      %v1575 = vpop.f32.mrf.mxu0
      %v1576 = vpop.f32.mrf.mxu0
      %v1577 = vadd.f32 %v979, %v1576
      %v1578 = vpop.f32.mrf.mxu0
      %1579 = vmatprep.mubr.bf16.mxu0 0
      %1580 = vmatmul.mubr.bf16.gmra.mxu0 %v1407
      %v1581 = vpop.f32.mrf.mxu0
      %v1582 = vadd.f32 %v984, %v1581
      %v1583 = vpop.f32.mrf.mxu0
      %v1584 = vpop.f32.mrf.mxu0
      %v1585 = vadd.f32 %v989, %v1584
      %v1586 = vpop.f32.mrf.mxu0
      %1587 = vmatprep.mubr.bf16.mxu0 0
      %1588 = vmatmul.mubr.bf16.gmra.mxu0 %v1410
      %v1589 = vpop.f32.mrf.mxu0
      %v1590 = vadd.f32 %v994, %v1589
      %v1591 = vpop.f32.mrf.mxu0
      %v1592 = vpop.f32.mrf.mxu0
      %v1593 = vadd.f32 %v999, %v1592
      %v1594 = vpop.f32.mrf.mxu0
      %1595 = vmatprep.mubr.bf16.mxu0 0
      %1596 = vmatmul.mubr.bf16.gmra.mxu0 %v1413
      %v1597 = vpop.f32.mrf.mxu0
      %v1598 = vadd.f32 %v1004, %v1597
      %v1599 = vpop.f32.mrf.mxu0
      %v1600 = vpop.f32.mrf.mxu0
      %v1601 = vadd.f32 %v1009, %v1600
      %v1602 = vpop.f32.mrf.mxu0
      %1603 = vmatprep.mubr.bf16.mxu0 0
      %1604 = vmatmul.mubr.bf16.gmra.mxu0 %v1416
      %v1605 = vpop.f32.mrf.mxu0
      %v1606 = vadd.f32 %v1014, %v1605
      %v1607 = vpop.f32.mrf.mxu0
      %v1608 = vpop.f32.mrf.mxu0
      %v1609 = vadd.f32 %v1019, %v1608
      %v1610 = vpop.f32.mrf.mxu0
      %1611 = vmatprep.mubr.bf16.mxu0 0
      %1612 = vmatmul.mubr.bf16.gmra.mxu0 %v1419
      %v1613 = vpop.f32.mrf.mxu0
      %v1614 = vadd.f32 %v1024, %v1613
      %v1615 = vpop.f32.mrf.mxu0
      %v1616 = vpop.f32.mrf.mxu0
      %v1617 = vadd.f32 %v1029, %v1616
      %v1618 = vpop.f32.mrf.mxu0
      %1619 = vmatprep.mubr.bf16.mxu0 0
      %1620 = vmatmul.mubr.bf16.gmra.mxu0 %v1422
      %v1621 = vpop.f32.mrf.mxu0
      %v1622 = vadd.f32 %v1034, %v1621
      %v1623 = vpop.f32.mrf.mxu0
      %v1624 = vpop.f32.mrf.mxu0
      %v1625 = vadd.f32 %v1039, %v1624
      %v1626 = vpop.f32.mrf.mxu0
      %1627 = vmatprep.mubr.bf16.mxu0 0
      %1628 = vmatmul.mubr.bf16.gmra.mxu0 %v1425
      %v1629 = vpop.f32.mrf.mxu0
      %v1630 = vadd.f32 %v1044, %v1629
      %v1631 = vpop.f32.mrf.mxu0
      %v1632 = vpop.f32.mrf.mxu0
      %v1633 = vadd.f32 %v1049, %v1632
      %v1634 = vpop.f32.mrf.mxu0
      %1635 = vmatprep.mubr.bf16.mxu0 0
      %1636 = vmatmul.mubr.bf16.gmra.mxu0 %v1428
      %v1637 = vpop.f32.mrf.mxu0
      %v1638 = vadd.f32 %v1054, %v1637
      %v1639 = vpop.f32.mrf.mxu0
      %v1640 = vpop.f32.mrf.mxu0
      %v1641 = vadd.f32 %v1059, %v1640
      %v1642 = vpop.f32.mrf.mxu0
      %1643 = vmatprep.mubr.bf16.mxu0 0
      %1644 = vmatmul.mubr.bf16.gmra.mxu0 %v1431
      %v1645 = vpop.f32.mrf.mxu0
      %v1646 = vadd.f32 %v1064, %v1645
      %v1647 = vpop.f32.mrf.mxu0
      %v1648 = vpop.f32.mrf.mxu0
      %v1649 = vadd.f32 %v1069, %v1648
      %v1650 = vpop.f32.mrf.mxu0
      %1651 = vmatprep.mubr.bf16.mxu0 0
      %1652 = vmatmul.mubr.bf16.gmra.mxu0 %v1434
      %v1653 = vpop.f32.mrf.mxu0
      %v1654 = vadd.f32 %v1074, %v1653
      %v1655 = vpop.f32.mrf.mxu0
      %v1656 = vpop.f32.mrf.mxu0
      %v1657 = vadd.f32 %v1079, %v1656
      %v1658 = vpop.f32.mrf.mxu0
      %1659 = vmatprep.mubr.bf16.mxu0 0
      %1660 = vmatmul.mubr.bf16.gmra.mxu0 %v1437
      %v1661 = vpop.f32.mrf.mxu0
      %v1662 = vadd.f32 %v1084, %v1661
      %v1663 = vpop.f32.mrf.mxu0
      %v1664 = vpop.f32.mrf.mxu0
      %v1665 = vadd.f32 %v1089, %v1664
      %v1666 = vpop.f32.mrf.mxu0
      %1667 = vmatprep.mubr.bf16.mxu0 0
      %1668 = vmatmul.mubr.bf16.gmra.mxu0 %v1440
      %v1669 = vpop.f32.mrf.mxu0
      %v1670 = vadd.f32 %v1094, %v1669
      %v1671 = vpop.f32.mrf.mxu0
      %v1672 = vpop.f32.mrf.mxu0
      %v1673 = vadd.f32 %v1099, %v1672
      %v1674 = vpop.f32.mrf.mxu0
      %1675 = vmatprep.mubr.bf16.mxu0 0
      %1676 = vmatmul.mubr.bf16.gmra.mxu0 %v1443
      %v1677 = vpop.f32.mrf.mxu0
      %v1678 = vadd.f32 %v1104, %v1677
      %v1679 = vpop.f32.mrf.mxu0
      %v1680 = vpop.f32.mrf.mxu0
      %v1681 = vadd.f32 %v1109, %v1680
      %v1682 = vpop.f32.mrf.mxu0
      %1683 = vmatprep.mubr.bf16.mxu0 0
      %1684 = vmatmul.mubr.bf16.gmra.mxu0 %v1446
      %v1685 = vpop.f32.mrf.mxu0
      %v1686 = vadd.f32 %v1114, %v1685
      %v1687 = vpop.f32.mrf.mxu0
      %v1688 = vpop.f32.mrf.mxu0
      %v1689 = vadd.f32 %v1119, %v1688
      %v1690 = vpop.f32.mrf.mxu0
      %1691 = vmatprep.mubr.bf16.mxu0 0
      %1692 = vmatmul.mubr.bf16.gmra.mxu0 %v1449
      %v1693 = vpop.f32.mrf.mxu0
      %v1694 = vadd.f32 %v1124, %v1693
      %v1695 = vpop.f32.mrf.mxu0
      %v1696 = vpop.f32.mrf.mxu0
      %v1697 = vadd.f32 %v1129, %v1696
      %v1698 = vpop.f32.mrf.mxu0
      %1699 = vmatprep.mubr.bf16.mxu0 0
      %1700 = vmatmul.mubr.bf16.gmra.mxu0 %v1452
      %v1701 = vpop.f32.mrf.mxu0
      %v1702 = vadd.f32 %v1134, %v1701
      %v1703 = vpop.f32.mrf.mxu0
      %v1704 = vpop.f32.mrf.mxu0
      %v1705 = vadd.f32 %v1139, %v1704
      %v1706 = vpop.f32.mrf.mxu0
      %1707 = vmatprep.mubr.bf16.mxu0 0
      %1708 = vmatmul.mubr.bf16.gmra.mxu0 %v1455
      %v1709 = vpop.f32.mrf.mxu0
      %v1710 = vadd.f32 %v1144, %v1709
      %v1711 = vpop.f32.mrf.mxu0
      %v1712 = vpop.f32.mrf.mxu0
      %v1713 = vadd.f32 %v1149, %v1712
      %v1714 = vpop.f32.mrf.mxu0
      %1715 = vmatprep.mubr.bf16.mxu0 0
      %1716 = vmatmul.mubr.bf16.gmra.mxu0 %v1458
      %v1717 = vpop.f32.mrf.mxu0
      %v1718 = vadd.f32 %v1154, %v1717
      %v1719 = vpop.f32.mrf.mxu0
      %v1720 = vpop.f32.mrf.mxu0
      %v1721 = vadd.f32 %v1159, %v1720
      %v1722 = vpop.f32.mrf.mxu0
      %1723 = vmatprep.mubr.bf16.mxu0 0
      %1724 = vmatmul.mubr.bf16.gmra.mxu0 %v1461
      %v1725 = vpop.f32.mrf.mxu0
      %v1726 = vadd.f32 %v1164, %v1725
      %v1727 = vpop.f32.mrf.mxu0
      %v1728 = vpop.f32.mrf.mxu0
      %v1729 = vadd.f32 %v1169, %v1728
      %v1730 = vpop.f32.mrf.mxu0
      %1731 = vmatprep.mubr.bf16.mxu0 0
      %1732 = vmatmul.mubr.bf16.gmra.mxu0 %v1464
      %v1733 = vpop.f32.mrf.mxu0
      %v1734 = vadd.f32 %v1174, %v1733
      %v1735 = vpop.f32.mrf.mxu0
      %v1736 = vpop.f32.mrf.mxu0
      %v1737 = vadd.f32 %v1179, %v1736
      %v1738 = vpop.f32.mrf.mxu0
      %1739 = vmatprep.mubr.bf16.mxu0 0
      %1740 = vmatmul.mubr.bf16.gmra.mxu0 %v1467
      %v1741 = vpop.f32.mrf.mxu0
      %v1742 = vadd.f32 %v1184, %v1741
      %v1743 = vpop.f32.mrf.mxu0
      %v1744 = vpop.f32.mrf.mxu0
      %v1745 = vadd.f32 %v1189, %v1744
      %v1746 = vpop.f32.mrf.mxu0
      %1747 = vmatprep.mubr.bf16.mxu0 0
      %1748 = vmatmul.mubr.bf16.gmra.mxu0 %v1470
      %v1749 = vpop.f32.mrf.mxu0
      %v1750 = vadd.f32 %v1194, %v1749
      %v1751 = vpop.f32.mrf.mxu0
      %v1752 = vpop.f32.mrf.mxu0
      %v1753 = vadd.f32 %v1199, %v1752
      %v1754 = vpop.f32.mrf.mxu0
      %1755 = vmatprep.mubr.bf16.mxu0 0
      %1756 = vmatmul.mubr.bf16.gmra.mxu0 %v1473
      %v1757 = vpop.f32.mrf.mxu0
      %v1758 = vadd.f32 %v1204, %v1757
      %v1759 = vpop.f32.mrf.mxu0
      %v1760 = vpop.f32.mrf.mxu0
      %v1761 = vadd.f32 %v1209, %v1760
      %v1762 = vpop.f32.mrf.mxu0
      %1763 = vdwg.mxu0
      %v1764 = vld [vmem:[%s410] sm:$0xff]
      %v1765 = vld [vmem:[%s410 + $0x8] sm:$0xff]
      %v1766 = vld [vmem:[%s410 + $0x10] sm:$0xff]
      %v1767 = vld [vmem:[%s410 + $0x18] sm:$0xff]
      %v1768 = vld [vmem:[%s410 + $0x20] sm:$0xff]
      %v1769 = vld [vmem:[%s410 + $0x28] sm:$0xff]
      %v1770 = vld [vmem:[%s410 + $0x30] sm:$0xff]
      %v1771 = vld [vmem:[%s410 + $0x38] sm:$0xff]
      %v1772 = vld [vmem:[%s410 + $0x40] sm:$0xff]
      %v1773 = vld [vmem:[%s410 + $0x48] sm:$0xff]
      %v1774 = vld [vmem:[%s410 + $0x50] sm:$0xff]
      %v1775 = vld [vmem:[%s410 + $0x58] sm:$0xff]
      %v1776 = vld [vmem:[%s410 + $0x60] sm:$0xff]
      %v1777 = vld [vmem:[%s410 + $0x68] sm:$0xff]
      %v1778 = vld [vmem:[%s410 + $0x70] sm:$0xff]
      %v1779 = vld [vmem:[%s410 + $0x78] sm:$0xff]
      %v1780 = vld [vmem:[%s410 + $0x80] sm:$0xff]
      %v1781 = vld [vmem:[%s410 + $0x88] sm:$0xff]
      %v1782 = vld [vmem:[%s410 + $0x90] sm:$0xff]
      %v1783 = vld [vmem:[%s410 + $0x98] sm:$0xff]
      %v1784 = vld [vmem:[%s410 + $0xa0] sm:$0xff]
      %v1785 = vld [vmem:[%s410 + $0xa8] sm:$0xff]
      %v1786 = vld [vmem:[%s410 + $0xb0] sm:$0xff]
      %v1787 = vld [vmem:[%s410 + $0xb8] sm:$0xff]
      %v1788 = vld [vmem:[%s410 + $0xc0] sm:$0xff]
      %v1789 = vld [vmem:[%s410 + $0xc8] sm:$0xff]
      %v1790 = vld [vmem:[%s410 + $0xd0] sm:$0xff]
      %v1791 = vld [vmem:[%s410 + $0xd8] sm:$0xff]
      %v1792 = vld [vmem:[%s410 + $0xe0] sm:$0xff]
      %v1793 = vld [vmem:[%s410 + $0xe8] sm:$0xff]
      %v1794 = vld [vmem:[%s410 + $0xf0] sm:$0xff]
      %v1795 = vld [vmem:[%s410 + $0xf8] sm:$0xff]
      %v1796 = vld [vmem:[%s410 + $0x100] sm:$0xff]
      %v1797 = vld [vmem:[%s410 + $0x108] sm:$0xff]
      %v1798 = vld [vmem:[%s410 + $0x110] sm:$0xff]
      %v1799 = vld [vmem:[%s410 + $0x118] sm:$0xff]
      %v1800 = vld [vmem:[%s410 + $0x120] sm:$0xff]
      %v1801 = vld [vmem:[%s410 + $0x128] sm:$0xff]
      %v1802 = vld [vmem:[%s410 + $0x130] sm:$0xff]
      %v1803 = vld [vmem:[%s410 + $0x138] sm:$0xff]
      %v1804 = vld [vmem:[%s410 + $0x140] sm:$0xff]
      %v1805 = vld [vmem:[%s410 + $0x148] sm:$0xff]
      %v1806 = vld [vmem:[%s410 + $0x150] sm:$0xff]
      %v1807 = vld [vmem:[%s410 + $0x158] sm:$0xff]
      %v1808 = vld [vmem:[%s410 + $0x160] sm:$0xff]
      %v1809 = vld [vmem:[%s410 + $0x168] sm:$0xff]
      %v1810 = vld [vmem:[%s410 + $0x170] sm:$0xff]
      %v1811 = vld [vmem:[%s410 + $0x178] sm:$0xff]
      %v1812 = vld [vmem:[%s410 + $0x180] sm:$0xff]
      %v1813 = vld [vmem:[%s410 + $0x188] sm:$0xff]
      %v1814 = vld [vmem:[%s410 + $0x190] sm:$0xff]
      %v1815 = vld [vmem:[%s410 + $0x198] sm:$0xff]
      %v1816 = vld [vmem:[%s410 + $0x1a0] sm:$0xff]
      %v1817 = vld [vmem:[%s410 + $0x1a8] sm:$0xff]
      %v1818 = vld [vmem:[%s410 + $0x1b0] sm:$0xff]
      %v1819 = vld [vmem:[%s410 + $0x1b8] sm:$0xff]
      %v1820 = vld [vmem:[%s410 + $0x1c0] sm:$0xff]
      %v1821 = vld [vmem:[%s410 + $0x1c8] sm:$0xff]
      %v1822 = vld [vmem:[%s410 + $0x1d0] sm:$0xff]
      %v1823 = vld [vmem:[%s410 + $0x1d8] sm:$0xff]
      %v1824 = vld [vmem:[%s410 + $0x1e0] sm:$0xff]
      %v1825 = vld [vmem:[%s410 + $0x1e8] sm:$0xff]
      %v1826 = vld [vmem:[%s410 + $0x1f0] sm:$0xff]
      %v1827 = vld [vmem:[%s410 + $0x1f8] sm:$0xff]
      %v1828 = vld [vmem:[%s416] sm:$0xff]
      %v1829 = vld [vmem:[%s416 + $0x8] sm:$0xff]
      %v1830 = vld [vmem:[%s416 + $0x10] sm:$0xff]
      %v1831 = vld [vmem:[%s416 + $0x18] sm:$0xff]
      %v1832 = vld [vmem:[%s416 + $0x20] sm:$0xff]
      %v1833 = vld [vmem:[%s416 + $0x28] sm:$0xff]
      %v1834 = vld [vmem:[%s416 + $0x30] sm:$0xff]
      %v1835 = vld [vmem:[%s416 + $0x38] sm:$0xff]
      %v1836 = vld [vmem:[%s416 + $0x40] sm:$0xff]
      %v1837 = vld [vmem:[%s416 + $0x48] sm:$0xff]
      %v1838 = vld [vmem:[%s416 + $0x50] sm:$0xff]
      %v1839 = vld [vmem:[%s416 + $0x58] sm:$0xff]
      %v1840 = vld [vmem:[%s416 + $0x60] sm:$0xff]
      %v1841 = vld [vmem:[%s416 + $0x68] sm:$0xff]
      %v1842 = vld [vmem:[%s416 + $0x70] sm:$0xff]
      %v1843 = vld [vmem:[%s416 + $0x78] sm:$0xff]
      %v1844 = vld [vmem:[%s416 + $0x80] sm:$0xff]
      %v1845 = vld [vmem:[%s416 + $0x88] sm:$0xff]
      %v1846 = vld [vmem:[%s416 + $0x90] sm:$0xff]
      %v1847 = vld [vmem:[%s416 + $0x98] sm:$0xff]
      %v1848 = vld [vmem:[%s416 + $0xa0] sm:$0xff]
      %v1849 = vld [vmem:[%s416 + $0xa8] sm:$0xff]
      %v1850 = vld [vmem:[%s416 + $0xb0] sm:$0xff]
      %v1851 = vld [vmem:[%s416 + $0xb8] sm:$0xff]
      %v1852 = vld [vmem:[%s416 + $0xc0] sm:$0xff]
      %v1853 = vld [vmem:[%s416 + $0xc8] sm:$0xff]
      %v1854 = vld [vmem:[%s416 + $0xd0] sm:$0xff]
      %v1855 = vld [vmem:[%s416 + $0xd8] sm:$0xff]
      %v1856 = vld [vmem:[%s416 + $0xe0] sm:$0xff]
      %v1857 = vld [vmem:[%s416 + $0xe8] sm:$0xff]
      %v1858 = vld [vmem:[%s416 + $0xf0] sm:$0xff]
      %v1859 = vld [vmem:[%s416 + $0xf8] sm:$0xff]
      %v1860 = vld [vmem:[%s416 + $0x100] sm:$0xff]
      %v1861 = vld [vmem:[%s416 + $0x108] sm:$0xff]
      %v1862 = vld [vmem:[%s416 + $0x110] sm:$0xff]
      %v1863 = vld [vmem:[%s416 + $0x118] sm:$0xff]
      %v1864 = vld [vmem:[%s416 + $0x120] sm:$0xff]
      %v1865 = vld [vmem:[%s416 + $0x128] sm:$0xff]
      %v1866 = vld [vmem:[%s416 + $0x130] sm:$0xff]
      %v1867 = vld [vmem:[%s416 + $0x138] sm:$0xff]
      %v1868 = vld [vmem:[%s416 + $0x140] sm:$0xff]
      %v1869 = vld [vmem:[%s416 + $0x148] sm:$0xff]
      %v1870 = vld [vmem:[%s416 + $0x150] sm:$0xff]
      %v1871 = vld [vmem:[%s416 + $0x158] sm:$0xff]
      %v1872 = vld [vmem:[%s416 + $0x160] sm:$0xff]
      %v1873 = vld [vmem:[%s416 + $0x168] sm:$0xff]
      %v1874 = vld [vmem:[%s416 + $0x170] sm:$0xff]
      %v1875 = vld [vmem:[%s416 + $0x178] sm:$0xff]
      %v1876 = vld [vmem:[%s416 + $0x180] sm:$0xff]
      %v1877 = vld [vmem:[%s416 + $0x188] sm:$0xff]
      %v1878 = vld [vmem:[%s416 + $0x190] sm:$0xff]
      %v1879 = vld [vmem:[%s416 + $0x198] sm:$0xff]
      %v1880 = vld [vmem:[%s416 + $0x1a0] sm:$0xff]
      %v1881 = vld [vmem:[%s416 + $0x1a8] sm:$0xff]
      %v1882 = vld [vmem:[%s416 + $0x1b0] sm:$0xff]
      %v1883 = vld [vmem:[%s416 + $0x1b8] sm:$0xff]
      %v1884 = vld [vmem:[%s416 + $0x1c0] sm:$0xff]
      %v1885 = vld [vmem:[%s416 + $0x1c8] sm:$0xff]
      %v1886 = vld [vmem:[%s416 + $0x1d0] sm:$0xff]
      %v1887 = vld [vmem:[%s416 + $0x1d8] sm:$0xff]
      %v1888 = vld [vmem:[%s416 + $0x1e0] sm:$0xff]
      %v1889 = vld [vmem:[%s416 + $0x1e8] sm:$0xff]
      %v1890 = vld [vmem:[%s416 + $0x1f0] sm:$0xff]
      %v1891 = vld [vmem:[%s416 + $0x1f8] sm:$0xff]
      %v1892 = vsub.f32 %v1764, %v1828
      %v1893 = vsub.f32 %v1765, %v1829
      %v1894 = vsub.f32 %v1766, %v1830
      %v1895 = vsub.f32 %v1767, %v1831
      %v1896 = vsub.f32 %v1768, %v1832
      %v1897 = vsub.f32 %v1769, %v1833
      %v1898 = vsub.f32 %v1770, %v1834
      %v1899 = vsub.f32 %v1771, %v1835
      %v1900 = vsub.f32 %v1772, %v1836
      %v1901 = vsub.f32 %v1773, %v1837
      %v1902 = vsub.f32 %v1774, %v1838
      %v1903 = vsub.f32 %v1775, %v1839
      %v1904 = vsub.f32 %v1776, %v1840
      %v1905 = vsub.f32 %v1777, %v1841
      %v1906 = vsub.f32 %v1778, %v1842
      %v1907 = vsub.f32 %v1779, %v1843
      %v1908 = vsub.f32 %v1780, %v1844
      %v1909 = vsub.f32 %v1781, %v1845
      %v1910 = vsub.f32 %v1782, %v1846
      %v1911 = vsub.f32 %v1783, %v1847
      %v1912 = vsub.f32 %v1784, %v1848
      %v1913 = vsub.f32 %v1785, %v1849
      %v1914 = vsub.f32 %v1786, %v1850
      %v1915 = vsub.f32 %v1787, %v1851
      %v1916 = vsub.f32 %v1788, %v1852
      %v1917 = vsub.f32 %v1789, %v1853
      %v1918 = vsub.f32 %v1790, %v1854
      %v1919 = vsub.f32 %v1791, %v1855
      %v1920 = vsub.f32 %v1792, %v1856
      %v1921 = vsub.f32 %v1793, %v1857
      %v1922 = vsub.f32 %v1794, %v1858
      %v1923 = vsub.f32 %v1795, %v1859
      %v1924 = vsub.f32 %v1796, %v1860
      %v1925 = vsub.f32 %v1797, %v1861
      %v1926 = vsub.f32 %v1798, %v1862
      %v1927 = vsub.f32 %v1799, %v1863
      %v1928 = vsub.f32 %v1800, %v1864
      %v1929 = vsub.f32 %v1801, %v1865
      %v1930 = vsub.f32 %v1802, %v1866
      %v1931 = vsub.f32 %v1803, %v1867
      %v1932 = vsub.f32 %v1804, %v1868
      %v1933 = vsub.f32 %v1805, %v1869
      %v1934 = vsub.f32 %v1806, %v1870
      %v1935 = vsub.f32 %v1807, %v1871
      %v1936 = vsub.f32 %v1808, %v1872
      %v1937 = vsub.f32 %v1809, %v1873
      %v1938 = vsub.f32 %v1810, %v1874
      %v1939 = vsub.f32 %v1811, %v1875
      %v1940 = vsub.f32 %v1812, %v1876
      %v1941 = vsub.f32 %v1813, %v1877
      %v1942 = vsub.f32 %v1814, %v1878
      %v1943 = vsub.f32 %v1815, %v1879
      %v1944 = vsub.f32 %v1816, %v1880
      %v1945 = vsub.f32 %v1817, %v1881
      %v1946 = vsub.f32 %v1818, %v1882
      %v1947 = vsub.f32 %v1819, %v1883
      %v1948 = vsub.f32 %v1820, %v1884
      %v1949 = vsub.f32 %v1821, %v1885
      %v1950 = vsub.f32 %v1822, %v1886
      %v1951 = vsub.f32 %v1823, %v1887
      %v1952 = vsub.f32 %v1824, %v1888
      %v1953 = vsub.f32 %v1825, %v1889
      %v1954 = vsub.f32 %v1826, %v1890
      %v1955 = vsub.f32 %v1827, %v1891
      %v1956 = vmul.f32 %v1892, %v1892
      %v1957 = vmul.f32 %v1893, %v1893
      %v1958 = vmul.f32 %v1894, %v1894
      %v1959 = vmul.f32 %v1895, %v1895
      %v1960 = vmul.f32 %v1896, %v1896
      %v1961 = vmul.f32 %v1897, %v1897
      %v1962 = vmul.f32 %v1898, %v1898
      %v1963 = vmul.f32 %v1899, %v1899
      %v1964 = vmul.f32 %v1900, %v1900
      %v1965 = vmul.f32 %v1901, %v1901
      %v1966 = vmul.f32 %v1902, %v1902
      %v1967 = vmul.f32 %v1903, %v1903
      %v1968 = vmul.f32 %v1904, %v1904
      %v1969 = vmul.f32 %v1905, %v1905
      %v1970 = vmul.f32 %v1906, %v1906
      %v1971 = vmul.f32 %v1907, %v1907
      %v1972 = vmul.f32 %v1908, %v1908
      %v1973 = vmul.f32 %v1909, %v1909
      %v1974 = vmul.f32 %v1910, %v1910
      %v1975 = vmul.f32 %v1911, %v1911
      %v1976 = vmul.f32 %v1912, %v1912
      %v1977 = vmul.f32 %v1913, %v1913
      %v1978 = vmul.f32 %v1914, %v1914
      %v1979 = vmul.f32 %v1915, %v1915
      %v1980 = vmul.f32 %v1916, %v1916
      %v1981 = vmul.f32 %v1917, %v1917
      %v1982 = vmul.f32 %v1918, %v1918
      %v1983 = vmul.f32 %v1919, %v1919
      %v1984 = vmul.f32 %v1920, %v1920
      %v1985 = vmul.f32 %v1921, %v1921
      %v1986 = vmul.f32 %v1922, %v1922
      %v1987 = vmul.f32 %v1923, %v1923
      %v1988 = vmul.f32 %v1924, %v1924
      %v1989 = vmul.f32 %v1925, %v1925
      %v1990 = vmul.f32 %v1926, %v1926
      %v1991 = vmul.f32 %v1927, %v1927
      %v1992 = vmul.f32 %v1928, %v1928
      %v1993 = vmul.f32 %v1929, %v1929
      %v1994 = vmul.f32 %v1930, %v1930
      %v1995 = vmul.f32 %v1931, %v1931
      %v1996 = vmul.f32 %v1932, %v1932
      %v1997 = vmul.f32 %v1933, %v1933
      %v1998 = vmul.f32 %v1934, %v1934
      %v1999 = vmul.f32 %v1935, %v1935
      %v2000 = vmul.f32 %v1936, %v1936
      %v2001 = vmul.f32 %v1937, %v1937
      %v2002 = vmul.f32 %v1938, %v1938
      %v2003 = vmul.f32 %v1939, %v1939
      %v2004 = vmul.f32 %v1940, %v1940
      %v2005 = vmul.f32 %v1941, %v1941
      %v2006 = vmul.f32 %v1942, %v1942
      %v2007 = vmul.f32 %v1943, %v1943
      %v2008 = vmul.f32 %v1944, %v1944
      %v2009 = vmul.f32 %v1945, %v1945
      %v2010 = vmul.f32 %v1946, %v1946
      %v2011 = vmul.f32 %v1947, %v1947
      %v2012 = vmul.f32 %v1948, %v1948
      %v2013 = vmul.f32 %v1949, %v1949
      %v2014 = vmul.f32 %v1950, %v1950
      %v2015 = vmul.f32 %v1951, %v1951
      %v2016 = vmul.f32 %v1952, %v1952
      %v2017 = vmul.f32 %v1953, %v1953
      %v2018 = vmul.f32 %v1954, %v1954
      %v2019 = vmul.f32 %v1955, %v1955
      %2084 = vrot.lane.b32.xlu0 %v1956, 96
      %v2085 = vpop.permute.xlu0 %2084
      %2086 = vrot.lane.b32.xlu0 %v1957, 96
      %v2087 = vpop.permute.xlu0 %2086
      %2088 = vrot.lane.b32.xlu0 %v1958, 96
      %v2089 = vpop.permute.xlu0 %2088
      %2090 = vrot.lane.b32.xlu0 %v1959, 96
      %v2091 = vpop.permute.xlu0 %2090
      %2092 = vrot.lane.b32.xlu0 %v1960, 96
      %v2093 = vpop.permute.xlu0 %2092
      %2094 = vrot.lane.b32.xlu0 %v1961, 96
      %v2095 = vpop.permute.xlu0 %2094
      %2096 = vrot.lane.b32.xlu0 %v1962, 96
      %v2097 = vpop.permute.xlu0 %2096
      %2098 = vrot.lane.b32.xlu0 %v1963, 96
      %v2099 = vpop.permute.xlu0 %2098
      %2100 = vrot.lane.b32.xlu0 %v1964, 96
      %v2101 = vpop.permute.xlu0 %2100
      %2102 = vrot.lane.b32.xlu0 %v1965, 96
      %v2103 = vpop.permute.xlu0 %2102
      %2104 = vrot.lane.b32.xlu0 %v1966, 96
      %v2105 = vpop.permute.xlu0 %2104
      %2106 = vrot.lane.b32.xlu0 %v1967, 96
      %v2107 = vpop.permute.xlu0 %2106
      %2108 = vrot.lane.b32.xlu0 %v1968, 96
      %v2109 = vpop.permute.xlu0 %2108
      %2110 = vrot.lane.b32.xlu0 %v1969, 96
      %v2111 = vpop.permute.xlu0 %2110
      %2112 = vrot.lane.b32.xlu0 %v1970, 96
      %v2113 = vpop.permute.xlu0 %2112
      %2114 = vrot.lane.b32.xlu0 %v1971, 96
      %v2115 = vpop.permute.xlu0 %2114
      %2116 = vrot.lane.b32.xlu0 %v1972, 96
      %v2117 = vpop.permute.xlu0 %2116
      %2118 = vrot.lane.b32.xlu0 %v1973, 96
      %v2119 = vpop.permute.xlu0 %2118
      %2120 = vrot.lane.b32.xlu0 %v1974, 96
      %v2121 = vpop.permute.xlu0 %2120
      %2122 = vrot.lane.b32.xlu0 %v1975, 96
      %v2123 = vpop.permute.xlu0 %2122
      %2124 = vrot.lane.b32.xlu0 %v1976, 96
      %v2125 = vpop.permute.xlu0 %2124
      %2126 = vrot.lane.b32.xlu0 %v1977, 96
      %v2127 = vpop.permute.xlu0 %2126
      %2128 = vrot.lane.b32.xlu0 %v1978, 96
      %v2129 = vpop.permute.xlu0 %2128
      %2130 = vrot.lane.b32.xlu0 %v1979, 96
      %v2131 = vpop.permute.xlu0 %2130
      %2132 = vrot.lane.b32.xlu0 %v1980, 96
      %v2133 = vpop.permute.xlu0 %2132
      %2134 = vrot.lane.b32.xlu0 %v1981, 96
      %v2135 = vpop.permute.xlu0 %2134
      %2136 = vrot.lane.b32.xlu0 %v1982, 96
      %v2137 = vpop.permute.xlu0 %2136
      %2138 = vrot.lane.b32.xlu0 %v1983, 96
      %v2139 = vpop.permute.xlu0 %2138
      %2140 = vrot.lane.b32.xlu0 %v1984, 96
      %v2141 = vpop.permute.xlu0 %2140
      %2142 = vrot.lane.b32.xlu0 %v1985, 96
      %v2143 = vpop.permute.xlu0 %2142
      %2144 = vrot.lane.b32.xlu0 %v1986, 96
      %v2145 = vpop.permute.xlu0 %2144
      %2146 = vrot.lane.b32.xlu0 %v1987, 96
      %v2147 = vpop.permute.xlu0 %2146
      %2148 = vrot.lane.b32.xlu0 %v1988, 96
      %v2149 = vpop.permute.xlu0 %2148
      %2150 = vrot.lane.b32.xlu0 %v1989, 96
      %v2151 = vpop.permute.xlu0 %2150
      %2152 = vrot.lane.b32.xlu0 %v1990, 96
      %v2153 = vpop.permute.xlu0 %2152
      %2154 = vrot.lane.b32.xlu0 %v1991, 96
      %v2155 = vpop.permute.xlu0 %2154
      %2156 = vrot.lane.b32.xlu0 %v1992, 96
      %v2157 = vpop.permute.xlu0 %2156
      %2158 = vrot.lane.b32.xlu0 %v1993, 96
      %v2159 = vpop.permute.xlu0 %2158
      %2160 = vrot.lane.b32.xlu0 %v1994, 96
      %v2161 = vpop.permute.xlu0 %2160
      %2162 = vrot.lane.b32.xlu0 %v1995, 96
      %v2163 = vpop.permute.xlu0 %2162
      %2164 = vrot.lane.b32.xlu0 %v1996, 96
      %v2165 = vpop.permute.xlu0 %2164
      %2166 = vrot.lane.b32.xlu0 %v1997, 96
      %v2167 = vpop.permute.xlu0 %2166
      %2168 = vrot.lane.b32.xlu0 %v1998, 96
      %v2169 = vpop.permute.xlu0 %2168
      %2170 = vrot.lane.b32.xlu0 %v1999, 96
      %v2171 = vpop.permute.xlu0 %2170
      %2172 = vrot.lane.b32.xlu0 %v2000, 96
      %v2173 = vpop.permute.xlu0 %2172
      %2174 = vrot.lane.b32.xlu0 %v2001, 96
      %v2175 = vpop.permute.xlu0 %2174
      %2176 = vrot.lane.b32.xlu0 %v2002, 96
      %v2177 = vpop.permute.xlu0 %2176
      %2178 = vrot.lane.b32.xlu0 %v2003, 96
      %v2179 = vpop.permute.xlu0 %2178
      %2180 = vrot.lane.b32.xlu0 %v2004, 96
      %v2181 = vpop.permute.xlu0 %2180
      %2182 = vrot.lane.b32.xlu0 %v2005, 96
      %v2183 = vpop.permute.xlu0 %2182
      %2184 = vrot.lane.b32.xlu0 %v2006, 96
      %v2185 = vpop.permute.xlu0 %2184
      %2186 = vrot.lane.b32.xlu0 %v2007, 96
      %v2187 = vpop.permute.xlu0 %2186
      %2188 = vrot.lane.b32.xlu0 %v2008, 96
      %v2189 = vpop.permute.xlu0 %2188
      %2190 = vrot.lane.b32.xlu0 %v2009, 96
      %v2191 = vpop.permute.xlu0 %2190
      %2192 = vrot.lane.b32.xlu0 %v2010, 96
      %v2193 = vpop.permute.xlu0 %2192
      %2194 = vrot.lane.b32.xlu0 %v2011, 96
      %v2195 = vpop.permute.xlu0 %2194
      %2196 = vrot.lane.b32.xlu0 %v2012, 96
      %v2197 = vpop.permute.xlu0 %2196
      %2198 = vrot.lane.b32.xlu0 %v2013, 96
      %v2199 = vpop.permute.xlu0 %2198
      %2200 = vrot.lane.b32.xlu0 %v2014, 96
      %v2201 = vpop.permute.xlu0 %2200
      %2202 = vrot.lane.b32.xlu0 %v2015, 96
      %v2203 = vpop.permute.xlu0 %2202
      %2204 = vrot.lane.b32.xlu0 %v2016, 96
      %v2205 = vpop.permute.xlu0 %2204
      %2206 = vrot.lane.b32.xlu0 %v2017, 96
      %v2207 = vpop.permute.xlu0 %2206
      %2208 = vrot.lane.b32.xlu0 %v2018, 96
      %v2209 = vpop.permute.xlu0 %2208
      %2210 = vrot.lane.b32.xlu0 %v2019, 96
      %v2211 = vpop.permute.xlu0 %2210
      %v2276 = vadd.f32 %v1956, %v2085
      %v2277 = vadd.f32 %v1957, %v2087
      %v2278 = vadd.f32 %v1958, %v2089
      %v2279 = vadd.f32 %v1959, %v2091
      %v2280 = vadd.f32 %v1960, %v2093
      %v2281 = vadd.f32 %v1961, %v2095
      %v2282 = vadd.f32 %v1962, %v2097
      %v2283 = vadd.f32 %v1963, %v2099
      %v2284 = vadd.f32 %v1964, %v2101
      %v2285 = vadd.f32 %v1965, %v2103
      %v2286 = vadd.f32 %v1966, %v2105
      %v2287 = vadd.f32 %v1967, %v2107
      %v2288 = vadd.f32 %v1968, %v2109
      %v2289 = vadd.f32 %v1969, %v2111
      %v2290 = vadd.f32 %v1970, %v2113
      %v2291 = vadd.f32 %v1971, %v2115
      %v2292 = vadd.f32 %v1972, %v2117
      %v2293 = vadd.f32 %v1973, %v2119
      %v2294 = vadd.f32 %v1974, %v2121
      %v2295 = vadd.f32 %v1975, %v2123
      %v2296 = vadd.f32 %v1976, %v2125
      %v2297 = vadd.f32 %v1977, %v2127
      %v2298 = vadd.f32 %v1978, %v2129
      %v2299 = vadd.f32 %v1979, %v2131
      %v2300 = vadd.f32 %v1980, %v2133
      %v2301 = vadd.f32 %v1981, %v2135
      %v2302 = vadd.f32 %v1982, %v2137
      %v2303 = vadd.f32 %v1983, %v2139
      %v2304 = vadd.f32 %v1984, %v2141
      %v2305 = vadd.f32 %v1985, %v2143
      %v2306 = vadd.f32 %v1986, %v2145
      %v2307 = vadd.f32 %v1987, %v2147
      %v2308 = vadd.f32 %v1988, %v2149
      %v2309 = vadd.f32 %v1989, %v2151
      %v2310 = vadd.f32 %v1990, %v2153
      %v2311 = vadd.f32 %v1991, %v2155
      %v2312 = vadd.f32 %v1992, %v2157
      %v2313 = vadd.f32 %v1993, %v2159
      %v2314 = vadd.f32 %v1994, %v2161
      %v2315 = vadd.f32 %v1995, %v2163
      %v2316 = vadd.f32 %v1996, %v2165
      %v2317 = vadd.f32 %v1997, %v2167
      %v2318 = vadd.f32 %v1998, %v2169
      %v2319 = vadd.f32 %v1999, %v2171
      %v2320 = vadd.f32 %v2000, %v2173
      %v2321 = vadd.f32 %v2001, %v2175
      %v2322 = vadd.f32 %v2002, %v2177
      %v2323 = vadd.f32 %v2003, %v2179
      %v2324 = vadd.f32 %v2004, %v2181
      %v2325 = vadd.f32 %v2005, %v2183
      %v2326 = vadd.f32 %v2006, %v2185
      %v2327 = vadd.f32 %v2007, %v2187
      %v2328 = vadd.f32 %v2008, %v2189
      %v2329 = vadd.f32 %v2009, %v2191
      %v2330 = vadd.f32 %v2010, %v2193
      %v2331 = vadd.f32 %v2011, %v2195
      %v2332 = vadd.f32 %v2012, %v2197
      %v2333 = vadd.f32 %v2013, %v2199
      %v2334 = vadd.f32 %v2014, %v2201
      %v2335 = vadd.f32 %v2015, %v2203
      %v2336 = vadd.f32 %v2016, %v2205
      %v2337 = vadd.f32 %v2017, %v2207
      %v2338 = vadd.f32 %v2018, %v2209
      %v2339 = vadd.f32 %v2019, %v2211
      %2340 = vrot.lane.b32.xlu0 %v1956, 64
      %v2341 = vpop.permute.xlu0 %2340
      %2342 = vrot.lane.b32.xlu0 %v1957, 64
      %v2343 = vpop.permute.xlu0 %2342
      %2344 = vrot.lane.b32.xlu0 %v1958, 64
      %v2345 = vpop.permute.xlu0 %2344
      %2346 = vrot.lane.b32.xlu0 %v1959, 64
      %v2347 = vpop.permute.xlu0 %2346
      %2348 = vrot.lane.b32.xlu0 %v1960, 64
      %v2349 = vpop.permute.xlu0 %2348
      %2350 = vrot.lane.b32.xlu0 %v1961, 64
      %v2351 = vpop.permute.xlu0 %2350
      %2352 = vrot.lane.b32.xlu0 %v1962, 64
      %v2353 = vpop.permute.xlu0 %2352
      %2354 = vrot.lane.b32.xlu0 %v1963, 64
      %v2355 = vpop.permute.xlu0 %2354
      %2356 = vrot.lane.b32.xlu0 %v1964, 64
      %v2357 = vpop.permute.xlu0 %2356
      %2358 = vrot.lane.b32.xlu0 %v1965, 64
      %v2359 = vpop.permute.xlu0 %2358
      %2360 = vrot.lane.b32.xlu0 %v1966, 64
      %v2361 = vpop.permute.xlu0 %2360
      %2362 = vrot.lane.b32.xlu0 %v1967, 64
      %v2363 = vpop.permute.xlu0 %2362
      %2364 = vrot.lane.b32.xlu0 %v1968, 64
      %v2365 = vpop.permute.xlu0 %2364
      %2366 = vrot.lane.b32.xlu0 %v1969, 64
      %v2367 = vpop.permute.xlu0 %2366
      %2368 = vrot.lane.b32.xlu0 %v1970, 64
      %v2369 = vpop.permute.xlu0 %2368
      %2370 = vrot.lane.b32.xlu0 %v1971, 64
      %v2371 = vpop.permute.xlu0 %2370
      %2372 = vrot.lane.b32.xlu0 %v1972, 64
      %v2373 = vpop.permute.xlu0 %2372
      %2374 = vrot.lane.b32.xlu0 %v1973, 64
      %v2375 = vpop.permute.xlu0 %2374
      %2376 = vrot.lane.b32.xlu0 %v1974, 64
      %v2377 = vpop.permute.xlu0 %2376
      %2378 = vrot.lane.b32.xlu0 %v1975, 64
      %v2379 = vpop.permute.xlu0 %2378
      %2380 = vrot.lane.b32.xlu0 %v1976, 64
      %v2381 = vpop.permute.xlu0 %2380
      %2382 = vrot.lane.b32.xlu0 %v1977, 64
      %v2383 = vpop.permute.xlu0 %2382
      %2384 = vrot.lane.b32.xlu0 %v1978, 64
      %v2385 = vpop.permute.xlu0 %2384
      %2386 = vrot.lane.b32.xlu0 %v1979, 64
      %v2387 = vpop.permute.xlu0 %2386
      %2388 = vrot.lane.b32.xlu0 %v1980, 64
      %v2389 = vpop.permute.xlu0 %2388
      %2390 = vrot.lane.b32.xlu0 %v1981, 64
      %v2391 = vpop.permute.xlu0 %2390
      %2392 = vrot.lane.b32.xlu0 %v1982, 64
      %v2393 = vpop.permute.xlu0 %2392
      %2394 = vrot.lane.b32.xlu0 %v1983, 64
      %v2395 = vpop.permute.xlu0 %2394
      %2396 = vrot.lane.b32.xlu0 %v1984, 64
      %v2397 = vpop.permute.xlu0 %2396
      %2398 = vrot.lane.b32.xlu0 %v1985, 64
      %v2399 = vpop.permute.xlu0 %2398
      %2400 = vrot.lane.b32.xlu0 %v1986, 64
      %v2401 = vpop.permute.xlu0 %2400
      %2402 = vrot.lane.b32.xlu0 %v1987, 64
      %v2403 = vpop.permute.xlu0 %2402
      %2404 = vrot.lane.b32.xlu0 %v1988, 64
      %v2405 = vpop.permute.xlu0 %2404
      %2406 = vrot.lane.b32.xlu0 %v1989, 64
      %v2407 = vpop.permute.xlu0 %2406
      %2408 = vrot.lane.b32.xlu0 %v1990, 64
      %v2409 = vpop.permute.xlu0 %2408
      %2410 = vrot.lane.b32.xlu0 %v1991, 64
      %v2411 = vpop.permute.xlu0 %2410
      %2412 = vrot.lane.b32.xlu0 %v1992, 64
      %v2413 = vpop.permute.xlu0 %2412
      %2414 = vrot.lane.b32.xlu0 %v1993, 64
      %v2415 = vpop.permute.xlu0 %2414
      %2416 = vrot.lane.b32.xlu0 %v1994, 64
      %v2417 = vpop.permute.xlu0 %2416
      %2418 = vrot.lane.b32.xlu0 %v1995, 64
      %v2419 = vpop.permute.xlu0 %2418
      %2420 = vrot.lane.b32.xlu0 %v1996, 64
      %v2421 = vpop.permute.xlu0 %2420
      %2422 = vrot.lane.b32.xlu0 %v1997, 64
      %v2423 = vpop.permute.xlu0 %2422
      %2424 = vrot.lane.b32.xlu0 %v1998, 64
      %v2425 = vpop.permute.xlu0 %2424
      %2426 = vrot.lane.b32.xlu0 %v1999, 64
      %v2427 = vpop.permute.xlu0 %2426
      %2428 = vrot.lane.b32.xlu0 %v2000, 64
      %v2429 = vpop.permute.xlu0 %2428
      %2430 = vrot.lane.b32.xlu0 %v2001, 64
      %v2431 = vpop.permute.xlu0 %2430
      %2432 = vrot.lane.b32.xlu0 %v2002, 64
      %v2433 = vpop.permute.xlu0 %2432
      %2434 = vrot.lane.b32.xlu0 %v2003, 64
      %v2435 = vpop.permute.xlu0 %2434
      %2436 = vrot.lane.b32.xlu0 %v2004, 64
      %v2437 = vpop.permute.xlu0 %2436
      %2438 = vrot.lane.b32.xlu0 %v2005, 64
      %v2439 = vpop.permute.xlu0 %2438
      %2440 = vrot.lane.b32.xlu0 %v2006, 64
      %v2441 = vpop.permute.xlu0 %2440
      %2442 = vrot.lane.b32.xlu0 %v2007, 64
      %v2443 = vpop.permute.xlu0 %2442
      %2444 = vrot.lane.b32.xlu0 %v2008, 64
      %v2445 = vpop.permute.xlu0 %2444
      %2446 = vrot.lane.b32.xlu0 %v2009, 64
      %v2447 = vpop.permute.xlu0 %2446
      %2448 = vrot.lane.b32.xlu0 %v2010, 64
      %v2449 = vpop.permute.xlu0 %2448
      %2450 = vrot.lane.b32.xlu0 %v2011, 64
      %v2451 = vpop.permute.xlu0 %2450
      %2452 = vrot.lane.b32.xlu0 %v2012, 64
      %v2453 = vpop.permute.xlu0 %2452
      %2454 = vrot.lane.b32.xlu0 %v2013, 64
      %v2455 = vpop.permute.xlu0 %2454
      %2456 = vrot.lane.b32.xlu0 %v2014, 64
      %v2457 = vpop.permute.xlu0 %2456
      %2458 = vrot.lane.b32.xlu0 %v2015, 64
      %v2459 = vpop.permute.xlu0 %2458
      %2460 = vrot.lane.b32.xlu0 %v2016, 64
      %v2461 = vpop.permute.xlu0 %2460
      %2462 = vrot.lane.b32.xlu0 %v2017, 64
      %v2463 = vpop.permute.xlu0 %2462
      %2464 = vrot.lane.b32.xlu0 %v2018, 64
      %v2465 = vpop.permute.xlu0 %2464
      %2466 = vrot.lane.b32.xlu0 %v2019, 64
      %v2467 = vpop.permute.xlu0 %2466
      %v2532 = vadd.f32 %v2276, %v2341
      %v2533 = vadd.f32 %v2277, %v2343
      %v2534 = vadd.f32 %v2278, %v2345
      %v2535 = vadd.f32 %v2279, %v2347
      %v2536 = vadd.f32 %v2280, %v2349
      %v2537 = vadd.f32 %v2281, %v2351
      %v2538 = vadd.f32 %v2282, %v2353
      %v2539 = vadd.f32 %v2283, %v2355
      %v2540 = vadd.f32 %v2284, %v2357
      %v2541 = vadd.f32 %v2285, %v2359
      %v2542 = vadd.f32 %v2286, %v2361
      %v2543 = vadd.f32 %v2287, %v2363
      %v2544 = vadd.f32 %v2288, %v2365
      %v2545 = vadd.f32 %v2289, %v2367
      %v2546 = vadd.f32 %v2290, %v2369
      %v2547 = vadd.f32 %v2291, %v2371
      %v2548 = vadd.f32 %v2292, %v2373
      %v2549 = vadd.f32 %v2293, %v2375
      %v2550 = vadd.f32 %v2294, %v2377
      %v2551 = vadd.f32 %v2295, %v2379
      %v2552 = vadd.f32 %v2296, %v2381
      %v2553 = vadd.f32 %v2297, %v2383
      %v2554 = vadd.f32 %v2298, %v2385
      %v2555 = vadd.f32 %v2299, %v2387
      %v2556 = vadd.f32 %v2300, %v2389
      %v2557 = vadd.f32 %v2301, %v2391
      %v2558 = vadd.f32 %v2302, %v2393
      %v2559 = vadd.f32 %v2303, %v2395
      %v2560 = vadd.f32 %v2304, %v2397
      %v2561 = vadd.f32 %v2305, %v2399
      %v2562 = vadd.f32 %v2306, %v2401
      %v2563 = vadd.f32 %v2307, %v2403
      %v2564 = vadd.f32 %v2308, %v2405
      %v2565 = vadd.f32 %v2309, %v2407
      %v2566 = vadd.f32 %v2310, %v2409
      %v2567 = vadd.f32 %v2311, %v2411
      %v2568 = vadd.f32 %v2312, %v2413
      %v2569 = vadd.f32 %v2313, %v2415
      %v2570 = vadd.f32 %v2314, %v2417
      %v2571 = vadd.f32 %v2315, %v2419
      %v2572 = vadd.f32 %v2316, %v2421
      %v2573 = vadd.f32 %v2317, %v2423
      %v2574 = vadd.f32 %v2318, %v2425
      %v2575 = vadd.f32 %v2319, %v2427
      %v2576 = vadd.f32 %v2320, %v2429
      %v2577 = vadd.f32 %v2321, %v2431
      %v2578 = vadd.f32 %v2322, %v2433
      %v2579 = vadd.f32 %v2323, %v2435
      %v2580 = vadd.f32 %v2324, %v2437
      %v2581 = vadd.f32 %v2325, %v2439
      %v2582 = vadd.f32 %v2326, %v2441
      %v2583 = vadd.f32 %v2327, %v2443
      %v2584 = vadd.f32 %v2328, %v2445
      %v2585 = vadd.f32 %v2329, %v2447
      %v2586 = vadd.f32 %v2330, %v2449
      %v2587 = vadd.f32 %v2331, %v2451
      %v2588 = vadd.f32 %v2332, %v2453
      %v2589 = vadd.f32 %v2333, %v2455
      %v2590 = vadd.f32 %v2334, %v2457
      %v2591 = vadd.f32 %v2335, %v2459
      %v2592 = vadd.f32 %v2336, %v2461
      %v2593 = vadd.f32 %v2337, %v2463
      %v2594 = vadd.f32 %v2338, %v2465
      %v2595 = vadd.f32 %v2339, %v2467
      %v2596 = vld [vmem:[%s7] sm:$0xff]
      %v2597 = vld [vmem:[%s7 + $0x8] sm:$0xff]
      %v2598 = vld [vmem:[%s7 + $0x10] sm:$0xff]
      %v2599 = vld [vmem:[%s7 + $0x18] sm:$0xff]
      %vm2600 = vcmask 261120
      %v2602 = vsel %vm2600, %v2532, 0
      %v2605 = vsel %vm2600, %v2533, 0
      %v2608 = vsel %vm2600, %v2534, 0
      %v2611 = vsel %vm2600, %v2535, 0
      %v2614 = vsel %vm2600, %v2536, 0
      %v2617 = vsel %vm2600, %v2537, 0
      %v2620 = vsel %vm2600, %v2538, 0
      %v2623 = vsel %vm2600, %v2539, 0
      %v2626 = vsel %vm2600, %v2540, 0
      %v2629 = vsel %vm2600, %v2541, 0
      %v2632 = vsel %vm2600, %v2542, 0
      %v2635 = vsel %vm2600, %v2543, 0
      %v2638 = vsel %vm2600, %v2544, 0
      %v2641 = vsel %vm2600, %v2545, 0
      %v2644 = vsel %vm2600, %v2546, 0
      %v2647 = vsel %vm2600, %v2547, 0
      %v2650 = vsel %vm2600, %v2548, 0
      %v2653 = vsel %vm2600, %v2549, 0
      %v2656 = vsel %vm2600, %v2550, 0
      %v2659 = vsel %vm2600, %v2551, 0
      %v2662 = vsel %vm2600, %v2552, 0
      %v2665 = vsel %vm2600, %v2553, 0
      %v2668 = vsel %vm2600, %v2554, 0
      %v2671 = vsel %vm2600, %v2555, 0
      %v2674 = vsel %vm2600, %v2556, 0
      %v2677 = vsel %vm2600, %v2557, 0
      %v2680 = vsel %vm2600, %v2558, 0
      %v2683 = vsel %vm2600, %v2559, 0
      %v2686 = vsel %vm2600, %v2560, 0
      %v2689 = vsel %vm2600, %v2561, 0
      %v2692 = vsel %vm2600, %v2562, 0
      %v2695 = vsel %vm2600, %v2563, 0
      %v2698 = vsel %vm2600, %v2564, 0
      %v2701 = vsel %vm2600, %v2565, 0
      %v2704 = vsel %vm2600, %v2566, 0
      %v2707 = vsel %vm2600, %v2567, 0
      %v2710 = vsel %vm2600, %v2568, 0
      %v2713 = vsel %vm2600, %v2569, 0
      %v2716 = vsel %vm2600, %v2570, 0
      %v2719 = vsel %vm2600, %v2571, 0
      %v2722 = vsel %vm2600, %v2572, 0
      %v2725 = vsel %vm2600, %v2573, 0
      %v2728 = vsel %vm2600, %v2574, 0
      %v2731 = vsel %vm2600, %v2575, 0
      %v2734 = vsel %vm2600, %v2576, 0
      %v2737 = vsel %vm2600, %v2577, 0
      %v2740 = vsel %vm2600, %v2578, 0
      %v2743 = vsel %vm2600, %v2579, 0
      %v2746 = vsel %vm2600, %v2580, 0
      %v2749 = vsel %vm2600, %v2581, 0
      %v2752 = vsel %vm2600, %v2582, 0
      %v2755 = vsel %vm2600, %v2583, 0
      %v2758 = vsel %vm2600, %v2584, 0
      %v2761 = vsel %vm2600, %v2585, 0
      %v2764 = vsel %vm2600, %v2586, 0
      %v2767 = vsel %vm2600, %v2587, 0
      %v2770 = vsel %vm2600, %v2588, 0
      %v2773 = vsel %vm2600, %v2589, 0
      %v2776 = vsel %vm2600, %v2590, 0
      %v2779 = vsel %vm2600, %v2591, 0
      %v2782 = vsel %vm2600, %v2592, 0
      %v2785 = vsel %vm2600, %v2593, 0
      %v2788 = vsel %vm2600, %v2594, 0
      %v2791 = vsel %vm2600, %v2595, 0
      %2793 = vmatprep.subr.mxu0 0.0
      %2794 = vmatpush1.msra.mxu0 0.0
      %2795 = vmatprep.subr.mxu0 0.0
      %2796 = vmatpush1.msra.mxu0 0.0
      %2797 = vmatprep.subr.mxu0 0.0
      %2798 = vmatpush1.msra.mxu0 0.0
      %2799 = vmatprep.subr.mxu0 0.0
      %2800 = vmatpush1.msra.mxu0 0.0
      %2801 = vmatprep.subr.mxu0 0.0
      %2802 = vmatpush1.msra.mxu0 0.0
      %2803 = vmatprep.subr.mxu0 0.0
      %2804 = vmatpush1.msra.mxu0 0.0
      %2805 = vmatprep.subr.mxu0 0.0
      %2806 = vmatpush1.msra.mxu0 0.0
      %2807 = vmatprep.subr.mxu0 0.0
      %2808 = vmatpush1.msra.mxu0 0.0
      %2809 = vmatprep.subr.mxu0 0.0
      %2810 = vmatpush1.msra.mxu0 0.0
      %2811 = vmatprep.subr.mxu0 0.0
      %2812 = vmatpush1.msra.mxu0 0.0
      %2813 = vmatprep.subr.mxu0 0.0
      %2814 = vmatpush1.msra.mxu0 0.0
      %2815 = vmatprep.subr.mxu0 0.0
      %2816 = vmatpush1.msra.mxu0 0.0
      %2817 = vmatprep.subr.mxu0 0.0
      %2818 = vmatpush1.msra.mxu0 %v2599
      %2819 = vmatprep.subr.mxu0 0.0
      %2820 = vmatpush1.msra.mxu0 %v2598
      %2821 = vmatprep.subr.mxu0 0.0
      %2822 = vmatpush1.msra.mxu0 %v2597
      %2823 = vmatprep.subr.mxu0 0.0
      %2824 = vmatpush1.msra.mxu0 %v2596
      %2825 = vmatprep.subr.mxu0 0.0
      %2826 = vmatpush2.msra.mxu0 0.0
      %2827 = vmatprep.subr.mxu0 0.0
      %2828 = vmatpush2.msra.mxu0 0.0
      %2829 = vmatprep.subr.mxu0 0.0
      %2830 = vmatpush2.msra.mxu0 0.0
      %2831 = vmatprep.subr.mxu0 0.0
      %2832 = vmatpush2.msra.mxu0 0.0
      %2833 = vmatprep.subr.mxu0 0.0
      %2834 = vmatpush2.msra.mxu0 0.0
      %2835 = vmatprep.subr.mxu0 0.0
      %2836 = vmatpush2.msra.mxu0 0.0
      %2837 = vmatprep.subr.mxu0 0.0
      %2838 = vmatpush2.msra.mxu0 0.0
      %2839 = vmatprep.subr.mxu0 0.0
      %2840 = vmatpush2.msra.mxu0 0.0
      %2841 = vmatprep.subr.mxu0 0.0
      %2842 = vmatpush2.msra.mxu0 0.0
      %2843 = vmatprep.subr.mxu0 0.0
      %2844 = vmatpush2.msra.mxu0 0.0
      %2845 = vmatprep.subr.mxu0 0.0
      %2846 = vmatpush2.msra.mxu0 0.0
      %2847 = vmatprep.subr.mxu0 0.0
      %2848 = vmatpush2.msra.mxu0 0.0
      %2849 = vmatprep.subr.mxu0 0.0
      %2850 = vmatpush2.msra.mxu0 0.0
      %2851 = vmatprep.subr.mxu0 0.0
      %2852 = vmatpush2.msra.mxu0 0.0
      %2853 = vmatprep.subr.mxu0 0.0
      %2854 = vmatpush2.msra.mxu0 0.0
      %2855 = vmatprep.subr.mxu0 0.0
      %2856 = vmatpush2.msra.mxu0 0.0
      %2857 = vmatprep.mubr.f32.mxu0 0.0
      %2858 = vmatmul.mubr.f32.gmra.mxu0 %v2602
      %v2859 = vpop.f32.mrf.mxu0
      %v2860 = vadd.f32 0.0, %v2859
      %v2861 = vpop.f32.mrf.mxu0
      %2862 = vmatprep.mubr.f32.mxu0 0.0
      %2863 = vmatmul.mubr.f32.gmra.mxu0 %v2605
      %v2864 = vpop.f32.mrf.mxu0
      %v2865 = vadd.f32 0.0, %v2864
      %v2866 = vpop.f32.mrf.mxu0
      %2867 = vmatprep.mubr.f32.mxu0 0.0
      %2868 = vmatmul.mubr.f32.gmra.mxu0 %v2608
      %v2869 = vpop.f32.mrf.mxu0
      %v2870 = vadd.f32 0.0, %v2869
      %v2871 = vpop.f32.mrf.mxu0
      %2872 = vmatprep.mubr.f32.mxu0 0.0
      %2873 = vmatmul.mubr.f32.gmra.mxu0 %v2611
      %v2874 = vpop.f32.mrf.mxu0
      %v2875 = vadd.f32 0.0, %v2874
      %v2876 = vpop.f32.mrf.mxu0
      %2877 = vmatprep.mubr.f32.mxu0 0.0
      %2878 = vmatmul.mubr.f32.gmra.mxu0 %v2614
      %v2879 = vpop.f32.mrf.mxu0
      %v2880 = vadd.f32 0.0, %v2879
      %v2881 = vpop.f32.mrf.mxu0
      %2882 = vmatprep.mubr.f32.mxu0 0.0
      %2883 = vmatmul.mubr.f32.gmra.mxu0 %v2617
      %v2884 = vpop.f32.mrf.mxu0
      %v2885 = vadd.f32 0.0, %v2884
      %v2886 = vpop.f32.mrf.mxu0
      %2887 = vmatprep.mubr.f32.mxu0 0.0
      %2888 = vmatmul.mubr.f32.gmra.mxu0 %v2620
      %v2889 = vpop.f32.mrf.mxu0
      %v2890 = vadd.f32 0.0, %v2889
      %v2891 = vpop.f32.mrf.mxu0
      %2892 = vmatprep.mubr.f32.mxu0 0.0
      %2893 = vmatmul.mubr.f32.gmra.mxu0 %v2623
      %v2894 = vpop.f32.mrf.mxu0
      %v2895 = vadd.f32 0.0, %v2894
      %v2896 = vpop.f32.mrf.mxu0
      %2897 = vmatprep.mubr.f32.mxu0 0.0
      %2898 = vmatmul.mubr.f32.gmra.mxu0 %v2626
      %v2899 = vpop.f32.mrf.mxu0
      %v2900 = vadd.f32 0.0, %v2899
      %v2901 = vpop.f32.mrf.mxu0
      %2902 = vmatprep.mubr.f32.mxu0 0.0
      %2903 = vmatmul.mubr.f32.gmra.mxu0 %v2629
      %v2904 = vpop.f32.mrf.mxu0
      %v2905 = vadd.f32 0.0, %v2904
      %v2906 = vpop.f32.mrf.mxu0
      %2907 = vmatprep.mubr.f32.mxu0 0.0
      %2908 = vmatmul.mubr.f32.gmra.mxu0 %v2632
      %v2909 = vpop.f32.mrf.mxu0
      %v2910 = vadd.f32 0.0, %v2909
      %v2911 = vpop.f32.mrf.mxu0
      %2912 = vmatprep.mubr.f32.mxu0 0.0
      %2913 = vmatmul.mubr.f32.gmra.mxu0 %v2635
      %v2914 = vpop.f32.mrf.mxu0
      %v2915 = vadd.f32 0.0, %v2914
      %v2916 = vpop.f32.mrf.mxu0
      %2917 = vmatprep.mubr.f32.mxu0 0.0
      %2918 = vmatmul.mubr.f32.gmra.mxu0 %v2638
      %v2919 = vpop.f32.mrf.mxu0
      %v2920 = vadd.f32 0.0, %v2919
      %v2921 = vpop.f32.mrf.mxu0
      %2922 = vmatprep.mubr.f32.mxu0 0.0
      %2923 = vmatmul.mubr.f32.gmra.mxu0 %v2641
      %v2924 = vpop.f32.mrf.mxu0
      %v2925 = vadd.f32 0.0, %v2924
      %v2926 = vpop.f32.mrf.mxu0
      %2927 = vmatprep.mubr.f32.mxu0 0.0
      %2928 = vmatmul.mubr.f32.gmra.mxu0 %v2644
      %v2929 = vpop.f32.mrf.mxu0
      %v2930 = vadd.f32 0.0, %v2929
      %v2931 = vpop.f32.mrf.mxu0
      %2932 = vmatprep.mubr.f32.mxu0 0.0
      %2933 = vmatmul.mubr.f32.gmra.mxu0 %v2647
      %v2934 = vpop.f32.mrf.mxu0
      %v2935 = vadd.f32 0.0, %v2934
      %v2936 = vpop.f32.mrf.mxu0
      %2937 = vmatprep.mubr.f32.mxu0 0.0
      %2938 = vmatmul.mubr.f32.gmra.mxu0 %v2650
      %v2939 = vpop.f32.mrf.mxu0
      %v2940 = vadd.f32 0.0, %v2939
      %v2941 = vpop.f32.mrf.mxu0
      %2942 = vmatprep.mubr.f32.mxu0 0.0
      %2943 = vmatmul.mubr.f32.gmra.mxu0 %v2653
      %v2944 = vpop.f32.mrf.mxu0
      %v2945 = vadd.f32 0.0, %v2944
      %v2946 = vpop.f32.mrf.mxu0
      %2947 = vmatprep.mubr.f32.mxu0 0.0
      %2948 = vmatmul.mubr.f32.gmra.mxu0 %v2656
      %v2949 = vpop.f32.mrf.mxu0
      %v2950 = vadd.f32 0.0, %v2949
      %v2951 = vpop.f32.mrf.mxu0
      %2952 = vmatprep.mubr.f32.mxu0 0.0
      %2953 = vmatmul.mubr.f32.gmra.mxu0 %v2659
      %v2954 = vpop.f32.mrf.mxu0
      %v2955 = vadd.f32 0.0, %v2954
      %v2956 = vpop.f32.mrf.mxu0
      %2957 = vmatprep.mubr.f32.mxu0 0.0
      %2958 = vmatmul.mubr.f32.gmra.mxu0 %v2662
      %v2959 = vpop.f32.mrf.mxu0
      %v2960 = vadd.f32 0.0, %v2959
      %v2961 = vpop.f32.mrf.mxu0
      %2962 = vmatprep.mubr.f32.mxu0 0.0
      %2963 = vmatmul.mubr.f32.gmra.mxu0 %v2665
      %v2964 = vpop.f32.mrf.mxu0
      %v2965 = vadd.f32 0.0, %v2964
      %v2966 = vpop.f32.mrf.mxu0
      %2967 = vmatprep.mubr.f32.mxu0 0.0
      %2968 = vmatmul.mubr.f32.gmra.mxu0 %v2668
      %v2969 = vpop.f32.mrf.mxu0
      %v2970 = vadd.f32 0.0, %v2969
      %v2971 = vpop.f32.mrf.mxu0
      %2972 = vmatprep.mubr.f32.mxu0 0.0
      %2973 = vmatmul.mubr.f32.gmra.mxu0 %v2671
      %v2974 = vpop.f32.mrf.mxu0
      %v2975 = vadd.f32 0.0, %v2974
      %v2976 = vpop.f32.mrf.mxu0
      %2977 = vmatprep.mubr.f32.mxu0 0.0
      %2978 = vmatmul.mubr.f32.gmra.mxu0 %v2674
      %v2979 = vpop.f32.mrf.mxu0
      %v2980 = vadd.f32 0.0, %v2979
      %v2981 = vpop.f32.mrf.mxu0
      %2982 = vmatprep.mubr.f32.mxu0 0.0
      %2983 = vmatmul.mubr.f32.gmra.mxu0 %v2677
      %v2984 = vpop.f32.mrf.mxu0
      %v2985 = vadd.f32 0.0, %v2984
      %v2986 = vpop.f32.mrf.mxu0
      %2987 = vmatprep.mubr.f32.mxu0 0.0
      %2988 = vmatmul.mubr.f32.gmra.mxu0 %v2680
      %v2989 = vpop.f32.mrf.mxu0
      %v2990 = vadd.f32 0.0, %v2989
      %v2991 = vpop.f32.mrf.mxu0
      %2992 = vmatprep.mubr.f32.mxu0 0.0
      %2993 = vmatmul.mubr.f32.gmra.mxu0 %v2683
      %v2994 = vpop.f32.mrf.mxu0
      %v2995 = vadd.f32 0.0, %v2994
      %v2996 = vpop.f32.mrf.mxu0
      %2997 = vmatprep.mubr.f32.mxu0 0.0
      %2998 = vmatmul.mubr.f32.gmra.mxu0 %v2686
      %v2999 = vpop.f32.mrf.mxu0
      %v3000 = vadd.f32 0.0, %v2999
      %v3001 = vpop.f32.mrf.mxu0
      %3002 = vmatprep.mubr.f32.mxu0 0.0
      %3003 = vmatmul.mubr.f32.gmra.mxu0 %v2689
      %v3004 = vpop.f32.mrf.mxu0
      %v3005 = vadd.f32 0.0, %v3004
      %v3006 = vpop.f32.mrf.mxu0
      %3007 = vmatprep.mubr.f32.mxu0 0.0
      %3008 = vmatmul.mubr.f32.gmra.mxu0 %v2692
      %v3009 = vpop.f32.mrf.mxu0
      %v3010 = vadd.f32 0.0, %v3009
      %v3011 = vpop.f32.mrf.mxu0
      %3012 = vmatprep.mubr.f32.mxu0 0.0
      %3013 = vmatmul.mubr.f32.gmra.mxu0 %v2695
      %v3014 = vpop.f32.mrf.mxu0
      %v3015 = vadd.f32 0.0, %v3014
      %v3016 = vpop.f32.mrf.mxu0
      %3017 = vmatprep.mubr.f32.mxu0 0.0
      %3018 = vmatmul.mubr.f32.gmra.mxu0 %v2698
      %v3019 = vpop.f32.mrf.mxu0
      %v3020 = vadd.f32 0.0, %v3019
      %v3021 = vpop.f32.mrf.mxu0
      %3022 = vmatprep.mubr.f32.mxu0 0.0
      %3023 = vmatmul.mubr.f32.gmra.mxu0 %v2701
      %v3024 = vpop.f32.mrf.mxu0
      %v3025 = vadd.f32 0.0, %v3024
      %v3026 = vpop.f32.mrf.mxu0
      %3027 = vmatprep.mubr.f32.mxu0 0.0
      %3028 = vmatmul.mubr.f32.gmra.mxu0 %v2704
      %v3029 = vpop.f32.mrf.mxu0
      %v3030 = vadd.f32 0.0, %v3029
      %v3031 = vpop.f32.mrf.mxu0
      %3032 = vmatprep.mubr.f32.mxu0 0.0
      %3033 = vmatmul.mubr.f32.gmra.mxu0 %v2707
      %v3034 = vpop.f32.mrf.mxu0
      %v3035 = vadd.f32 0.0, %v3034
      %v3036 = vpop.f32.mrf.mxu0
      %3037 = vmatprep.mubr.f32.mxu0 0.0
      %3038 = vmatmul.mubr.f32.gmra.mxu0 %v2710
      %v3039 = vpop.f32.mrf.mxu0
      %v3040 = vadd.f32 0.0, %v3039
      %v3041 = vpop.f32.mrf.mxu0
      %3042 = vmatprep.mubr.f32.mxu0 0.0
      %3043 = vmatmul.mubr.f32.gmra.mxu0 %v2713
      %v3044 = vpop.f32.mrf.mxu0
      %v3045 = vadd.f32 0.0, %v3044
      %v3046 = vpop.f32.mrf.mxu0
      %3047 = vmatprep.mubr.f32.mxu0 0.0
      %3048 = vmatmul.mubr.f32.gmra.mxu0 %v2716
      %v3049 = vpop.f32.mrf.mxu0
      %v3050 = vadd.f32 0.0, %v3049
      %v3051 = vpop.f32.mrf.mxu0
      %3052 = vmatprep.mubr.f32.mxu0 0.0
      %3053 = vmatmul.mubr.f32.gmra.mxu0 %v2719
      %v3054 = vpop.f32.mrf.mxu0
      %v3055 = vadd.f32 0.0, %v3054
      %v3056 = vpop.f32.mrf.mxu0
      %3057 = vmatprep.mubr.f32.mxu0 0.0
      %3058 = vmatmul.mubr.f32.gmra.mxu0 %v2722
      %v3059 = vpop.f32.mrf.mxu0
      %v3060 = vadd.f32 0.0, %v3059
      %v3061 = vpop.f32.mrf.mxu0
      %3062 = vmatprep.mubr.f32.mxu0 0.0
      %3063 = vmatmul.mubr.f32.gmra.mxu0 %v2725
      %v3064 = vpop.f32.mrf.mxu0
      %v3065 = vadd.f32 0.0, %v3064
      %v3066 = vpop.f32.mrf.mxu0
      %3067 = vmatprep.mubr.f32.mxu0 0.0
      %3068 = vmatmul.mubr.f32.gmra.mxu0 %v2728
      %v3069 = vpop.f32.mrf.mxu0
      %v3070 = vadd.f32 0.0, %v3069
      %v3071 = vpop.f32.mrf.mxu0
      %3072 = vmatprep.mubr.f32.mxu0 0.0
      %3073 = vmatmul.mubr.f32.gmra.mxu0 %v2731
      %v3074 = vpop.f32.mrf.mxu0
      %v3075 = vadd.f32 0.0, %v3074
      %v3076 = vpop.f32.mrf.mxu0
      %3077 = vmatprep.mubr.f32.mxu0 0.0
      %3078 = vmatmul.mubr.f32.gmra.mxu0 %v2734
      %v3079 = vpop.f32.mrf.mxu0
      %v3080 = vadd.f32 0.0, %v3079
      %v3081 = vpop.f32.mrf.mxu0
      %3082 = vmatprep.mubr.f32.mxu0 0.0
      %3083 = vmatmul.mubr.f32.gmra.mxu0 %v2737
      %v3084 = vpop.f32.mrf.mxu0
      %v3085 = vadd.f32 0.0, %v3084
      %v3086 = vpop.f32.mrf.mxu0
      %3087 = vmatprep.mubr.f32.mxu0 0.0
      %3088 = vmatmul.mubr.f32.gmra.mxu0 %v2740
      %v3089 = vpop.f32.mrf.mxu0
      %v3090 = vadd.f32 0.0, %v3089
      %v3091 = vpop.f32.mrf.mxu0
      %3092 = vmatprep.mubr.f32.mxu0 0.0
      %3093 = vmatmul.mubr.f32.gmra.mxu0 %v2743
      %v3094 = vpop.f32.mrf.mxu0
      %v3095 = vadd.f32 0.0, %v3094
      %v3096 = vpop.f32.mrf.mxu0
      %3097 = vmatprep.mubr.f32.mxu0 0.0
      %3098 = vmatmul.mubr.f32.gmra.mxu0 %v2746
      %v3099 = vpop.f32.mrf.mxu0
      %v3100 = vadd.f32 0.0, %v3099
      %v3101 = vpop.f32.mrf.mxu0
      %3102 = vmatprep.mubr.f32.mxu0 0.0
      %3103 = vmatmul.mubr.f32.gmra.mxu0 %v2749
      %v3104 = vpop.f32.mrf.mxu0
      %v3105 = vadd.f32 0.0, %v3104
      %v3106 = vpop.f32.mrf.mxu0
      %3107 = vmatprep.mubr.f32.mxu0 0.0
      %3108 = vmatmul.mubr.f32.gmra.mxu0 %v2752
      %v3109 = vpop.f32.mrf.mxu0
      %v3110 = vadd.f32 0.0, %v3109
      %v3111 = vpop.f32.mrf.mxu0
      %3112 = vmatprep.mubr.f32.mxu0 0.0
      %3113 = vmatmul.mubr.f32.gmra.mxu0 %v2755
      %v3114 = vpop.f32.mrf.mxu0
      %v3115 = vadd.f32 0.0, %v3114
      %v3116 = vpop.f32.mrf.mxu0
      %3117 = vmatprep.mubr.f32.mxu0 0.0
      %3118 = vmatmul.mubr.f32.gmra.mxu0 %v2758
      %v3119 = vpop.f32.mrf.mxu0
      %v3120 = vadd.f32 0.0, %v3119
      %v3121 = vpop.f32.mrf.mxu0
      %3122 = vmatprep.mubr.f32.mxu0 0.0
      %3123 = vmatmul.mubr.f32.gmra.mxu0 %v2761
      %v3124 = vpop.f32.mrf.mxu0
      %v3125 = vadd.f32 0.0, %v3124
      %v3126 = vpop.f32.mrf.mxu0
      %3127 = vmatprep.mubr.f32.mxu0 0.0
      %3128 = vmatmul.mubr.f32.gmra.mxu0 %v2764
      %v3129 = vpop.f32.mrf.mxu0
      %v3130 = vadd.f32 0.0, %v3129
      %v3131 = vpop.f32.mrf.mxu0
      %3132 = vmatprep.mubr.f32.mxu0 0.0
      %3133 = vmatmul.mubr.f32.gmra.mxu0 %v2767
      %v3134 = vpop.f32.mrf.mxu0
      %v3135 = vadd.f32 0.0, %v3134
      %v3136 = vpop.f32.mrf.mxu0
      %3137 = vmatprep.mubr.f32.mxu0 0.0
      %3138 = vmatmul.mubr.f32.gmra.mxu0 %v2770
      %v3139 = vpop.f32.mrf.mxu0
      %v3140 = vadd.f32 0.0, %v3139
      %v3141 = vpop.f32.mrf.mxu0
      %3142 = vmatprep.mubr.f32.mxu0 0.0
      %3143 = vmatmul.mubr.f32.gmra.mxu0 %v2773
      %v3144 = vpop.f32.mrf.mxu0
      %v3145 = vadd.f32 0.0, %v3144
      %v3146 = vpop.f32.mrf.mxu0
      %3147 = vmatprep.mubr.f32.mxu0 0.0
      %3148 = vmatmul.mubr.f32.gmra.mxu0 %v2776
      %v3149 = vpop.f32.mrf.mxu0
      %v3150 = vadd.f32 0.0, %v3149
      %v3151 = vpop.f32.mrf.mxu0
      %3152 = vmatprep.mubr.f32.mxu0 0.0
      %3153 = vmatmul.mubr.f32.gmra.mxu0 %v2779
      %v3154 = vpop.f32.mrf.mxu0
      %v3155 = vadd.f32 0.0, %v3154
      %v3156 = vpop.f32.mrf.mxu0
      %3157 = vmatprep.mubr.f32.mxu0 0.0
      %3158 = vmatmul.mubr.f32.gmra.mxu0 %v2782
      %v3159 = vpop.f32.mrf.mxu0
      %v3160 = vadd.f32 0.0, %v3159
      %v3161 = vpop.f32.mrf.mxu0
      %3162 = vmatprep.mubr.f32.mxu0 0.0
      %3163 = vmatmul.mubr.f32.gmra.mxu0 %v2785
      %v3164 = vpop.f32.mrf.mxu0
      %v3165 = vadd.f32 0.0, %v3164
      %v3166 = vpop.f32.mrf.mxu0
      %3167 = vmatprep.mubr.f32.mxu0 0.0
      %3168 = vmatmul.mubr.f32.gmra.mxu0 %v2788
      %v3169 = vpop.f32.mrf.mxu0
      %v3170 = vadd.f32 0.0, %v3169
      %v3171 = vpop.f32.mrf.mxu0
      %3172 = vmatprep.mubr.f32.mxu0 0.0
      %3173 = vmatmul.mubr.f32.gmra.mxu0 %v2791
      %v3174 = vpop.f32.mrf.mxu0
      %v3175 = vadd.f32 0.0, %v3174
      %v3176 = vpop.f32.mrf.mxu0
      %3177 = vdwg.mxu0
      %v3178 = vadd.f32 %v1510, %v2860
      %v3179 = vadd.f32 %v1513, %v2865
      %v3180 = vadd.f32 %v1518, %v2870
      %v3181 = vadd.f32 %v1521, %v2875
      %v3182 = vadd.f32 %v1526, %v2880
      %v3183 = vadd.f32 %v1529, %v2885
      %v3184 = vadd.f32 %v1534, %v2890
      %v3185 = vadd.f32 %v1537, %v2895
      %v3186 = vadd.f32 %v1542, %v2900
      %v3187 = vadd.f32 %v1545, %v2905
      %v3188 = vadd.f32 %v1550, %v2910
      %v3189 = vadd.f32 %v1553, %v2915
      %v3190 = vadd.f32 %v1558, %v2920
      %v3191 = vadd.f32 %v1561, %v2925
      %v3192 = vadd.f32 %v1566, %v2930
      %v3193 = vadd.f32 %v1569, %v2935
      %v3194 = vadd.f32 %v1574, %v2940
      %v3195 = vadd.f32 %v1577, %v2945
      %v3196 = vadd.f32 %v1582, %v2950
      %v3197 = vadd.f32 %v1585, %v2955
      %v3198 = vadd.f32 %v1590, %v2960
      %v3199 = vadd.f32 %v1593, %v2965
      %v3200 = vadd.f32 %v1598, %v2970
      %v3201 = vadd.f32 %v1601, %v2975
      %v3202 = vadd.f32 %v1606, %v2980
      %v3203 = vadd.f32 %v1609, %v2985
      %v3204 = vadd.f32 %v1614, %v2990
      %v3205 = vadd.f32 %v1617, %v2995
      %v3206 = vadd.f32 %v1622, %v3000
      %v3207 = vadd.f32 %v1625, %v3005
      %v3208 = vadd.f32 %v1630, %v3010
      %v3209 = vadd.f32 %v1633, %v3015
      %v3210 = vadd.f32 %v1638, %v3020
      %v3211 = vadd.f32 %v1641, %v3025
      %v3212 = vadd.f32 %v1646, %v3030
      %v3213 = vadd.f32 %v1649, %v3035
      %v3214 = vadd.f32 %v1654, %v3040
      %v3215 = vadd.f32 %v1657, %v3045
      %v3216 = vadd.f32 %v1662, %v3050
      %v3217 = vadd.f32 %v1665, %v3055
      %v3218 = vadd.f32 %v1670, %v3060
      %v3219 = vadd.f32 %v1673, %v3065
      %v3220 = vadd.f32 %v1678, %v3070
      %v3221 = vadd.f32 %v1681, %v3075
      %v3222 = vadd.f32 %v1686, %v3080
      %v3223 = vadd.f32 %v1689, %v3085
      %v3224 = vadd.f32 %v1694, %v3090
      %v3225 = vadd.f32 %v1697, %v3095
      %v3226 = vadd.f32 %v1702, %v3100
      %v3227 = vadd.f32 %v1705, %v3105
      %v3228 = vadd.f32 %v1710, %v3110
      %v3229 = vadd.f32 %v1713, %v3115
      %v3230 = vadd.f32 %v1718, %v3120
      %v3231 = vadd.f32 %v1721, %v3125
      %v3232 = vadd.f32 %v1726, %v3130
      %v3233 = vadd.f32 %v1729, %v3135
      %v3234 = vadd.f32 %v1734, %v3140
      %v3235 = vadd.f32 %v1737, %v3145
      %v3236 = vadd.f32 %v1742, %v3150
      %v3237 = vadd.f32 %v1745, %v3155
      %v3238 = vadd.f32 %v1750, %v3160
      %v3239 = vadd.f32 %v1753, %v3165
      %v3240 = vadd.f32 %v1758, %v3170
      %v3241 = vadd.f32 %v1761, %v3175
      %v3242 = vld [vmem:[%s8] sm:$0x1]
      %v3244 = vlaneseq
      %v3245 = vshrl.u32 %v3244, 7
      %v3246 = vsub.s32 0, %v3245
      %v3247 = vrot.slane %v3242, %v3246
      %v3249 = vadd.f32 %v3178, %v3247
      %v3250 = vadd.f32 %v3179, %v3247
      %v3251 = vadd.f32 %v3180, %v3247
      %v3252 = vadd.f32 %v3181, %v3247
      %v3253 = vadd.f32 %v3182, %v3247
      %v3254 = vadd.f32 %v3183, %v3247
      %v3255 = vadd.f32 %v3184, %v3247
      %v3256 = vadd.f32 %v3185, %v3247
      %v3257 = vadd.f32 %v3186, %v3247
      %v3258 = vadd.f32 %v3187, %v3247
      %v3259 = vadd.f32 %v3188, %v3247
      %v3260 = vadd.f32 %v3189, %v3247
      %v3261 = vadd.f32 %v3190, %v3247
      %v3262 = vadd.f32 %v3191, %v3247
      %v3263 = vadd.f32 %v3192, %v3247
      %v3264 = vadd.f32 %v3193, %v3247
      %v3265 = vadd.f32 %v3194, %v3247
      %v3266 = vadd.f32 %v3195, %v3247
      %v3267 = vadd.f32 %v3196, %v3247
      %v3268 = vadd.f32 %v3197, %v3247
      %v3269 = vadd.f32 %v3198, %v3247
      %v3270 = vadd.f32 %v3199, %v3247
      %v3271 = vadd.f32 %v3200, %v3247
      %v3272 = vadd.f32 %v3201, %v3247
      %v3273 = vadd.f32 %v3202, %v3247
      %v3274 = vadd.f32 %v3203, %v3247
      %v3275 = vadd.f32 %v3204, %v3247
      %v3276 = vadd.f32 %v3205, %v3247
      %v3277 = vadd.f32 %v3206, %v3247
      %v3278 = vadd.f32 %v3207, %v3247
      %v3279 = vadd.f32 %v3208, %v3247
      %v3280 = vadd.f32 %v3209, %v3247
      %v3281 = vadd.f32 %v3210, %v3247
      %v3282 = vadd.f32 %v3211, %v3247
      %v3283 = vadd.f32 %v3212, %v3247
      %v3284 = vadd.f32 %v3213, %v3247
      %v3285 = vadd.f32 %v3214, %v3247
      %v3286 = vadd.f32 %v3215, %v3247
      %v3287 = vadd.f32 %v3216, %v3247
      %v3288 = vadd.f32 %v3217, %v3247
      %v3289 = vadd.f32 %v3218, %v3247
      %v3290 = vadd.f32 %v3219, %v3247
      %v3291 = vadd.f32 %v3220, %v3247
      %v3292 = vadd.f32 %v3221, %v3247
      %v3293 = vadd.f32 %v3222, %v3247
      %v3294 = vadd.f32 %v3223, %v3247
      %v3295 = vadd.f32 %v3224, %v3247
      %v3296 = vadd.f32 %v3225, %v3247
      %v3297 = vadd.f32 %v3226, %v3247
      %v3298 = vadd.f32 %v3227, %v3247
      %v3299 = vadd.f32 %v3228, %v3247
      %v3300 = vadd.f32 %v3229, %v3247
      %v3301 = vadd.f32 %v3230, %v3247
      %v3302 = vadd.f32 %v3231, %v3247
      %v3303 = vadd.f32 %v3232, %v3247
      %v3304 = vadd.f32 %v3233, %v3247
      %v3305 = vadd.f32 %v3234, %v3247
      %v3306 = vadd.f32 %v3235, %v3247
      %v3307 = vadd.f32 %v3236, %v3247
      %v3308 = vadd.f32 %v3237, %v3247
      %v3309 = vadd.f32 %v3238, %v3247
      %v3310 = vadd.f32 %v3239, %v3247
      %v3311 = vadd.f32 %v3240, %v3247
      %v3312 = vadd.f32 %v3241, %v3247
      %vm3313 = vcmask 64512
      %3314 = vst.msk [vmem:[%s422] sm:$0xff] %vm3313, %v3249
      %3315 = vst.msk [vmem:[%s422 + $0x8] sm:$0xff] %vm3313, %v3250
      %3316 = vst.msk [vmem:[%s422 + $0x10] sm:$0xff] %vm3313, %v3251
      %3317 = vst.msk [vmem:[%s422 + $0x18] sm:$0xff] %vm3313, %v3252
      %3318 = vst.msk [vmem:[%s422 + $0x20] sm:$0xff] %vm3313, %v3253
      %3319 = vst.msk [vmem:[%s422 + $0x28] sm:$0xff] %vm3313, %v3254
      %3320 = vst.msk [vmem:[%s422 + $0x30] sm:$0xff] %vm3313, %v3255
      %3321 = vst.msk [vmem:[%s422 + $0x38] sm:$0xff] %vm3313, %v3256
      %3322 = vst.msk [vmem:[%s422 + $0x40] sm:$0xff] %vm3313, %v3257
      %3323 = vst.msk [vmem:[%s422 + $0x48] sm:$0xff] %vm3313, %v3258
      %3324 = vst.msk [vmem:[%s422 + $0x50] sm:$0xff] %vm3313, %v3259
      %3325 = vst.msk [vmem:[%s422 + $0x58] sm:$0xff] %vm3313, %v3260
      %3326 = vst.msk [vmem:[%s422 + $0x60] sm:$0xff] %vm3313, %v3261
      %3327 = vst.msk [vmem:[%s422 + $0x68] sm:$0xff] %vm3313, %v3262
      %3328 = vst.msk [vmem:[%s422 + $0x70] sm:$0xff] %vm3313, %v3263
      %3329 = vst.msk [vmem:[%s422 + $0x78] sm:$0xff] %vm3313, %v3264
      %3330 = vst.msk [vmem:[%s422 + $0x80] sm:$0xff] %vm3313, %v3265
      %3331 = vst.msk [vmem:[%s422 + $0x88] sm:$0xff] %vm3313, %v3266
      %3332 = vst.msk [vmem:[%s422 + $0x90] sm:$0xff] %vm3313, %v3267
      %3333 = vst.msk [vmem:[%s422 + $0x98] sm:$0xff] %vm3313, %v3268
      %3334 = vst.msk [vmem:[%s422 + $0xa0] sm:$0xff] %vm3313, %v3269
      %3335 = vst.msk [vmem:[%s422 + $0xa8] sm:$0xff] %vm3313, %v3270
      %3336 = vst.msk [vmem:[%s422 + $0xb0] sm:$0xff] %vm3313, %v3271
      %3337 = vst.msk [vmem:[%s422 + $0xb8] sm:$0xff] %vm3313, %v3272
      %3338 = vst.msk [vmem:[%s422 + $0xc0] sm:$0xff] %vm3313, %v3273
      %3339 = vst.msk [vmem:[%s422 + $0xc8] sm:$0xff] %vm3313, %v3274
      %3340 = vst.msk [vmem:[%s422 + $0xd0] sm:$0xff] %vm3313, %v3275
      %3341 = vst.msk [vmem:[%s422 + $0xd8] sm:$0xff] %vm3313, %v3276
      %3342 = vst.msk [vmem:[%s422 + $0xe0] sm:$0xff] %vm3313, %v3277
      %3343 = vst.msk [vmem:[%s422 + $0xe8] sm:$0xff] %vm3313, %v3278
      %3344 = vst.msk [vmem:[%s422 + $0xf0] sm:$0xff] %vm3313, %v3279
      %3345 = vst.msk [vmem:[%s422 + $0xf8] sm:$0xff] %vm3313, %v3280
      %3346 = vst.msk [vmem:[%s422 + $0x100] sm:$0xff] %vm3313, %v3281
      %3347 = vst.msk [vmem:[%s422 + $0x108] sm:$0xff] %vm3313, %v3282
      %3348 = vst.msk [vmem:[%s422 + $0x110] sm:$0xff] %vm3313, %v3283
      %3349 = vst.msk [vmem:[%s422 + $0x118] sm:$0xff] %vm3313, %v3284
      %3350 = vst.msk [vmem:[%s422 + $0x120] sm:$0xff] %vm3313, %v3285
      %3351 = vst.msk [vmem:[%s422 + $0x128] sm:$0xff] %vm3313, %v3286
      %3352 = vst.msk [vmem:[%s422 + $0x130] sm:$0xff] %vm3313, %v3287
      %3353 = vst.msk [vmem:[%s422 + $0x138] sm:$0xff] %vm3313, %v3288
      %3354 = vst.msk [vmem:[%s422 + $0x140] sm:$0xff] %vm3313, %v3289
      %3355 = vst.msk [vmem:[%s422 + $0x148] sm:$0xff] %vm3313, %v3290
      %3356 = vst.msk [vmem:[%s422 + $0x150] sm:$0xff] %vm3313, %v3291
      %3357 = vst.msk [vmem:[%s422 + $0x158] sm:$0xff] %vm3313, %v3292
      %3358 = vst.msk [vmem:[%s422 + $0x160] sm:$0xff] %vm3313, %v3293
      %3359 = vst.msk [vmem:[%s422 + $0x168] sm:$0xff] %vm3313, %v3294
      %3360 = vst.msk [vmem:[%s422 + $0x170] sm:$0xff] %vm3313, %v3295
      %3361 = vst.msk [vmem:[%s422 + $0x178] sm:$0xff] %vm3313, %v3296
      %3362 = vst.msk [vmem:[%s422 + $0x180] sm:$0xff] %vm3313, %v3297
      %3363 = vst.msk [vmem:[%s422 + $0x188] sm:$0xff] %vm3313, %v3298
      %3364 = vst.msk [vmem:[%s422 + $0x190] sm:$0xff] %vm3313, %v3299
      %3365 = vst.msk [vmem:[%s422 + $0x198] sm:$0xff] %vm3313, %v3300
      %3366 = vst.msk [vmem:[%s422 + $0x1a0] sm:$0xff] %vm3313, %v3301
      %3367 = vst.msk [vmem:[%s422 + $0x1a8] sm:$0xff] %vm3313, %v3302
      %3368 = vst.msk [vmem:[%s422 + $0x1b0] sm:$0xff] %vm3313, %v3303
      %3369 = vst.msk [vmem:[%s422 + $0x1b8] sm:$0xff] %vm3313, %v3304
      %3370 = vst.msk [vmem:[%s422 + $0x1c0] sm:$0xff] %vm3313, %v3305
      %3371 = vst.msk [vmem:[%s422 + $0x1c8] sm:$0xff] %vm3313, %v3306
      %3372 = vst.msk [vmem:[%s422 + $0x1d0] sm:$0xff] %vm3313, %v3307
      %3373 = vst.msk [vmem:[%s422 + $0x1d8] sm:$0xff] %vm3313, %v3308
      %3374 = vst.msk [vmem:[%s422 + $0x1e0] sm:$0xff] %vm3313, %v3309
      %3375 = vst.msk [vmem:[%s422 + $0x1e8] sm:$0xff] %vm3313, %v3310
      %3376 = vst.msk [vmem:[%s422 + $0x1f0] sm:$0xff] %vm3313, %v3311
      %3377 = vst.msk [vmem:[%s422 + $0x1f8] sm:$0xff] %vm3313, %v3312
      %s3378 = smul.u32 64, %s20
      %p3379 = scmp.lt.s32.totalorder %s3378, 511
      %s3380 = scalar_select %p3379, %s3378, 511
      %s3381 = smul.addr %s3380, 8
      %s3382 = scalar_lea.vmem %s9, %s3381
      // Predicated region
      $region57: #{invariant_point_attention.4} parent=55 // pred_check
        %p3383 = pneg %p252
      $region58: #{invariant_point_attention.4} parent=55 // pred_check_branch
        %3385 = sbr.rel (%p3383) target = $region60
      $region59: #{invariant_point_attention.4} parent=55 // pred_region
        %s3386 = smul.u32 64, %s20
      $region60: #{invariant_point_attention.4} parent=55 // pred_fallthru
        _
    $region56: #{invariant_point_attention.4} parent=5 // pred_fallthru
      _
    %p3387 = scmp.le.s32.totalorder 2, %s15
    // Predicated region
    $region61: #{invariant_point_attention.4} parent=5 // pred_check
      %p3388 = pneg %p3387
    $region62: #{invariant_point_attention.4} parent=5 // pred_check_branch
      %3390 = sbr.rel (%p3388) target = $region64
    $region63: #{invariant_point_attention.4} parent=5 // pred_region
      %s3391 = ssub.s32 %s15, 2
      // Predicated region
      $region65: #{invariant_point_attention.4} parent=63 // pred_check
        %p3392 = pneg %p258
      $region66: #{invariant_point_attention.4} parent=63 // pred_check_branch
        %3394 = sbr.rel (%p3392) target = $region68
      $region67: #{invariant_point_attention.4} parent=63 // pred_region
        %s3395 = smul.u32 64, %s21
        %p3396 = scmp.lt.s32.totalorder %s3395, 511
        %s3397 = scalar_select %p3396, %s3395, 511
        %s3398 = smul.addr %s3397, 8
        %s3399 = scalar_lea.vmem %s9, %s3398
      $region68: #{invariant_point_attention.4} parent=63 // pred_fallthru
        _
    $region64: #{invariant_point_attention.4} parent=5 // pred_fallthru
      _
  $region6: #{invariant_point_attention.4} parent=0 // loop_footer
    %s19 = sadd.s32 1, %s15
  $region7: #{invariant_point_attention.4} parent=0 // loop_footer_branch
    %14 = sbr.rel target = $region3
  $region8: #{invariant_point_attention.4} parent=0 // loop_exit
    _

// kernel: invariant_point_attention.5
$region0: #{invariant_point_attention.5}
  #allocation0 [shape = 'u32[]', space=smem, size = 0x4, offset = 0x4, fixed_abs, tag = 'smem constant byte address 0x4 - core index']
  #allocation1 [shape = 'u32[144,128]{1,0:T(1,128)}', space=vmem, size = 0x12000, scoped, tag = 'internal scratch']
  %s0 = inlined_call_operand.vmem [shape: bf16[1024,128], index: 0, kind: input, shape index: {}]
  %s1 = inlined_call_operand.vmem [shape: f32[1024,96], index: 1, kind: input, shape index: {}]
  %s2 = inlined_call_operand.vmem [shape: bf16[1024,16], index: 2, kind: input, shape index: {}]
  %s3 = inlined_call_operand.vmem [shape: f32[1024,8], index: 3, kind: input, shape index: {}]
  %s4 = inlined_call_operand.vmem [shape: bf16[272,32], index: 4, kind: input, shape index: {}]
  %s5 = inlined_call_operand.vmem [shape: f32[1,32], index: 5, kind: input, shape index: {}]
  %s6 = inlined_call_operand.vmem [shape: f32[1024,32], index: 6, kind: output, shape index: {}]
  %s7 = sld [smem:[#allocation0]]
  $region57: #{invariant_point_attention.5} parent=0
    _
  %s9 = ssub.s32 1, %s7
  %s10 = scalar_select 0, %s9, %s7
  loop: start=0, step=1, limit=10
  $region2: #{invariant_point_attention.5} parent=0 // loop_pre_header
    _
  $region3: #{invariant_point_attention.5} parent=0 // loop_header
    %s12 = sphi 0, %s16
    %p13 = scmp.ge.s32.totalorder %s12, 10
    %s22 = sphi 0, %s24
    %s25 = sphi 0, %s22
    %s26 = sphi 0, %s25
    %s42 = sphi 0, %s26
    %s48 = sphi 0, %s50
    %s51 = sphi 0, %s48
    %s52 = sphi 0, %s51
    %s68 = sphi 0, %s52
    %s74 = sphi 0, %s76
    %s77 = sphi 0, %s74
    %s78 = sphi 0, %s77
    %s94 = sphi 0, %s78
    %s100 = sphi 0, %s102
    %s103 = sphi 0, %s100
    %s104 = sphi 0, %s103
    %s120 = sphi 0, %s104
    %s124 = sphi 0, %s124
    %s126 = sphi 0, %s124
    %s127 = sphi 0, %s126
    %s141 = sphi 0, %s127
    %s145 = sphi 0, %s145
    %s147 = sphi 0, %s145
    %s148 = sphi 0, %s147
    %s162 = sphi 0, %s148
    %s168 = sphi 0, %s170
    %s171 = sphi 0, %s168
    %s172 = sphi 0, %s171
    %s188 = sphi 0, %s172
  $region4: #{invariant_point_attention.5} parent=0 // loop_header_branch
    %15 = sbr.rel (%p13) target = $region8
  $region5: #{invariant_point_attention.5} parent=0 // loop_body
    %s17 = ssub.s32 %s12, 1
    %s18 = ssub.s32 %s12, 2
    %s19 = sadd.s32 %s12, 1
    %s20 = ssub.s32 %s12, %s19
    %p21 = scmp.eq.s32.totalorder %s20, 0
    %s23 = sadd.s32 %s22, 1
    %s24 = scalar_select %p21, %s22, %s23
    %p27 = pneg %p21
    %p28 = scmp.eq.s32.totalorder %s12, 7
    %p29 = por %p27, %p28
    %p30 = scmp.ne.s32.totalorder %s22, %s25
    %p31 = scmp.eq.s32.totalorder %s12, 0
    %p32 = por %p30, %p31
    %p33 = scmp.ne.s32.totalorder %s22, %s25
    %p34 = scmp.eq.s32.totalorder %s17, 7
    %p35 = por %p33, %p34
    %p36 = scmp.ne.s32.totalorder %s25, %s26
    %p37 = scmp.eq.s32.totalorder %s17, 0
    %p38 = por %p36, %p37
    %p39 = scmp.ne.s32.totalorder %s25, %s26
    %p40 = scmp.eq.s32.totalorder %s18, 7
    %p41 = por %p39, %p40
    %p43 = scmp.ne.s32.totalorder %s26, %s42
    %p44 = scmp.eq.s32.totalorder %s18, 0
    %p45 = por %p43, %p44
    %s46 = ssub.s32 %s12, %s19
    %p47 = scmp.eq.s32.totalorder %s46, 0
    %s49 = sadd.s32 %s48, 1
    %s50 = scalar_select %p47, %s48, %s49
    %p53 = pneg %p47
    %p54 = scmp.eq.s32.totalorder %s12, 7
    %p55 = por %p53, %p54
    %p56 = scmp.ne.s32.totalorder %s48, %s51
    %p57 = scmp.eq.s32.totalorder %s12, 0
    %p58 = por %p56, %p57
    %p59 = scmp.ne.s32.totalorder %s48, %s51
    %p60 = scmp.eq.s32.totalorder %s17, 7
    %p61 = por %p59, %p60
    %p62 = scmp.ne.s32.totalorder %s51, %s52
    %p63 = scmp.eq.s32.totalorder %s17, 0
    %p64 = por %p62, %p63
    %p65 = scmp.ne.s32.totalorder %s51, %s52
    %p66 = scmp.eq.s32.totalorder %s18, 7
    %p67 = por %p65, %p66
    %p69 = scmp.ne.s32.totalorder %s52, %s68
    %p70 = scmp.eq.s32.totalorder %s18, 0
    %p71 = por %p69, %p70
    %s72 = ssub.s32 %s12, %s19
    %p73 = scmp.eq.s32.totalorder %s72, 0
    %s75 = sadd.s32 %s74, 1
    %s76 = scalar_select %p73, %s74, %s75
    %p79 = pneg %p73
    %p80 = scmp.eq.s32.totalorder %s12, 7
    %p81 = por %p79, %p80
    %p82 = scmp.ne.s32.totalorder %s74, %s77
    %p83 = scmp.eq.s32.totalorder %s12, 0
    %p84 = por %p82, %p83
    %p85 = scmp.ne.s32.totalorder %s74, %s77
    %p86 = scmp.eq.s32.totalorder %s17, 7
    %p87 = por %p85, %p86
    %p88 = scmp.ne.s32.totalorder %s77, %s78
    %p89 = scmp.eq.s32.totalorder %s17, 0
    %p90 = por %p88, %p89
    %p91 = scmp.ne.s32.totalorder %s77, %s78
    %p92 = scmp.eq.s32.totalorder %s18, 7
    %p93 = por %p91, %p92
    %p95 = scmp.ne.s32.totalorder %s78, %s94
    %p96 = scmp.eq.s32.totalorder %s18, 0
    %p97 = por %p95, %p96
    %s98 = ssub.s32 %s12, %s19
    %p99 = scmp.eq.s32.totalorder %s98, 0
    %s101 = sadd.s32 %s100, 1
    %s102 = scalar_select %p99, %s100, %s101
    %p105 = pneg %p99
    %p106 = scmp.eq.s32.totalorder %s12, 7
    %p107 = por %p105, %p106
    %p108 = scmp.ne.s32.totalorder %s100, %s103
    %p109 = scmp.eq.s32.totalorder %s12, 0
    %p110 = por %p108, %p109
    %p111 = scmp.ne.s32.totalorder %s100, %s103
    %p112 = scmp.eq.s32.totalorder %s17, 7
    %p113 = por %p111, %p112
    %p114 = scmp.ne.s32.totalorder %s103, %s104
    %p115 = scmp.eq.s32.totalorder %s17, 0
    %p116 = por %p114, %p115
    %p117 = scmp.ne.s32.totalorder %s103, %s104
    %p118 = scmp.eq.s32.totalorder %s18, 7
    %p119 = por %p117, %p118
    %p121 = scmp.ne.s32.totalorder %s104, %s120
    %p122 = scmp.eq.s32.totalorder %s18, 0
    %p123 = por %p121, %p122
    %s125 = sadd.s32 %s124, 1
    %p128 = scmp.eq.s32.totalorder %s12, 7
    %p129 = scmp.ne.s32.totalorder %s124, %s126
    %p130 = scmp.eq.s32.totalorder %s12, 0
    %p131 = por %p129, %p130
    %p132 = scmp.ne.s32.totalorder %s124, %s126
    %p133 = scmp.eq.s32.totalorder %s17, 7
    %p134 = por %p132, %p133
    %p135 = scmp.ne.s32.totalorder %s126, %s127
    %p136 = scmp.eq.s32.totalorder %s17, 0
    %p137 = por %p135, %p136
    %p138 = scmp.ne.s32.totalorder %s126, %s127
    %p139 = scmp.eq.s32.totalorder %s18, 7
    %p140 = por %p138, %p139
    %p142 = scmp.ne.s32.totalorder %s127, %s141
    %p143 = scmp.eq.s32.totalorder %s18, 0
    %p144 = por %p142, %p143
    %s146 = sadd.s32 %s145, 1
    %p149 = scmp.eq.s32.totalorder %s12, 7
    %p150 = scmp.ne.s32.totalorder %s145, %s147
    %p151 = scmp.eq.s32.totalorder %s12, 0
    %p152 = por %p150, %p151
    %p153 = scmp.ne.s32.totalorder %s145, %s147
    %p154 = scmp.eq.s32.totalorder %s17, 7
    %p155 = por %p153, %p154
    %p156 = scmp.ne.s32.totalorder %s147, %s148
    %p157 = scmp.eq.s32.totalorder %s17, 0
    %p158 = por %p156, %p157
    %p159 = scmp.ne.s32.totalorder %s147, %s148
    %p160 = scmp.eq.s32.totalorder %s18, 7
    %p161 = por %p159, %p160
    %p163 = scmp.ne.s32.totalorder %s148, %s162
    %p164 = scmp.eq.s32.totalorder %s18, 0
    %p165 = por %p163, %p164
    %s166 = ssub.s32 %s12, %s19
    %p167 = scmp.eq.s32.totalorder %s166, 0
    %s169 = sadd.s32 %s168, 1
    %s170 = scalar_select %p167, %s168, %s169
    %p173 = pneg %p167
    %p174 = scmp.eq.s32.totalorder %s12, 7
    %p175 = por %p173, %p174
    %p176 = scmp.ne.s32.totalorder %s168, %s171
    %p177 = scmp.eq.s32.totalorder %s12, 0
    %p178 = por %p176, %p177
    %p179 = scmp.ne.s32.totalorder %s168, %s171
    %p180 = scmp.eq.s32.totalorder %s17, 7
    %p181 = por %p179, %p180
    %p182 = scmp.ne.s32.totalorder %s171, %s172
    %p183 = scmp.eq.s32.totalorder %s17, 0
    %p184 = por %p182, %p183
    %p185 = scmp.ne.s32.totalorder %s171, %s172
    %p186 = scmp.eq.s32.totalorder %s18, 7
    %p187 = por %p185, %p186
    %p189 = scmp.ne.s32.totalorder %s172, %s188
    %p190 = scmp.eq.s32.totalorder %s18, 0
    %p191 = por %p189, %p190
    %p192 = scmp.le.s32.totalorder 1, %s12
    %p193 = scmp.lt.s32.totalorder %s12, 9
    %p194 = pnand %p192, %p193
    %p195 = pneg %p194
    // Predicated region
    $region9: #{invariant_point_attention.5} parent=5 // pred_check
      _
    $region10: #{invariant_point_attention.5} parent=5 // pred_check_branch
      %197 = sbr.rel (%p194) target = $region12
    $region11: #{invariant_point_attention.5} parent=5 // pred_region
      %s198 = ssub.s32 %s12, 1
      // Predicated region
      $region13: #{invariant_point_attention.5} parent=11 // pred_check
        %p199 = pneg %p137
      $region14: #{invariant_point_attention.5} parent=11 // pred_check_branch
        %201 = sbr.rel (%p199) target = $region16
      $region15: #{invariant_point_attention.5} parent=11 // pred_region
        _
      $region16: #{invariant_point_attention.5} parent=11 // pred_fallthru
        _
      // Predicated region
      $region17: #{invariant_point_attention.5} parent=11 // pred_check
        %p202 = pneg %p158
      $region18: #{invariant_point_attention.5} parent=11 // pred_check_branch
        %204 = sbr.rel (%p202) target = $region20
      $region19: #{invariant_point_attention.5} parent=11 // pred_region
        _
      $region20: #{invariant_point_attention.5} parent=11 // pred_fallthru
        _
    $region12: #{invariant_point_attention.5} parent=5 // pred_fallthru
      _
    %p205 = scmp.lt.s32.totalorder %s12, 8
    // Predicated region
    $region21: #{invariant_point_attention.5} parent=5 // pred_check
      %p206 = pneg %p205
    $region22: #{invariant_point_attention.5} parent=5 // pred_check_branch
      %208 = sbr.rel (%p206) target = $region24
    $region23: #{invariant_point_attention.5} parent=5 // pred_region
      // Predicated region
      $region25: #{invariant_point_attention.5} parent=23 // pred_check
        %p209 = pneg %p32
      $region26: #{invariant_point_attention.5} parent=23 // pred_check_branch
        %211 = sbr.rel (%p209) target = $region28
      $region27: #{invariant_point_attention.5} parent=23 // pred_region
        %s212 = smul.u32 16, %s12
        %p213 = scmp.lt.s32.totalorder %s212, 127
        %s214 = scalar_select %p213, %s212, 127
        %s215 = smul.addr %s214, 4
        %s216 = scalar_lea.vmem %s0, %s215
        %s217 = smul.u32 16, %s12
      $region28: #{invariant_point_attention.5} parent=23 // pred_fallthru
        _
      // Predicated region
      $region29: #{invariant_point_attention.5} parent=23 // pred_check
        %p218 = pneg %p58
      $region30: #{invariant_point_attention.5} parent=23 // pred_check_branch
        %220 = sbr.rel (%p218) target = $region32
      $region31: #{invariant_point_attention.5} parent=23 // pred_region
        %s221 = smul.u32 16, %s12
        %p222 = scmp.lt.s32.totalorder %s221, 127
        %s223 = scalar_select %p222, %s221, 127
        %s224 = smul.addr %s223, 8
        %s225 = scalar_lea.vmem %s1, %s224
        %s226 = smul.u32 16, %s12
      $region32: #{invariant_point_attention.5} parent=23 // pred_fallthru
        _
      // Predicated region
      $region33: #{invariant_point_attention.5} parent=23 // pred_check
        %p227 = pneg %p84
      $region34: #{invariant_point_attention.5} parent=23 // pred_check_branch
        %229 = sbr.rel (%p227) target = $region36
      $region35: #{invariant_point_attention.5} parent=23 // pred_region
        %s230 = smul.u32 16, %s12
        %p231 = scmp.lt.s32.totalorder %s230, 127
        %s232 = scalar_select %p231, %s230, 127
        %s233 = smul.addr %s232, 4
        %s234 = scalar_lea.vmem %s2, %s233
        %s235 = smul.u32 16, %s12
      $region36: #{invariant_point_attention.5} parent=23 // pred_fallthru
        _
      // Predicated region
      $region37: #{invariant_point_attention.5} parent=23 // pred_check
        %p236 = pneg %p110
      $region38: #{invariant_point_attention.5} parent=23 // pred_check_branch
        %238 = sbr.rel (%p236) target = $region40
      $region39: #{invariant_point_attention.5} parent=23 // pred_region
        %s239 = smul.u32 16, %s12
        %p240 = scmp.lt.s32.totalorder %s239, 127
        %s241 = scalar_select %p240, %s239, 127
        %s242 = smul.addr %s241, 8
        %s243 = scalar_lea.vmem %s3, %s242
        %s244 = smul.u32 16, %s12
      $region40: #{invariant_point_attention.5} parent=23 // pred_fallthru
        _
    $region24: #{invariant_point_attention.5} parent=5 // pred_fallthru
      _
    %p245 = scmp.le.s32.totalorder 1, %s12
    %p246 = scmp.lt.s32.totalorder %s12, 9
    %p247 = pnand %p245, %p246
    %p248 = pneg %p247
    // Predicated region
    $region41: #{invariant_point_attention.5} parent=5 // pred_check
      _
    $region42: #{invariant_point_attention.5} parent=5 // pred_check_branch
      %250 = sbr.rel (%p247) target = $region44
    $region43: #{invariant_point_attention.5} parent=5 // pred_region
      %s251 = ssub.s32 %s12, 1
      %s252 = smul.u32 16, %s17
      %p253 = scmp.lt.s32.totalorder %s252, 127
      %s254 = scalar_select %p253, %s252, 127
      %s255 = smul.addr %s254, 4
      %s256 = scalar_lea.vmem %s0, %s255
      %p257 = pneg %p38
      %p258 = pneg %p35
      %s259 = smul.u32 16, %s17
      %p260 = scmp.lt.s32.totalorder %s259, 127
      %s261 = scalar_select %p260, %s259, 127
      %s262 = smul.addr %s261, 8
      %s263 = scalar_lea.vmem %s1, %s262
      %p264 = pneg %p64
      %p265 = pneg %p61
      %s266 = smul.u32 16, %s17
      %p267 = scmp.lt.s32.totalorder %s266, 127
      %s268 = scalar_select %p267, %s266, 127
      %s269 = smul.addr %s268, 4
      %s270 = scalar_lea.vmem %s2, %s269
      %p271 = pneg %p90
      %p272 = pneg %p87
      %s273 = smul.u32 16, %s17
      %p274 = scmp.lt.s32.totalorder %s273, 127
      %s275 = scalar_select %p274, %s273, 127
      %s276 = smul.addr %s275, 8
      %s277 = scalar_lea.vmem %s3, %s276
      %p278 = pneg %p116
      %p279 = pneg %p113
      %p280 = pneg %p137
      %p281 = pneg %p134
      %p282 = pneg %p158
      %p283 = pneg %p155
      %p284 = pneg %p184
      %p285 = pneg %p181
      %s286 = smul.u32 16, %s17
      %p287 = scmp.lt.s32.totalorder %s286, 127
      %s288 = scalar_select %p287, %s286, 127
      %s289 = smul.addr %s288, 8
      %s290 = scalar_lea.vmem %s6, %s289
      %s291 = smul.u32 16, %s17
      %p292 = scmp.lt.s32.totalorder %s291, 127
      %s293 = scalar_select %p292, %s291, 127
      %s294 = smul.addr %s293, 4
      %s295 = scalar_lea.vmem %s0, %s294
      %s296 = smul.u32 16, %s17
      %s297 = smul.u32 16, %s17
      %p298 = scmp.lt.s32.totalorder %s297, 127
      %s299 = scalar_select %p298, %s297, 127
      %s300 = smul.addr %s299, 8
      %s301 = scalar_lea.vmem %s1, %s300
      %s302 = smul.u32 16, %s17
      %s303 = smul.u32 16, %s17
      %p304 = scmp.lt.s32.totalorder %s303, 127
      %s305 = scalar_select %p304, %s303, 127
      %s306 = smul.addr %s305, 4
      %s307 = scalar_lea.vmem %s2, %s306
      %s308 = smul.u32 16, %s17
      %s309 = smul.u32 16, %s17
      %p310 = scmp.lt.s32.totalorder %s309, 127
      %s311 = scalar_select %p310, %s309, 127
      %s312 = smul.addr %s311, 8
      %s313 = scalar_lea.vmem %s3, %s312
      %s314 = smul.u32 16, %s17
      %s315 = smul.u32 16, %s17
      %p316 = scmp.lt.s32.totalorder %s315, 127
      %s317 = scalar_select %p316, %s315, 127
      %s318 = smul.addr %s317, 8
      %s319 = scalar_lea.vmem %s6, %s318
      %s320 = smul.u32 16, %s17
      %v322 = vld [vmem:[%s313] sm:$0xff]
      %v323 = vld [vmem:[%s313 + $0x8] sm:$0xff]
      %v324 = vld [vmem:[%s313 + $0x10] sm:$0xff]
      %v325 = vld [vmem:[%s313 + $0x18] sm:$0xff]
      %v326 = vld [vmem:[%s313 + $0x20] sm:$0xff]
      %v327 = vld [vmem:[%s313 + $0x28] sm:$0xff]
      %v328 = vld [vmem:[%s313 + $0x30] sm:$0xff]
      %v329 = vld [vmem:[%s313 + $0x38] sm:$0xff]
      %v330 = vld [vmem:[%s313 + $0x40] sm:$0xff]
      %v331 = vld [vmem:[%s313 + $0x48] sm:$0xff]
      %v332 = vld [vmem:[%s313 + $0x50] sm:$0xff]
      %v333 = vld [vmem:[%s313 + $0x58] sm:$0xff]
      %v334 = vld [vmem:[%s313 + $0x60] sm:$0xff]
      %v335 = vld [vmem:[%s313 + $0x68] sm:$0xff]
      %v336 = vld [vmem:[%s313 + $0x70] sm:$0xff]
      %v337 = vld [vmem:[%s313 + $0x78] sm:$0xff]
      %v338 = vsub.f32 0.0, %v322
      %v339 = vsub.f32 0.0, %v323
      %v340 = vsub.f32 0.0, %v324
      %v341 = vsub.f32 0.0, %v325
      %v342 = vsub.f32 0.0, %v326
      %v343 = vsub.f32 0.0, %v327
      %v344 = vsub.f32 0.0, %v328
      %v345 = vsub.f32 0.0, %v329
      %v346 = vsub.f32 0.0, %v330
      %v347 = vsub.f32 0.0, %v331
      %v348 = vsub.f32 0.0, %v332
      %v349 = vsub.f32 0.0, %v333
      %v350 = vsub.f32 0.0, %v334
      %v351 = vsub.f32 0.0, %v335
      %v352 = vsub.f32 0.0, %v336
      %v353 = vsub.f32 0.0, %v337
      %v354 = vld [vmem:[%s301] sm:$0xff]
      %v355 = vld [vmem:[%s301 + $0x8] sm:$0xff]
      %v356 = vld [vmem:[%s301 + $0x10] sm:$0xff]
      %v357 = vld [vmem:[%s301 + $0x18] sm:$0xff]
      %v358 = vld [vmem:[%s301 + $0x20] sm:$0xff]
      %v359 = vld [vmem:[%s301 + $0x28] sm:$0xff]
      %v360 = vld [vmem:[%s301 + $0x30] sm:$0xff]
      %v361 = vld [vmem:[%s301 + $0x38] sm:$0xff]
      %v362 = vld [vmem:[%s301 + $0x40] sm:$0xff]
      %v363 = vld [vmem:[%s301 + $0x48] sm:$0xff]
      %v364 = vld [vmem:[%s301 + $0x50] sm:$0xff]
      %v365 = vld [vmem:[%s301 + $0x58] sm:$0xff]
      %v366 = vld [vmem:[%s301 + $0x60] sm:$0xff]
      %v367 = vld [vmem:[%s301 + $0x68] sm:$0xff]
      %v368 = vld [vmem:[%s301 + $0x70] sm:$0xff]
      %v369 = vld [vmem:[%s301 + $0x78] sm:$0xff]
      %371 = vset.pattern.permute.xlu0 4
      %372 = vperm.xlu0 %371, %v322
      %v373 = vpop.permute.xlu0 %372
      %376 = vset.pattern.permute.xlu0 4
      %377 = vperm.xlu0 %376, %v323
      %v378 = vpop.permute.xlu0 %377
      %381 = vset.pattern.permute.xlu0 4
      %382 = vperm.xlu0 %381, %v324
      %v383 = vpop.permute.xlu0 %382
      %386 = vset.pattern.permute.xlu0 4
      %387 = vperm.xlu0 %386, %v325
      %v388 = vpop.permute.xlu0 %387
      %391 = vset.pattern.permute.xlu0 4
      %392 = vperm.xlu0 %391, %v326
      %v393 = vpop.permute.xlu0 %392
      %396 = vset.pattern.permute.xlu0 4
      %397 = vperm.xlu0 %396, %v327
      %v398 = vpop.permute.xlu0 %397
      %401 = vset.pattern.permute.xlu0 4
      %402 = vperm.xlu0 %401, %v328
      %v403 = vpop.permute.xlu0 %402
      %406 = vset.pattern.permute.xlu0 4
      %407 = vperm.xlu0 %406, %v329
      %v408 = vpop.permute.xlu0 %407
      %411 = vset.pattern.permute.xlu0 4
      %412 = vperm.xlu0 %411, %v330
      %v413 = vpop.permute.xlu0 %412
      %416 = vset.pattern.permute.xlu0 4
      %417 = vperm.xlu0 %416, %v331
      %v418 = vpop.permute.xlu0 %417
      %421 = vset.pattern.permute.xlu0 4
      %422 = vperm.xlu0 %421, %v332
      %v423 = vpop.permute.xlu0 %422
      %426 = vset.pattern.permute.xlu0 4
      %427 = vperm.xlu0 %426, %v333
      %v428 = vpop.permute.xlu0 %427
      %431 = vset.pattern.permute.xlu0 4
      %432 = vperm.xlu0 %431, %v334
      %v433 = vpop.permute.xlu0 %432
      %436 = vset.pattern.permute.xlu0 4
      %437 = vperm.xlu0 %436, %v335
      %v438 = vpop.permute.xlu0 %437
      %441 = vset.pattern.permute.xlu0 4
      %442 = vperm.xlu0 %441, %v336
      %v443 = vpop.permute.xlu0 %442
      %446 = vset.pattern.permute.xlu0 4
      %447 = vperm.xlu0 %446, %v337
      %v448 = vpop.permute.xlu0 %447
      %v450 = vsub.f32 %v354, %v373
      %v451 = vsub.f32 %v355, %v378
      %v452 = vsub.f32 %v356, %v383
      %v453 = vsub.f32 %v357, %v388
      %v454 = vsub.f32 %v358, %v393
      %v455 = vsub.f32 %v359, %v398
      %v456 = vsub.f32 %v360, %v403
      %v457 = vsub.f32 %v361, %v408
      %v458 = vsub.f32 %v362, %v413
      %v459 = vsub.f32 %v363, %v418
      %v460 = vsub.f32 %v364, %v423
      %v461 = vsub.f32 %v365, %v428
      %v462 = vsub.f32 %v366, %v433
      %v463 = vsub.f32 %v367, %v438
      %v464 = vsub.f32 %v368, %v443
      %v465 = vsub.f32 %v369, %v448
      %466 = vset.pattern.permute.xlu0 5
      %467 = vperm.xlu0 %466, %v322
      %v468 = vpop.permute.xlu0 %467
      %470 = vset.pattern.permute.xlu0 5
      %471 = vperm.xlu0 %470, %v323
      %v472 = vpop.permute.xlu0 %471
      %474 = vset.pattern.permute.xlu0 5
      %475 = vperm.xlu0 %474, %v324
      %v476 = vpop.permute.xlu0 %475
      %478 = vset.pattern.permute.xlu0 5
      %479 = vperm.xlu0 %478, %v325
      %v480 = vpop.permute.xlu0 %479
      %482 = vset.pattern.permute.xlu0 5
      %483 = vperm.xlu0 %482, %v326
      %v484 = vpop.permute.xlu0 %483
      %486 = vset.pattern.permute.xlu0 5
      %487 = vperm.xlu0 %486, %v327
      %v488 = vpop.permute.xlu0 %487
      %490 = vset.pattern.permute.xlu0 5
      %491 = vperm.xlu0 %490, %v328
      %v492 = vpop.permute.xlu0 %491
      %494 = vset.pattern.permute.xlu0 5
      %495 = vperm.xlu0 %494, %v329
      %v496 = vpop.permute.xlu0 %495
      %498 = vset.pattern.permute.xlu0 5
      %499 = vperm.xlu0 %498, %v330
      %v500 = vpop.permute.xlu0 %499
      %502 = vset.pattern.permute.xlu0 5
      %503 = vperm.xlu0 %502, %v331
      %v504 = vpop.permute.xlu0 %503
      %506 = vset.pattern.permute.xlu0 5
      %507 = vperm.xlu0 %506, %v332
      %v508 = vpop.permute.xlu0 %507
      %510 = vset.pattern.permute.xlu0 5
      %511 = vperm.xlu0 %510, %v333
      %v512 = vpop.permute.xlu0 %511
      %514 = vset.pattern.permute.xlu0 5
      %515 = vperm.xlu0 %514, %v334
      %v516 = vpop.permute.xlu0 %515
      %518 = vset.pattern.permute.xlu0 5
      %519 = vperm.xlu0 %518, %v335
      %v520 = vpop.permute.xlu0 %519
      %522 = vset.pattern.permute.xlu0 5
      %523 = vperm.xlu0 %522, %v336
      %v524 = vpop.permute.xlu0 %523
      %526 = vset.pattern.permute.xlu0 5
      %527 = vperm.xlu0 %526, %v337
      %v528 = vpop.permute.xlu0 %527
      %v530 = vsub.f32 %v354, %v468
      %v531 = vsub.f32 %v355, %v472
      %v532 = vsub.f32 %v356, %v476
      %v533 = vsub.f32 %v357, %v480
      %v534 = vsub.f32 %v358, %v484
      %v535 = vsub.f32 %v359, %v488
      %v536 = vsub.f32 %v360, %v492
      %v537 = vsub.f32 %v361, %v496
      %v538 = vsub.f32 %v362, %v500
      %v539 = vsub.f32 %v363, %v504
      %v540 = vsub.f32 %v364, %v508
      %v541 = vsub.f32 %v365, %v512
      %v542 = vsub.f32 %v366, %v516
      %v543 = vsub.f32 %v367, %v520
      %v544 = vsub.f32 %v368, %v524
      %v545 = vsub.f32 %v369, %v528
      %546 = vset.pattern.permute.xlu0 6
      %547 = vperm.xlu0 %546, %v322
      %v548 = vpop.permute.xlu0 %547
      %550 = vset.pattern.permute.xlu0 6
      %551 = vperm.xlu0 %550, %v323
      %v552 = vpop.permute.xlu0 %551
      %554 = vset.pattern.permute.xlu0 6
      %555 = vperm.xlu0 %554, %v324
      %v556 = vpop.permute.xlu0 %555
      %558 = vset.pattern.permute.xlu0 6
      %559 = vperm.xlu0 %558, %v325
      %v560 = vpop.permute.xlu0 %559
      %562 = vset.pattern.permute.xlu0 6
      %563 = vperm.xlu0 %562, %v326
      %v564 = vpop.permute.xlu0 %563
      %566 = vset.pattern.permute.xlu0 6
      %567 = vperm.xlu0 %566, %v327
      %v568 = vpop.permute.xlu0 %567
      %570 = vset.pattern.permute.xlu0 6
      %571 = vperm.xlu0 %570, %v328
      %v572 = vpop.permute.xlu0 %571
      %574 = vset.pattern.permute.xlu0 6
      %575 = vperm.xlu0 %574, %v329
      %v576 = vpop.permute.xlu0 %575
      %578 = vset.pattern.permute.xlu0 6
      %579 = vperm.xlu0 %578, %v330
      %v580 = vpop.permute.xlu0 %579
      %582 = vset.pattern.permute.xlu0 6
      %583 = vperm.xlu0 %582, %v331
      %v584 = vpop.permute.xlu0 %583
      %586 = vset.pattern.permute.xlu0 6
      %587 = vperm.xlu0 %586, %v332
      %v588 = vpop.permute.xlu0 %587
      %590 = vset.pattern.permute.xlu0 6
      %591 = vperm.xlu0 %590, %v333
      %v592 = vpop.permute.xlu0 %591
      %594 = vset.pattern.permute.xlu0 6
      %595 = vperm.xlu0 %594, %v334
      %v596 = vpop.permute.xlu0 %595
      %598 = vset.pattern.permute.xlu0 6
      %599 = vperm.xlu0 %598, %v335
      %v600 = vpop.permute.xlu0 %599
      %602 = vset.pattern.permute.xlu0 6
      %603 = vperm.xlu0 %602, %v336
      %v604 = vpop.permute.xlu0 %603
      %606 = vset.pattern.permute.xlu0 6
      %607 = vperm.xlu0 %606, %v337
      %v608 = vpop.permute.xlu0 %607
      %v610 = vsub.f32 %v354, %v548
      %v611 = vsub.f32 %v355, %v552
      %v612 = vsub.f32 %v356, %v556
      %v613 = vsub.f32 %v357, %v560
      %v614 = vsub.f32 %v358, %v564
      %v615 = vsub.f32 %v359, %v568
      %v616 = vsub.f32 %v360, %v572
      %v617 = vsub.f32 %v361, %v576
      %v618 = vsub.f32 %v362, %v580
      %v619 = vsub.f32 %v363, %v584
      %v620 = vsub.f32 %v364, %v588
      %v621 = vsub.f32 %v365, %v592
      %v622 = vsub.f32 %v366, %v596
      %v623 = vsub.f32 %v367, %v600
      %v624 = vsub.f32 %v368, %v604
      %v625 = vsub.f32 %v369, %v608
      %627 = vset.pattern.permute.xlu0 2
      %628 = vperm.xlu0 %627, %v338
      %v629 = vpop.permute.xlu0 %628
      %632 = vset.pattern.permute.xlu0 2
      %633 = vperm.xlu0 %632, %v339
      %v634 = vpop.permute.xlu0 %633
      %637 = vset.pattern.permute.xlu0 2
      %638 = vperm.xlu0 %637, %v340
      %v639 = vpop.permute.xlu0 %638
      %642 = vset.pattern.permute.xlu0 2
      %643 = vperm.xlu0 %642, %v341
      %v644 = vpop.permute.xlu0 %643
      %647 = vset.pattern.permute.xlu0 2
      %648 = vperm.xlu0 %647, %v342
      %v649 = vpop.permute.xlu0 %648
      %652 = vset.pattern.permute.xlu0 2
      %653 = vperm.xlu0 %652, %v343
      %v654 = vpop.permute.xlu0 %653
      %657 = vset.pattern.permute.xlu0 2
      %658 = vperm.xlu0 %657, %v344
      %v659 = vpop.permute.xlu0 %658
      %662 = vset.pattern.permute.xlu0 2
      %663 = vperm.xlu0 %662, %v345
      %v664 = vpop.permute.xlu0 %663
      %667 = vset.pattern.permute.xlu0 2
      %668 = vperm.xlu0 %667, %v346
      %v669 = vpop.permute.xlu0 %668
      %672 = vset.pattern.permute.xlu0 2
      %673 = vperm.xlu0 %672, %v347
      %v674 = vpop.permute.xlu0 %673
      %677 = vset.pattern.permute.xlu0 2
      %678 = vperm.xlu0 %677, %v348
      %v679 = vpop.permute.xlu0 %678
      %682 = vset.pattern.permute.xlu0 2
      %683 = vperm.xlu0 %682, %v349
      %v684 = vpop.permute.xlu0 %683
      %687 = vset.pattern.permute.xlu0 2
      %688 = vperm.xlu0 %687, %v350
      %v689 = vpop.permute.xlu0 %688
      %692 = vset.pattern.permute.xlu0 2
      %693 = vperm.xlu0 %692, %v351
      %v694 = vpop.permute.xlu0 %693
      %697 = vset.pattern.permute.xlu0 2
      %698 = vperm.xlu0 %697, %v352
      %v699 = vpop.permute.xlu0 %698
      %702 = vset.pattern.permute.xlu0 2
      %703 = vperm.xlu0 %702, %v353
      %v704 = vpop.permute.xlu0 %703
      %v706 = vmul.f32 %v629, %v610
      %v707 = vmul.f32 %v634, %v611
      %v708 = vmul.f32 %v639, %v612
      %v709 = vmul.f32 %v644, %v613
      %v710 = vmul.f32 %v649, %v614
      %v711 = vmul.f32 %v654, %v615
      %v712 = vmul.f32 %v659, %v616
      %v713 = vmul.f32 %v664, %v617
      %v714 = vmul.f32 %v669, %v618
      %v715 = vmul.f32 %v674, %v619
      %v716 = vmul.f32 %v679, %v620
      %v717 = vmul.f32 %v684, %v621
      %v718 = vmul.f32 %v689, %v622
      %v719 = vmul.f32 %v694, %v623
      %v720 = vmul.f32 %v699, %v624
      %v721 = vmul.f32 %v704, %v625
      %722 = vset.pattern.permute.xlu0 3
      %723 = vperm.xlu0 %722, %v338
      %v724 = vpop.permute.xlu0 %723
      %726 = vset.pattern.permute.xlu0 3
      %727 = vperm.xlu0 %726, %v339
      %v728 = vpop.permute.xlu0 %727
      %730 = vset.pattern.permute.xlu0 3
      %731 = vperm.xlu0 %730, %v340
      %v732 = vpop.permute.xlu0 %731
      %734 = vset.pattern.permute.xlu0 3
      %735 = vperm.xlu0 %734, %v341
      %v736 = vpop.permute.xlu0 %735
      %738 = vset.pattern.permute.xlu0 3
      %739 = vperm.xlu0 %738, %v342
      %v740 = vpop.permute.xlu0 %739
      %742 = vset.pattern.permute.xlu0 3
      %743 = vperm.xlu0 %742, %v343
      %v744 = vpop.permute.xlu0 %743
      %746 = vset.pattern.permute.xlu0 3
      %747 = vperm.xlu0 %746, %v344
      %v748 = vpop.permute.xlu0 %747
      %750 = vset.pattern.permute.xlu0 3
      %751 = vperm.xlu0 %750, %v345
      %v752 = vpop.permute.xlu0 %751
      %754 = vset.pattern.permute.xlu0 3
      %755 = vperm.xlu0 %754, %v346
      %v756 = vpop.permute.xlu0 %755
      %758 = vset.pattern.permute.xlu0 3
      %759 = vperm.xlu0 %758, %v347
      %v760 = vpop.permute.xlu0 %759
      %762 = vset.pattern.permute.xlu0 3
      %763 = vperm.xlu0 %762, %v348
      %v764 = vpop.permute.xlu0 %763
      %766 = vset.pattern.permute.xlu0 3
      %767 = vperm.xlu0 %766, %v349
      %v768 = vpop.permute.xlu0 %767
      %770 = vset.pattern.permute.xlu0 3
      %771 = vperm.xlu0 %770, %v350
      %v772 = vpop.permute.xlu0 %771
      %774 = vset.pattern.permute.xlu0 3
      %775 = vperm.xlu0 %774, %v351
      %v776 = vpop.permute.xlu0 %775
      %778 = vset.pattern.permute.xlu0 3
      %779 = vperm.xlu0 %778, %v352
      %v780 = vpop.permute.xlu0 %779
      %782 = vset.pattern.permute.xlu0 3
      %783 = vperm.xlu0 %782, %v353
      %v784 = vpop.permute.xlu0 %783
      %v786 = vmul.f32 %v724, %v530
      %v787 = vmul.f32 %v728, %v531
      %v788 = vmul.f32 %v732, %v532
      %v789 = vmul.f32 %v736, %v533
      %v790 = vmul.f32 %v740, %v534
      %v791 = vmul.f32 %v744, %v535
      %v792 = vmul.f32 %v748, %v536
      %v793 = vmul.f32 %v752, %v537
      %v794 = vmul.f32 %v756, %v538
      %v795 = vmul.f32 %v760, %v539
      %v796 = vmul.f32 %v764, %v540
      %v797 = vmul.f32 %v768, %v541
      %v798 = vmul.f32 %v772, %v542
      %v799 = vmul.f32 %v776, %v543
      %v800 = vmul.f32 %v780, %v544
      %v801 = vmul.f32 %v784, %v545
      %818 = vrot.lane.b32.xlu0 %v786, 32
      %v819 = vpop.permute.xlu0 %818
      %820 = vrot.lane.b32.xlu0 %v787, 32
      %v821 = vpop.permute.xlu0 %820
      %822 = vrot.lane.b32.xlu0 %v788, 32
      %v823 = vpop.permute.xlu0 %822
      %824 = vrot.lane.b32.xlu0 %v789, 32
      %v825 = vpop.permute.xlu0 %824
      %826 = vrot.lane.b32.xlu0 %v790, 32
      %v827 = vpop.permute.xlu0 %826
      %828 = vrot.lane.b32.xlu0 %v791, 32
      %v829 = vpop.permute.xlu0 %828
      %830 = vrot.lane.b32.xlu0 %v792, 32
      %v831 = vpop.permute.xlu0 %830
      %832 = vrot.lane.b32.xlu0 %v793, 32
      %v833 = vpop.permute.xlu0 %832
      %834 = vrot.lane.b32.xlu0 %v794, 32
      %v835 = vpop.permute.xlu0 %834
      %836 = vrot.lane.b32.xlu0 %v795, 32
      %v837 = vpop.permute.xlu0 %836
      %838 = vrot.lane.b32.xlu0 %v796, 32
      %v839 = vpop.permute.xlu0 %838
      %840 = vrot.lane.b32.xlu0 %v797, 32
      %v841 = vpop.permute.xlu0 %840
      %842 = vrot.lane.b32.xlu0 %v798, 32
      %v843 = vpop.permute.xlu0 %842
      %844 = vrot.lane.b32.xlu0 %v799, 32
      %v845 = vpop.permute.xlu0 %844
      %846 = vrot.lane.b32.xlu0 %v800, 32
      %v847 = vpop.permute.xlu0 %846
      %848 = vrot.lane.b32.xlu0 %v801, 32
      %v849 = vpop.permute.xlu0 %848
      %v866 = vsub.f32 %v706, %v819
      %v867 = vsub.f32 %v707, %v821
      %v868 = vsub.f32 %v708, %v823
      %v869 = vsub.f32 %v709, %v825
      %v870 = vsub.f32 %v710, %v827
      %v871 = vsub.f32 %v711, %v829
      %v872 = vsub.f32 %v712, %v831
      %v873 = vsub.f32 %v713, %v833
      %v874 = vsub.f32 %v714, %v835
      %v875 = vsub.f32 %v715, %v837
      %v876 = vsub.f32 %v716, %v839
      %v877 = vsub.f32 %v717, %v841
      %v878 = vsub.f32 %v718, %v843
      %v879 = vsub.f32 %v719, %v845
      %v880 = vsub.f32 %v720, %v847
      %v881 = vsub.f32 %v721, %v849
      %882 = vset.pattern.permute.xlu0 0
      %883 = vperm.xlu0 %882, %v322
      %v884 = vpop.permute.xlu0 %883
      %886 = vset.pattern.permute.xlu0 0
      %887 = vperm.xlu0 %886, %v323
      %v888 = vpop.permute.xlu0 %887
      %890 = vset.pattern.permute.xlu0 0
      %891 = vperm.xlu0 %890, %v324
      %v892 = vpop.permute.xlu0 %891
      %894 = vset.pattern.permute.xlu0 0
      %895 = vperm.xlu0 %894, %v325
      %v896 = vpop.permute.xlu0 %895
      %898 = vset.pattern.permute.xlu0 0
      %899 = vperm.xlu0 %898, %v326
      %v900 = vpop.permute.xlu0 %899
      %902 = vset.pattern.permute.xlu0 0
      %903 = vperm.xlu0 %902, %v327
      %v904 = vpop.permute.xlu0 %903
      %906 = vset.pattern.permute.xlu0 0
      %907 = vperm.xlu0 %906, %v328
      %v908 = vpop.permute.xlu0 %907
      %910 = vset.pattern.permute.xlu0 0
      %911 = vperm.xlu0 %910, %v329
      %v912 = vpop.permute.xlu0 %911
      %914 = vset.pattern.permute.xlu0 0
      %915 = vperm.xlu0 %914, %v330
      %v916 = vpop.permute.xlu0 %915
      %918 = vset.pattern.permute.xlu0 0
      %919 = vperm.xlu0 %918, %v331
      %v920 = vpop.permute.xlu0 %919
      %922 = vset.pattern.permute.xlu0 0
      %923 = vperm.xlu0 %922, %v332
      %v924 = vpop.permute.xlu0 %923
      %926 = vset.pattern.permute.xlu0 0
      %927 = vperm.xlu0 %926, %v333
      %v928 = vpop.permute.xlu0 %927
      %930 = vset.pattern.permute.xlu0 0
      %931 = vperm.xlu0 %930, %v334
      %v932 = vpop.permute.xlu0 %931
      %934 = vset.pattern.permute.xlu0 0
      %935 = vperm.xlu0 %934, %v335
      %v936 = vpop.permute.xlu0 %935
      %938 = vset.pattern.permute.xlu0 0
      %939 = vperm.xlu0 %938, %v336
      %v940 = vpop.permute.xlu0 %939
      %942 = vset.pattern.permute.xlu0 0
      %943 = vperm.xlu0 %942, %v337
      %v944 = vpop.permute.xlu0 %943
      %v946 = vmul.f32 %v884, %v450
      %v947 = vmul.f32 %v888, %v451
      %v948 = vmul.f32 %v892, %v452
      %v949 = vmul.f32 %v896, %v453
      %v950 = vmul.f32 %v900, %v454
      %v951 = vmul.f32 %v904, %v455
      %v952 = vmul.f32 %v908, %v456
      %v953 = vmul.f32 %v912, %v457
      %v954 = vmul.f32 %v916, %v458
      %v955 = vmul.f32 %v920, %v459
      %v956 = vmul.f32 %v924, %v460
      %v957 = vmul.f32 %v928, %v461
      %v958 = vmul.f32 %v932, %v462
      %v959 = vmul.f32 %v936, %v463
      %v960 = vmul.f32 %v940, %v464
      %v961 = vmul.f32 %v944, %v465
      %978 = vrot.lane.b32.xlu0 %v946, 64
      %v979 = vpop.permute.xlu0 %978
      %980 = vrot.lane.b32.xlu0 %v947, 64
      %v981 = vpop.permute.xlu0 %980
      %982 = vrot.lane.b32.xlu0 %v948, 64
      %v983 = vpop.permute.xlu0 %982
      %984 = vrot.lane.b32.xlu0 %v949, 64
      %v985 = vpop.permute.xlu0 %984
      %986 = vrot.lane.b32.xlu0 %v950, 64
      %v987 = vpop.permute.xlu0 %986
      %988 = vrot.lane.b32.xlu0 %v951, 64
      %v989 = vpop.permute.xlu0 %988
      %990 = vrot.lane.b32.xlu0 %v952, 64
      %v991 = vpop.permute.xlu0 %990
      %992 = vrot.lane.b32.xlu0 %v953, 64
      %v993 = vpop.permute.xlu0 %992
      %994 = vrot.lane.b32.xlu0 %v954, 64
      %v995 = vpop.permute.xlu0 %994
      %996 = vrot.lane.b32.xlu0 %v955, 64
      %v997 = vpop.permute.xlu0 %996
      %998 = vrot.lane.b32.xlu0 %v956, 64
      %v999 = vpop.permute.xlu0 %998
      %1000 = vrot.lane.b32.xlu0 %v957, 64
      %v1001 = vpop.permute.xlu0 %1000
      %1002 = vrot.lane.b32.xlu0 %v958, 64
      %v1003 = vpop.permute.xlu0 %1002
      %1004 = vrot.lane.b32.xlu0 %v959, 64
      %v1005 = vpop.permute.xlu0 %1004
      %1006 = vrot.lane.b32.xlu0 %v960, 64
      %v1007 = vpop.permute.xlu0 %1006
      %1008 = vrot.lane.b32.xlu0 %v961, 64
      %v1009 = vpop.permute.xlu0 %1008
      %v1026 = vadd.f32 %v866, %v979
      %v1027 = vadd.f32 %v867, %v981
      %v1028 = vadd.f32 %v868, %v983
      %v1029 = vadd.f32 %v869, %v985
      %v1030 = vadd.f32 %v870, %v987
      %v1031 = vadd.f32 %v871, %v989
      %v1032 = vadd.f32 %v872, %v991
      %v1033 = vadd.f32 %v873, %v993
      %v1034 = vadd.f32 %v874, %v995
      %v1035 = vadd.f32 %v875, %v997
      %v1036 = vadd.f32 %v876, %v999
      %v1037 = vadd.f32 %v877, %v1001
      %v1038 = vadd.f32 %v878, %v1003
      %v1039 = vadd.f32 %v879, %v1005
      %v1040 = vadd.f32 %v880, %v1007
      %v1041 = vadd.f32 %v881, %v1009
      %v1042 = vmul.f32 %v724, %v450
      %v1043 = vmul.f32 %v728, %v451
      %v1044 = vmul.f32 %v732, %v452
      %v1045 = vmul.f32 %v736, %v453
      %v1046 = vmul.f32 %v740, %v454
      %v1047 = vmul.f32 %v744, %v455
      %v1048 = vmul.f32 %v748, %v456
      %v1049 = vmul.f32 %v752, %v457
      %v1050 = vmul.f32 %v756, %v458
      %v1051 = vmul.f32 %v760, %v459
      %v1052 = vmul.f32 %v764, %v460
      %v1053 = vmul.f32 %v768, %v461
      %v1054 = vmul.f32 %v772, %v462
      %v1055 = vmul.f32 %v776, %v463
      %v1056 = vmul.f32 %v780, %v464
      %v1057 = vmul.f32 %v784, %v465
      %1058 = vset.pattern.permute.xlu0 1
      %1059 = vperm.xlu0 %1058, %v338
      %v1060 = vpop.permute.xlu0 %1059
      %1062 = vset.pattern.permute.xlu0 1
      %1063 = vperm.xlu0 %1062, %v339
      %v1064 = vpop.permute.xlu0 %1063
      %1066 = vset.pattern.permute.xlu0 1
      %1067 = vperm.xlu0 %1066, %v340
      %v1068 = vpop.permute.xlu0 %1067
      %1070 = vset.pattern.permute.xlu0 1
      %1071 = vperm.xlu0 %1070, %v341
      %v1072 = vpop.permute.xlu0 %1071
      %1074 = vset.pattern.permute.xlu0 1
      %1075 = vperm.xlu0 %1074, %v342
      %v1076 = vpop.permute.xlu0 %1075
      %1078 = vset.pattern.permute.xlu0 1
      %1079 = vperm.xlu0 %1078, %v343
      %v1080 = vpop.permute.xlu0 %1079
      %1082 = vset.pattern.permute.xlu0 1
      %1083 = vperm.xlu0 %1082, %v344
      %v1084 = vpop.permute.xlu0 %1083
      %1086 = vset.pattern.permute.xlu0 1
      %1087 = vperm.xlu0 %1086, %v345
      %v1088 = vpop.permute.xlu0 %1087
      %1090 = vset.pattern.permute.xlu0 1
      %1091 = vperm.xlu0 %1090, %v346
      %v1092 = vpop.permute.xlu0 %1091
      %1094 = vset.pattern.permute.xlu0 1
      %1095 = vperm.xlu0 %1094, %v347
      %v1096 = vpop.permute.xlu0 %1095
      %1098 = vset.pattern.permute.xlu0 1
      %1099 = vperm.xlu0 %1098, %v348
      %v1100 = vpop.permute.xlu0 %1099
      %1102 = vset.pattern.permute.xlu0 1
      %1103 = vperm.xlu0 %1102, %v349
      %v1104 = vpop.permute.xlu0 %1103
      %1106 = vset.pattern.permute.xlu0 1
      %1107 = vperm.xlu0 %1106, %v350
      %v1108 = vpop.permute.xlu0 %1107
      %1110 = vset.pattern.permute.xlu0 1
      %1111 = vperm.xlu0 %1110, %v351
      %v1112 = vpop.permute.xlu0 %1111
      %1114 = vset.pattern.permute.xlu0 1
      %1115 = vperm.xlu0 %1114, %v352
      %v1116 = vpop.permute.xlu0 %1115
      %1118 = vset.pattern.permute.xlu0 1
      %1119 = vperm.xlu0 %1118, %v353
      %v1120 = vpop.permute.xlu0 %1119
      %v1122 = vmul.f32 %v1060, %v610
      %v1123 = vmul.f32 %v1064, %v611
      %v1124 = vmul.f32 %v1068, %v612
      %v1125 = vmul.f32 %v1072, %v613
      %v1126 = vmul.f32 %v1076, %v614
      %v1127 = vmul.f32 %v1080, %v615
      %v1128 = vmul.f32 %v1084, %v616
      %v1129 = vmul.f32 %v1088, %v617
      %v1130 = vmul.f32 %v1092, %v618
      %v1131 = vmul.f32 %v1096, %v619
      %v1132 = vmul.f32 %v1100, %v620
      %v1133 = vmul.f32 %v1104, %v621
      %v1134 = vmul.f32 %v1108, %v622
      %v1135 = vmul.f32 %v1112, %v623
      %v1136 = vmul.f32 %v1116, %v624
      %v1137 = vmul.f32 %v1120, %v625
      %1154 = vrot.lane.b32.xlu0 %v1122, 64
      %v1155 = vpop.permute.xlu0 %1154
      %1156 = vrot.lane.b32.xlu0 %v1123, 64
      %v1157 = vpop.permute.xlu0 %1156
      %1158 = vrot.lane.b32.xlu0 %v1124, 64
      %v1159 = vpop.permute.xlu0 %1158
      %1160 = vrot.lane.b32.xlu0 %v1125, 64
      %v1161 = vpop.permute.xlu0 %1160
      %1162 = vrot.lane.b32.xlu0 %v1126, 64
      %v1163 = vpop.permute.xlu0 %1162
      %1164 = vrot.lane.b32.xlu0 %v1127, 64
      %v1165 = vpop.permute.xlu0 %1164
      %1166 = vrot.lane.b32.xlu0 %v1128, 64
      %v1167 = vpop.permute.xlu0 %1166
      %1168 = vrot.lane.b32.xlu0 %v1129, 64
      %v1169 = vpop.permute.xlu0 %1168
      %1170 = vrot.lane.b32.xlu0 %v1130, 64
      %v1171 = vpop.permute.xlu0 %1170
      %1172 = vrot.lane.b32.xlu0 %v1131, 64
      %v1173 = vpop.permute.xlu0 %1172
      %1174 = vrot.lane.b32.xlu0 %v1132, 64
      %v1175 = vpop.permute.xlu0 %1174
      %1176 = vrot.lane.b32.xlu0 %v1133, 64
      %v1177 = vpop.permute.xlu0 %1176
      %1178 = vrot.lane.b32.xlu0 %v1134, 64
      %v1179 = vpop.permute.xlu0 %1178
      %1180 = vrot.lane.b32.xlu0 %v1135, 64
      %v1181 = vpop.permute.xlu0 %1180
      %1182 = vrot.lane.b32.xlu0 %v1136, 64
      %v1183 = vpop.permute.xlu0 %1182
      %1184 = vrot.lane.b32.xlu0 %v1137, 64
      %v1185 = vpop.permute.xlu0 %1184
      %v1202 = vsub.f32 %v1042, %v1155
      %v1203 = vsub.f32 %v1043, %v1157
      %v1204 = vsub.f32 %v1044, %v1159
      %v1205 = vsub.f32 %v1045, %v1161
      %v1206 = vsub.f32 %v1046, %v1163
      %v1207 = vsub.f32 %v1047, %v1165
      %v1208 = vsub.f32 %v1048, %v1167
      %v1209 = vsub.f32 %v1049, %v1169
      %v1210 = vsub.f32 %v1050, %v1171
      %v1211 = vsub.f32 %v1051, %v1173
      %v1212 = vsub.f32 %v1052, %v1175
      %v1213 = vsub.f32 %v1053, %v1177
      %v1214 = vsub.f32 %v1054, %v1179
      %v1215 = vsub.f32 %v1055, %v1181
      %v1216 = vsub.f32 %v1056, %v1183
      %v1217 = vsub.f32 %v1057, %v1185
      %v1218 = vmul.f32 %v884, %v530
      %v1219 = vmul.f32 %v888, %v531
      %v1220 = vmul.f32 %v892, %v532
      %v1221 = vmul.f32 %v896, %v533
      %v1222 = vmul.f32 %v900, %v534
      %v1223 = vmul.f32 %v904, %v535
      %v1224 = vmul.f32 %v908, %v536
      %v1225 = vmul.f32 %v912, %v537
      %v1226 = vmul.f32 %v916, %v538
      %v1227 = vmul.f32 %v920, %v539
      %v1228 = vmul.f32 %v924, %v540
      %v1229 = vmul.f32 %v928, %v541
      %v1230 = vmul.f32 %v932, %v542
      %v1231 = vmul.f32 %v936, %v543
      %v1232 = vmul.f32 %v940, %v544
      %v1233 = vmul.f32 %v944, %v545
      %1250 = vrot.lane.b32.xlu0 %v1218, 96
      %v1251 = vpop.permute.xlu0 %1250
      %1252 = vrot.lane.b32.xlu0 %v1219, 96
      %v1253 = vpop.permute.xlu0 %1252
      %1254 = vrot.lane.b32.xlu0 %v1220, 96
      %v1255 = vpop.permute.xlu0 %1254
      %1256 = vrot.lane.b32.xlu0 %v1221, 96
      %v1257 = vpop.permute.xlu0 %1256
      %1258 = vrot.lane.b32.xlu0 %v1222, 96
      %v1259 = vpop.permute.xlu0 %1258
      %1260 = vrot.lane.b32.xlu0 %v1223, 96
      %v1261 = vpop.permute.xlu0 %1260
      %1262 = vrot.lane.b32.xlu0 %v1224, 96
      %v1263 = vpop.permute.xlu0 %1262
      %1264 = vrot.lane.b32.xlu0 %v1225, 96
      %v1265 = vpop.permute.xlu0 %1264
      %1266 = vrot.lane.b32.xlu0 %v1226, 96
      %v1267 = vpop.permute.xlu0 %1266
      %1268 = vrot.lane.b32.xlu0 %v1227, 96
      %v1269 = vpop.permute.xlu0 %1268
      %1270 = vrot.lane.b32.xlu0 %v1228, 96
      %v1271 = vpop.permute.xlu0 %1270
      %1272 = vrot.lane.b32.xlu0 %v1229, 96
      %v1273 = vpop.permute.xlu0 %1272
      %1274 = vrot.lane.b32.xlu0 %v1230, 96
      %v1275 = vpop.permute.xlu0 %1274
      %1276 = vrot.lane.b32.xlu0 %v1231, 96
      %v1277 = vpop.permute.xlu0 %1276
      %1278 = vrot.lane.b32.xlu0 %v1232, 96
      %v1279 = vpop.permute.xlu0 %1278
      %1280 = vrot.lane.b32.xlu0 %v1233, 96
      %v1281 = vpop.permute.xlu0 %1280
      %v1298 = vadd.f32 %v1202, %v1251
      %v1299 = vadd.f32 %v1203, %v1253
      %v1300 = vadd.f32 %v1204, %v1255
      %v1301 = vadd.f32 %v1205, %v1257
      %v1302 = vadd.f32 %v1206, %v1259
      %v1303 = vadd.f32 %v1207, %v1261
      %v1304 = vadd.f32 %v1208, %v1263
      %v1305 = vadd.f32 %v1209, %v1265
      %v1306 = vadd.f32 %v1210, %v1267
      %v1307 = vadd.f32 %v1211, %v1269
      %v1308 = vadd.f32 %v1212, %v1271
      %v1309 = vadd.f32 %v1213, %v1273
      %v1310 = vadd.f32 %v1214, %v1275
      %v1311 = vadd.f32 %v1215, %v1277
      %v1312 = vadd.f32 %v1216, %v1279
      %v1313 = vadd.f32 %v1217, %v1281
      %v1314 = vmul.f32 %v1060, %v530
      %v1315 = vmul.f32 %v1064, %v531
      %v1316 = vmul.f32 %v1068, %v532
      %v1317 = vmul.f32 %v1072, %v533
      %v1318 = vmul.f32 %v1076, %v534
      %v1319 = vmul.f32 %v1080, %v535
      %v1320 = vmul.f32 %v1084, %v536
      %v1321 = vmul.f32 %v1088, %v537
      %v1322 = vmul.f32 %v1092, %v538
      %v1323 = vmul.f32 %v1096, %v539
      %v1324 = vmul.f32 %v1100, %v540
      %v1325 = vmul.f32 %v1104, %v541
      %v1326 = vmul.f32 %v1108, %v542
      %v1327 = vmul.f32 %v1112, %v543
      %v1328 = vmul.f32 %v1116, %v544
      %v1329 = vmul.f32 %v1120, %v545
      %v1330 = vmul.f32 %v629, %v450
      %v1331 = vmul.f32 %v634, %v451
      %v1332 = vmul.f32 %v639, %v452
      %v1333 = vmul.f32 %v644, %v453
      %v1334 = vmul.f32 %v649, %v454
      %v1335 = vmul.f32 %v654, %v455
      %v1336 = vmul.f32 %v659, %v456
      %v1337 = vmul.f32 %v664, %v457
      %v1338 = vmul.f32 %v669, %v458
      %v1339 = vmul.f32 %v674, %v459
      %v1340 = vmul.f32 %v679, %v460
      %v1341 = vmul.f32 %v684, %v461
      %v1342 = vmul.f32 %v689, %v462
      %v1343 = vmul.f32 %v694, %v463
      %v1344 = vmul.f32 %v699, %v464
      %v1345 = vmul.f32 %v704, %v465
      %1362 = vrot.lane.b32.xlu0 %v1330, 32
      %v1363 = vpop.permute.xlu0 %1362
      %1364 = vrot.lane.b32.xlu0 %v1331, 32
      %v1365 = vpop.permute.xlu0 %1364
      %1366 = vrot.lane.b32.xlu0 %v1332, 32
      %v1367 = vpop.permute.xlu0 %1366
      %1368 = vrot.lane.b32.xlu0 %v1333, 32
      %v1369 = vpop.permute.xlu0 %1368
      %1370 = vrot.lane.b32.xlu0 %v1334, 32
      %v1371 = vpop.permute.xlu0 %1370
      %1372 = vrot.lane.b32.xlu0 %v1335, 32
      %v1373 = vpop.permute.xlu0 %1372
      %1374 = vrot.lane.b32.xlu0 %v1336, 32
      %v1375 = vpop.permute.xlu0 %1374
      %1376 = vrot.lane.b32.xlu0 %v1337, 32
      %v1377 = vpop.permute.xlu0 %1376
      %1378 = vrot.lane.b32.xlu0 %v1338, 32
      %v1379 = vpop.permute.xlu0 %1378
      %1380 = vrot.lane.b32.xlu0 %v1339, 32
      %v1381 = vpop.permute.xlu0 %1380
      %1382 = vrot.lane.b32.xlu0 %v1340, 32
      %v1383 = vpop.permute.xlu0 %1382
      %1384 = vrot.lane.b32.xlu0 %v1341, 32
      %v1385 = vpop.permute.xlu0 %1384
      %1386 = vrot.lane.b32.xlu0 %v1342, 32
      %v1387 = vpop.permute.xlu0 %1386
      %1388 = vrot.lane.b32.xlu0 %v1343, 32
      %v1389 = vpop.permute.xlu0 %1388
      %1390 = vrot.lane.b32.xlu0 %v1344, 32
      %v1391 = vpop.permute.xlu0 %1390
      %1392 = vrot.lane.b32.xlu0 %v1345, 32
      %v1393 = vpop.permute.xlu0 %1392
      %v1410 = vsub.f32 %v1314, %v1363
      %v1411 = vsub.f32 %v1315, %v1365
      %v1412 = vsub.f32 %v1316, %v1367
      %v1413 = vsub.f32 %v1317, %v1369
      %v1414 = vsub.f32 %v1318, %v1371
      %v1415 = vsub.f32 %v1319, %v1373
      %v1416 = vsub.f32 %v1320, %v1375
      %v1417 = vsub.f32 %v1321, %v1377
      %v1418 = vsub.f32 %v1322, %v1379
      %v1419 = vsub.f32 %v1323, %v1381
      %v1420 = vsub.f32 %v1324, %v1383
      %v1421 = vsub.f32 %v1325, %v1385
      %v1422 = vsub.f32 %v1326, %v1387
      %v1423 = vsub.f32 %v1327, %v1389
      %v1424 = vsub.f32 %v1328, %v1391
      %v1425 = vsub.f32 %v1329, %v1393
      %v1426 = vmul.f32 %v884, %v610
      %v1427 = vmul.f32 %v888, %v611
      %v1428 = vmul.f32 %v892, %v612
      %v1429 = vmul.f32 %v896, %v613
      %v1430 = vmul.f32 %v900, %v614
      %v1431 = vmul.f32 %v904, %v615
      %v1432 = vmul.f32 %v908, %v616
      %v1433 = vmul.f32 %v912, %v617
      %v1434 = vmul.f32 %v916, %v618
      %v1435 = vmul.f32 %v920, %v619
      %v1436 = vmul.f32 %v924, %v620
      %v1437 = vmul.f32 %v928, %v621
      %v1438 = vmul.f32 %v932, %v622
      %v1439 = vmul.f32 %v936, %v623
      %v1440 = vmul.f32 %v940, %v624
      %v1441 = vmul.f32 %v944, %v625
      %1458 = vrot.lane.b32.xlu0 %v1426, 96
      %v1459 = vpop.permute.xlu0 %1458
      %1460 = vrot.lane.b32.xlu0 %v1427, 96
      %v1461 = vpop.permute.xlu0 %1460
      %1462 = vrot.lane.b32.xlu0 %v1428, 96
      %v1463 = vpop.permute.xlu0 %1462
      %1464 = vrot.lane.b32.xlu0 %v1429, 96
      %v1465 = vpop.permute.xlu0 %1464
      %1466 = vrot.lane.b32.xlu0 %v1430, 96
      %v1467 = vpop.permute.xlu0 %1466
      %1468 = vrot.lane.b32.xlu0 %v1431, 96
      %v1469 = vpop.permute.xlu0 %1468
      %1470 = vrot.lane.b32.xlu0 %v1432, 96
      %v1471 = vpop.permute.xlu0 %1470
      %1472 = vrot.lane.b32.xlu0 %v1433, 96
      %v1473 = vpop.permute.xlu0 %1472
      %1474 = vrot.lane.b32.xlu0 %v1434, 96
      %v1475 = vpop.permute.xlu0 %1474
      %1476 = vrot.lane.b32.xlu0 %v1435, 96
      %v1477 = vpop.permute.xlu0 %1476
      %1478 = vrot.lane.b32.xlu0 %v1436, 96
      %v1479 = vpop.permute.xlu0 %1478
      %1480 = vrot.lane.b32.xlu0 %v1437, 96
      %v1481 = vpop.permute.xlu0 %1480
      %1482 = vrot.lane.b32.xlu0 %v1438, 96
      %v1483 = vpop.permute.xlu0 %1482
      %1484 = vrot.lane.b32.xlu0 %v1439, 96
      %v1485 = vpop.permute.xlu0 %1484
      %1486 = vrot.lane.b32.xlu0 %v1440, 96
      %v1487 = vpop.permute.xlu0 %1486
      %1488 = vrot.lane.b32.xlu0 %v1441, 96
      %v1489 = vpop.permute.xlu0 %1488
      %v1506 = vadd.f32 %v1410, %v1459
      %v1507 = vadd.f32 %v1411, %v1461
      %v1508 = vadd.f32 %v1412, %v1463
      %v1509 = vadd.f32 %v1413, %v1465
      %v1510 = vadd.f32 %v1414, %v1467
      %v1511 = vadd.f32 %v1415, %v1469
      %v1512 = vadd.f32 %v1416, %v1471
      %v1513 = vadd.f32 %v1417, %v1473
      %v1514 = vadd.f32 %v1418, %v1475
      %v1515 = vadd.f32 %v1419, %v1477
      %v1516 = vadd.f32 %v1420, %v1479
      %v1517 = vadd.f32 %v1421, %v1481
      %v1518 = vadd.f32 %v1422, %v1483
      %v1519 = vadd.f32 %v1423, %v1485
      %v1520 = vadd.f32 %v1424, %v1487
      %v1521 = vadd.f32 %v1425, %v1489
      %v1522 = vmul.f32 %v629, %v1506
      %v1523 = vmul.f32 %v634, %v1507
      %v1524 = vmul.f32 %v639, %v1508
      %v1525 = vmul.f32 %v644, %v1509
      %v1526 = vmul.f32 %v649, %v1510
      %v1527 = vmul.f32 %v654, %v1511
      %v1528 = vmul.f32 %v659, %v1512
      %v1529 = vmul.f32 %v664, %v1513
      %v1530 = vmul.f32 %v669, %v1514
      %v1531 = vmul.f32 %v674, %v1515
      %v1532 = vmul.f32 %v679, %v1516
      %v1533 = vmul.f32 %v684, %v1517
      %v1534 = vmul.f32 %v689, %v1518
      %v1535 = vmul.f32 %v694, %v1519
      %v1536 = vmul.f32 %v699, %v1520
      %v1537 = vmul.f32 %v704, %v1521
      %v1538 = vmul.f32 %v724, %v1298
      %v1539 = vmul.f32 %v728, %v1299
      %v1540 = vmul.f32 %v732, %v1300
      %v1541 = vmul.f32 %v736, %v1301
      %v1542 = vmul.f32 %v740, %v1302
      %v1543 = vmul.f32 %v744, %v1303
      %v1544 = vmul.f32 %v748, %v1304
      %v1545 = vmul.f32 %v752, %v1305
      %v1546 = vmul.f32 %v756, %v1306
      %v1547 = vmul.f32 %v760, %v1307
      %v1548 = vmul.f32 %v764, %v1308
      %v1549 = vmul.f32 %v768, %v1309
      %v1550 = vmul.f32 %v772, %v1310
      %v1551 = vmul.f32 %v776, %v1311
      %v1552 = vmul.f32 %v780, %v1312
      %v1553 = vmul.f32 %v784, %v1313
      %1570 = vrot.lane.b32.xlu0 %v1538, 32
      %v1571 = vpop.permute.xlu0 %1570
      %1572 = vrot.lane.b32.xlu0 %v1539, 32
      %v1573 = vpop.permute.xlu0 %1572
      %1574 = vrot.lane.b32.xlu0 %v1540, 32
      %v1575 = vpop.permute.xlu0 %1574
      %1576 = vrot.lane.b32.xlu0 %v1541, 32
      %v1577 = vpop.permute.xlu0 %1576
      %1578 = vrot.lane.b32.xlu0 %v1542, 32
      %v1579 = vpop.permute.xlu0 %1578
      %1580 = vrot.lane.b32.xlu0 %v1543, 32
      %v1581 = vpop.permute.xlu0 %1580
      %1582 = vrot.lane.b32.xlu0 %v1544, 32
      %v1583 = vpop.permute.xlu0 %1582
      %1584 = vrot.lane.b32.xlu0 %v1545, 32
      %v1585 = vpop.permute.xlu0 %1584
      %1586 = vrot.lane.b32.xlu0 %v1546, 32
      %v1587 = vpop.permute.xlu0 %1586
      %1588 = vrot.lane.b32.xlu0 %v1547, 32
      %v1589 = vpop.permute.xlu0 %1588
      %1590 = vrot.lane.b32.xlu0 %v1548, 32
      %v1591 = vpop.permute.xlu0 %1590
      %1592 = vrot.lane.b32.xlu0 %v1549, 32
      %v1593 = vpop.permute.xlu0 %1592
      %1594 = vrot.lane.b32.xlu0 %v1550, 32
      %v1595 = vpop.permute.xlu0 %1594
      %1596 = vrot.lane.b32.xlu0 %v1551, 32
      %v1597 = vpop.permute.xlu0 %1596
      %1598 = vrot.lane.b32.xlu0 %v1552, 32
      %v1599 = vpop.permute.xlu0 %1598
      %1600 = vrot.lane.b32.xlu0 %v1553, 32
      %v1601 = vpop.permute.xlu0 %1600
      %v1618 = vsub.f32 %v1522, %v1571
      %v1619 = vsub.f32 %v1523, %v1573
      %v1620 = vsub.f32 %v1524, %v1575
      %v1621 = vsub.f32 %v1525, %v1577
      %v1622 = vsub.f32 %v1526, %v1579
      %v1623 = vsub.f32 %v1527, %v1581
      %v1624 = vsub.f32 %v1528, %v1583
      %v1625 = vsub.f32 %v1529, %v1585
      %v1626 = vsub.f32 %v1530, %v1587
      %v1627 = vsub.f32 %v1531, %v1589
      %v1628 = vsub.f32 %v1532, %v1591
      %v1629 = vsub.f32 %v1533, %v1593
      %v1630 = vsub.f32 %v1534, %v1595
      %v1631 = vsub.f32 %v1535, %v1597
      %v1632 = vsub.f32 %v1536, %v1599
      %v1633 = vsub.f32 %v1537, %v1601
      %v1634 = vmul.f32 %v1618, 2.0
      %v1635 = vmul.f32 %v1619, 2.0
      %v1636 = vmul.f32 %v1620, 2.0
      %v1637 = vmul.f32 %v1621, 2.0
      %v1638 = vmul.f32 %v1622, 2.0
      %v1639 = vmul.f32 %v1623, 2.0
      %v1640 = vmul.f32 %v1624, 2.0
      %v1641 = vmul.f32 %v1625, 2.0
      %v1642 = vmul.f32 %v1626, 2.0
      %v1643 = vmul.f32 %v1627, 2.0
      %v1644 = vmul.f32 %v1628, 2.0
      %v1645 = vmul.f32 %v1629, 2.0
      %v1646 = vmul.f32 %v1630, 2.0
      %v1647 = vmul.f32 %v1631, 2.0
      %v1648 = vmul.f32 %v1632, 2.0
      %v1649 = vmul.f32 %v1633, 2.0
      %1666 = vrot.lane.b32.xlu0 %v1634, 96
      %v1667 = vpop.permute.xlu0 %1666
      %1668 = vrot.lane.b32.xlu0 %v1635, 96
      %v1669 = vpop.permute.xlu0 %1668
      %1670 = vrot.lane.b32.xlu0 %v1636, 96
      %v1671 = vpop.permute.xlu0 %1670
      %1672 = vrot.lane.b32.xlu0 %v1637, 96
      %v1673 = vpop.permute.xlu0 %1672
      %1674 = vrot.lane.b32.xlu0 %v1638, 96
      %v1675 = vpop.permute.xlu0 %1674
      %1676 = vrot.lane.b32.xlu0 %v1639, 96
      %v1677 = vpop.permute.xlu0 %1676
      %1678 = vrot.lane.b32.xlu0 %v1640, 96
      %v1679 = vpop.permute.xlu0 %1678
      %1680 = vrot.lane.b32.xlu0 %v1641, 96
      %v1681 = vpop.permute.xlu0 %1680
      %1682 = vrot.lane.b32.xlu0 %v1642, 96
      %v1683 = vpop.permute.xlu0 %1682
      %1684 = vrot.lane.b32.xlu0 %v1643, 96
      %v1685 = vpop.permute.xlu0 %1684
      %1686 = vrot.lane.b32.xlu0 %v1644, 96
      %v1687 = vpop.permute.xlu0 %1686
      %1688 = vrot.lane.b32.xlu0 %v1645, 96
      %v1689 = vpop.permute.xlu0 %1688
      %1690 = vrot.lane.b32.xlu0 %v1646, 96
      %v1691 = vpop.permute.xlu0 %1690
      %1692 = vrot.lane.b32.xlu0 %v1647, 96
      %v1693 = vpop.permute.xlu0 %1692
      %1694 = vrot.lane.b32.xlu0 %v1648, 96
      %v1695 = vpop.permute.xlu0 %1694
      %1696 = vrot.lane.b32.xlu0 %v1649, 96
      %v1697 = vpop.permute.xlu0 %1696
      %v1714 = vadd.f32 %v450, %v1667
      %v1715 = vadd.f32 %v451, %v1669
      %v1716 = vadd.f32 %v452, %v1671
      %v1717 = vadd.f32 %v453, %v1673
      %v1718 = vadd.f32 %v454, %v1675
      %v1719 = vadd.f32 %v455, %v1677
      %v1720 = vadd.f32 %v456, %v1679
      %v1721 = vadd.f32 %v457, %v1681
      %v1722 = vadd.f32 %v458, %v1683
      %v1723 = vadd.f32 %v459, %v1685
      %v1724 = vadd.f32 %v460, %v1687
      %v1725 = vadd.f32 %v461, %v1689
      %v1726 = vadd.f32 %v462, %v1691
      %v1727 = vadd.f32 %v463, %v1693
      %v1728 = vadd.f32 %v464, %v1695
      %v1729 = vadd.f32 %v465, %v1697
      %v1730 = vmul.f32 %v724, %v1026
      %v1731 = vmul.f32 %v728, %v1027
      %v1732 = vmul.f32 %v732, %v1028
      %v1733 = vmul.f32 %v736, %v1029
      %v1734 = vmul.f32 %v740, %v1030
      %v1735 = vmul.f32 %v744, %v1031
      %v1736 = vmul.f32 %v748, %v1032
      %v1737 = vmul.f32 %v752, %v1033
      %v1738 = vmul.f32 %v756, %v1034
      %v1739 = vmul.f32 %v760, %v1035
      %v1740 = vmul.f32 %v764, %v1036
      %v1741 = vmul.f32 %v768, %v1037
      %v1742 = vmul.f32 %v772, %v1038
      %v1743 = vmul.f32 %v776, %v1039
      %v1744 = vmul.f32 %v780, %v1040
      %v1745 = vmul.f32 %v784, %v1041
      %v1746 = vmul.f32 %v1060, %v1506
      %v1747 = vmul.f32 %v1064, %v1507
      %v1748 = vmul.f32 %v1068, %v1508
      %v1749 = vmul.f32 %v1072, %v1509
      %v1750 = vmul.f32 %v1076, %v1510
      %v1751 = vmul.f32 %v1080, %v1511
      %v1752 = vmul.f32 %v1084, %v1512
      %v1753 = vmul.f32 %v1088, %v1513
      %v1754 = vmul.f32 %v1092, %v1514
      %v1755 = vmul.f32 %v1096, %v1515
      %v1756 = vmul.f32 %v1100, %v1516
      %v1757 = vmul.f32 %v1104, %v1517
      %v1758 = vmul.f32 %v1108, %v1518
      %v1759 = vmul.f32 %v1112, %v1519
      %v1760 = vmul.f32 %v1116, %v1520
      %v1761 = vmul.f32 %v1120, %v1521
      %1778 = vrot.lane.b32.xlu0 %v1746, 32
      %v1779 = vpop.permute.xlu0 %1778
      %1780 = vrot.lane.b32.xlu0 %v1747, 32
      %v1781 = vpop.permute.xlu0 %1780
      %1782 = vrot.lane.b32.xlu0 %v1748, 32
      %v1783 = vpop.permute.xlu0 %1782
      %1784 = vrot.lane.b32.xlu0 %v1749, 32
      %v1785 = vpop.permute.xlu0 %1784
      %1786 = vrot.lane.b32.xlu0 %v1750, 32
      %v1787 = vpop.permute.xlu0 %1786
      %1788 = vrot.lane.b32.xlu0 %v1751, 32
      %v1789 = vpop.permute.xlu0 %1788
      %1790 = vrot.lane.b32.xlu0 %v1752, 32
      %v1791 = vpop.permute.xlu0 %1790
      %1792 = vrot.lane.b32.xlu0 %v1753, 32
      %v1793 = vpop.permute.xlu0 %1792
      %1794 = vrot.lane.b32.xlu0 %v1754, 32
      %v1795 = vpop.permute.xlu0 %1794
      %1796 = vrot.lane.b32.xlu0 %v1755, 32
      %v1797 = vpop.permute.xlu0 %1796
      %1798 = vrot.lane.b32.xlu0 %v1756, 32
      %v1799 = vpop.permute.xlu0 %1798
      %1800 = vrot.lane.b32.xlu0 %v1757, 32
      %v1801 = vpop.permute.xlu0 %1800
      %1802 = vrot.lane.b32.xlu0 %v1758, 32
      %v1803 = vpop.permute.xlu0 %1802
      %1804 = vrot.lane.b32.xlu0 %v1759, 32
      %v1805 = vpop.permute.xlu0 %1804
      %1806 = vrot.lane.b32.xlu0 %v1760, 32
      %v1807 = vpop.permute.xlu0 %1806
      %1808 = vrot.lane.b32.xlu0 %v1761, 32
      %v1809 = vpop.permute.xlu0 %1808
      %v1826 = vsub.f32 %v1730, %v1779
      %v1827 = vsub.f32 %v1731, %v1781
      %v1828 = vsub.f32 %v1732, %v1783
      %v1829 = vsub.f32 %v1733, %v1785
      %v1830 = vsub.f32 %v1734, %v1787
      %v1831 = vsub.f32 %v1735, %v1789
      %v1832 = vsub.f32 %v1736, %v1791
      %v1833 = vsub.f32 %v1737, %v1793
      %v1834 = vsub.f32 %v1738, %v1795
      %v1835 = vsub.f32 %v1739, %v1797
      %v1836 = vsub.f32 %v1740, %v1799
      %v1837 = vsub.f32 %v1741, %v1801
      %v1838 = vsub.f32 %v1742, %v1803
      %v1839 = vsub.f32 %v1743, %v1805
      %v1840 = vsub.f32 %v1744, %v1807
      %v1841 = vsub.f32 %v1745, %v1809
      %v1842 = vmul.f32 %v1826, 2.0
      %v1843 = vmul.f32 %v1827, 2.0
      %v1844 = vmul.f32 %v1828, 2.0
      %v1845 = vmul.f32 %v1829, 2.0
      %v1846 = vmul.f32 %v1830, 2.0
      %v1847 = vmul.f32 %v1831, 2.0
      %v1848 = vmul.f32 %v1832, 2.0
      %v1849 = vmul.f32 %v1833, 2.0
      %v1850 = vmul.f32 %v1834, 2.0
      %v1851 = vmul.f32 %v1835, 2.0
      %v1852 = vmul.f32 %v1836, 2.0
      %v1853 = vmul.f32 %v1837, 2.0
      %v1854 = vmul.f32 %v1838, 2.0
      %v1855 = vmul.f32 %v1839, 2.0
      %v1856 = vmul.f32 %v1840, 2.0
      %v1857 = vmul.f32 %v1841, 2.0
      %1874 = vrot.lane.b32.xlu0 %v1842, 96
      %v1875 = vpop.permute.xlu0 %1874
      %1876 = vrot.lane.b32.xlu0 %v1843, 96
      %v1877 = vpop.permute.xlu0 %1876
      %1878 = vrot.lane.b32.xlu0 %v1844, 96
      %v1879 = vpop.permute.xlu0 %1878
      %1880 = vrot.lane.b32.xlu0 %v1845, 96
      %v1881 = vpop.permute.xlu0 %1880
      %1882 = vrot.lane.b32.xlu0 %v1846, 96
      %v1883 = vpop.permute.xlu0 %1882
      %1884 = vrot.lane.b32.xlu0 %v1847, 96
      %v1885 = vpop.permute.xlu0 %1884
      %1886 = vrot.lane.b32.xlu0 %v1848, 96
      %v1887 = vpop.permute.xlu0 %1886
      %1888 = vrot.lane.b32.xlu0 %v1849, 96
      %v1889 = vpop.permute.xlu0 %1888
      %1890 = vrot.lane.b32.xlu0 %v1850, 96
      %v1891 = vpop.permute.xlu0 %1890
      %1892 = vrot.lane.b32.xlu0 %v1851, 96
      %v1893 = vpop.permute.xlu0 %1892
      %1894 = vrot.lane.b32.xlu0 %v1852, 96
      %v1895 = vpop.permute.xlu0 %1894
      %1896 = vrot.lane.b32.xlu0 %v1853, 96
      %v1897 = vpop.permute.xlu0 %1896
      %1898 = vrot.lane.b32.xlu0 %v1854, 96
      %v1899 = vpop.permute.xlu0 %1898
      %1900 = vrot.lane.b32.xlu0 %v1855, 96
      %v1901 = vpop.permute.xlu0 %1900
      %1902 = vrot.lane.b32.xlu0 %v1856, 96
      %v1903 = vpop.permute.xlu0 %1902
      %1904 = vrot.lane.b32.xlu0 %v1857, 96
      %v1905 = vpop.permute.xlu0 %1904
      %v1922 = vadd.f32 %v530, %v1875
      %v1923 = vadd.f32 %v531, %v1877
      %v1924 = vadd.f32 %v532, %v1879
      %v1925 = vadd.f32 %v533, %v1881
      %v1926 = vadd.f32 %v534, %v1883
      %v1927 = vadd.f32 %v535, %v1885
      %v1928 = vadd.f32 %v536, %v1887
      %v1929 = vadd.f32 %v537, %v1889
      %v1930 = vadd.f32 %v538, %v1891
      %v1931 = vadd.f32 %v539, %v1893
      %v1932 = vadd.f32 %v540, %v1895
      %v1933 = vadd.f32 %v541, %v1897
      %v1934 = vadd.f32 %v542, %v1899
      %v1935 = vadd.f32 %v543, %v1901
      %v1936 = vadd.f32 %v544, %v1903
      %v1937 = vadd.f32 %v545, %v1905
      %v1938 = vmul.f32 %v1060, %v1298
      %v1939 = vmul.f32 %v1064, %v1299
      %v1940 = vmul.f32 %v1068, %v1300
      %v1941 = vmul.f32 %v1072, %v1301
      %v1942 = vmul.f32 %v1076, %v1302
      %v1943 = vmul.f32 %v1080, %v1303
      %v1944 = vmul.f32 %v1084, %v1304
      %v1945 = vmul.f32 %v1088, %v1305
      %v1946 = vmul.f32 %v1092, %v1306
      %v1947 = vmul.f32 %v1096, %v1307
      %v1948 = vmul.f32 %v1100, %v1308
      %v1949 = vmul.f32 %v1104, %v1309
      %v1950 = vmul.f32 %v1108, %v1310
      %v1951 = vmul.f32 %v1112, %v1311
      %v1952 = vmul.f32 %v1116, %v1312
      %v1953 = vmul.f32 %v1120, %v1313
      %v1954 = vmul.f32 %v629, %v1026
      %v1955 = vmul.f32 %v634, %v1027
      %v1956 = vmul.f32 %v639, %v1028
      %v1957 = vmul.f32 %v644, %v1029
      %v1958 = vmul.f32 %v649, %v1030
      %v1959 = vmul.f32 %v654, %v1031
      %v1960 = vmul.f32 %v659, %v1032
      %v1961 = vmul.f32 %v664, %v1033
      %v1962 = vmul.f32 %v669, %v1034
      %v1963 = vmul.f32 %v674, %v1035
      %v1964 = vmul.f32 %v679, %v1036
      %v1965 = vmul.f32 %v684, %v1037
      %v1966 = vmul.f32 %v689, %v1038
      %v1967 = vmul.f32 %v694, %v1039
      %v1968 = vmul.f32 %v699, %v1040
      %v1969 = vmul.f32 %v704, %v1041
      %1986 = vrot.lane.b32.xlu0 %v1954, 64
      %v1987 = vpop.permute.xlu0 %1986
      %1988 = vrot.lane.b32.xlu0 %v1955, 64
      %v1989 = vpop.permute.xlu0 %1988
      %1990 = vrot.lane.b32.xlu0 %v1956, 64
      %v1991 = vpop.permute.xlu0 %1990
      %1992 = vrot.lane.b32.xlu0 %v1957, 64
      %v1993 = vpop.permute.xlu0 %1992
      %1994 = vrot.lane.b32.xlu0 %v1958, 64
      %v1995 = vpop.permute.xlu0 %1994
      %1996 = vrot.lane.b32.xlu0 %v1959, 64
      %v1997 = vpop.permute.xlu0 %1996
      %1998 = vrot.lane.b32.xlu0 %v1960, 64
      %v1999 = vpop.permute.xlu0 %1998
      %2000 = vrot.lane.b32.xlu0 %v1961, 64
      %v2001 = vpop.permute.xlu0 %2000
      %2002 = vrot.lane.b32.xlu0 %v1962, 64
      %v2003 = vpop.permute.xlu0 %2002
      %2004 = vrot.lane.b32.xlu0 %v1963, 64
      %v2005 = vpop.permute.xlu0 %2004
      %2006 = vrot.lane.b32.xlu0 %v1964, 64
      %v2007 = vpop.permute.xlu0 %2006
      %2008 = vrot.lane.b32.xlu0 %v1965, 64
      %v2009 = vpop.permute.xlu0 %2008
      %2010 = vrot.lane.b32.xlu0 %v1966, 64
      %v2011 = vpop.permute.xlu0 %2010
      %2012 = vrot.lane.b32.xlu0 %v1967, 64
      %v2013 = vpop.permute.xlu0 %2012
      %2014 = vrot.lane.b32.xlu0 %v1968, 64
      %v2015 = vpop.permute.xlu0 %2014
      %2016 = vrot.lane.b32.xlu0 %v1969, 64
      %v2017 = vpop.permute.xlu0 %2016
      %v2034 = vsub.f32 %v1938, %v1987
      %v2035 = vsub.f32 %v1939, %v1989
      %v2036 = vsub.f32 %v1940, %v1991
      %v2037 = vsub.f32 %v1941, %v1993
      %v2038 = vsub.f32 %v1942, %v1995
      %v2039 = vsub.f32 %v1943, %v1997
      %v2040 = vsub.f32 %v1944, %v1999
      %v2041 = vsub.f32 %v1945, %v2001
      %v2042 = vsub.f32 %v1946, %v2003
      %v2043 = vsub.f32 %v1947, %v2005
      %v2044 = vsub.f32 %v1948, %v2007
      %v2045 = vsub.f32 %v1949, %v2009
      %v2046 = vsub.f32 %v1950, %v2011
      %v2047 = vsub.f32 %v1951, %v2013
      %v2048 = vsub.f32 %v1952, %v2015
      %v2049 = vsub.f32 %v1953, %v2017
      %v2050 = vmul.f32 %v2034, 2.0
      %v2051 = vmul.f32 %v2035, 2.0
      %v2052 = vmul.f32 %v2036, 2.0
      %v2053 = vmul.f32 %v2037, 2.0
      %v2054 = vmul.f32 %v2038, 2.0
      %v2055 = vmul.f32 %v2039, 2.0
      %v2056 = vmul.f32 %v2040, 2.0
      %v2057 = vmul.f32 %v2041, 2.0
      %v2058 = vmul.f32 %v2042, 2.0
      %v2059 = vmul.f32 %v2043, 2.0
      %v2060 = vmul.f32 %v2044, 2.0
      %v2061 = vmul.f32 %v2045, 2.0
      %v2062 = vmul.f32 %v2046, 2.0
      %v2063 = vmul.f32 %v2047, 2.0
      %v2064 = vmul.f32 %v2048, 2.0
      %v2065 = vmul.f32 %v2049, 2.0
      %2082 = vrot.lane.b32.xlu0 %v2050, 64
      %v2083 = vpop.permute.xlu0 %2082
      %2084 = vrot.lane.b32.xlu0 %v2051, 64
      %v2085 = vpop.permute.xlu0 %2084
      %2086 = vrot.lane.b32.xlu0 %v2052, 64
      %v2087 = vpop.permute.xlu0 %2086
      %2088 = vrot.lane.b32.xlu0 %v2053, 64
      %v2089 = vpop.permute.xlu0 %2088
      %2090 = vrot.lane.b32.xlu0 %v2054, 64
      %v2091 = vpop.permute.xlu0 %2090
      %2092 = vrot.lane.b32.xlu0 %v2055, 64
      %v2093 = vpop.permute.xlu0 %2092
      %2094 = vrot.lane.b32.xlu0 %v2056, 64
      %v2095 = vpop.permute.xlu0 %2094
      %2096 = vrot.lane.b32.xlu0 %v2057, 64
      %v2097 = vpop.permute.xlu0 %2096
      %2098 = vrot.lane.b32.xlu0 %v2058, 64
      %v2099 = vpop.permute.xlu0 %2098
      %2100 = vrot.lane.b32.xlu0 %v2059, 64
      %v2101 = vpop.permute.xlu0 %2100
      %2102 = vrot.lane.b32.xlu0 %v2060, 64
      %v2103 = vpop.permute.xlu0 %2102
      %2104 = vrot.lane.b32.xlu0 %v2061, 64
      %v2105 = vpop.permute.xlu0 %2104
      %2106 = vrot.lane.b32.xlu0 %v2062, 64
      %v2107 = vpop.permute.xlu0 %2106
      %2108 = vrot.lane.b32.xlu0 %v2063, 64
      %v2109 = vpop.permute.xlu0 %2108
      %2110 = vrot.lane.b32.xlu0 %v2064, 64
      %v2111 = vpop.permute.xlu0 %2110
      %2112 = vrot.lane.b32.xlu0 %v2065, 64
      %v2113 = vpop.permute.xlu0 %2112
      %v2130 = vadd.f32 %v610, %v2083
      %v2131 = vadd.f32 %v611, %v2085
      %v2132 = vadd.f32 %v612, %v2087
      %v2133 = vadd.f32 %v613, %v2089
      %v2134 = vadd.f32 %v614, %v2091
      %v2135 = vadd.f32 %v615, %v2093
      %v2136 = vadd.f32 %v616, %v2095
      %v2137 = vadd.f32 %v617, %v2097
      %v2138 = vadd.f32 %v618, %v2099
      %v2139 = vadd.f32 %v619, %v2101
      %v2140 = vadd.f32 %v620, %v2103
      %v2141 = vadd.f32 %v621, %v2105
      %v2142 = vadd.f32 %v622, %v2107
      %v2143 = vadd.f32 %v623, %v2109
      %v2144 = vadd.f32 %v624, %v2111
      %v2145 = vadd.f32 %v625, %v2113
      %v2146 = vmul.f32 %v1714, %v1714
      %v2147 = vmul.f32 %v1715, %v1715
      %v2148 = vmul.f32 %v1716, %v1716
      %v2149 = vmul.f32 %v1717, %v1717
      %v2150 = vmul.f32 %v1718, %v1718
      %v2151 = vmul.f32 %v1719, %v1719
      %v2152 = vmul.f32 %v1720, %v1720
      %v2153 = vmul.f32 %v1721, %v1721
      %v2154 = vmul.f32 %v1722, %v1722
      %v2155 = vmul.f32 %v1723, %v1723
      %v2156 = vmul.f32 %v1724, %v1724
      %v2157 = vmul.f32 %v1725, %v1725
      %v2158 = vmul.f32 %v1726, %v1726
      %v2159 = vmul.f32 %v1727, %v1727
      %v2160 = vmul.f32 %v1728, %v1728
      %v2161 = vmul.f32 %v1729, %v1729
      %v2162 = vmul.f32 %v1922, %v1922
      %v2163 = vmul.f32 %v1923, %v1923
      %v2164 = vmul.f32 %v1924, %v1924
      %v2165 = vmul.f32 %v1925, %v1925
      %v2166 = vmul.f32 %v1926, %v1926
      %v2167 = vmul.f32 %v1927, %v1927
      %v2168 = vmul.f32 %v1928, %v1928
      %v2169 = vmul.f32 %v1929, %v1929
      %v2170 = vmul.f32 %v1930, %v1930
      %v2171 = vmul.f32 %v1931, %v1931
      %v2172 = vmul.f32 %v1932, %v1932
      %v2173 = vmul.f32 %v1933, %v1933
      %v2174 = vmul.f32 %v1934, %v1934
      %v2175 = vmul.f32 %v1935, %v1935
      %v2176 = vmul.f32 %v1936, %v1936
      %v2177 = vmul.f32 %v1937, %v1937
      %2194 = vrot.lane.b32.xlu0 %v2162, 96
      %v2195 = vpop.permute.xlu0 %2194
      %2196 = vrot.lane.b32.xlu0 %v2163, 96
      %v2197 = vpop.permute.xlu0 %2196
      %2198 = vrot.lane.b32.xlu0 %v2164, 96
      %v2199 = vpop.permute.xlu0 %2198
      %2200 = vrot.lane.b32.xlu0 %v2165, 96
      %v2201 = vpop.permute.xlu0 %2200
      %2202 = vrot.lane.b32.xlu0 %v2166, 96
      %v2203 = vpop.permute.xlu0 %2202
      %2204 = vrot.lane.b32.xlu0 %v2167, 96
      %v2205 = vpop.permute.xlu0 %2204
      %2206 = vrot.lane.b32.xlu0 %v2168, 96
      %v2207 = vpop.permute.xlu0 %2206
      %2208 = vrot.lane.b32.xlu0 %v2169, 96
      %v2209 = vpop.permute.xlu0 %2208
      %2210 = vrot.lane.b32.xlu0 %v2170, 96
      %v2211 = vpop.permute.xlu0 %2210
      %2212 = vrot.lane.b32.xlu0 %v2171, 96
      %v2213 = vpop.permute.xlu0 %2212
      %2214 = vrot.lane.b32.xlu0 %v2172, 96
      %v2215 = vpop.permute.xlu0 %2214
      %2216 = vrot.lane.b32.xlu0 %v2173, 96
      %v2217 = vpop.permute.xlu0 %2216
      %2218 = vrot.lane.b32.xlu0 %v2174, 96
      %v2219 = vpop.permute.xlu0 %2218
      %2220 = vrot.lane.b32.xlu0 %v2175, 96
      %v2221 = vpop.permute.xlu0 %2220
      %2222 = vrot.lane.b32.xlu0 %v2176, 96
      %v2223 = vpop.permute.xlu0 %2222
      %2224 = vrot.lane.b32.xlu0 %v2177, 96
      %v2225 = vpop.permute.xlu0 %2224
      %v2242 = vadd.f32 %v2146, %v2195
      %v2243 = vadd.f32 %v2147, %v2197
      %v2244 = vadd.f32 %v2148, %v2199
      %v2245 = vadd.f32 %v2149, %v2201
      %v2246 = vadd.f32 %v2150, %v2203
      %v2247 = vadd.f32 %v2151, %v2205
      %v2248 = vadd.f32 %v2152, %v2207
      %v2249 = vadd.f32 %v2153, %v2209
      %v2250 = vadd.f32 %v2154, %v2211
      %v2251 = vadd.f32 %v2155, %v2213
      %v2252 = vadd.f32 %v2156, %v2215
      %v2253 = vadd.f32 %v2157, %v2217
      %v2254 = vadd.f32 %v2158, %v2219
      %v2255 = vadd.f32 %v2159, %v2221
      %v2256 = vadd.f32 %v2160, %v2223
      %v2257 = vadd.f32 %v2161, %v2225
      %v2258 = vmul.f32 %v2130, %v2130
      %v2259 = vmul.f32 %v2131, %v2131
      %v2260 = vmul.f32 %v2132, %v2132
      %v2261 = vmul.f32 %v2133, %v2133
      %v2262 = vmul.f32 %v2134, %v2134
      %v2263 = vmul.f32 %v2135, %v2135
      %v2264 = vmul.f32 %v2136, %v2136
      %v2265 = vmul.f32 %v2137, %v2137
      %v2266 = vmul.f32 %v2138, %v2138
      %v2267 = vmul.f32 %v2139, %v2139
      %v2268 = vmul.f32 %v2140, %v2140
      %v2269 = vmul.f32 %v2141, %v2141
      %v2270 = vmul.f32 %v2142, %v2142
      %v2271 = vmul.f32 %v2143, %v2143
      %v2272 = vmul.f32 %v2144, %v2144
      %v2273 = vmul.f32 %v2145, %v2145
      %2290 = vrot.lane.b32.xlu0 %v2258, 64
      %v2291 = vpop.permute.xlu0 %2290
      %2292 = vrot.lane.b32.xlu0 %v2259, 64
      %v2293 = vpop.permute.xlu0 %2292
      %2294 = vrot.lane.b32.xlu0 %v2260, 64
      %v2295 = vpop.permute.xlu0 %2294
      %2296 = vrot.lane.b32.xlu0 %v2261, 64
      %v2297 = vpop.permute.xlu0 %2296
      %2298 = vrot.lane.b32.xlu0 %v2262, 64
      %v2299 = vpop.permute.xlu0 %2298
      %2300 = vrot.lane.b32.xlu0 %v2263, 64
      %v2301 = vpop.permute.xlu0 %2300
      %2302 = vrot.lane.b32.xlu0 %v2264, 64
      %v2303 = vpop.permute.xlu0 %2302
      %2304 = vrot.lane.b32.xlu0 %v2265, 64
      %v2305 = vpop.permute.xlu0 %2304
      %2306 = vrot.lane.b32.xlu0 %v2266, 64
      %v2307 = vpop.permute.xlu0 %2306
      %2308 = vrot.lane.b32.xlu0 %v2267, 64
      %v2309 = vpop.permute.xlu0 %2308
      %2310 = vrot.lane.b32.xlu0 %v2268, 64
      %v2311 = vpop.permute.xlu0 %2310
      %2312 = vrot.lane.b32.xlu0 %v2269, 64
      %v2313 = vpop.permute.xlu0 %2312
      %2314 = vrot.lane.b32.xlu0 %v2270, 64
      %v2315 = vpop.permute.xlu0 %2314
      %2316 = vrot.lane.b32.xlu0 %v2271, 64
      %v2317 = vpop.permute.xlu0 %2316
      %2318 = vrot.lane.b32.xlu0 %v2272, 64
      %v2319 = vpop.permute.xlu0 %2318
      %2320 = vrot.lane.b32.xlu0 %v2273, 64
      %v2321 = vpop.permute.xlu0 %2320
      %v2338 = vadd.f32 %v2242, %v2291
      %v2339 = vadd.f32 %v2243, %v2293
      %v2340 = vadd.f32 %v2244, %v2295
      %v2341 = vadd.f32 %v2245, %v2297
      %v2342 = vadd.f32 %v2246, %v2299
      %v2343 = vadd.f32 %v2247, %v2301
      %v2344 = vadd.f32 %v2248, %v2303
      %v2345 = vadd.f32 %v2249, %v2305
      %v2346 = vadd.f32 %v2250, %v2307
      %v2347 = vadd.f32 %v2251, %v2309
      %v2348 = vadd.f32 %v2252, %v2311
      %v2349 = vadd.f32 %v2253, %v2313
      %v2350 = vadd.f32 %v2254, %v2315
      %v2351 = vadd.f32 %v2255, %v2317
      %v2352 = vadd.f32 %v2256, %v2319
      %v2353 = vadd.f32 %v2257, %v2321
      %v2354 = vadd.f32 %v2338, 1e-08
      %v2355 = vadd.f32 %v2339, 1e-08
      %v2356 = vadd.f32 %v2340, 1e-08
      %v2357 = vadd.f32 %v2341, 1e-08
      %v2358 = vadd.f32 %v2342, 1e-08
      %v2359 = vadd.f32 %v2343, 1e-08
      %v2360 = vadd.f32 %v2344, 1e-08
      %v2361 = vadd.f32 %v2345, 1e-08
      %v2362 = vadd.f32 %v2346, 1e-08
      %v2363 = vadd.f32 %v2347, 1e-08
      %v2364 = vadd.f32 %v2348, 1e-08
      %v2365 = vadd.f32 %v2349, 1e-08
      %v2366 = vadd.f32 %v2350, 1e-08
      %v2367 = vadd.f32 %v2351, 1e-08
      %v2368 = vadd.f32 %v2352, 1e-08
      %v2369 = vadd.f32 %v2353, 1e-08
      %v2370 = vrsqrt.pop %v2354
      %v2371 = vmul.f32 %v2354, %v2370
      %vm2372 = vcmp.eq.f32.partialorder %v2354, inf
      %v2373 = vsel %vm2372, %v2354, %v2371
      %vm2374 = vcmp.eq.f32.partialorder %v2354, 0.0
      %v2375 = vand.u32 %v2354, 2147483648
      %v2376 = vsel %vm2374, %v2375, %v2373
      %v2377 = vrsqrt.pop %v2355
      %v2378 = vmul.f32 %v2355, %v2377
      %vm2379 = vcmp.eq.f32.partialorder %v2355, inf
      %v2380 = vsel %vm2379, %v2355, %v2378
      %vm2381 = vcmp.eq.f32.partialorder %v2355, 0.0
      %v2382 = vand.u32 %v2355, 2147483648
      %v2383 = vsel %vm2381, %v2382, %v2380
      %v2384 = vrsqrt.pop %v2356
      %v2385 = vmul.f32 %v2356, %v2384
      %vm2386 = vcmp.eq.f32.partialorder %v2356, inf
      %v2387 = vsel %vm2386, %v2356, %v2385
      %vm2388 = vcmp.eq.f32.partialorder %v2356, 0.0
      %v2389 = vand.u32 %v2356, 2147483648
      %v2390 = vsel %vm2388, %v2389, %v2387
      %v2391 = vrsqrt.pop %v2357
      %v2392 = vmul.f32 %v2357, %v2391
      %vm2393 = vcmp.eq.f32.partialorder %v2357, inf
      %v2394 = vsel %vm2393, %v2357, %v2392
      %vm2395 = vcmp.eq.f32.partialorder %v2357, 0.0
      %v2396 = vand.u32 %v2357, 2147483648
      %v2397 = vsel %vm2395, %v2396, %v2394
      %v2398 = vrsqrt.pop %v2358
      %v2399 = vmul.f32 %v2358, %v2398
      %vm2400 = vcmp.eq.f32.partialorder %v2358, inf
      %v2401 = vsel %vm2400, %v2358, %v2399
      %vm2402 = vcmp.eq.f32.partialorder %v2358, 0.0
      %v2403 = vand.u32 %v2358, 2147483648
      %v2404 = vsel %vm2402, %v2403, %v2401
      %v2405 = vrsqrt.pop %v2359
      %v2406 = vmul.f32 %v2359, %v2405
      %vm2407 = vcmp.eq.f32.partialorder %v2359, inf
      %v2408 = vsel %vm2407, %v2359, %v2406
      %vm2409 = vcmp.eq.f32.partialorder %v2359, 0.0
      %v2410 = vand.u32 %v2359, 2147483648
      %v2411 = vsel %vm2409, %v2410, %v2408
      %v2412 = vrsqrt.pop %v2360
      %v2413 = vmul.f32 %v2360, %v2412
      %vm2414 = vcmp.eq.f32.partialorder %v2360, inf
      %v2415 = vsel %vm2414, %v2360, %v2413
      %vm2416 = vcmp.eq.f32.partialorder %v2360, 0.0
      %v2417 = vand.u32 %v2360, 2147483648
      %v2418 = vsel %vm2416, %v2417, %v2415
      %v2419 = vrsqrt.pop %v2361
      %v2420 = vmul.f32 %v2361, %v2419
      %vm2421 = vcmp.eq.f32.partialorder %v2361, inf
      %v2422 = vsel %vm2421, %v2361, %v2420
      %vm2423 = vcmp.eq.f32.partialorder %v2361, 0.0
      %v2424 = vand.u32 %v2361, 2147483648
      %v2425 = vsel %vm2423, %v2424, %v2422
      %v2426 = vrsqrt.pop %v2362
      %v2427 = vmul.f32 %v2362, %v2426
      %vm2428 = vcmp.eq.f32.partialorder %v2362, inf
      %v2429 = vsel %vm2428, %v2362, %v2427
      %vm2430 = vcmp.eq.f32.partialorder %v2362, 0.0
      %v2431 = vand.u32 %v2362, 2147483648
      %v2432 = vsel %vm2430, %v2431, %v2429
      %v2433 = vrsqrt.pop %v2363
      %v2434 = vmul.f32 %v2363, %v2433
      %vm2435 = vcmp.eq.f32.partialorder %v2363, inf
      %v2436 = vsel %vm2435, %v2363, %v2434
      %vm2437 = vcmp.eq.f32.partialorder %v2363, 0.0
      %v2438 = vand.u32 %v2363, 2147483648
      %v2439 = vsel %vm2437, %v2438, %v2436
      %v2440 = vrsqrt.pop %v2364
      %v2441 = vmul.f32 %v2364, %v2440
      %vm2442 = vcmp.eq.f32.partialorder %v2364, inf
      %v2443 = vsel %vm2442, %v2364, %v2441
      %vm2444 = vcmp.eq.f32.partialorder %v2364, 0.0
      %v2445 = vand.u32 %v2364, 2147483648
      %v2446 = vsel %vm2444, %v2445, %v2443
      %v2447 = vrsqrt.pop %v2365
      %v2448 = vmul.f32 %v2365, %v2447
      %vm2449 = vcmp.eq.f32.partialorder %v2365, inf
      %v2450 = vsel %vm2449, %v2365, %v2448
      %vm2451 = vcmp.eq.f32.partialorder %v2365, 0.0
      %v2452 = vand.u32 %v2365, 2147483648
      %v2453 = vsel %vm2451, %v2452, %v2450
      %v2454 = vrsqrt.pop %v2366
      %v2455 = vmul.f32 %v2366, %v2454
      %vm2456 = vcmp.eq.f32.partialorder %v2366, inf
      %v2457 = vsel %vm2456, %v2366, %v2455
      %vm2458 = vcmp.eq.f32.partialorder %v2366, 0.0
      %v2459 = vand.u32 %v2366, 2147483648
      %v2460 = vsel %vm2458, %v2459, %v2457
      %v2461 = vrsqrt.pop %v2367
      %v2462 = vmul.f32 %v2367, %v2461
      %vm2463 = vcmp.eq.f32.partialorder %v2367, inf
      %v2464 = vsel %vm2463, %v2367, %v2462
      %vm2465 = vcmp.eq.f32.partialorder %v2367, 0.0
      %v2466 = vand.u32 %v2367, 2147483648
      %v2467 = vsel %vm2465, %v2466, %v2464
      %v2468 = vrsqrt.pop %v2368
      %v2469 = vmul.f32 %v2368, %v2468
      %vm2470 = vcmp.eq.f32.partialorder %v2368, inf
      %v2471 = vsel %vm2470, %v2368, %v2469
      %vm2472 = vcmp.eq.f32.partialorder %v2368, 0.0
      %v2473 = vand.u32 %v2368, 2147483648
      %v2474 = vsel %vm2472, %v2473, %v2471
      %v2475 = vrsqrt.pop %v2369
      %v2476 = vmul.f32 %v2369, %v2475
      %vm2477 = vcmp.eq.f32.partialorder %v2369, inf
      %v2478 = vsel %vm2477, %v2369, %v2476
      %vm2479 = vcmp.eq.f32.partialorder %v2369, 0.0
      %v2480 = vand.u32 %v2369, 2147483648
      %v2481 = vsel %vm2479, %v2480, %v2478
      %2498 = vrot.lane.b32.xlu0 %v2376, 96
      %v2499 = vpop.permute.xlu0 %2498
      %2500 = vrot.lane.b32.xlu0 %v2383, 96
      %v2501 = vpop.permute.xlu0 %2500
      %2502 = vrot.lane.b32.xlu0 %v2390, 96
      %v2503 = vpop.permute.xlu0 %2502
      %2504 = vrot.lane.b32.xlu0 %v2397, 96
      %v2505 = vpop.permute.xlu0 %2504
      %2506 = vrot.lane.b32.xlu0 %v2404, 96
      %v2507 = vpop.permute.xlu0 %2506
      %2508 = vrot.lane.b32.xlu0 %v2411, 96
      %v2509 = vpop.permute.xlu0 %2508
      %2510 = vrot.lane.b32.xlu0 %v2418, 96
      %v2511 = vpop.permute.xlu0 %2510
      %2512 = vrot.lane.b32.xlu0 %v2425, 96
      %v2513 = vpop.permute.xlu0 %2512
      %2514 = vrot.lane.b32.xlu0 %v2432, 96
      %v2515 = vpop.permute.xlu0 %2514
      %2516 = vrot.lane.b32.xlu0 %v2439, 96
      %v2517 = vpop.permute.xlu0 %2516
      %2518 = vrot.lane.b32.xlu0 %v2446, 96
      %v2519 = vpop.permute.xlu0 %2518
      %2520 = vrot.lane.b32.xlu0 %v2453, 96
      %v2521 = vpop.permute.xlu0 %2520
      %2522 = vrot.lane.b32.xlu0 %v2460, 96
      %v2523 = vpop.permute.xlu0 %2522
      %2524 = vrot.lane.b32.xlu0 %v2467, 96
      %v2525 = vpop.permute.xlu0 %2524
      %2526 = vrot.lane.b32.xlu0 %v2474, 96
      %v2527 = vpop.permute.xlu0 %2526
      %2528 = vrot.lane.b32.xlu0 %v2481, 96
      %v2529 = vpop.permute.xlu0 %2528
      %vm2546 = vcmask 261120
      %v2547 = vsel %vm2546, %v1714, %v1922
      %v2548 = vsel %vm2546, %v1715, %v1923
      %v2549 = vsel %vm2546, %v1716, %v1924
      %v2550 = vsel %vm2546, %v1717, %v1925
      %v2551 = vsel %vm2546, %v1718, %v1926
      %v2552 = vsel %vm2546, %v1719, %v1927
      %v2553 = vsel %vm2546, %v1720, %v1928
      %v2554 = vsel %vm2546, %v1721, %v1929
      %v2555 = vsel %vm2546, %v1722, %v1930
      %v2556 = vsel %vm2546, %v1723, %v1931
      %v2557 = vsel %vm2546, %v1724, %v1932
      %v2558 = vsel %vm2546, %v1725, %v1933
      %v2559 = vsel %vm2546, %v1726, %v1934
      %v2560 = vsel %vm2546, %v1727, %v1935
      %v2561 = vsel %vm2546, %v1728, %v1936
      %v2562 = vsel %vm2546, %v1729, %v1937
      %vm2563 = vcmask 523264
      %v2564 = vsel %vm2563, %v2547, %v2130
      %v2565 = vsel %vm2563, %v2548, %v2131
      %v2566 = vsel %vm2563, %v2549, %v2132
      %v2567 = vsel %vm2563, %v2550, %v2133
      %v2568 = vsel %vm2563, %v2551, %v2134
      %v2569 = vsel %vm2563, %v2552, %v2135
      %v2570 = vsel %vm2563, %v2553, %v2136
      %v2571 = vsel %vm2563, %v2554, %v2137
      %v2572 = vsel %vm2563, %v2555, %v2138
      %v2573 = vsel %vm2563, %v2556, %v2139
      %v2574 = vsel %vm2563, %v2557, %v2140
      %v2575 = vsel %vm2563, %v2558, %v2141
      %v2576 = vsel %vm2563, %v2559, %v2142
      %v2577 = vsel %vm2563, %v2560, %v2143
      %v2578 = vsel %vm2563, %v2561, %v2144
      %v2579 = vsel %vm2563, %v2562, %v2145
      %vm2580 = vcmask 785408
      %v2581 = vsel %vm2580, %v2564, %v2499
      %v2582 = vsel %vm2580, %v2565, %v2501
      %v2583 = vsel %vm2580, %v2566, %v2503
      %v2584 = vsel %vm2580, %v2567, %v2505
      %v2585 = vsel %vm2580, %v2568, %v2507
      %v2586 = vsel %vm2580, %v2569, %v2509
      %v2587 = vsel %vm2580, %v2570, %v2511
      %v2588 = vsel %vm2580, %v2571, %v2513
      %v2589 = vsel %vm2580, %v2572, %v2515
      %v2590 = vsel %vm2580, %v2573, %v2517
      %v2591 = vsel %vm2580, %v2574, %v2519
      %v2592 = vsel %vm2580, %v2575, %v2521
      %v2593 = vsel %vm2580, %v2576, %v2523
      %v2594 = vsel %vm2580, %v2577, %v2525
      %v2595 = vsel %vm2580, %v2578, %v2527
      %v2596 = vsel %vm2580, %v2579, %v2529
      %v2597 = vld [vmem:[%s295] sm:$0xf]
      %v2598 = vld [vmem:[%s295 + $0x4] sm:$0xf]
      %v2599 = vld [vmem:[%s295 + $0x8] sm:$0xf]
      %v2600 = vld [vmem:[%s295 + $0xc] sm:$0xf]
      %v2601 = vld [vmem:[%s295 + $0x10] sm:$0xf]
      %v2602 = vld [vmem:[%s295 + $0x14] sm:$0xf]
      %v2603 = vld [vmem:[%s295 + $0x18] sm:$0xf]
      %v2604 = vld [vmem:[%s295 + $0x1c] sm:$0xf]
      %v2605 = vld [vmem:[%s295 + $0x20] sm:$0xf]
      %v2606 = vld [vmem:[%s295 + $0x24] sm:$0xf]
      %v2607 = vld [vmem:[%s295 + $0x28] sm:$0xf]
      %v2608 = vld [vmem:[%s295 + $0x2c] sm:$0xf]
      %v2609 = vld [vmem:[%s295 + $0x30] sm:$0xf]
      %v2610 = vld [vmem:[%s295 + $0x34] sm:$0xf]
      %v2611 = vld [vmem:[%s295 + $0x38] sm:$0xf]
      %v2612 = vld [vmem:[%s295 + $0x3c] sm:$0xf]
      %v2613 = vld [vmem:[%s4] sm:$0xf]
      %v2614 = vld [vmem:[%s4 + $0x4] sm:$0xf]
      %v2615 = vld [vmem:[%s4 + $0x8] sm:$0xf]
      %v2616 = vld [vmem:[%s4 + $0xc] sm:$0xf]
      %v2617 = vld [vmem:[%s4 + $0x10] sm:$0xf]
      %v2618 = vld [vmem:[%s4 + $0x14] sm:$0xf]
      %v2619 = vld [vmem:[%s4 + $0x18] sm:$0xf]
      %v2620 = vld [vmem:[%s4 + $0x1c] sm:$0xf]
      %v2621 = vld [vmem:[%s4 + $0x20] sm:$0xf]
      %v2622 = vld [vmem:[%s4 + $0x24] sm:$0xf]
      %v2623 = vld [vmem:[%s4 + $0x28] sm:$0xf]
      %v2624 = vld [vmem:[%s4 + $0x2c] sm:$0xf]
      %v2625 = vld [vmem:[%s4 + $0x30] sm:$0xf]
      %v2626 = vld [vmem:[%s4 + $0x34] sm:$0xf]
      %v2627 = vld [vmem:[%s4 + $0x38] sm:$0xf]
      %v2628 = vld [vmem:[%s4 + $0x3c] sm:$0xf]
      %v2629 = vpack.c.bf16 %v2582, %v2581
      %v2630 = vpack.c.bf16 %v2584, %v2583
      %v2631 = vpack.c.bf16 %v2586, %v2585
      %v2632 = vpack.c.bf16 %v2588, %v2587
      %v2633 = vpack.c.bf16 %v2590, %v2589
      %v2634 = vpack.c.bf16 %v2592, %v2591
      %v2635 = vpack.c.bf16 %v2594, %v2593
      %v2636 = vpack.c.bf16 %v2596, %v2595
      %v2637 = vld [vmem:[%s4 + $0x40] sm:$0xf]
      %v2638 = vld [vmem:[%s4 + $0x44] sm:$0xf]
      %v2639 = vld [vmem:[%s4 + $0x48] sm:$0xf]
      %v2640 = vld [vmem:[%s4 + $0x4c] sm:$0xf]
      %v2641 = vld [vmem:[%s4 + $0x50] sm:$0xf]
      %v2642 = vld [vmem:[%s4 + $0x54] sm:$0xf]
      %v2643 = vld [vmem:[%s4 + $0x58] sm:$0xf]
      %v2644 = vld [vmem:[%s4 + $0x5c] sm:$0xf]
      %v2645 = vld [vmem:[%s4 + $0x60] sm:$0xf]
      %v2646 = vld [vmem:[%s4 + $0x64] sm:$0xf]
      %v2647 = vld [vmem:[%s4 + $0x68] sm:$0xf]
      %v2648 = vld [vmem:[%s4 + $0x6c] sm:$0xf]
      %v2649 = vld [vmem:[%s4 + $0x70] sm:$0xf]
      %v2650 = vld [vmem:[%s4 + $0x74] sm:$0xf]
      %v2651 = vld [vmem:[%s4 + $0x78] sm:$0xf]
      %v2652 = vld [vmem:[%s4 + $0x7c] sm:$0xf]
      %v2669 = vunpack.c.l.b16 %v2637
      %v2670 = vunpack.c.l.b16 %v2638
      %v2671 = vunpack.c.l.b16 %v2639
      %v2672 = vunpack.c.l.b16 %v2640
      %v2673 = vunpack.c.l.b16 %v2641
      %v2674 = vunpack.c.l.b16 %v2642
      %v2675 = vunpack.c.l.b16 %v2643
      %v2676 = vunpack.c.l.b16 %v2644
      %v2677 = vunpack.c.l.b16 %v2645
      %v2678 = vunpack.c.l.b16 %v2646
      %v2679 = vunpack.c.l.b16 %v2647
      %v2680 = vunpack.c.l.b16 %v2648
      %v2681 = vunpack.c.l.b16 %v2649
      %v2682 = vunpack.c.l.b16 %v2650
      %v2683 = vunpack.c.l.b16 %v2651
      %v2684 = vunpack.c.l.b16 %v2652
      %v2685 = vpack.c.b16 %v2670, %v2669
      %v2686 = vpack.c.b16 %v2672, %v2671
      %v2687 = vpack.c.b16 %v2674, %v2673
      %v2688 = vpack.c.b16 %v2676, %v2675
      %v2689 = vpack.c.b16 %v2678, %v2677
      %v2690 = vpack.c.b16 %v2680, %v2679
      %v2691 = vpack.c.b16 %v2682, %v2681
      %v2692 = vpack.c.b16 %v2684, %v2683
      %2701 = vmatprep.subr.bf16.mxu0 0
      %2702 = vmatpush1.bf16.msra.mxu0 %v2692
      %2703 = vmatprep.subr.bf16.mxu0 0
      %2704 = vmatpush1.bf16.msra.mxu0 %v2691
      %2705 = vmatprep.subr.bf16.mxu0 0
      %2706 = vmatpush1.bf16.msra.mxu0 %v2690
      %2707 = vmatprep.subr.bf16.mxu0 0
      %2708 = vmatpush1.bf16.msra.mxu0 %v2689
      %2709 = vmatprep.subr.bf16.mxu0 0
      %2710 = vmatpush1.bf16.msra.mxu0 %v2688
      %2711 = vmatprep.subr.bf16.mxu0 0
      %2712 = vmatpush1.bf16.msra.mxu0 %v2687
      %2713 = vmatprep.subr.bf16.mxu0 0
      %2714 = vmatpush1.bf16.msra.mxu0 %v2686
      %2715 = vmatprep.subr.bf16.mxu0 0
      %2716 = vmatpush1.bf16.msra.mxu0 %v2685
      %2717 = vmatprep.subr.bf16.mxu0 0
      %2718 = vmatpush2.bf16.msra.mxu0 0
      %2719 = vmatprep.subr.bf16.mxu0 0
      %2720 = vmatpush2.bf16.msra.mxu0 0
      %2721 = vmatprep.subr.bf16.mxu0 0
      %2722 = vmatpush2.bf16.msra.mxu0 0
      %2723 = vmatprep.subr.bf16.mxu0 0
      %2724 = vmatpush2.bf16.msra.mxu0 0
      %2725 = vmatprep.subr.bf16.mxu0 0
      %2726 = vmatpush2.bf16.msra.mxu0 0
      %2727 = vmatprep.subr.bf16.mxu0 0
      %2728 = vmatpush2.bf16.msra.mxu0 0
      %2729 = vmatprep.subr.bf16.mxu0 0
      %2730 = vmatpush2.bf16.msra.mxu0 0
      %2731 = vmatprep.subr.bf16.mxu0 0
      %2732 = vmatpush2.bf16.msra.mxu0 0
      %2733 = vmatprep.mubr.bf16.mxu0 0
      %2734 = vmatmul.mubr.bf16.gmra.mxu0 %v2629
      %v2735 = vpop.f32.mrf.mxu0
      %v2736 = vadd.f32 0.0, %v2735
      %v2737 = vpop.f32.mrf.mxu0
      %v2738 = vpop.f32.mrf.mxu0
      %v2739 = vadd.f32 0.0, %v2738
      %v2740 = vpop.f32.mrf.mxu0
      %2741 = vmatprep.mubr.bf16.mxu0 0
      %2742 = vmatmul.mubr.bf16.gmra.mxu0 %v2630
      %v2743 = vpop.f32.mrf.mxu0
      %v2744 = vadd.f32 0.0, %v2743
      %v2745 = vpop.f32.mrf.mxu0
      %v2746 = vpop.f32.mrf.mxu0
      %v2747 = vadd.f32 0.0, %v2746
      %v2748 = vpop.f32.mrf.mxu0
      %2749 = vmatprep.mubr.bf16.mxu0 0
      %2750 = vmatmul.mubr.bf16.gmra.mxu0 %v2631
      %v2751 = vpop.f32.mrf.mxu0
      %v2752 = vadd.f32 0.0, %v2751
      %v2753 = vpop.f32.mrf.mxu0
      %v2754 = vpop.f32.mrf.mxu0
      %v2755 = vadd.f32 0.0, %v2754
      %v2756 = vpop.f32.mrf.mxu0
      %2757 = vmatprep.mubr.bf16.mxu0 0
      %2758 = vmatmul.mubr.bf16.gmra.mxu0 %v2632
      %v2759 = vpop.f32.mrf.mxu0
      %v2760 = vadd.f32 0.0, %v2759
      %v2761 = vpop.f32.mrf.mxu0
      %v2762 = vpop.f32.mrf.mxu0
      %v2763 = vadd.f32 0.0, %v2762
      %v2764 = vpop.f32.mrf.mxu0
      %2765 = vmatprep.mubr.bf16.mxu0 0
      %2766 = vmatmul.mubr.bf16.gmra.mxu0 %v2633
      %v2767 = vpop.f32.mrf.mxu0
      %v2768 = vadd.f32 0.0, %v2767
      %v2769 = vpop.f32.mrf.mxu0
      %v2770 = vpop.f32.mrf.mxu0
      %v2771 = vadd.f32 0.0, %v2770
      %v2772 = vpop.f32.mrf.mxu0
      %2773 = vmatprep.mubr.bf16.mxu0 0
      %2774 = vmatmul.mubr.bf16.gmra.mxu0 %v2634
      %v2775 = vpop.f32.mrf.mxu0
      %v2776 = vadd.f32 0.0, %v2775
      %v2777 = vpop.f32.mrf.mxu0
      %v2778 = vpop.f32.mrf.mxu0
      %v2779 = vadd.f32 0.0, %v2778
      %v2780 = vpop.f32.mrf.mxu0
      %2781 = vmatprep.mubr.bf16.mxu0 0
      %2782 = vmatmul.mubr.bf16.gmra.mxu0 %v2635
      %v2783 = vpop.f32.mrf.mxu0
      %v2784 = vadd.f32 0.0, %v2783
      %v2785 = vpop.f32.mrf.mxu0
      %v2786 = vpop.f32.mrf.mxu0
      %v2787 = vadd.f32 0.0, %v2786
      %v2788 = vpop.f32.mrf.mxu0
      %2789 = vmatprep.mubr.bf16.mxu0 0
      %2790 = vmatmul.mubr.bf16.gmra.mxu0 %v2636
      %v2791 = vpop.f32.mrf.mxu0
      %v2792 = vadd.f32 0.0, %v2791
      %v2793 = vpop.f32.mrf.mxu0
      %v2794 = vpop.f32.mrf.mxu0
      %v2795 = vadd.f32 0.0, %v2794
      %v2796 = vpop.f32.mrf.mxu0
      %2797 = vdwg.mxu0
      %v2814 = vunpack.c.l.b16 %v2597
      %v2815 = vunpack.c.l.b16 %v2598
      %v2816 = vunpack.c.l.b16 %v2599
      %v2817 = vunpack.c.l.b16 %v2600
      %v2818 = vunpack.c.l.b16 %v2601
      %v2819 = vunpack.c.l.b16 %v2602
      %v2820 = vunpack.c.l.b16 %v2603
      %v2821 = vunpack.c.l.b16 %v2604
      %v2822 = vunpack.c.l.b16 %v2605
      %v2823 = vunpack.c.l.b16 %v2606
      %v2824 = vunpack.c.l.b16 %v2607
      %v2825 = vunpack.c.l.b16 %v2608
      %v2826 = vunpack.c.l.b16 %v2609
      %v2827 = vunpack.c.l.b16 %v2610
      %v2828 = vunpack.c.l.b16 %v2611
      %v2829 = vunpack.c.l.b16 %v2612
      %v2830 = vpack.c.b16 %v2815, %v2814
      %v2831 = vpack.c.b16 %v2817, %v2816
      %v2832 = vpack.c.b16 %v2819, %v2818
      %v2833 = vpack.c.b16 %v2821, %v2820
      %v2834 = vpack.c.b16 %v2823, %v2822
      %v2835 = vpack.c.b16 %v2825, %v2824
      %v2836 = vpack.c.b16 %v2827, %v2826
      %v2837 = vpack.c.b16 %v2829, %v2828
      %v2862 = vunpack.c.l.b16 %v2613
      %v2863 = vunpack.c.l.b16 %v2614
      %v2864 = vunpack.c.l.b16 %v2615
      %v2865 = vunpack.c.l.b16 %v2616
      %v2866 = vunpack.c.l.b16 %v2617
      %v2867 = vunpack.c.l.b16 %v2618
      %v2868 = vunpack.c.l.b16 %v2619
      %v2869 = vunpack.c.l.b16 %v2620
      %v2870 = vunpack.c.l.b16 %v2621
      %v2871 = vunpack.c.l.b16 %v2622
      %v2872 = vunpack.c.l.b16 %v2623
      %v2873 = vunpack.c.l.b16 %v2624
      %v2874 = vunpack.c.l.b16 %v2625
      %v2875 = vunpack.c.l.b16 %v2626
      %v2876 = vunpack.c.l.b16 %v2627
      %v2877 = vunpack.c.l.b16 %v2628
      %v2878 = vpack.c.b16 %v2863, %v2862
      %v2879 = vpack.c.b16 %v2865, %v2864
      %v2880 = vpack.c.b16 %v2867, %v2866
      %v2881 = vpack.c.b16 %v2869, %v2868
      %v2882 = vpack.c.b16 %v2871, %v2870
      %v2883 = vpack.c.b16 %v2873, %v2872
      %v2884 = vpack.c.b16 %v2875, %v2874
      %v2885 = vpack.c.b16 %v2877, %v2876
      %2894 = vmatprep.subr.bf16.mxu0 0
      %2895 = vmatpush1.bf16.msra.mxu0 %v2885
      %2896 = vmatprep.subr.bf16.mxu0 0
      %2897 = vmatpush1.bf16.msra.mxu0 %v2884
      %2898 = vmatprep.subr.bf16.mxu0 0
      %2899 = vmatpush1.bf16.msra.mxu0 %v2883
      %2900 = vmatprep.subr.bf16.mxu0 0
      %2901 = vmatpush1.bf16.msra.mxu0 %v2882
      %2902 = vmatprep.subr.bf16.mxu0 0
      %2903 = vmatpush1.bf16.msra.mxu0 %v2881
      %2904 = vmatprep.subr.bf16.mxu0 0
      %2905 = vmatpush1.bf16.msra.mxu0 %v2880
      %2906 = vmatprep.subr.bf16.mxu0 0
      %2907 = vmatpush1.bf16.msra.mxu0 %v2879
      %2908 = vmatprep.subr.bf16.mxu0 0
      %2909 = vmatpush1.bf16.msra.mxu0 %v2878
      %2910 = vmatprep.subr.bf16.mxu0 0
      %2911 = vmatpush2.bf16.msra.mxu0 0
      %2912 = vmatprep.subr.bf16.mxu0 0
      %2913 = vmatpush2.bf16.msra.mxu0 0
      %2914 = vmatprep.subr.bf16.mxu0 0
      %2915 = vmatpush2.bf16.msra.mxu0 0
      %2916 = vmatprep.subr.bf16.mxu0 0
      %2917 = vmatpush2.bf16.msra.mxu0 0
      %2918 = vmatprep.subr.bf16.mxu0 0
      %2919 = vmatpush2.bf16.msra.mxu0 0
      %2920 = vmatprep.subr.bf16.mxu0 0
      %2921 = vmatpush2.bf16.msra.mxu0 0
      %2922 = vmatprep.subr.bf16.mxu0 0
      %2923 = vmatpush2.bf16.msra.mxu0 0
      %2924 = vmatprep.subr.bf16.mxu0 0
      %2925 = vmatpush2.bf16.msra.mxu0 0
      %2926 = vmatprep.mubr.bf16.mxu0 0
      %2927 = vmatmul.mubr.bf16.gmra.mxu0 %v2830
      %v2928 = vpop.f32.mrf.mxu0
      %v2929 = vadd.f32 %v2736, %v2928
      %v2930 = vpop.f32.mrf.mxu0
      %v2931 = vpop.f32.mrf.mxu0
      %v2932 = vadd.f32 %v2739, %v2931
      %v2933 = vpop.f32.mrf.mxu0
      %2934 = vmatprep.mubr.bf16.mxu0 0
      %2935 = vmatmul.mubr.bf16.gmra.mxu0 %v2831
      %v2936 = vpop.f32.mrf.mxu0
      %v2937 = vadd.f32 %v2744, %v2936
      %v2938 = vpop.f32.mrf.mxu0
      %v2939 = vpop.f32.mrf.mxu0
      %v2940 = vadd.f32 %v2747, %v2939
      %v2941 = vpop.f32.mrf.mxu0
      %2942 = vmatprep.mubr.bf16.mxu0 0
      %2943 = vmatmul.mubr.bf16.gmra.mxu0 %v2832
      %v2944 = vpop.f32.mrf.mxu0
      %v2945 = vadd.f32 %v2752, %v2944
      %v2946 = vpop.f32.mrf.mxu0
      %v2947 = vpop.f32.mrf.mxu0
      %v2948 = vadd.f32 %v2755, %v2947
      %v2949 = vpop.f32.mrf.mxu0
      %2950 = vmatprep.mubr.bf16.mxu0 0
      %2951 = vmatmul.mubr.bf16.gmra.mxu0 %v2833
      %v2952 = vpop.f32.mrf.mxu0
      %v2953 = vadd.f32 %v2760, %v2952
      %v2954 = vpop.f32.mrf.mxu0
      %v2955 = vpop.f32.mrf.mxu0
      %v2956 = vadd.f32 %v2763, %v2955
      %v2957 = vpop.f32.mrf.mxu0
      %2958 = vmatprep.mubr.bf16.mxu0 0
      %2959 = vmatmul.mubr.bf16.gmra.mxu0 %v2834
      %v2960 = vpop.f32.mrf.mxu0
      %v2961 = vadd.f32 %v2768, %v2960
      %v2962 = vpop.f32.mrf.mxu0
      %v2963 = vpop.f32.mrf.mxu0
      %v2964 = vadd.f32 %v2771, %v2963
      %v2965 = vpop.f32.mrf.mxu0
      %2966 = vmatprep.mubr.bf16.mxu0 0
      %2967 = vmatmul.mubr.bf16.gmra.mxu0 %v2835
      %v2968 = vpop.f32.mrf.mxu0
      %v2969 = vadd.f32 %v2776, %v2968
      %v2970 = vpop.f32.mrf.mxu0
      %v2971 = vpop.f32.mrf.mxu0
      %v2972 = vadd.f32 %v2779, %v2971
      %v2973 = vpop.f32.mrf.mxu0
      %2974 = vmatprep.mubr.bf16.mxu0 0
      %2975 = vmatmul.mubr.bf16.gmra.mxu0 %v2836
      %v2976 = vpop.f32.mrf.mxu0
      %v2977 = vadd.f32 %v2784, %v2976
      %v2978 = vpop.f32.mrf.mxu0
      %v2979 = vpop.f32.mrf.mxu0
      %v2980 = vadd.f32 %v2787, %v2979
      %v2981 = vpop.f32.mrf.mxu0
      %2982 = vmatprep.mubr.bf16.mxu0 0
      %2983 = vmatmul.mubr.bf16.gmra.mxu0 %v2837
      %v2984 = vpop.f32.mrf.mxu0
      %v2985 = vadd.f32 %v2792, %v2984
      %v2986 = vpop.f32.mrf.mxu0
      %v2987 = vpop.f32.mrf.mxu0
      %v2988 = vadd.f32 %v2795, %v2987
      %v2989 = vpop.f32.mrf.mxu0
      %2990 = vdwg.mxu0
      %v2991 = vld [vmem:[%s307] sm:$0xf]
      %v2992 = vld [vmem:[%s307 + $0x4] sm:$0xf]
      %v2993 = vld [vmem:[%s307 + $0x8] sm:$0xf]
      %v2994 = vld [vmem:[%s307 + $0xc] sm:$0xf]
      %v2995 = vld [vmem:[%s307 + $0x10] sm:$0xf]
      %v2996 = vld [vmem:[%s307 + $0x14] sm:$0xf]
      %v2997 = vld [vmem:[%s307 + $0x18] sm:$0xf]
      %v2998 = vld [vmem:[%s307 + $0x1c] sm:$0xf]
      %v2999 = vld [vmem:[%s307 + $0x20] sm:$0xf]
      %v3000 = vld [vmem:[%s307 + $0x24] sm:$0xf]
      %v3001 = vld [vmem:[%s307 + $0x28] sm:$0xf]
      %v3002 = vld [vmem:[%s307 + $0x2c] sm:$0xf]
      %v3003 = vld [vmem:[%s307 + $0x30] sm:$0xf]
      %v3004 = vld [vmem:[%s307 + $0x34] sm:$0xf]
      %v3005 = vld [vmem:[%s307 + $0x38] sm:$0xf]
      %v3006 = vld [vmem:[%s307 + $0x3c] sm:$0xf]
      %v3007 = vld [vmem:[%s4 + $0x80] sm:$0xf]
      %v3008 = vld [vmem:[%s4 + $0x84] sm:$0xf]
      %v3025 = vunpack.c.l.b16 %v2991
      %v3026 = vunpack.c.l.b16 %v2992
      %v3027 = vunpack.c.l.b16 %v2993
      %v3028 = vunpack.c.l.b16 %v2994
      %v3029 = vunpack.c.l.b16 %v2995
      %v3030 = vunpack.c.l.b16 %v2996
      %v3031 = vunpack.c.l.b16 %v2997
      %v3032 = vunpack.c.l.b16 %v2998
      %v3033 = vunpack.c.l.b16 %v2999
      %v3034 = vunpack.c.l.b16 %v3000
      %v3035 = vunpack.c.l.b16 %v3001
      %v3036 = vunpack.c.l.b16 %v3002
      %v3037 = vunpack.c.l.b16 %v3003
      %v3038 = vunpack.c.l.b16 %v3004
      %v3039 = vunpack.c.l.b16 %v3005
      %v3040 = vunpack.c.l.b16 %v3006
      %v3041 = vpack.c.b16 %v3026, %v3025
      %v3042 = vpack.c.b16 %v3028, %v3027
      %v3043 = vpack.c.b16 %v3030, %v3029
      %v3044 = vpack.c.b16 %v3032, %v3031
      %v3045 = vpack.c.b16 %v3034, %v3033
      %v3046 = vpack.c.b16 %v3036, %v3035
      %v3047 = vpack.c.b16 %v3038, %v3037
      %v3048 = vpack.c.b16 %v3040, %v3039
      %v3051 = vunpack.c.l.b16 %v3007
      %v3052 = vunpack.c.l.b16 %v3008
      %v3053 = vpack.c.b16 %v3052, %v3051
      %vm3055 = vcmask 130048
      %v3057 = vsel %vm3055, %v3041, 0
      %v3060 = vsel %vm3055, %v3042, 0
      %v3063 = vsel %vm3055, %v3043, 0
      %v3066 = vsel %vm3055, %v3044, 0
      %v3069 = vsel %vm3055, %v3045, 0
      %v3072 = vsel %vm3055, %v3046, 0
      %v3075 = vsel %vm3055, %v3047, 0
      %v3078 = vsel %vm3055, %v3048, 0
      %3080 = vmatprep.subr.bf16.mxu0 0
      %3081 = vmatpush1.bf16.msra.mxu0 0
      %3082 = vmatprep.subr.bf16.mxu0 0
      %3083 = vmatpush1.bf16.msra.mxu0 0
      %3084 = vmatprep.subr.bf16.mxu0 0
      %3085 = vmatpush1.bf16.msra.mxu0 0
      %3086 = vmatprep.subr.bf16.mxu0 0
      %3087 = vmatpush1.bf16.msra.mxu0 0
      %3088 = vmatprep.subr.bf16.mxu0 0
      %3089 = vmatpush1.bf16.msra.mxu0 0
      %3090 = vmatprep.subr.bf16.mxu0 0
      %3091 = vmatpush1.bf16.msra.mxu0 0
      %3092 = vmatprep.subr.bf16.mxu0 0
      %3093 = vmatpush1.bf16.msra.mxu0 0
      %3094 = vmatprep.subr.bf16.mxu0 0
      %3095 = vmatpush1.bf16.msra.mxu0 %v3053
      %3096 = vmatprep.subr.bf16.mxu0 0
      %3097 = vmatpush2.bf16.msra.mxu0 0
      %3098 = vmatprep.subr.bf16.mxu0 0
      %3099 = vmatpush2.bf16.msra.mxu0 0
      %3100 = vmatprep.subr.bf16.mxu0 0
      %3101 = vmatpush2.bf16.msra.mxu0 0
      %3102 = vmatprep.subr.bf16.mxu0 0
      %3103 = vmatpush2.bf16.msra.mxu0 0
      %3104 = vmatprep.subr.bf16.mxu0 0
      %3105 = vmatpush2.bf16.msra.mxu0 0
      %3106 = vmatprep.subr.bf16.mxu0 0
      %3107 = vmatpush2.bf16.msra.mxu0 0
      %3108 = vmatprep.subr.bf16.mxu0 0
      %3109 = vmatpush2.bf16.msra.mxu0 0
      %3110 = vmatprep.subr.bf16.mxu0 0
      %3111 = vmatpush2.bf16.msra.mxu0 0
      %3112 = vmatprep.mubr.bf16.mxu0 0
      %3113 = vmatmul.mubr.bf16.gmra.mxu0 %v3057
      %v3114 = vpop.f32.mrf.mxu0
      %v3115 = vadd.f32 0.0, %v3114
      %v3116 = vpop.f32.mrf.mxu0
      %v3117 = vpop.f32.mrf.mxu0
      %v3118 = vadd.f32 0.0, %v3117
      %v3119 = vpop.f32.mrf.mxu0
      %3120 = vmatprep.mubr.bf16.mxu0 0
      %3121 = vmatmul.mubr.bf16.gmra.mxu0 %v3060
      %v3122 = vpop.f32.mrf.mxu0
      %v3123 = vadd.f32 0.0, %v3122
      %v3124 = vpop.f32.mrf.mxu0
      %v3125 = vpop.f32.mrf.mxu0
      %v3126 = vadd.f32 0.0, %v3125
      %v3127 = vpop.f32.mrf.mxu0
      %3128 = vmatprep.mubr.bf16.mxu0 0
      %3129 = vmatmul.mubr.bf16.gmra.mxu0 %v3063
      %v3130 = vpop.f32.mrf.mxu0
      %v3131 = vadd.f32 0.0, %v3130
      %v3132 = vpop.f32.mrf.mxu0
      %v3133 = vpop.f32.mrf.mxu0
      %v3134 = vadd.f32 0.0, %v3133
      %v3135 = vpop.f32.mrf.mxu0
      %3136 = vmatprep.mubr.bf16.mxu0 0
      %3137 = vmatmul.mubr.bf16.gmra.mxu0 %v3066
      %v3138 = vpop.f32.mrf.mxu0
      %v3139 = vadd.f32 0.0, %v3138
      %v3140 = vpop.f32.mrf.mxu0
      %v3141 = vpop.f32.mrf.mxu0
      %v3142 = vadd.f32 0.0, %v3141
      %v3143 = vpop.f32.mrf.mxu0
      %3144 = vmatprep.mubr.bf16.mxu0 0
      %3145 = vmatmul.mubr.bf16.gmra.mxu0 %v3069
      %v3146 = vpop.f32.mrf.mxu0
      %v3147 = vadd.f32 0.0, %v3146
      %v3148 = vpop.f32.mrf.mxu0
      %v3149 = vpop.f32.mrf.mxu0
      %v3150 = vadd.f32 0.0, %v3149
      %v3151 = vpop.f32.mrf.mxu0
      %3152 = vmatprep.mubr.bf16.mxu0 0
      %3153 = vmatmul.mubr.bf16.gmra.mxu0 %v3072
      %v3154 = vpop.f32.mrf.mxu0
      %v3155 = vadd.f32 0.0, %v3154
      %v3156 = vpop.f32.mrf.mxu0
      %v3157 = vpop.f32.mrf.mxu0
      %v3158 = vadd.f32 0.0, %v3157
      %v3159 = vpop.f32.mrf.mxu0
      %3160 = vmatprep.mubr.bf16.mxu0 0
      %3161 = vmatmul.mubr.bf16.gmra.mxu0 %v3075
      %v3162 = vpop.f32.mrf.mxu0
      %v3163 = vadd.f32 0.0, %v3162
      %v3164 = vpop.f32.mrf.mxu0
      %v3165 = vpop.f32.mrf.mxu0
      %v3166 = vadd.f32 0.0, %v3165
      %v3167 = vpop.f32.mrf.mxu0
      %3168 = vmatprep.mubr.bf16.mxu0 0
      %3169 = vmatmul.mubr.bf16.gmra.mxu0 %v3078
      %v3170 = vpop.f32.mrf.mxu0
      %v3171 = vadd.f32 0.0, %v3170
      %v3172 = vpop.f32.mrf.mxu0
      %v3173 = vpop.f32.mrf.mxu0
      %v3174 = vadd.f32 0.0, %v3173
      %v3175 = vpop.f32.mrf.mxu0
      %3176 = vdwg.mxu0
      %v3177 = vadd.f32 %v2929, %v3115
      %v3178 = vadd.f32 %v2932, %v3118
      %v3179 = vadd.f32 %v2937, %v3123
      %v3180 = vadd.f32 %v2940, %v3126
      %v3181 = vadd.f32 %v2945, %v3131
      %v3182 = vadd.f32 %v2948, %v3134
      %v3183 = vadd.f32 %v2953, %v3139
      %v3184 = vadd.f32 %v2956, %v3142
      %v3185 = vadd.f32 %v2961, %v3147
      %v3186 = vadd.f32 %v2964, %v3150
      %v3187 = vadd.f32 %v2969, %v3155
      %v3188 = vadd.f32 %v2972, %v3158
      %v3189 = vadd.f32 %v2977, %v3163
      %v3190 = vadd.f32 %v2980, %v3166
      %v3191 = vadd.f32 %v2985, %v3171
      %v3192 = vadd.f32 %v2988, %v3174
      %v3193 = vld [vmem:[%s5] sm:$0x1]
      %v3195 = vlaneseq
      %v3196 = vshrl.u32 %v3195, 7
      %v3197 = vsub.s32 0, %v3196
      %v3198 = vrot.slane %v3193, %v3197
      %v3200 = vadd.f32 %v3177, %v3198
      %v3201 = vadd.f32 %v3178, %v3198
      %v3202 = vadd.f32 %v3179, %v3198
      %v3203 = vadd.f32 %v3180, %v3198
      %v3204 = vadd.f32 %v3181, %v3198
      %v3205 = vadd.f32 %v3182, %v3198
      %v3206 = vadd.f32 %v3183, %v3198
      %v3207 = vadd.f32 %v3184, %v3198
      %v3208 = vadd.f32 %v3185, %v3198
      %v3209 = vadd.f32 %v3186, %v3198
      %v3210 = vadd.f32 %v3187, %v3198
      %v3211 = vadd.f32 %v3188, %v3198
      %v3212 = vadd.f32 %v3189, %v3198
      %v3213 = vadd.f32 %v3190, %v3198
      %v3214 = vadd.f32 %v3191, %v3198
      %v3215 = vadd.f32 %v3192, %v3198
      %3216 = vst.msk [vmem:[%s319] sm:$0xff] %vm2546, %v3200
      %3217 = vst.msk [vmem:[%s319 + $0x8] sm:$0xff] %vm2546, %v3201
      %3218 = vst.msk [vmem:[%s319 + $0x10] sm:$0xff] %vm2546, %v3202
      %3219 = vst.msk [vmem:[%s319 + $0x18] sm:$0xff] %vm2546, %v3203
      %3220 = vst.msk [vmem:[%s319 + $0x20] sm:$0xff] %vm2546, %v3204
      %3221 = vst.msk [vmem:[%s319 + $0x28] sm:$0xff] %vm2546, %v3205
      %3222 = vst.msk [vmem:[%s319 + $0x30] sm:$0xff] %vm2546, %v3206
      %3223 = vst.msk [vmem:[%s319 + $0x38] sm:$0xff] %vm2546, %v3207
      %3224 = vst.msk [vmem:[%s319 + $0x40] sm:$0xff] %vm2546, %v3208
      %3225 = vst.msk [vmem:[%s319 + $0x48] sm:$0xff] %vm2546, %v3209
      %3226 = vst.msk [vmem:[%s319 + $0x50] sm:$0xff] %vm2546, %v3210
      %3227 = vst.msk [vmem:[%s319 + $0x58] sm:$0xff] %vm2546, %v3211
      %3228 = vst.msk [vmem:[%s319 + $0x60] sm:$0xff] %vm2546, %v3212
      %3229 = vst.msk [vmem:[%s319 + $0x68] sm:$0xff] %vm2546, %v3213
      %3230 = vst.msk [vmem:[%s319 + $0x70] sm:$0xff] %vm2546, %v3214
      %3231 = vst.msk [vmem:[%s319 + $0x78] sm:$0xff] %vm2546, %v3215
      %s3232 = smul.u32 16, %s17
      %p3233 = scmp.lt.s32.totalorder %s3232, 127
      %s3234 = scalar_select %p3233, %s3232, 127
      %s3235 = smul.addr %s3234, 8
      %s3236 = scalar_lea.vmem %s6, %s3235
      // Predicated region
      $region45: #{invariant_point_attention.5} parent=43 // pred_check
        %p3237 = pneg %p181
      $region46: #{invariant_point_attention.5} parent=43 // pred_check_branch
        %3239 = sbr.rel (%p3237) target = $region48
      $region47: #{invariant_point_attention.5} parent=43 // pred_region
        %s3240 = smul.u32 16, %s17
      $region48: #{invariant_point_attention.5} parent=43 // pred_fallthru
        _
    $region44: #{invariant_point_attention.5} parent=5 // pred_fallthru
      _
    %p3241 = scmp.le.s32.totalorder 2, %s12
    // Predicated region
    $region49: #{invariant_point_attention.5} parent=5 // pred_check
      %p3242 = pneg %p3241
    $region50: #{invariant_point_attention.5} parent=5 // pred_check_branch
      %3244 = sbr.rel (%p3242) target = $region52
    $region51: #{invariant_point_attention.5} parent=5 // pred_region
      %s3245 = ssub.s32 %s12, 2
      // Predicated region
      $region53: #{invariant_point_attention.5} parent=51 // pred_check
        %p3246 = pneg %p187
      $region54: #{invariant_point_attention.5} parent=51 // pred_check_branch
        %3248 = sbr.rel (%p3246) target = $region56
      $region55: #{invariant_point_attention.5} parent=51 // pred_region
        %s3249 = smul.u32 16, %s18
        %p3250 = scmp.lt.s32.totalorder %s3249, 127
        %s3251 = scalar_select %p3250, %s3249, 127
        %s3252 = smul.addr %s3251, 8
        %s3253 = scalar_lea.vmem %s6, %s3252
      $region56: #{invariant_point_attention.5} parent=51 // pred_fallthru
        _
    $region52: #{invariant_point_attention.5} parent=5 // pred_fallthru
      _
  $region6: #{invariant_point_attention.5} parent=0 // loop_footer
    %s16 = sadd.s32 1, %s12
  $region7: #{invariant_point_attention.5} parent=0 // loop_footer_branch
    %11 = sbr.rel target = $region3
  $region8: #{invariant_point_attention.5} parent=0 // loop_exit
    _

</llo_original>
